<compile_context>
chip_gen: v6e
topology: v6e:2x2x1
jax: 0.10.0
libtpu: 0.0.40
codegen_flags: <defaults>
</compile_context>

<pallas_src>
import jax
import jax.numpy as jnp
import numpy as np
from jax.experimental import pallas as pl
from jax.experimental.pallas import tpu as pltpu


def _kdim_attn_kernel(x_ref, wqcs_ref, wkcs_ref, bsum_ref, wv_ref, bv_ref, o_ref):
    # x_ref   : (K, T, G) VMEM   -- input feature on leading axis, heads on lanes
    # wqcs_ref, wkcs_ref : (K,) SMEM f32  -- column sums of Wq / Wk
    # bsum_ref: (2,) SMEM f32             -- [sum(bq), sum(bk)]
    # wv_ref  : (K, K) SMEM f32           -- Wv as [out, in]
    # bv_ref  : (K,) SMEM f32
    # o_ref   : (K, T, G) VMEM
    Kd, T, G = x_ref.shape
    f32 = jnp.float32
    scale = 1.0 / (Kd ** 0.5)

    # Load x once as K lane-dense (T, G) slabs, exact f32.
    xs = [x_ref[i].astype(f32) for i in range(Kd)]

    # qsum[t,g] = sum_i x[i,t,g] * colsum(Wq)[i] + sum(bq)   (ksum analogous,
    # with the 1/sqrt(K) attention scale folded in).  Pure VPU scalar MACs.
    qsum = xs[0] * wqcs_ref[0]
    ksum = xs[0] * wkcs_ref[0]
    for i in range(1, Kd):
        qsum = qsum + xs[i] * wqcs_ref[i]
        ksum = ksum + xs[i] * wkcs_ref[i]
    qsum = qsum + bsum_ref[0]
    ksum = (ksum + bsum_ref[1]) * scale

    # v-projection: one (T, G) slab per output feature o, via lane-dense VPU
    # scalar-broadcast MACs (16-deep contraction is far too small for the MXU).
    vs = []
    for o in range(Kd):
        acc = xs[0] * wv_ref[o, 0]
        for i in range(1, Kd):
            acc = acc + xs[i] * wv_ref[o, i]
        vs.append(acc + bv_ref[o])          # vs[o][s, g] = v[head g, s, o]

    # Rank-1 softmax max:  max_s qsum*ksum[s] = max(qsum*max(ksum), qsum*min(ksum)).
    kmax = jnp.max(ksum, axis=0, keepdims=True)          # (1, G)
    kmin = jnp.min(ksum, axis=0, keepdims=True)          # (1, G)
    m = jnp.maximum(qsum * kmax, qsum * kmin)            # (T, G)

    # Stream over the key index s: never materialize (T, T, G) scores / e / weights.
    denom = None
    outs = [None] * Kd
    for s in range(T):
        e_s = jnp.exp(qsum * ksum[s][None, :] - m)       # (T, G), un-normalized
        denom = e_s if s == 0 else denom + e_s
        for o in range(Kd):
            term = e_s * vs[o][s][None, :]
            outs[o] = term if s == 0 else outs[o] + term

    # Deferred normalization: EUP approximate reciprocal + one Newton refinement
    # (keeps the whole kernel at full f32 accuracy while the divide stays off VPU).
    inv = pl.reciprocal(denom, approx=True)
    inv = inv * (2.0 - denom * inv)
    for o in range(Kd):
        o_ref[o] = (outs[o] * inv).astype(o_ref.dtype)


def _tpu_vmem_capacity_bytes():
    cap = 128 * 1024 * 1024
    try:
        info = pltpu.get_tpu_info()
        cap = int(getattr(info, "vmem_capacity_bytes", cap) or cap)
    except Exception:
        pass
    return cap


def _pick_group(bc, t, k, itemsize, vmem_cap):
    """Heads packed per grid step == lane width G (multiple of 128) of every block."""
    # Per-head working set: double-buffered in/out blocks + f32 slab temporaries
    # (x, v, out accumulators, qsum/ksum/m/denom/e_s).
    per_head = 2 * 2 * t * k * itemsize + 4 * (3 * t * k + 8 * t)
    # ~8 MiB-class working set on v7x (64 MiB VMEM), larger on v5e/v6e (128 MiB).
    budget = 8 * 1024 * 1024 if vmem_cap <= 64 * 1024 * 1024 else 16 * 1024 * 1024
    g = max(128, (budget // max(per_head, 1)) // 128 * 128)
    # The slab loops are fully unrolled; cap G to keep the kernel body a sane size
    # (the kernel is VALU-bound, so the ~0.35us/step overhead is already <10% here).
    g = min(g, 512)
    # Never pad the head axis beyond the next multiple of 128.
    g = min(g, pl.cdiv(bc, 128) * 128)
    # With enough work, keep >= 2 grid steps so the "parallel" axis shards across
    # both TensorCores on v7x (harmless on single-TC v5e/v6e).
    if bc > 2 * 128:
        g = min(g, pl.cdiv(pl.cdiv(bc, 2), 128) * 128)
    return g


@jax.jit
def kdim_self_attention(x, wq, bq, wk, bk, wv, bv):
    """Fused KDimSelfAttention forward.  x: (B, C, T, K); W*: (K, K) [out,in]; b*: (K,)."""
    B, C, T, K = x.shape
    BC = B * C
    itemsize = jnp.dtype(x.dtype).itemsize
    vmem_cap = _tpu_vmem_capacity_bytes()
    G = _pick_group(BC, T, K, itemsize, vmem_cap)
    pad = (-BC) % G
    BCp = BC + pad
    n_tiles = BCp // G

    # Layout plumbing: heads on the last (lane) axis -> (K, T, BCp).
    x_t = jnp.transpose(x.reshape(BC, T, K), (2, 1, 0))
    if pad:
        x_t = jnp.pad(x_t, ((0, 0), (0, 0), (0, pad)))

    # einsum('bcti,bcsj->bcts') sums q over i and k over j, so only the column
    # sums of Wq / Wk and the summed biases are needed; precompute them once here.
    f32 = jnp.float32
    wq_cs = jnp.sum(wq.astype(f32), axis=0)                               # (K,)
    wk_cs = jnp.sum(wk.astype(f32), axis=0)                               # (K,)
    b_sums = jnp.stack([jnp.sum(bq.astype(f32)), jnp.sum(bk.astype(f32))])  # (2,)
    wv_f = wv.astype(f32)                                                 # (K, K)
    bv_f = bv.astype(f32)                                                 # (K,)

    cost = pl.CostEstimate(
        flops=int(BCp * (2 * T * K * K + 2 * T * T * K + 3 * T * T + 6 * T * K)),
        transcendentals=int(BCp * (T * T + T)),
        bytes_accessed=int(2 * BCp * T * K * itemsize + (K * K + 4 * K + 2) * 4),
    )

    smem = pl.BlockSpec(memory_space=pltpu.MemorySpace.SMEM)
    out_t = pl.pallas_call(
        _kdim_attn_kernel,
        out_shape=jax.ShapeDtypeStruct((K, T, BCp), x.dtype),
        grid=(n_tiles,),
        in_specs=[
            pl.BlockSpec((K, T, G), lambda i: (0, 0, i)),
            smem,   # colsum(Wq)
            smem,   # colsum(Wk)
            smem,   # [sum(bq), sum(bk)]
            smem,   # Wv
            smem,   # bv
        ],
        out_specs=pl.BlockSpec((K, T, G), lambda i: (0, 0, i)),
        compiler_params=pltpu.CompilerParams(
            dimension_semantics=("parallel",),
            vmem_limit_bytes=int(min(96 * 1024 * 1024, (vmem_cap * 3) // 4))),
        cost_estimate=cost,
    )(x_t, wq_cs, wk_cs, b_sums, wv_f, bv_f)

    return jnp.transpose(out_t[:, :, :BC], (2, 1, 0)).reshape(B, C, T, K)


def _reference_np(x, wq, bq, wk, bk, wv, bv):
    """Float64 numpy reference mirroring the torch forward exactly."""
    x = np.asarray(x, np.float64)
    wq, bq = np.asarray(wq, np.float64), np.asarray(bq, np.float64)
    wk, bk = np.asarray(wk, np.float64), np.asarray(bk, np.float64)
    wv, bv = np.asarray(wv, np.float64), np.asarray(bv, np.float64)
    K = x.shape[-1]
    q = x @ wq.T + bq
    k = x @ wk.T + bk
    v = x @ wv.T + bv
    scores = np.einsum('bcti,bcsj->bcts', q, k) / np.sqrt(K)
    scores = scores - scores.max(-1, keepdims=True)
    e = np.exp(scores)
    w = e / e.sum(-1, keepdims=True)
    return np.einsum('bcts,bcsj->bctj', w, v)


if __name__ == "__main__":
    key = jax.random.PRNGKey(0)
    kx, k1, k2, k3, k4, k5, k6 = jax.random.split(key, 7)

    B, C, T, K = 2, 4, 16, 16
    bound = 1.0 / (K ** 0.5)          # torch Linear default init scale
    x = jax.random.normal(kx, (B, C, T, K), dtype=jnp.float32)
    wq = jax.random.uniform(k1, (K, K), jnp.float32, -bound, bound)
    wk = jax.random.uniform(k2, (K, K), jnp.float32, -bound, bound)
    wv = jax.random.uniform(k3, (K, K), jnp.float32, -bound, bound)
    bq = jax.random.uniform(k4, (K,), jnp.float32, -bound, bound)
    bk = jax.random.uniform(k5, (K,), jnp.float32, -bound, bound)
    bv = jax.random.uniform(k6, (K,), jnp.float32, -bound, bound)

    out = kdim_self_attention(x, wq, bq, wk, bk, wv, bv)
    out = jax.block_until_ready(out)
    out_np = np.asarray(out)

    ref = _reference_np(x, wq, bq, wk, bk, wv, bv)
    # Whole kernel is exact f32 (VPU only; no MXU bf16 passes); the reciprocal is
    # Newton-refined, so a tight tolerance holds.
    assert out_np.shape == (B, C, T, K)
    assert np.all(np.isfinite(out_np))
    assert np.allclose(out_np, ref, rtol=1e-3, atol=1e-3), \
        float(np.max(np.abs(out_np - ref)))

    print("KERNEL_OK")
</pallas_src>

<mosaic_0001>
module attributes {stable_mosaic.version = 11 : i64} {
  func.func @_kdim_attn_kernel(%arg0: i32, %arg1: memref<16x16x128xf32, #tpu.memory_space<vmem>>, %arg2: memref<16xf32, #tpu.memory_space<smem>>, %arg3: memref<16xf32, #tpu.memory_space<smem>>, %arg4: memref<2xf32, #tpu.memory_space<smem>>, %arg5: memref<16x16xf32, #tpu.memory_space<smem>>, %arg6: memref<16xf32, #tpu.memory_space<smem>>, %arg7: memref<16x16x128xf32, #tpu.memory_space<vmem>>) attributes {dimension_semantics = [#tpu.dimension_semantics<parallel>], iteration_bounds = array<i64: 1>, scalar_prefetch = 0 : i64, scratch_operands = 0 : i64, tpu.core_type = #tpu.core_type<tc>, window_params = [{transform_indices = @transform_0, window_bounds = array<i64: 16, 16, 128>}, {transform_indices = @transform_1, window_bounds = array<i64: 16>}, {transform_indices = @transform_2, window_bounds = array<i64: 16>}, {transform_indices = @transform_3, window_bounds = array<i64: 2>}, {transform_indices = @transform_4, window_bounds = array<i64: 16, 16>}, {transform_indices = @transform_5, window_bounds = array<i64: 16>}, {transform_indices = @transform_6, window_bounds = array<i64: 16, 16, 128>}]} {
    %c0 = arith.constant 0 : index
    %c0_0 = arith.constant 0 : index
    %c0_1 = arith.constant 0 : index
    %0 = vector.load %arg1[%c0, %c0_0, %c0_1] : memref<16x16x128xf32, #tpu.memory_space<vmem>>, vector<1x16x128xf32>
    %1 = vector.shape_cast %0 : vector<1x16x128xf32> to vector<16x128xf32>
    %c1 = arith.constant 1 : index
    %c0_2 = arith.constant 0 : index
    %c0_3 = arith.constant 0 : index
    %2 = vector.load %arg1[%c1, %c0_2, %c0_3] : memref<16x16x128xf32, #tpu.memory_space<vmem>>, vector<1x16x128xf32>
    %3 = vector.shape_cast %2 : vector<1x16x128xf32> to vector<16x128xf32>
    %c2 = arith.constant 2 : index
    %c0_4 = arith.constant 0 : index
    %c0_5 = arith.constant 0 : index
    %4 = vector.load %arg1[%c2, %c0_4, %c0_5] : memref<16x16x128xf32, #tpu.memory_space<vmem>>, vector<1x16x128xf32>
    %5 = vector.shape_cast %4 : vector<1x16x128xf32> to vector<16x128xf32>
    %c3 = arith.constant 3 : index
    %c0_6 = arith.constant 0 : index
    %c0_7 = arith.constant 0 : index
    %6 = vector.load %arg1[%c3, %c0_6, %c0_7] : memref<16x16x128xf32, #tpu.memory_space<vmem>>, vector<1x16x128xf32>
    %7 = vector.shape_cast %6 : vector<1x16x128xf32> to vector<16x128xf32>
    %c4 = arith.constant 4 : index
    %c0_8 = arith.constant 0 : index
    %c0_9 = arith.constant 0 : index
    %8 = vector.load %arg1[%c4, %c0_8, %c0_9] : memref<16x16x128xf32, #tpu.memory_space<vmem>>, vector<1x16x128xf32>
    %9 = vector.shape_cast %8 : vector<1x16x128xf32> to vector<16x128xf32>
    %c5 = arith.constant 5 : index
    %c0_10 = arith.constant 0 : index
    %c0_11 = arith.constant 0 : index
    %10 = vector.load %arg1[%c5, %c0_10, %c0_11] : memref<16x16x128xf32, #tpu.memory_space<vmem>>, vector<1x16x128xf32>
    %11 = vector.shape_cast %10 : vector<1x16x128xf32> to vector<16x128xf32>
    %c6 = arith.constant 6 : index
    %c0_12 = arith.constant 0 : index
    %c0_13 = arith.constant 0 : index
    %12 = vector.load %arg1[%c6, %c0_12, %c0_13] : memref<16x16x128xf32, #tpu.memory_space<vmem>>, vector<1x16x128xf32>
    %13 = vector.shape_cast %12 : vector<1x16x128xf32> to vector<16x128xf32>
    %c7 = arith.constant 7 : index
    %c0_14 = arith.constant 0 : index
    %c0_15 = arith.constant 0 : index
    %14 = vector.load %arg1[%c7, %c0_14, %c0_15] : memref<16x16x128xf32, #tpu.memory_space<vmem>>, vector<1x16x128xf32>
    %15 = vector.shape_cast %14 : vector<1x16x128xf32> to vector<16x128xf32>
    %c8 = arith.constant 8 : index
    %c0_16 = arith.constant 0 : index
    %c0_17 = arith.constant 0 : index
    %16 = vector.load %arg1[%c8, %c0_16, %c0_17] : memref<16x16x128xf32, #tpu.memory_space<vmem>>, vector<1x16x128xf32>
    %17 = vector.shape_cast %16 : vector<1x16x128xf32> to vector<16x128xf32>
    %c9 = arith.constant 9 : index
    %c0_18 = arith.constant 0 : index
    %c0_19 = arith.constant 0 : index
    %18 = vector.load %arg1[%c9, %c0_18, %c0_19] : memref<16x16x128xf32, #tpu.memory_space<vmem>>, vector<1x16x128xf32>
    %19 = vector.shape_cast %18 : vector<1x16x128xf32> to vector<16x128xf32>
    %c10 = arith.constant 10 : index
    %c0_20 = arith.constant 0 : index
    %c0_21 = arith.constant 0 : index
    %20 = vector.load %arg1[%c10, %c0_20, %c0_21] : memref<16x16x128xf32, #tpu.memory_space<vmem>>, vector<1x16x128xf32>
    %21 = vector.shape_cast %20 : vector<1x16x128xf32> to vector<16x128xf32>
    %c11 = arith.constant 11 : index
    %c0_22 = arith.constant 0 : index
    %c0_23 = arith.constant 0 : index
    %22 = vector.load %arg1[%c11, %c0_22, %c0_23] : memref<16x16x128xf32, #tpu.memory_space<vmem>>, vector<1x16x128xf32>
    %23 = vector.shape_cast %22 : vector<1x16x128xf32> to vector<16x128xf32>
    %c12 = arith.constant 12 : index
    %c0_24 = arith.constant 0 : index
    %c0_25 = arith.constant 0 : index
    %24 = vector.load %arg1[%c12, %c0_24, %c0_25] : memref<16x16x128xf32, #tpu.memory_space<vmem>>, vector<1x16x128xf32>
    %25 = vector.shape_cast %24 : vector<1x16x128xf32> to vector<16x128xf32>
    %c13 = arith.constant 13 : index
    %c0_26 = arith.constant 0 : index
    %c0_27 = arith.constant 0 : index
    %26 = vector.load %arg1[%c13, %c0_26, %c0_27] : memref<16x16x128xf32, #tpu.memory_space<vmem>>, vector<1x16x128xf32>
    %27 = vector.shape_cast %26 : vector<1x16x128xf32> to vector<16x128xf32>
    %c14 = arith.constant 14 : index
    %c0_28 = arith.constant 0 : index
    %c0_29 = arith.constant 0 : index
    %28 = vector.load %arg1[%c14, %c0_28, %c0_29] : memref<16x16x128xf32, #tpu.memory_space<vmem>>, vector<1x16x128xf32>
    %29 = vector.shape_cast %28 : vector<1x16x128xf32> to vector<16x128xf32>
    %c15 = arith.constant 15 : index
    %c0_30 = arith.constant 0 : index
    %c0_31 = arith.constant 0 : index
    %30 = vector.load %arg1[%c15, %c0_30, %c0_31] : memref<16x16x128xf32, #tpu.memory_space<vmem>>, vector<1x16x128xf32>
    %31 = vector.shape_cast %30 : vector<1x16x128xf32> to vector<16x128xf32>
    %c0_32 = arith.constant 0 : index
    %32 = memref.load %arg2[%c0_32] : memref<16xf32, #tpu.memory_space<smem>>
    %33 = vector.broadcast %32 : f32 to vector<16x128xf32>
    %34 = arith.mulf %1, %33 : vector<16x128xf32>
    %c0_33 = arith.constant 0 : index
    %35 = memref.load %arg3[%c0_33] : memref<16xf32, #tpu.memory_space<smem>>
    %36 = vector.broadcast %35 : f32 to vector<16x128xf32>
    %37 = arith.mulf %1, %36 : vector<16x128xf32>
    %c1_34 = arith.constant 1 : index
    %38 = memref.load %arg2[%c1_34] : memref<16xf32, #tpu.memory_space<smem>>
    %39 = vector.broadcast %38 : f32 to vector<16x128xf32>
    %40 = arith.mulf %3, %39 : vector<16x128xf32>
    %41 = arith.addf %34, %40 : vector<16x128xf32>
    %c1_35 = arith.constant 1 : index
    %42 = memref.load %arg3[%c1_35] : memref<16xf32, #tpu.memory_space<smem>>
    %43 = vector.broadcast %42 : f32 to vector<16x128xf32>
    %44 = arith.mulf %3, %43 : vector<16x128xf32>
    %45 = arith.addf %37, %44 : vector<16x128xf32>
    %c2_36 = arith.constant 2 : index
    %46 = memref.load %arg2[%c2_36] : memref<16xf32, #tpu.memory_space<smem>>
    %47 = vector.broadcast %46 : f32 to vector<16x128xf32>
    %48 = arith.mulf %5, %47 : vector<16x128xf32>
    %49 = arith.addf %41, %48 : vector<16x128xf32>
    %c2_37 = arith.constant 2 : index
    %50 = memref.load %arg3[%c2_37] : memref<16xf32, #tpu.memory_space<smem>>
    %51 = vector.broadcast %50 : f32 to vector<16x128xf32>
    %52 = arith.mulf %5, %51 : vector<16x128xf32>
    %53 = arith.addf %45, %52 : vector<16x128xf32>
    %c3_38 = arith.constant 3 : index
    %54 = memref.load %arg2[%c3_38] : memref<16xf32, #tpu.memory_space<smem>>
    %55 = vector.broadcast %54 : f32 to vector<16x128xf32>
    %56 = arith.mulf %7, %55 : vector<16x128xf32>
    %57 = arith.addf %49, %56 : vector<16x128xf32>
    %c3_39 = arith.constant 3 : index
    %58 = memref.load %arg3[%c3_39] : memref<16xf32, #tpu.memory_space<smem>>
    %59 = vector.broadcast %58 : f32 to vector<16x128xf32>
    %60 = arith.mulf %7, %59 : vector<16x128xf32>
    %61 = arith.addf %53, %60 : vector<16x128xf32>
    %c4_40 = arith.constant 4 : index
    %62 = memref.load %arg2[%c4_40] : memref<16xf32, #tpu.memory_space<smem>>
    %63 = vector.broadcast %62 : f32 to vector<16x128xf32>
    %64 = arith.mulf %9, %63 : vector<16x128xf32>
    %65 = arith.addf %57, %64 : vector<16x128xf32>
    %c4_41 = arith.constant 4 : index
    %66 = memref.load %arg3[%c4_41] : memref<16xf32, #tpu.memory_space<smem>>
    %67 = vector.broadcast %66 : f32 to vector<16x128xf32>
    %68 = arith.mulf %9, %67 : vector<16x128xf32>
    %69 = arith.addf %61, %68 : vector<16x128xf32>
    %c5_42 = arith.constant 5 : index
    %70 = memref.load %arg2[%c5_42] : memref<16xf32, #tpu.memory_space<smem>>
    %71 = vector.broadcast %70 : f32 to vector<16x128xf32>
    %72 = arith.mulf %11, %71 : vector<16x128xf32>
    %73 = arith.addf %65, %72 : vector<16x128xf32>
    %c5_43 = arith.constant 5 : index
    %74 = memref.load %arg3[%c5_43] : memref<16xf32, #tpu.memory_space<smem>>
    %75 = vector.broadcast %74 : f32 to vector<16x128xf32>
    %76 = arith.mulf %11, %75 : vector<16x128xf32>
    %77 = arith.addf %69, %76 : vector<16x128xf32>
    %c6_44 = arith.constant 6 : index
    %78 = memref.load %arg2[%c6_44] : memref<16xf32, #tpu.memory_space<smem>>
    %79 = vector.broadcast %78 : f32 to vector<16x128xf32>
    %80 = arith.mulf %13, %79 : vector<16x128xf32>
    %81 = arith.addf %73, %80 : vector<16x128xf32>
    %c6_45 = arith.constant 6 : index
    %82 = memref.load %arg3[%c6_45] : memref<16xf32, #tpu.memory_space<smem>>
    %83 = vector.broadcast %82 : f32 to vector<16x128xf32>
    %84 = arith.mulf %13, %83 : vector<16x128xf32>
    %85 = arith.addf %77, %84 : vector<16x128xf32>
    %c7_46 = arith.constant 7 : index
    %86 = memref.load %arg2[%c7_46] : memref<16xf32, #tpu.memory_space<smem>>
    %87 = vector.broadcast %86 : f32 to vector<16x128xf32>
    %88 = arith.mulf %15, %87 : vector<16x128xf32>
    %89 = arith.addf %81, %88 : vector<16x128xf32>
    %c7_47 = arith.constant 7 : index
    %90 = memref.load %arg3[%c7_47] : memref<16xf32, #tpu.memory_space<smem>>
    %91 = vector.broadcast %90 : f32 to vector<16x128xf32>
    %92 = arith.mulf %15, %91 : vector<16x128xf32>
    %93 = arith.addf %85, %92 : vector<16x128xf32>
    %c8_48 = arith.constant 8 : index
    %94 = memref.load %arg2[%c8_48] : memref<16xf32, #tpu.memory_space<smem>>
    %95 = vector.broadcast %94 : f32 to vector<16x128xf32>
    %96 = arith.mulf %17, %95 : vector<16x128xf32>
    %97 = arith.addf %89, %96 : vector<16x128xf32>
    %c8_49 = arith.constant 8 : index
    %98 = memref.load %arg3[%c8_49] : memref<16xf32, #tpu.memory_space<smem>>
    %99 = vector.broadcast %98 : f32 to vector<16x128xf32>
    %100 = arith.mulf %17, %99 : vector<16x128xf32>
    %101 = arith.addf %93, %100 : vector<16x128xf32>
    %c9_50 = arith.constant 9 : index
    %102 = memref.load %arg2[%c9_50] : memref<16xf32, #tpu.memory_space<smem>>
    %103 = vector.broadcast %102 : f32 to vector<16x128xf32>
    %104 = arith.mulf %19, %103 : vector<16x128xf32>
    %105 = arith.addf %97, %104 : vector<16x128xf32>
    %c9_51 = arith.constant 9 : index
    %106 = memref.load %arg3[%c9_51] : memref<16xf32, #tpu.memory_space<smem>>
    %107 = vector.broadcast %106 : f32 to vector<16x128xf32>
    %108 = arith.mulf %19, %107 : vector<16x128xf32>
    %109 = arith.addf %101, %108 : vector<16x128xf32>
    %c10_52 = arith.constant 10 : index
    %110 = memref.load %arg2[%c10_52] : memref<16xf32, #tpu.memory_space<smem>>
    %111 = vector.broadcast %110 : f32 to vector<16x128xf32>
    %112 = arith.mulf %21, %111 : vector<16x128xf32>
    %113 = arith.addf %105, %112 : vector<16x128xf32>
    %c10_53 = arith.constant 10 : index
    %114 = memref.load %arg3[%c10_53] : memref<16xf32, #tpu.memory_space<smem>>
    %115 = vector.broadcast %114 : f32 to vector<16x128xf32>
    %116 = arith.mulf %21, %115 : vector<16x128xf32>
    %117 = arith.addf %109, %116 : vector<16x128xf32>
    %c11_54 = arith.constant 11 : index
    %118 = memref.load %arg2[%c11_54] : memref<16xf32, #tpu.memory_space<smem>>
    %119 = vector.broadcast %118 : f32 to vector<16x128xf32>
    %120 = arith.mulf %23, %119 : vector<16x128xf32>
    %121 = arith.addf %113, %120 : vector<16x128xf32>
    %c11_55 = arith.constant 11 : index
    %122 = memref.load %arg3[%c11_55] : memref<16xf32, #tpu.memory_space<smem>>
    %123 = vector.broadcast %122 : f32 to vector<16x128xf32>
    %124 = arith.mulf %23, %123 : vector<16x128xf32>
    %125 = arith.addf %117, %124 : vector<16x128xf32>
    %c12_56 = arith.constant 12 : index
    %126 = memref.load %arg2[%c12_56] : memref<16xf32, #tpu.memory_space<smem>>
    %127 = vector.broadcast %126 : f32 to vector<16x128xf32>
    %128 = arith.mulf %25, %127 : vector<16x128xf32>
    %129 = arith.addf %121, %128 : vector<16x128xf32>
    %c12_57 = arith.constant 12 : index
    %130 = memref.load %arg3[%c12_57] : memref<16xf32, #tpu.memory_space<smem>>
    %131 = vector.broadcast %130 : f32 to vector<16x128xf32>
    %132 = arith.mulf %25, %131 : vector<16x128xf32>
    %133 = arith.addf %125, %132 : vector<16x128xf32>
    %c13_58 = arith.constant 13 : index
    %134 = memref.load %arg2[%c13_58] : memref<16xf32, #tpu.memory_space<smem>>
    %135 = vector.broadcast %134 : f32 to vector<16x128xf32>
    %136 = arith.mulf %27, %135 : vector<16x128xf32>
    %137 = arith.addf %129, %136 : vector<16x128xf32>
    %c13_59 = arith.constant 13 : index
    %138 = memref.load %arg3[%c13_59] : memref<16xf32, #tpu.memory_space<smem>>
    %139 = vector.broadcast %138 : f32 to vector<16x128xf32>
    %140 = arith.mulf %27, %139 : vector<16x128xf32>
    %141 = arith.addf %133, %140 : vector<16x128xf32>
    %c14_60 = arith.constant 14 : index
    %142 = memref.load %arg2[%c14_60] : memref<16xf32, #tpu.memory_space<smem>>
    %143 = vector.broadcast %142 : f32 to vector<16x128xf32>
    %144 = arith.mulf %29, %143 : vector<16x128xf32>
    %145 = arith.addf %137, %144 : vector<16x128xf32>
    %c14_61 = arith.constant 14 : index
    %146 = memref.load %arg3[%c14_61] : memref<16xf32, #tpu.memory_space<smem>>
    %147 = vector.broadcast %146 : f32 to vector<16x128xf32>
    %148 = arith.mulf %29, %147 : vector<16x128xf32>
    %149 = arith.addf %141, %148 : vector<16x128xf32>
    %c15_62 = arith.constant 15 : index
    %150 = memref.load %arg2[%c15_62] : memref<16xf32, #tpu.memory_space<smem>>
    %151 = vector.broadcast %150 : f32 to vector<16x128xf32>
    %152 = arith.mulf %31, %151 : vector<16x128xf32>
    %153 = arith.addf %145, %152 : vector<16x128xf32>
    %c15_63 = arith.constant 15 : index
    %154 = memref.load %arg3[%c15_63] : memref<16xf32, #tpu.memory_space<smem>>
    %155 = vector.broadcast %154 : f32 to vector<16x128xf32>
    %156 = arith.mulf %31, %155 : vector<16x128xf32>
    %157 = arith.addf %149, %156 : vector<16x128xf32>
    %c0_64 = arith.constant 0 : index
    %158 = memref.load %arg4[%c0_64] : memref<2xf32, #tpu.memory_space<smem>>
    %159 = vector.broadcast %158 : f32 to vector<16x128xf32>
    %160 = arith.addf %153, %159 : vector<16x128xf32>
    %c1_65 = arith.constant 1 : index
    %161 = memref.load %arg4[%c1_65] : memref<2xf32, #tpu.memory_space<smem>>
    %162 = vector.broadcast %161 : f32 to vector<16x128xf32>
    %163 = arith.addf %157, %162 : vector<16x128xf32>
    %cst = arith.constant 2.500000e-01 : f32
    %164 = vector.broadcast %cst : f32 to vector<16x128xf32>
    %165 = arith.mulf %163, %164 : vector<16x128xf32>
    %c0_66 = arith.constant 0 : index
    %c0_67 = arith.constant 0 : index
    %166 = memref.load %arg5[%c0_66, %c0_67] : memref<16x16xf32, #tpu.memory_space<smem>>
    %167 = vector.broadcast %166 : f32 to vector<16x128xf32>
    %168 = arith.mulf %1, %167 : vector<16x128xf32>
    %c0_68 = arith.constant 0 : index
    %c1_69 = arith.constant 1 : index
    %169 = memref.load %arg5[%c0_68, %c1_69] : memref<16x16xf32, #tpu.memory_space<smem>>
    %170 = vector.broadcast %169 : f32 to vector<16x128xf32>
    %171 = arith.mulf %3, %170 : vector<16x128xf32>
    %172 = arith.addf %168, %171 : vector<16x128xf32>
    %c0_70 = arith.constant 0 : index
    %c2_71 = arith.constant 2 : index
    %173 = memref.load %arg5[%c0_70, %c2_71] : memref<16x16xf32, #tpu.memory_space<smem>>
    %174 = vector.broadcast %173 : f32 to vector<16x128xf32>
    %175 = arith.mulf %5, %174 : vector<16x128xf32>
    %176 = arith.addf %172, %175 : vector<16x128xf32>
    %c0_72 = arith.constant 0 : index
    %c3_73 = arith.constant 3 : index
    %177 = memref.load %arg5[%c0_72, %c3_73] : memref<16x16xf32, #tpu.memory_space<smem>>
    %178 = vector.broadcast %177 : f32 to vector<16x128xf32>
    %179 = arith.mulf %7, %178 : vector<16x128xf32>
    %180 = arith.addf %176, %179 : vector<16x128xf32>
    %c0_74 = arith.constant 0 : index
    %c4_75 = arith.constant 4 : index
    %181 = memref.load %arg5[%c0_74, %c4_75] : memref<16x16xf32, #tpu.memory_space<smem>>
    %182 = vector.broadcast %181 : f32 to vector<16x128xf32>
    %183 = arith.mulf %9, %182 : vector<16x128xf32>
    %184 = arith.addf %180, %183 : vector<16x128xf32>
    %c0_76 = arith.constant 0 : index
    %c5_77 = arith.constant 5 : index
    %185 = memref.load %arg5[%c0_76, %c5_77] : memref<16x16xf32, #tpu.memory_space<smem>>
    %186 = vector.broadcast %185 : f32 to vector<16x128xf32>
    %187 = arith.mulf %11, %186 : vector<16x128xf32>
    %188 = arith.addf %184, %187 : vector<16x128xf32>
    %c0_78 = arith.constant 0 : index
    %c6_79 = arith.constant 6 : index
    %189 = memref.load %arg5[%c0_78, %c6_79] : memref<16x16xf32, #tpu.memory_space<smem>>
    %190 = vector.broadcast %189 : f32 to vector<16x128xf32>
    %191 = arith.mulf %13, %190 : vector<16x128xf32>
    %192 = arith.addf %188, %191 : vector<16x128xf32>
    %c0_80 = arith.constant 0 : index
    %c7_81 = arith.constant 7 : index
    %193 = memref.load %arg5[%c0_80, %c7_81] : memref<16x16xf32, #tpu.memory_space<smem>>
    %194 = vector.broadcast %193 : f32 to vector<16x128xf32>
    %195 = arith.mulf %15, %194 : vector<16x128xf32>
    %196 = arith.addf %192, %195 : vector<16x128xf32>
    %c0_82 = arith.constant 0 : index
    %c8_83 = arith.constant 8 : index
    %197 = memref.load %arg5[%c0_82, %c8_83] : memref<16x16xf32, #tpu.memory_space<smem>>
    %198 = vector.broadcast %197 : f32 to vector<16x128xf32>
    %199 = arith.mulf %17, %198 : vector<16x128xf32>
    %200 = arith.addf %196, %199 : vector<16x128xf32>
    %c0_84 = arith.constant 0 : index
    %c9_85 = arith.constant 9 : index
    %201 = memref.load %arg5[%c0_84, %c9_85] : memref<16x16xf32, #tpu.memory_space<smem>>
    %202 = vector.broadcast %201 : f32 to vector<16x128xf32>
    %203 = arith.mulf %19, %202 : vector<16x128xf32>
    %204 = arith.addf %200, %203 : vector<16x128xf32>
    %c0_86 = arith.constant 0 : index
    %c10_87 = arith.constant 10 : index
    %205 = memref.load %arg5[%c0_86, %c10_87] : memref<16x16xf32, #tpu.memory_space<smem>>
    %206 = vector.broadcast %205 : f32 to vector<16x128xf32>
    %207 = arith.mulf %21, %206 : vector<16x128xf32>
    %208 = arith.addf %204, %207 : vector<16x128xf32>
    %c0_88 = arith.constant 0 : index
    %c11_89 = arith.constant 11 : index
    %209 = memref.load %arg5[%c0_88, %c11_89] : memref<16x16xf32, #tpu.memory_space<smem>>
    %210 = vector.broadcast %209 : f32 to vector<16x128xf32>
    %211 = arith.mulf %23, %210 : vector<16x128xf32>
    %212 = arith.addf %208, %211 : vector<16x128xf32>
    %c0_90 = arith.constant 0 : index
    %c12_91 = arith.constant 12 : index
    %213 = memref.load %arg5[%c0_90, %c12_91] : memref<16x16xf32, #tpu.memory_space<smem>>
    %214 = vector.broadcast %213 : f32 to vector<16x128xf32>
    %215 = arith.mulf %25, %214 : vector<16x128xf32>
    %216 = arith.addf %212, %215 : vector<16x128xf32>
    %c0_92 = arith.constant 0 : index
    %c13_93 = arith.constant 13 : index
    %217 = memref.load %arg5[%c0_92, %c13_93] : memref<16x16xf32, #tpu.memory_space<smem>>
    %218 = vector.broadcast %217 : f32 to vector<16x128xf32>
    %219 = arith.mulf %27, %218 : vector<16x128xf32>
    %220 = arith.addf %216, %219 : vector<16x128xf32>
    %c0_94 = arith.constant 0 : index
    %c14_95 = arith.constant 14 : index
    %221 = memref.load %arg5[%c0_94, %c14_95] : memref<16x16xf32, #tpu.memory_space<smem>>
    %222 = vector.broadcast %221 : f32 to vector<16x128xf32>
    %223 = arith.mulf %29, %222 : vector<16x128xf32>
    %224 = arith.addf %220, %223 : vector<16x128xf32>
    %c0_96 = arith.constant 0 : index
    %c15_97 = arith.constant 15 : index
    %225 = memref.load %arg5[%c0_96, %c15_97] : memref<16x16xf32, #tpu.memory_space<smem>>
    %226 = vector.broadcast %225 : f32 to vector<16x128xf32>
    %227 = arith.mulf %31, %226 : vector<16x128xf32>
    %228 = arith.addf %224, %227 : vector<16x128xf32>
    %c0_98 = arith.constant 0 : index
    %229 = memref.load %arg6[%c0_98] : memref<16xf32, #tpu.memory_space<smem>>
    %230 = vector.broadcast %229 : f32 to vector<16x128xf32>
    %231 = arith.addf %228, %230 : vector<16x128xf32>
    %c1_99 = arith.constant 1 : index
    %c0_100 = arith.constant 0 : index
    %232 = memref.load %arg5[%c1_99, %c0_100] : memref<16x16xf32, #tpu.memory_space<smem>>
    %233 = vector.broadcast %232 : f32 to vector<16x128xf32>
    %234 = arith.mulf %1, %233 : vector<16x128xf32>
    %c1_101 = arith.constant 1 : index
    %c1_102 = arith.constant 1 : index
    %235 = memref.load %arg5[%c1_101, %c1_102] : memref<16x16xf32, #tpu.memory_space<smem>>
    %236 = vector.broadcast %235 : f32 to vector<16x128xf32>
    %237 = arith.mulf %3, %236 : vector<16x128xf32>
    %238 = arith.addf %234, %237 : vector<16x128xf32>
    %c1_103 = arith.constant 1 : index
    %c2_104 = arith.constant 2 : index
    %239 = memref.load %arg5[%c1_103, %c2_104] : memref<16x16xf32, #tpu.memory_space<smem>>
    %240 = vector.broadcast %239 : f32 to vector<16x128xf32>
    %241 = arith.mulf %5, %240 : vector<16x128xf32>
    %242 = arith.addf %238, %241 : vector<16x128xf32>
    %c1_105 = arith.constant 1 : index
    %c3_106 = arith.constant 3 : index
    %243 = memref.load %arg5[%c1_105, %c3_106] : memref<16x16xf32, #tpu.memory_space<smem>>
    %244 = vector.broadcast %243 : f32 to vector<16x128xf32>
    %245 = arith.mulf %7, %244 : vector<16x128xf32>
    %246 = arith.addf %242, %245 : vector<16x128xf32>
    %c1_107 = arith.constant 1 : index
    %c4_108 = arith.constant 4 : index
    %247 = memref.load %arg5[%c1_107, %c4_108] : memref<16x16xf32, #tpu.memory_space<smem>>
    %248 = vector.broadcast %247 : f32 to vector<16x128xf32>
    %249 = arith.mulf %9, %248 : vector<16x128xf32>
    %250 = arith.addf %246, %249 : vector<16x128xf32>
    %c1_109 = arith.constant 1 : index
    %c5_110 = arith.constant 5 : index
    %251 = memref.load %arg5[%c1_109, %c5_110] : memref<16x16xf32, #tpu.memory_space<smem>>
    %252 = vector.broadcast %251 : f32 to vector<16x128xf32>
    %253 = arith.mulf %11, %252 : vector<16x128xf32>
    %254 = arith.addf %250, %253 : vector<16x128xf32>
    %c1_111 = arith.constant 1 : index
    %c6_112 = arith.constant 6 : index
    %255 = memref.load %arg5[%c1_111, %c6_112] : memref<16x16xf32, #tpu.memory_space<smem>>
    %256 = vector.broadcast %255 : f32 to vector<16x128xf32>
    %257 = arith.mulf %13, %256 : vector<16x128xf32>
    %258 = arith.addf %254, %257 : vector<16x128xf32>
    %c1_113 = arith.constant 1 : index
    %c7_114 = arith.constant 7 : index
    %259 = memref.load %arg5[%c1_113, %c7_114] : memref<16x16xf32, #tpu.memory_space<smem>>
    %260 = vector.broadcast %259 : f32 to vector<16x128xf32>
    %261 = arith.mulf %15, %260 : vector<16x128xf32>
    %262 = arith.addf %258, %261 : vector<16x128xf32>
    %c1_115 = arith.constant 1 : index
    %c8_116 = arith.constant 8 : index
    %263 = memref.load %arg5[%c1_115, %c8_116] : memref<16x16xf32, #tpu.memory_space<smem>>
    %264 = vector.broadcast %263 : f32 to vector<16x128xf32>
    %265 = arith.mulf %17, %264 : vector<16x128xf32>
    %266 = arith.addf %262, %265 : vector<16x128xf32>
    %c1_117 = arith.constant 1 : index
    %c9_118 = arith.constant 9 : index
    %267 = memref.load %arg5[%c1_117, %c9_118] : memref<16x16xf32, #tpu.memory_space<smem>>
    %268 = vector.broadcast %267 : f32 to vector<16x128xf32>
    %269 = arith.mulf %19, %268 : vector<16x128xf32>
    %270 = arith.addf %266, %269 : vector<16x128xf32>
    %c1_119 = arith.constant 1 : index
    %c10_120 = arith.constant 10 : index
    %271 = memref.load %arg5[%c1_119, %c10_120] : memref<16x16xf32, #tpu.memory_space<smem>>
    %272 = vector.broadcast %271 : f32 to vector<16x128xf32>
    %273 = arith.mulf %21, %272 : vector<16x128xf32>
    %274 = arith.addf %270, %273 : vector<16x128xf32>
    %c1_121 = arith.constant 1 : index
    %c11_122 = arith.constant 11 : index
    %275 = memref.load %arg5[%c1_121, %c11_122] : memref<16x16xf32, #tpu.memory_space<smem>>
    %276 = vector.broadcast %275 : f32 to vector<16x128xf32>
    %277 = arith.mulf %23, %276 : vector<16x128xf32>
    %278 = arith.addf %274, %277 : vector<16x128xf32>
    %c1_123 = arith.constant 1 : index
    %c12_124 = arith.constant 12 : index
    %279 = memref.load %arg5[%c1_123, %c12_124] : memref<16x16xf32, #tpu.memory_space<smem>>
    %280 = vector.broadcast %279 : f32 to vector<16x128xf32>
    %281 = arith.mulf %25, %280 : vector<16x128xf32>
    %282 = arith.addf %278, %281 : vector<16x128xf32>
    %c1_125 = arith.constant 1 : index
    %c13_126 = arith.constant 13 : index
    %283 = memref.load %arg5[%c1_125, %c13_126] : memref<16x16xf32, #tpu.memory_space<smem>>
    %284 = vector.broadcast %283 : f32 to vector<16x128xf32>
    %285 = arith.mulf %27, %284 : vector<16x128xf32>
    %286 = arith.addf %282, %285 : vector<16x128xf32>
    %c1_127 = arith.constant 1 : index
    %c14_128 = arith.constant 14 : index
    %287 = memref.load %arg5[%c1_127, %c14_128] : memref<16x16xf32, #tpu.memory_space<smem>>
    %288 = vector.broadcast %287 : f32 to vector<16x128xf32>
    %289 = arith.mulf %29, %288 : vector<16x128xf32>
    %290 = arith.addf %286, %289 : vector<16x128xf32>
    %c1_129 = arith.constant 1 : index
    %c15_130 = arith.constant 15 : index
    %291 = memref.load %arg5[%c1_129, %c15_130] : memref<16x16xf32, #tpu.memory_space<smem>>
    %292 = vector.broadcast %291 : f32 to vector<16x128xf32>
    %293 = arith.mulf %31, %292 : vector<16x128xf32>
    %294 = arith.addf %290, %293 : vector<16x128xf32>
    %c1_131 = arith.constant 1 : index
    %295 = memref.load %arg6[%c1_131] : memref<16xf32, #tpu.memory_space<smem>>
    %296 = vector.broadcast %295 : f32 to vector<16x128xf32>
    %297 = arith.addf %294, %296 : vector<16x128xf32>
    %c2_132 = arith.constant 2 : index
    %c0_133 = arith.constant 0 : index
    %298 = memref.load %arg5[%c2_132, %c0_133] : memref<16x16xf32, #tpu.memory_space<smem>>
    %299 = vector.broadcast %298 : f32 to vector<16x128xf32>
    %300 = arith.mulf %1, %299 : vector<16x128xf32>
    %c2_134 = arith.constant 2 : index
    %c1_135 = arith.constant 1 : index
    %301 = memref.load %arg5[%c2_134, %c1_135] : memref<16x16xf32, #tpu.memory_space<smem>>
    %302 = vector.broadcast %301 : f32 to vector<16x128xf32>
    %303 = arith.mulf %3, %302 : vector<16x128xf32>
    %304 = arith.addf %300, %303 : vector<16x128xf32>
    %c2_136 = arith.constant 2 : index
    %c2_137 = arith.constant 2 : index
    %305 = memref.load %arg5[%c2_136, %c2_137] : memref<16x16xf32, #tpu.memory_space<smem>>
    %306 = vector.broadcast %305 : f32 to vector<16x128xf32>
    %307 = arith.mulf %5, %306 : vector<16x128xf32>
    %308 = arith.addf %304, %307 : vector<16x128xf32>
    %c2_138 = arith.constant 2 : index
    %c3_139 = arith.constant 3 : index
    %309 = memref.load %arg5[%c2_138, %c3_139] : memref<16x16xf32, #tpu.memory_space<smem>>
    %310 = vector.broadcast %309 : f32 to vector<16x128xf32>
    %311 = arith.mulf %7, %310 : vector<16x128xf32>
    %312 = arith.addf %308, %311 : vector<16x128xf32>
    %c2_140 = arith.constant 2 : index
    %c4_141 = arith.constant 4 : index
    %313 = memref.load %arg5[%c2_140, %c4_141] : memref<16x16xf32, #tpu.memory_space<smem>>
    %314 = vector.broadcast %313 : f32 to vector<16x128xf32>
    %315 = arith.mulf %9, %314 : vector<16x128xf32>
    %316 = arith.addf %312, %315 : vector<16x128xf32>
    %c2_142 = arith.constant 2 : index
    %c5_143 = arith.constant 5 : index
    %317 = memref.load %arg5[%c2_142, %c5_143] : memref<16x16xf32, #tpu.memory_space<smem>>
    %318 = vector.broadcast %317 : f32 to vector<16x128xf32>
    %319 = arith.mulf %11, %318 : vector<16x128xf32>
    %320 = arith.addf %316, %319 : vector<16x128xf32>
    %c2_144 = arith.constant 2 : index
    %c6_145 = arith.constant 6 : index
    %321 = memref.load %arg5[%c2_144, %c6_145] : memref<16x16xf32, #tpu.memory_space<smem>>
    %322 = vector.broadcast %321 : f32 to vector<16x128xf32>
    %323 = arith.mulf %13, %322 : vector<16x128xf32>
    %324 = arith.addf %320, %323 : vector<16x128xf32>
    %c2_146 = arith.constant 2 : index
    %c7_147 = arith.constant 7 : index
    %325 = memref.load %arg5[%c2_146, %c7_147] : memref<16x16xf32, #tpu.memory_space<smem>>
    %326 = vector.broadcast %325 : f32 to vector<16x128xf32>
    %327 = arith.mulf %15, %326 : vector<16x128xf32>
    %328 = arith.addf %324, %327 : vector<16x128xf32>
    %c2_148 = arith.constant 2 : index
    %c8_149 = arith.constant 8 : index
    %329 = memref.load %arg5[%c2_148, %c8_149] : memref<16x16xf32, #tpu.memory_space<smem>>
    %330 = vector.broadcast %329 : f32 to vector<16x128xf32>
    %331 = arith.mulf %17, %330 : vector<16x128xf32>
    %332 = arith.addf %328, %331 : vector<16x128xf32>
    %c2_150 = arith.constant 2 : index
    %c9_151 = arith.constant 9 : index
    %333 = memref.load %arg5[%c2_150, %c9_151] : memref<16x16xf32, #tpu.memory_space<smem>>
    %334 = vector.broadcast %333 : f32 to vector<16x128xf32>
    %335 = arith.mulf %19, %334 : vector<16x128xf32>
    %336 = arith.addf %332, %335 : vector<16x128xf32>
    %c2_152 = arith.constant 2 : index
    %c10_153 = arith.constant 10 : index
    %337 = memref.load %arg5[%c2_152, %c10_153] : memref<16x16xf32, #tpu.memory_space<smem>>
    %338 = vector.broadcast %337 : f32 to vector<16x128xf32>
    %339 = arith.mulf %21, %338 : vector<16x128xf32>
    %340 = arith.addf %336, %339 : vector<16x128xf32>
    %c2_154 = arith.constant 2 : index
    %c11_155 = arith.constant 11 : index
    %341 = memref.load %arg5[%c2_154, %c11_155] : memref<16x16xf32, #tpu.memory_space<smem>>
    %342 = vector.broadcast %341 : f32 to vector<16x128xf32>
    %343 = arith.mulf %23, %342 : vector<16x128xf32>
    %344 = arith.addf %340, %343 : vector<16x128xf32>
    %c2_156 = arith.constant 2 : index
    %c12_157 = arith.constant 12 : index
    %345 = memref.load %arg5[%c2_156, %c12_157] : memref<16x16xf32, #tpu.memory_space<smem>>
    %346 = vector.broadcast %345 : f32 to vector<16x128xf32>
    %347 = arith.mulf %25, %346 : vector<16x128xf32>
    %348 = arith.addf %344, %347 : vector<16x128xf32>
    %c2_158 = arith.constant 2 : index
    %c13_159 = arith.constant 13 : index
    %349 = memref.load %arg5[%c2_158, %c13_159] : memref<16x16xf32, #tpu.memory_space<smem>>
    %350 = vector.broadcast %349 : f32 to vector<16x128xf32>
    %351 = arith.mulf %27, %350 : vector<16x128xf32>
    %352 = arith.addf %348, %351 : vector<16x128xf32>
    %c2_160 = arith.constant 2 : index
    %c14_161 = arith.constant 14 : index
    %353 = memref.load %arg5[%c2_160, %c14_161] : memref<16x16xf32, #tpu.memory_space<smem>>
    %354 = vector.broadcast %353 : f32 to vector<16x128xf32>
    %355 = arith.mulf %29, %354 : vector<16x128xf32>
    %356 = arith.addf %352, %355 : vector<16x128xf32>
    %c2_162 = arith.constant 2 : index
    %c15_163 = arith.constant 15 : index
    %357 = memref.load %arg5[%c2_162, %c15_163] : memref<16x16xf32, #tpu.memory_space<smem>>
    %358 = vector.broadcast %357 : f32 to vector<16x128xf32>
    %359 = arith.mulf %31, %358 : vector<16x128xf32>
    %360 = arith.addf %356, %359 : vector<16x128xf32>
    %c2_164 = arith.constant 2 : index
    %361 = memref.load %arg6[%c2_164] : memref<16xf32, #tpu.memory_space<smem>>
    %362 = vector.broadcast %361 : f32 to vector<16x128xf32>
    %363 = arith.addf %360, %362 : vector<16x128xf32>
    %c3_165 = arith.constant 3 : index
    %c0_166 = arith.constant 0 : index
    %364 = memref.load %arg5[%c3_165, %c0_166] : memref<16x16xf32, #tpu.memory_space<smem>>
    %365 = vector.broadcast %364 : f32 to vector<16x128xf32>
    %366 = arith.mulf %1, %365 : vector<16x128xf32>
    %c3_167 = arith.constant 3 : index
    %c1_168 = arith.constant 1 : index
    %367 = memref.load %arg5[%c3_167, %c1_168] : memref<16x16xf32, #tpu.memory_space<smem>>
    %368 = vector.broadcast %367 : f32 to vector<16x128xf32>
    %369 = arith.mulf %3, %368 : vector<16x128xf32>
    %370 = arith.addf %366, %369 : vector<16x128xf32>
    %c3_169 = arith.constant 3 : index
    %c2_170 = arith.constant 2 : index
    %371 = memref.load %arg5[%c3_169, %c2_170] : memref<16x16xf32, #tpu.memory_space<smem>>
    %372 = vector.broadcast %371 : f32 to vector<16x128xf32>
    %373 = arith.mulf %5, %372 : vector<16x128xf32>
    %374 = arith.addf %370, %373 : vector<16x128xf32>
    %c3_171 = arith.constant 3 : index
    %c3_172 = arith.constant 3 : index
    %375 = memref.load %arg5[%c3_171, %c3_172] : memref<16x16xf32, #tpu.memory_space<smem>>
    %376 = vector.broadcast %375 : f32 to vector<16x128xf32>
    %377 = arith.mulf %7, %376 : vector<16x128xf32>
    %378 = arith.addf %374, %377 : vector<16x128xf32>
    %c3_173 = arith.constant 3 : index
    %c4_174 = arith.constant 4 : index
    %379 = memref.load %arg5[%c3_173, %c4_174] : memref<16x16xf32, #tpu.memory_space<smem>>
    %380 = vector.broadcast %379 : f32 to vector<16x128xf32>
    %381 = arith.mulf %9, %380 : vector<16x128xf32>
    %382 = arith.addf %378, %381 : vector<16x128xf32>
    %c3_175 = arith.constant 3 : index
    %c5_176 = arith.constant 5 : index
    %383 = memref.load %arg5[%c3_175, %c5_176] : memref<16x16xf32, #tpu.memory_space<smem>>
    %384 = vector.broadcast %383 : f32 to vector<16x128xf32>
    %385 = arith.mulf %11, %384 : vector<16x128xf32>
    %386 = arith.addf %382, %385 : vector<16x128xf32>
    %c3_177 = arith.constant 3 : index
    %c6_178 = arith.constant 6 : index
    %387 = memref.load %arg5[%c3_177, %c6_178] : memref<16x16xf32, #tpu.memory_space<smem>>
    %388 = vector.broadcast %387 : f32 to vector<16x128xf32>
    %389 = arith.mulf %13, %388 : vector<16x128xf32>
    %390 = arith.addf %386, %389 : vector<16x128xf32>
    %c3_179 = arith.constant 3 : index
    %c7_180 = arith.constant 7 : index
    %391 = memref.load %arg5[%c3_179, %c7_180] : memref<16x16xf32, #tpu.memory_space<smem>>
    %392 = vector.broadcast %391 : f32 to vector<16x128xf32>
    %393 = arith.mulf %15, %392 : vector<16x128xf32>
    %394 = arith.addf %390, %393 : vector<16x128xf32>
    %c3_181 = arith.constant 3 : index
    %c8_182 = arith.constant 8 : index
    %395 = memref.load %arg5[%c3_181, %c8_182] : memref<16x16xf32, #tpu.memory_space<smem>>
    %396 = vector.broadcast %395 : f32 to vector<16x128xf32>
    %397 = arith.mulf %17, %396 : vector<16x128xf32>
    %398 = arith.addf %394, %397 : vector<16x128xf32>
    %c3_183 = arith.constant 3 : index
    %c9_184 = arith.constant 9 : index
    %399 = memref.load %arg5[%c3_183, %c9_184] : memref<16x16xf32, #tpu.memory_space<smem>>
    %400 = vector.broadcast %399 : f32 to vector<16x128xf32>
    %401 = arith.mulf %19, %400 : vector<16x128xf32>
    %402 = arith.addf %398, %401 : vector<16x128xf32>
    %c3_185 = arith.constant 3 : index
    %c10_186 = arith.constant 10 : index
    %403 = memref.load %arg5[%c3_185, %c10_186] : memref<16x16xf32, #tpu.memory_space<smem>>
    %404 = vector.broadcast %403 : f32 to vector<16x128xf32>
    %405 = arith.mulf %21, %404 : vector<16x128xf32>
    %406 = arith.addf %402, %405 : vector<16x128xf32>
    %c3_187 = arith.constant 3 : index
    %c11_188 = arith.constant 11 : index
    %407 = memref.load %arg5[%c3_187, %c11_188] : memref<16x16xf32, #tpu.memory_space<smem>>
    %408 = vector.broadcast %407 : f32 to vector<16x128xf32>
    %409 = arith.mulf %23, %408 : vector<16x128xf32>
    %410 = arith.addf %406, %409 : vector<16x128xf32>
    %c3_189 = arith.constant 3 : index
    %c12_190 = arith.constant 12 : index
    %411 = memref.load %arg5[%c3_189, %c12_190] : memref<16x16xf32, #tpu.memory_space<smem>>
    %412 = vector.broadcast %411 : f32 to vector<16x128xf32>
    %413 = arith.mulf %25, %412 : vector<16x128xf32>
    %414 = arith.addf %410, %413 : vector<16x128xf32>
    %c3_191 = arith.constant 3 : index
    %c13_192 = arith.constant 13 : index
    %415 = memref.load %arg5[%c3_191, %c13_192] : memref<16x16xf32, #tpu.memory_space<smem>>
    %416 = vector.broadcast %415 : f32 to vector<16x128xf32>
    %417 = arith.mulf %27, %416 : vector<16x128xf32>
    %418 = arith.addf %414, %417 : vector<16x128xf32>
    %c3_193 = arith.constant 3 : index
    %c14_194 = arith.constant 14 : index
    %419 = memref.load %arg5[%c3_193, %c14_194] : memref<16x16xf32, #tpu.memory_space<smem>>
    %420 = vector.broadcast %419 : f32 to vector<16x128xf32>
    %421 = arith.mulf %29, %420 : vector<16x128xf32>
    %422 = arith.addf %418, %421 : vector<16x128xf32>
    %c3_195 = arith.constant 3 : index
    %c15_196 = arith.constant 15 : index
    %423 = memref.load %arg5[%c3_195, %c15_196] : memref<16x16xf32, #tpu.memory_space<smem>>
    %424 = vector.broadcast %423 : f32 to vector<16x128xf32>
    %425 = arith.mulf %31, %424 : vector<16x128xf32>
    %426 = arith.addf %422, %425 : vector<16x128xf32>
    %c3_197 = arith.constant 3 : index
    %427 = memref.load %arg6[%c3_197] : memref<16xf32, #tpu.memory_space<smem>>
    %428 = vector.broadcast %427 : f32 to vector<16x128xf32>
    %429 = arith.addf %426, %428 : vector<16x128xf32>
    %c4_198 = arith.constant 4 : index
    %c0_199 = arith.constant 0 : index
    %430 = memref.load %arg5[%c4_198, %c0_199] : memref<16x16xf32, #tpu.memory_space<smem>>
    %431 = vector.broadcast %430 : f32 to vector<16x128xf32>
    %432 = arith.mulf %1, %431 : vector<16x128xf32>
    %c4_200 = arith.constant 4 : index
    %c1_201 = arith.constant 1 : index
    %433 = memref.load %arg5[%c4_200, %c1_201] : memref<16x16xf32, #tpu.memory_space<smem>>
    %434 = vector.broadcast %433 : f32 to vector<16x128xf32>
    %435 = arith.mulf %3, %434 : vector<16x128xf32>
    %436 = arith.addf %432, %435 : vector<16x128xf32>
    %c4_202 = arith.constant 4 : index
    %c2_203 = arith.constant 2 : index
    %437 = memref.load %arg5[%c4_202, %c2_203] : memref<16x16xf32, #tpu.memory_space<smem>>
    %438 = vector.broadcast %437 : f32 to vector<16x128xf32>
    %439 = arith.mulf %5, %438 : vector<16x128xf32>
    %440 = arith.addf %436, %439 : vector<16x128xf32>
    %c4_204 = arith.constant 4 : index
    %c3_205 = arith.constant 3 : index
    %441 = memref.load %arg5[%c4_204, %c3_205] : memref<16x16xf32, #tpu.memory_space<smem>>
    %442 = vector.broadcast %441 : f32 to vector<16x128xf32>
    %443 = arith.mulf %7, %442 : vector<16x128xf32>
    %444 = arith.addf %440, %443 : vector<16x128xf32>
    %c4_206 = arith.constant 4 : index
    %c4_207 = arith.constant 4 : index
    %445 = memref.load %arg5[%c4_206, %c4_207] : memref<16x16xf32, #tpu.memory_space<smem>>
    %446 = vector.broadcast %445 : f32 to vector<16x128xf32>
    %447 = arith.mulf %9, %446 : vector<16x128xf32>
    %448 = arith.addf %444, %447 : vector<16x128xf32>
    %c4_208 = arith.constant 4 : index
    %c5_209 = arith.constant 5 : index
    %449 = memref.load %arg5[%c4_208, %c5_209] : memref<16x16xf32, #tpu.memory_space<smem>>
    %450 = vector.broadcast %449 : f32 to vector<16x128xf32>
    %451 = arith.mulf %11, %450 : vector<16x128xf32>
    %452 = arith.addf %448, %451 : vector<16x128xf32>
    %c4_210 = arith.constant 4 : index
    %c6_211 = arith.constant 6 : index
    %453 = memref.load %arg5[%c4_210, %c6_211] : memref<16x16xf32, #tpu.memory_space<smem>>
    %454 = vector.broadcast %453 : f32 to vector<16x128xf32>
    %455 = arith.mulf %13, %454 : vector<16x128xf32>
    %456 = arith.addf %452, %455 : vector<16x128xf32>
    %c4_212 = arith.constant 4 : index
    %c7_213 = arith.constant 7 : index
    %457 = memref.load %arg5[%c4_212, %c7_213] : memref<16x16xf32, #tpu.memory_space<smem>>
    %458 = vector.broadcast %457 : f32 to vector<16x128xf32>
    %459 = arith.mulf %15, %458 : vector<16x128xf32>
    %460 = arith.addf %456, %459 : vector<16x128xf32>
    %c4_214 = arith.constant 4 : index
    %c8_215 = arith.constant 8 : index
    %461 = memref.load %arg5[%c4_214, %c8_215] : memref<16x16xf32, #tpu.memory_space<smem>>
    %462 = vector.broadcast %461 : f32 to vector<16x128xf32>
    %463 = arith.mulf %17, %462 : vector<16x128xf32>
    %464 = arith.addf %460, %463 : vector<16x128xf32>
    %c4_216 = arith.constant 4 : index
    %c9_217 = arith.constant 9 : index
    %465 = memref.load %arg5[%c4_216, %c9_217] : memref<16x16xf32, #tpu.memory_space<smem>>
    %466 = vector.broadcast %465 : f32 to vector<16x128xf32>
    %467 = arith.mulf %19, %466 : vector<16x128xf32>
    %468 = arith.addf %464, %467 : vector<16x128xf32>
    %c4_218 = arith.constant 4 : index
    %c10_219 = arith.constant 10 : index
    %469 = memref.load %arg5[%c4_218, %c10_219] : memref<16x16xf32, #tpu.memory_space<smem>>
    %470 = vector.broadcast %469 : f32 to vector<16x128xf32>
    %471 = arith.mulf %21, %470 : vector<16x128xf32>
    %472 = arith.addf %468, %471 : vector<16x128xf32>
    %c4_220 = arith.constant 4 : index
    %c11_221 = arith.constant 11 : index
    %473 = memref.load %arg5[%c4_220, %c11_221] : memref<16x16xf32, #tpu.memory_space<smem>>
    %474 = vector.broadcast %473 : f32 to vector<16x128xf32>
    %475 = arith.mulf %23, %474 : vector<16x128xf32>
    %476 = arith.addf %472, %475 : vector<16x128xf32>
    %c4_222 = arith.constant 4 : index
    %c12_223 = arith.constant 12 : index
    %477 = memref.load %arg5[%c4_222, %c12_223] : memref<16x16xf32, #tpu.memory_space<smem>>
    %478 = vector.broadcast %477 : f32 to vector<16x128xf32>
    %479 = arith.mulf %25, %478 : vector<16x128xf32>
    %480 = arith.addf %476, %479 : vector<16x128xf32>
    %c4_224 = arith.constant 4 : index
    %c13_225 = arith.constant 13 : index
    %481 = memref.load %arg5[%c4_224, %c13_225] : memref<16x16xf32, #tpu.memory_space<smem>>
    %482 = vector.broadcast %481 : f32 to vector<16x128xf32>
    %483 = arith.mulf %27, %482 : vector<16x128xf32>
    %484 = arith.addf %480, %483 : vector<16x128xf32>
    %c4_226 = arith.constant 4 : index
    %c14_227 = arith.constant 14 : index
    %485 = memref.load %arg5[%c4_226, %c14_227] : memref<16x16xf32, #tpu.memory_space<smem>>
    %486 = vector.broadcast %485 : f32 to vector<16x128xf32>
    %487 = arith.mulf %29, %486 : vector<16x128xf32>
    %488 = arith.addf %484, %487 : vector<16x128xf32>
    %c4_228 = arith.constant 4 : index
    %c15_229 = arith.constant 15 : index
    %489 = memref.load %arg5[%c4_228, %c15_229] : memref<16x16xf32, #tpu.memory_space<smem>>
    %490 = vector.broadcast %489 : f32 to vector<16x128xf32>
    %491 = arith.mulf %31, %490 : vector<16x128xf32>
    %492 = arith.addf %488, %491 : vector<16x128xf32>
    %c4_230 = arith.constant 4 : index
    %493 = memref.load %arg6[%c4_230] : memref<16xf32, #tpu.memory_space<smem>>
    %494 = vector.broadcast %493 : f32 to vector<16x128xf32>
    %495 = arith.addf %492, %494 : vector<16x128xf32>
    %c5_231 = arith.constant 5 : index
    %c0_232 = arith.constant 0 : index
    %496 = memref.load %arg5[%c5_231, %c0_232] : memref<16x16xf32, #tpu.memory_space<smem>>
    %497 = vector.broadcast %496 : f32 to vector<16x128xf32>
    %498 = arith.mulf %1, %497 : vector<16x128xf32>
    %c5_233 = arith.constant 5 : index
    %c1_234 = arith.constant 1 : index
    %499 = memref.load %arg5[%c5_233, %c1_234] : memref<16x16xf32, #tpu.memory_space<smem>>
    %500 = vector.broadcast %499 : f32 to vector<16x128xf32>
    %501 = arith.mulf %3, %500 : vector<16x128xf32>
    %502 = arith.addf %498, %501 : vector<16x128xf32>
    %c5_235 = arith.constant 5 : index
    %c2_236 = arith.constant 2 : index
    %503 = memref.load %arg5[%c5_235, %c2_236] : memref<16x16xf32, #tpu.memory_space<smem>>
    %504 = vector.broadcast %503 : f32 to vector<16x128xf32>
    %505 = arith.mulf %5, %504 : vector<16x128xf32>
    %506 = arith.addf %502, %505 : vector<16x128xf32>
    %c5_237 = arith.constant 5 : index
    %c3_238 = arith.constant 3 : index
    %507 = memref.load %arg5[%c5_237, %c3_238] : memref<16x16xf32, #tpu.memory_space<smem>>
    %508 = vector.broadcast %507 : f32 to vector<16x128xf32>
    %509 = arith.mulf %7, %508 : vector<16x128xf32>
    %510 = arith.addf %506, %509 : vector<16x128xf32>
    %c5_239 = arith.constant 5 : index
    %c4_240 = arith.constant 4 : index
    %511 = memref.load %arg5[%c5_239, %c4_240] : memref<16x16xf32, #tpu.memory_space<smem>>
    %512 = vector.broadcast %511 : f32 to vector<16x128xf32>
    %513 = arith.mulf %9, %512 : vector<16x128xf32>
    %514 = arith.addf %510, %513 : vector<16x128xf32>
    %c5_241 = arith.constant 5 : index
    %c5_242 = arith.constant 5 : index
    %515 = memref.load %arg5[%c5_241, %c5_242] : memref<16x16xf32, #tpu.memory_space<smem>>
    %516 = vector.broadcast %515 : f32 to vector<16x128xf32>
    %517 = arith.mulf %11, %516 : vector<16x128xf32>
    %518 = arith.addf %514, %517 : vector<16x128xf32>
    %c5_243 = arith.constant 5 : index
    %c6_244 = arith.constant 6 : index
    %519 = memref.load %arg5[%c5_243, %c6_244] : memref<16x16xf32, #tpu.memory_space<smem>>
    %520 = vector.broadcast %519 : f32 to vector<16x128xf32>
    %521 = arith.mulf %13, %520 : vector<16x128xf32>
    %522 = arith.addf %518, %521 : vector<16x128xf32>
    %c5_245 = arith.constant 5 : index
    %c7_246 = arith.constant 7 : index
    %523 = memref.load %arg5[%c5_245, %c7_246] : memref<16x16xf32, #tpu.memory_space<smem>>
    %524 = vector.broadcast %523 : f32 to vector<16x128xf32>
    %525 = arith.mulf %15, %524 : vector<16x128xf32>
    %526 = arith.addf %522, %525 : vector<16x128xf32>
    %c5_247 = arith.constant 5 : index
    %c8_248 = arith.constant 8 : index
    %527 = memref.load %arg5[%c5_247, %c8_248] : memref<16x16xf32, #tpu.memory_space<smem>>
    %528 = vector.broadcast %527 : f32 to vector<16x128xf32>
    %529 = arith.mulf %17, %528 : vector<16x128xf32>
    %530 = arith.addf %526, %529 : vector<16x128xf32>
    %c5_249 = arith.constant 5 : index
    %c9_250 = arith.constant 9 : index
    %531 = memref.load %arg5[%c5_249, %c9_250] : memref<16x16xf32, #tpu.memory_space<smem>>
    %532 = vector.broadcast %531 : f32 to vector<16x128xf32>
    %533 = arith.mulf %19, %532 : vector<16x128xf32>
    %534 = arith.addf %530, %533 : vector<16x128xf32>
    %c5_251 = arith.constant 5 : index
    %c10_252 = arith.constant 10 : index
    %535 = memref.load %arg5[%c5_251, %c10_252] : memref<16x16xf32, #tpu.memory_space<smem>>
    %536 = vector.broadcast %535 : f32 to vector<16x128xf32>
    %537 = arith.mulf %21, %536 : vector<16x128xf32>
    %538 = arith.addf %534, %537 : vector<16x128xf32>
    %c5_253 = arith.constant 5 : index
    %c11_254 = arith.constant 11 : index
    %539 = memref.load %arg5[%c5_253, %c11_254] : memref<16x16xf32, #tpu.memory_space<smem>>
    %540 = vector.broadcast %539 : f32 to vector<16x128xf32>
    %541 = arith.mulf %23, %540 : vector<16x128xf32>
    %542 = arith.addf %538, %541 : vector<16x128xf32>
    %c5_255 = arith.constant 5 : index
    %c12_256 = arith.constant 12 : index
    %543 = memref.load %arg5[%c5_255, %c12_256] : memref<16x16xf32, #tpu.memory_space<smem>>
    %544 = vector.broadcast %543 : f32 to vector<16x128xf32>
    %545 = arith.mulf %25, %544 : vector<16x128xf32>
    %546 = arith.addf %542, %545 : vector<16x128xf32>
    %c5_257 = arith.constant 5 : index
    %c13_258 = arith.constant 13 : index
    %547 = memref.load %arg5[%c5_257, %c13_258] : memref<16x16xf32, #tpu.memory_space<smem>>
    %548 = vector.broadcast %547 : f32 to vector<16x128xf32>
    %549 = arith.mulf %27, %548 : vector<16x128xf32>
    %550 = arith.addf %546, %549 : vector<16x128xf32>
    %c5_259 = arith.constant 5 : index
    %c14_260 = arith.constant 14 : index
    %551 = memref.load %arg5[%c5_259, %c14_260] : memref<16x16xf32, #tpu.memory_space<smem>>
    %552 = vector.broadcast %551 : f32 to vector<16x128xf32>
    %553 = arith.mulf %29, %552 : vector<16x128xf32>
    %554 = arith.addf %550, %553 : vector<16x128xf32>
    %c5_261 = arith.constant 5 : index
    %c15_262 = arith.constant 15 : index
    %555 = memref.load %arg5[%c5_261, %c15_262] : memref<16x16xf32, #tpu.memory_space<smem>>
    %556 = vector.broadcast %555 : f32 to vector<16x128xf32>
    %557 = arith.mulf %31, %556 : vector<16x128xf32>
    %558 = arith.addf %554, %557 : vector<16x128xf32>
    %c5_263 = arith.constant 5 : index
    %559 = memref.load %arg6[%c5_263] : memref<16xf32, #tpu.memory_space<smem>>
    %560 = vector.broadcast %559 : f32 to vector<16x128xf32>
    %561 = arith.addf %558, %560 : vector<16x128xf32>
    %c6_264 = arith.constant 6 : index
    %c0_265 = arith.constant 0 : index
    %562 = memref.load %arg5[%c6_264, %c0_265] : memref<16x16xf32, #tpu.memory_space<smem>>
    %563 = vector.broadcast %562 : f32 to vector<16x128xf32>
    %564 = arith.mulf %1, %563 : vector<16x128xf32>
    %c6_266 = arith.constant 6 : index
    %c1_267 = arith.constant 1 : index
    %565 = memref.load %arg5[%c6_266, %c1_267] : memref<16x16xf32, #tpu.memory_space<smem>>
    %566 = vector.broadcast %565 : f32 to vector<16x128xf32>
    %567 = arith.mulf %3, %566 : vector<16x128xf32>
    %568 = arith.addf %564, %567 : vector<16x128xf32>
    %c6_268 = arith.constant 6 : index
    %c2_269 = arith.constant 2 : index
    %569 = memref.load %arg5[%c6_268, %c2_269] : memref<16x16xf32, #tpu.memory_space<smem>>
    %570 = vector.broadcast %569 : f32 to vector<16x128xf32>
    %571 = arith.mulf %5, %570 : vector<16x128xf32>
    %572 = arith.addf %568, %571 : vector<16x128xf32>
    %c6_270 = arith.constant 6 : index
    %c3_271 = arith.constant 3 : index
    %573 = memref.load %arg5[%c6_270, %c3_271] : memref<16x16xf32, #tpu.memory_space<smem>>
    %574 = vector.broadcast %573 : f32 to vector<16x128xf32>
    %575 = arith.mulf %7, %574 : vector<16x128xf32>
    %576 = arith.addf %572, %575 : vector<16x128xf32>
    %c6_272 = arith.constant 6 : index
    %c4_273 = arith.constant 4 : index
    %577 = memref.load %arg5[%c6_272, %c4_273] : memref<16x16xf32, #tpu.memory_space<smem>>
    %578 = vector.broadcast %577 : f32 to vector<16x128xf32>
    %579 = arith.mulf %9, %578 : vector<16x128xf32>
    %580 = arith.addf %576, %579 : vector<16x128xf32>
    %c6_274 = arith.constant 6 : index
    %c5_275 = arith.constant 5 : index
    %581 = memref.load %arg5[%c6_274, %c5_275] : memref<16x16xf32, #tpu.memory_space<smem>>
    %582 = vector.broadcast %581 : f32 to vector<16x128xf32>
    %583 = arith.mulf %11, %582 : vector<16x128xf32>
    %584 = arith.addf %580, %583 : vector<16x128xf32>
    %c6_276 = arith.constant 6 : index
    %c6_277 = arith.constant 6 : index
    %585 = memref.load %arg5[%c6_276, %c6_277] : memref<16x16xf32, #tpu.memory_space<smem>>
    %586 = vector.broadcast %585 : f32 to vector<16x128xf32>
    %587 = arith.mulf %13, %586 : vector<16x128xf32>
    %588 = arith.addf %584, %587 : vector<16x128xf32>
    %c6_278 = arith.constant 6 : index
    %c7_279 = arith.constant 7 : index
    %589 = memref.load %arg5[%c6_278, %c7_279] : memref<16x16xf32, #tpu.memory_space<smem>>
    %590 = vector.broadcast %589 : f32 to vector<16x128xf32>
    %591 = arith.mulf %15, %590 : vector<16x128xf32>
    %592 = arith.addf %588, %591 : vector<16x128xf32>
    %c6_280 = arith.constant 6 : index
    %c8_281 = arith.constant 8 : index
    %593 = memref.load %arg5[%c6_280, %c8_281] : memref<16x16xf32, #tpu.memory_space<smem>>
    %594 = vector.broadcast %593 : f32 to vector<16x128xf32>
    %595 = arith.mulf %17, %594 : vector<16x128xf32>
    %596 = arith.addf %592, %595 : vector<16x128xf32>
    %c6_282 = arith.constant 6 : index
    %c9_283 = arith.constant 9 : index
    %597 = memref.load %arg5[%c6_282, %c9_283] : memref<16x16xf32, #tpu.memory_space<smem>>
    %598 = vector.broadcast %597 : f32 to vector<16x128xf32>
    %599 = arith.mulf %19, %598 : vector<16x128xf32>
    %600 = arith.addf %596, %599 : vector<16x128xf32>
    %c6_284 = arith.constant 6 : index
    %c10_285 = arith.constant 10 : index
    %601 = memref.load %arg5[%c6_284, %c10_285] : memref<16x16xf32, #tpu.memory_space<smem>>
    %602 = vector.broadcast %601 : f32 to vector<16x128xf32>
    %603 = arith.mulf %21, %602 : vector<16x128xf32>
    %604 = arith.addf %600, %603 : vector<16x128xf32>
    %c6_286 = arith.constant 6 : index
    %c11_287 = arith.constant 11 : index
    %605 = memref.load %arg5[%c6_286, %c11_287] : memref<16x16xf32, #tpu.memory_space<smem>>
    %606 = vector.broadcast %605 : f32 to vector<16x128xf32>
    %607 = arith.mulf %23, %606 : vector<16x128xf32>
    %608 = arith.addf %604, %607 : vector<16x128xf32>
    %c6_288 = arith.constant 6 : index
    %c12_289 = arith.constant 12 : index
    %609 = memref.load %arg5[%c6_288, %c12_289] : memref<16x16xf32, #tpu.memory_space<smem>>
    %610 = vector.broadcast %609 : f32 to vector<16x128xf32>
    %611 = arith.mulf %25, %610 : vector<16x128xf32>
    %612 = arith.addf %608, %611 : vector<16x128xf32>
    %c6_290 = arith.constant 6 : index
    %c13_291 = arith.constant 13 : index
    %613 = memref.load %arg5[%c6_290, %c13_291] : memref<16x16xf32, #tpu.memory_space<smem>>
    %614 = vector.broadcast %613 : f32 to vector<16x128xf32>
    %615 = arith.mulf %27, %614 : vector<16x128xf32>
    %616 = arith.addf %612, %615 : vector<16x128xf32>
    %c6_292 = arith.constant 6 : index
    %c14_293 = arith.constant 14 : index
    %617 = memref.load %arg5[%c6_292, %c14_293] : memref<16x16xf32, #tpu.memory_space<smem>>
    %618 = vector.broadcast %617 : f32 to vector<16x128xf32>
    %619 = arith.mulf %29, %618 : vector<16x128xf32>
    %620 = arith.addf %616, %619 : vector<16x128xf32>
    %c6_294 = arith.constant 6 : index
    %c15_295 = arith.constant 15 : index
    %621 = memref.load %arg5[%c6_294, %c15_295] : memref<16x16xf32, #tpu.memory_space<smem>>
    %622 = vector.broadcast %621 : f32 to vector<16x128xf32>
    %623 = arith.mulf %31, %622 : vector<16x128xf32>
    %624 = arith.addf %620, %623 : vector<16x128xf32>
    %c6_296 = arith.constant 6 : index
    %625 = memref.load %arg6[%c6_296] : memref<16xf32, #tpu.memory_space<smem>>
    %626 = vector.broadcast %625 : f32 to vector<16x128xf32>
    %627 = arith.addf %624, %626 : vector<16x128xf32>
    %c7_297 = arith.constant 7 : index
    %c0_298 = arith.constant 0 : index
    %628 = memref.load %arg5[%c7_297, %c0_298] : memref<16x16xf32, #tpu.memory_space<smem>>
    %629 = vector.broadcast %628 : f32 to vector<16x128xf32>
    %630 = arith.mulf %1, %629 : vector<16x128xf32>
    %c7_299 = arith.constant 7 : index
    %c1_300 = arith.constant 1 : index
    %631 = memref.load %arg5[%c7_299, %c1_300] : memref<16x16xf32, #tpu.memory_space<smem>>
    %632 = vector.broadcast %631 : f32 to vector<16x128xf32>
    %633 = arith.mulf %3, %632 : vector<16x128xf32>
    %634 = arith.addf %630, %633 : vector<16x128xf32>
    %c7_301 = arith.constant 7 : index
    %c2_302 = arith.constant 2 : index
    %635 = memref.load %arg5[%c7_301, %c2_302] : memref<16x16xf32, #tpu.memory_space<smem>>
    %636 = vector.broadcast %635 : f32 to vector<16x128xf32>
    %637 = arith.mulf %5, %636 : vector<16x128xf32>
    %638 = arith.addf %634, %637 : vector<16x128xf32>
    %c7_303 = arith.constant 7 : index
    %c3_304 = arith.constant 3 : index
    %639 = memref.load %arg5[%c7_303, %c3_304] : memref<16x16xf32, #tpu.memory_space<smem>>
    %640 = vector.broadcast %639 : f32 to vector<16x128xf32>
    %641 = arith.mulf %7, %640 : vector<16x128xf32>
    %642 = arith.addf %638, %641 : vector<16x128xf32>
    %c7_305 = arith.constant 7 : index
    %c4_306 = arith.constant 4 : index
    %643 = memref.load %arg5[%c7_305, %c4_306] : memref<16x16xf32, #tpu.memory_space<smem>>
    %644 = vector.broadcast %643 : f32 to vector<16x128xf32>
    %645 = arith.mulf %9, %644 : vector<16x128xf32>
    %646 = arith.addf %642, %645 : vector<16x128xf32>
    %c7_307 = arith.constant 7 : index
    %c5_308 = arith.constant 5 : index
    %647 = memref.load %arg5[%c7_307, %c5_308] : memref<16x16xf32, #tpu.memory_space<smem>>
    %648 = vector.broadcast %647 : f32 to vector<16x128xf32>
    %649 = arith.mulf %11, %648 : vector<16x128xf32>
    %650 = arith.addf %646, %649 : vector<16x128xf32>
    %c7_309 = arith.constant 7 : index
    %c6_310 = arith.constant 6 : index
    %651 = memref.load %arg5[%c7_309, %c6_310] : memref<16x16xf32, #tpu.memory_space<smem>>
    %652 = vector.broadcast %651 : f32 to vector<16x128xf32>
    %653 = arith.mulf %13, %652 : vector<16x128xf32>
    %654 = arith.addf %650, %653 : vector<16x128xf32>
    %c7_311 = arith.constant 7 : index
    %c7_312 = arith.constant 7 : index
    %655 = memref.load %arg5[%c7_311, %c7_312] : memref<16x16xf32, #tpu.memory_space<smem>>
    %656 = vector.broadcast %655 : f32 to vector<16x128xf32>
    %657 = arith.mulf %15, %656 : vector<16x128xf32>
    %658 = arith.addf %654, %657 : vector<16x128xf32>
    %c7_313 = arith.constant 7 : index
    %c8_314 = arith.constant 8 : index
    %659 = memref.load %arg5[%c7_313, %c8_314] : memref<16x16xf32, #tpu.memory_space<smem>>
    %660 = vector.broadcast %659 : f32 to vector<16x128xf32>
    %661 = arith.mulf %17, %660 : vector<16x128xf32>
    %662 = arith.addf %658, %661 : vector<16x128xf32>
    %c7_315 = arith.constant 7 : index
    %c9_316 = arith.constant 9 : index
    %663 = memref.load %arg5[%c7_315, %c9_316] : memref<16x16xf32, #tpu.memory_space<smem>>
    %664 = vector.broadcast %663 : f32 to vector<16x128xf32>
    %665 = arith.mulf %19, %664 : vector<16x128xf32>
    %666 = arith.addf %662, %665 : vector<16x128xf32>
    %c7_317 = arith.constant 7 : index
    %c10_318 = arith.constant 10 : index
    %667 = memref.load %arg5[%c7_317, %c10_318] : memref<16x16xf32, #tpu.memory_space<smem>>
    %668 = vector.broadcast %667 : f32 to vector<16x128xf32>
    %669 = arith.mulf %21, %668 : vector<16x128xf32>
    %670 = arith.addf %666, %669 : vector<16x128xf32>
    %c7_319 = arith.constant 7 : index
    %c11_320 = arith.constant 11 : index
    %671 = memref.load %arg5[%c7_319, %c11_320] : memref<16x16xf32, #tpu.memory_space<smem>>
    %672 = vector.broadcast %671 : f32 to vector<16x128xf32>
    %673 = arith.mulf %23, %672 : vector<16x128xf32>
    %674 = arith.addf %670, %673 : vector<16x128xf32>
    %c7_321 = arith.constant 7 : index
    %c12_322 = arith.constant 12 : index
    %675 = memref.load %arg5[%c7_321, %c12_322] : memref<16x16xf32, #tpu.memory_space<smem>>
    %676 = vector.broadcast %675 : f32 to vector<16x128xf32>
    %677 = arith.mulf %25, %676 : vector<16x128xf32>
    %678 = arith.addf %674, %677 : vector<16x128xf32>
    %c7_323 = arith.constant 7 : index
    %c13_324 = arith.constant 13 : index
    %679 = memref.load %arg5[%c7_323, %c13_324] : memref<16x16xf32, #tpu.memory_space<smem>>
    %680 = vector.broadcast %679 : f32 to vector<16x128xf32>
    %681 = arith.mulf %27, %680 : vector<16x128xf32>
    %682 = arith.addf %678, %681 : vector<16x128xf32>
    %c7_325 = arith.constant 7 : index
    %c14_326 = arith.constant 14 : index
    %683 = memref.load %arg5[%c7_325, %c14_326] : memref<16x16xf32, #tpu.memory_space<smem>>
    %684 = vector.broadcast %683 : f32 to vector<16x128xf32>
    %685 = arith.mulf %29, %684 : vector<16x128xf32>
    %686 = arith.addf %682, %685 : vector<16x128xf32>
    %c7_327 = arith.constant 7 : index
    %c15_328 = arith.constant 15 : index
    %687 = memref.load %arg5[%c7_327, %c15_328] : memref<16x16xf32, #tpu.memory_space<smem>>
    %688 = vector.broadcast %687 : f32 to vector<16x128xf32>
    %689 = arith.mulf %31, %688 : vector<16x128xf32>
    %690 = arith.addf %686, %689 : vector<16x128xf32>
    %c7_329 = arith.constant 7 : index
    %691 = memref.load %arg6[%c7_329] : memref<16xf32, #tpu.memory_space<smem>>
    %692 = vector.broadcast %691 : f32 to vector<16x128xf32>
    %693 = arith.addf %690, %692 : vector<16x128xf32>
    %c8_330 = arith.constant 8 : index
    %c0_331 = arith.constant 0 : index
    %694 = memref.load %arg5[%c8_330, %c0_331] : memref<16x16xf32, #tpu.memory_space<smem>>
    %695 = vector.broadcast %694 : f32 to vector<16x128xf32>
    %696 = arith.mulf %1, %695 : vector<16x128xf32>
    %c8_332 = arith.constant 8 : index
    %c1_333 = arith.constant 1 : index
    %697 = memref.load %arg5[%c8_332, %c1_333] : memref<16x16xf32, #tpu.memory_space<smem>>
    %698 = vector.broadcast %697 : f32 to vector<16x128xf32>
    %699 = arith.mulf %3, %698 : vector<16x128xf32>
    %700 = arith.addf %696, %699 : vector<16x128xf32>
    %c8_334 = arith.constant 8 : index
    %c2_335 = arith.constant 2 : index
    %701 = memref.load %arg5[%c8_334, %c2_335] : memref<16x16xf32, #tpu.memory_space<smem>>
    %702 = vector.broadcast %701 : f32 to vector<16x128xf32>
    %703 = arith.mulf %5, %702 : vector<16x128xf32>
    %704 = arith.addf %700, %703 : vector<16x128xf32>
    %c8_336 = arith.constant 8 : index
    %c3_337 = arith.constant 3 : index
    %705 = memref.load %arg5[%c8_336, %c3_337] : memref<16x16xf32, #tpu.memory_space<smem>>
    %706 = vector.broadcast %705 : f32 to vector<16x128xf32>
    %707 = arith.mulf %7, %706 : vector<16x128xf32>
    %708 = arith.addf %704, %707 : vector<16x128xf32>
    %c8_338 = arith.constant 8 : index
    %c4_339 = arith.constant 4 : index
    %709 = memref.load %arg5[%c8_338, %c4_339] : memref<16x16xf32, #tpu.memory_space<smem>>
    %710 = vector.broadcast %709 : f32 to vector<16x128xf32>
    %711 = arith.mulf %9, %710 : vector<16x128xf32>
    %712 = arith.addf %708, %711 : vector<16x128xf32>
    %c8_340 = arith.constant 8 : index
    %c5_341 = arith.constant 5 : index
    %713 = memref.load %arg5[%c8_340, %c5_341] : memref<16x16xf32, #tpu.memory_space<smem>>
    %714 = vector.broadcast %713 : f32 to vector<16x128xf32>
    %715 = arith.mulf %11, %714 : vector<16x128xf32>
    %716 = arith.addf %712, %715 : vector<16x128xf32>
    %c8_342 = arith.constant 8 : index
    %c6_343 = arith.constant 6 : index
    %717 = memref.load %arg5[%c8_342, %c6_343] : memref<16x16xf32, #tpu.memory_space<smem>>
    %718 = vector.broadcast %717 : f32 to vector<16x128xf32>
    %719 = arith.mulf %13, %718 : vector<16x128xf32>
    %720 = arith.addf %716, %719 : vector<16x128xf32>
    %c8_344 = arith.constant 8 : index
    %c7_345 = arith.constant 7 : index
    %721 = memref.load %arg5[%c8_344, %c7_345] : memref<16x16xf32, #tpu.memory_space<smem>>
    %722 = vector.broadcast %721 : f32 to vector<16x128xf32>
    %723 = arith.mulf %15, %722 : vector<16x128xf32>
    %724 = arith.addf %720, %723 : vector<16x128xf32>
    %c8_346 = arith.constant 8 : index
    %c8_347 = arith.constant 8 : index
    %725 = memref.load %arg5[%c8_346, %c8_347] : memref<16x16xf32, #tpu.memory_space<smem>>
    %726 = vector.broadcast %725 : f32 to vector<16x128xf32>
    %727 = arith.mulf %17, %726 : vector<16x128xf32>
    %728 = arith.addf %724, %727 : vector<16x128xf32>
    %c8_348 = arith.constant 8 : index
    %c9_349 = arith.constant 9 : index
    %729 = memref.load %arg5[%c8_348, %c9_349] : memref<16x16xf32, #tpu.memory_space<smem>>
    %730 = vector.broadcast %729 : f32 to vector<16x128xf32>
    %731 = arith.mulf %19, %730 : vector<16x128xf32>
    %732 = arith.addf %728, %731 : vector<16x128xf32>
    %c8_350 = arith.constant 8 : index
    %c10_351 = arith.constant 10 : index
    %733 = memref.load %arg5[%c8_350, %c10_351] : memref<16x16xf32, #tpu.memory_space<smem>>
    %734 = vector.broadcast %733 : f32 to vector<16x128xf32>
    %735 = arith.mulf %21, %734 : vector<16x128xf32>
    %736 = arith.addf %732, %735 : vector<16x128xf32>
    %c8_352 = arith.constant 8 : index
    %c11_353 = arith.constant 11 : index
    %737 = memref.load %arg5[%c8_352, %c11_353] : memref<16x16xf32, #tpu.memory_space<smem>>
    %738 = vector.broadcast %737 : f32 to vector<16x128xf32>
    %739 = arith.mulf %23, %738 : vector<16x128xf32>
    %740 = arith.addf %736, %739 : vector<16x128xf32>
    %c8_354 = arith.constant 8 : index
    %c12_355 = arith.constant 12 : index
    %741 = memref.load %arg5[%c8_354, %c12_355] : memref<16x16xf32, #tpu.memory_space<smem>>
    %742 = vector.broadcast %741 : f32 to vector<16x128xf32>
    %743 = arith.mulf %25, %742 : vector<16x128xf32>
    %744 = arith.addf %740, %743 : vector<16x128xf32>
    %c8_356 = arith.constant 8 : index
    %c13_357 = arith.constant 13 : index
    %745 = memref.load %arg5[%c8_356, %c13_357] : memref<16x16xf32, #tpu.memory_space<smem>>
    %746 = vector.broadcast %745 : f32 to vector<16x128xf32>
    %747 = arith.mulf %27, %746 : vector<16x128xf32>
    %748 = arith.addf %744, %747 : vector<16x128xf32>
    %c8_358 = arith.constant 8 : index
    %c14_359 = arith.constant 14 : index
    %749 = memref.load %arg5[%c8_358, %c14_359] : memref<16x16xf32, #tpu.memory_space<smem>>
    %750 = vector.broadcast %749 : f32 to vector<16x128xf32>
    %751 = arith.mulf %29, %750 : vector<16x128xf32>
    %752 = arith.addf %748, %751 : vector<16x128xf32>
    %c8_360 = arith.constant 8 : index
    %c15_361 = arith.constant 15 : index
    %753 = memref.load %arg5[%c8_360, %c15_361] : memref<16x16xf32, #tpu.memory_space<smem>>
    %754 = vector.broadcast %753 : f32 to vector<16x128xf32>
    %755 = arith.mulf %31, %754 : vector<16x128xf32>
    %756 = arith.addf %752, %755 : vector<16x128xf32>
    %c8_362 = arith.constant 8 : index
    %757 = memref.load %arg6[%c8_362] : memref<16xf32, #tpu.memory_space<smem>>
    %758 = vector.broadcast %757 : f32 to vector<16x128xf32>
    %759 = arith.addf %756, %758 : vector<16x128xf32>
    %c9_363 = arith.constant 9 : index
    %c0_364 = arith.constant 0 : index
    %760 = memref.load %arg5[%c9_363, %c0_364] : memref<16x16xf32, #tpu.memory_space<smem>>
    %761 = vector.broadcast %760 : f32 to vector<16x128xf32>
    %762 = arith.mulf %1, %761 : vector<16x128xf32>
    %c9_365 = arith.constant 9 : index
    %c1_366 = arith.constant 1 : index
    %763 = memref.load %arg5[%c9_365, %c1_366] : memref<16x16xf32, #tpu.memory_space<smem>>
    %764 = vector.broadcast %763 : f32 to vector<16x128xf32>
    %765 = arith.mulf %3, %764 : vector<16x128xf32>
    %766 = arith.addf %762, %765 : vector<16x128xf32>
    %c9_367 = arith.constant 9 : index
    %c2_368 = arith.constant 2 : index
    %767 = memref.load %arg5[%c9_367, %c2_368] : memref<16x16xf32, #tpu.memory_space<smem>>
    %768 = vector.broadcast %767 : f32 to vector<16x128xf32>
    %769 = arith.mulf %5, %768 : vector<16x128xf32>
    %770 = arith.addf %766, %769 : vector<16x128xf32>
    %c9_369 = arith.constant 9 : index
    %c3_370 = arith.constant 3 : index
    %771 = memref.load %arg5[%c9_369, %c3_370] : memref<16x16xf32, #tpu.memory_space<smem>>
    %772 = vector.broadcast %771 : f32 to vector<16x128xf32>
    %773 = arith.mulf %7, %772 : vector<16x128xf32>
    %774 = arith.addf %770, %773 : vector<16x128xf32>
    %c9_371 = arith.constant 9 : index
    %c4_372 = arith.constant 4 : index
    %775 = memref.load %arg5[%c9_371, %c4_372] : memref<16x16xf32, #tpu.memory_space<smem>>
    %776 = vector.broadcast %775 : f32 to vector<16x128xf32>
    %777 = arith.mulf %9, %776 : vector<16x128xf32>
    %778 = arith.addf %774, %777 : vector<16x128xf32>
    %c9_373 = arith.constant 9 : index
    %c5_374 = arith.constant 5 : index
    %779 = memref.load %arg5[%c9_373, %c5_374] : memref<16x16xf32, #tpu.memory_space<smem>>
    %780 = vector.broadcast %779 : f32 to vector<16x128xf32>
    %781 = arith.mulf %11, %780 : vector<16x128xf32>
    %782 = arith.addf %778, %781 : vector<16x128xf32>
    %c9_375 = arith.constant 9 : index
    %c6_376 = arith.constant 6 : index
    %783 = memref.load %arg5[%c9_375, %c6_376] : memref<16x16xf32, #tpu.memory_space<smem>>
    %784 = vector.broadcast %783 : f32 to vector<16x128xf32>
    %785 = arith.mulf %13, %784 : vector<16x128xf32>
    %786 = arith.addf %782, %785 : vector<16x128xf32>
    %c9_377 = arith.constant 9 : index
    %c7_378 = arith.constant 7 : index
    %787 = memref.load %arg5[%c9_377, %c7_378] : memref<16x16xf32, #tpu.memory_space<smem>>
    %788 = vector.broadcast %787 : f32 to vector<16x128xf32>
    %789 = arith.mulf %15, %788 : vector<16x128xf32>
    %790 = arith.addf %786, %789 : vector<16x128xf32>
    %c9_379 = arith.constant 9 : index
    %c8_380 = arith.constant 8 : index
    %791 = memref.load %arg5[%c9_379, %c8_380] : memref<16x16xf32, #tpu.memory_space<smem>>
    %792 = vector.broadcast %791 : f32 to vector<16x128xf32>
    %793 = arith.mulf %17, %792 : vector<16x128xf32>
    %794 = arith.addf %790, %793 : vector<16x128xf32>
    %c9_381 = arith.constant 9 : index
    %c9_382 = arith.constant 9 : index
    %795 = memref.load %arg5[%c9_381, %c9_382] : memref<16x16xf32, #tpu.memory_space<smem>>
    %796 = vector.broadcast %795 : f32 to vector<16x128xf32>
    %797 = arith.mulf %19, %796 : vector<16x128xf32>
    %798 = arith.addf %794, %797 : vector<16x128xf32>
    %c9_383 = arith.constant 9 : index
    %c10_384 = arith.constant 10 : index
    %799 = memref.load %arg5[%c9_383, %c10_384] : memref<16x16xf32, #tpu.memory_space<smem>>
    %800 = vector.broadcast %799 : f32 to vector<16x128xf32>
    %801 = arith.mulf %21, %800 : vector<16x128xf32>
    %802 = arith.addf %798, %801 : vector<16x128xf32>
    %c9_385 = arith.constant 9 : index
    %c11_386 = arith.constant 11 : index
    %803 = memref.load %arg5[%c9_385, %c11_386] : memref<16x16xf32, #tpu.memory_space<smem>>
    %804 = vector.broadcast %803 : f32 to vector<16x128xf32>
    %805 = arith.mulf %23, %804 : vector<16x128xf32>
    %806 = arith.addf %802, %805 : vector<16x128xf32>
    %c9_387 = arith.constant 9 : index
    %c12_388 = arith.constant 12 : index
    %807 = memref.load %arg5[%c9_387, %c12_388] : memref<16x16xf32, #tpu.memory_space<smem>>
    %808 = vector.broadcast %807 : f32 to vector<16x128xf32>
    %809 = arith.mulf %25, %808 : vector<16x128xf32>
    %810 = arith.addf %806, %809 : vector<16x128xf32>
    %c9_389 = arith.constant 9 : index
    %c13_390 = arith.constant 13 : index
    %811 = memref.load %arg5[%c9_389, %c13_390] : memref<16x16xf32, #tpu.memory_space<smem>>
    %812 = vector.broadcast %811 : f32 to vector<16x128xf32>
    %813 = arith.mulf %27, %812 : vector<16x128xf32>
    %814 = arith.addf %810, %813 : vector<16x128xf32>
    %c9_391 = arith.constant 9 : index
    %c14_392 = arith.constant 14 : index
    %815 = memref.load %arg5[%c9_391, %c14_392] : memref<16x16xf32, #tpu.memory_space<smem>>
    %816 = vector.broadcast %815 : f32 to vector<16x128xf32>
    %817 = arith.mulf %29, %816 : vector<16x128xf32>
    %818 = arith.addf %814, %817 : vector<16x128xf32>
    %c9_393 = arith.constant 9 : index
    %c15_394 = arith.constant 15 : index
    %819 = memref.load %arg5[%c9_393, %c15_394] : memref<16x16xf32, #tpu.memory_space<smem>>
    %820 = vector.broadcast %819 : f32 to vector<16x128xf32>
    %821 = arith.mulf %31, %820 : vector<16x128xf32>
    %822 = arith.addf %818, %821 : vector<16x128xf32>
    %c9_395 = arith.constant 9 : index
    %823 = memref.load %arg6[%c9_395] : memref<16xf32, #tpu.memory_space<smem>>
    %824 = vector.broadcast %823 : f32 to vector<16x128xf32>
    %825 = arith.addf %822, %824 : vector<16x128xf32>
    %c10_396 = arith.constant 10 : index
    %c0_397 = arith.constant 0 : index
    %826 = memref.load %arg5[%c10_396, %c0_397] : memref<16x16xf32, #tpu.memory_space<smem>>
    %827 = vector.broadcast %826 : f32 to vector<16x128xf32>
    %828 = arith.mulf %1, %827 : vector<16x128xf32>
    %c10_398 = arith.constant 10 : index
    %c1_399 = arith.constant 1 : index
    %829 = memref.load %arg5[%c10_398, %c1_399] : memref<16x16xf32, #tpu.memory_space<smem>>
    %830 = vector.broadcast %829 : f32 to vector<16x128xf32>
    %831 = arith.mulf %3, %830 : vector<16x128xf32>
    %832 = arith.addf %828, %831 : vector<16x128xf32>
    %c10_400 = arith.constant 10 : index
    %c2_401 = arith.constant 2 : index
    %833 = memref.load %arg5[%c10_400, %c2_401] : memref<16x16xf32, #tpu.memory_space<smem>>
    %834 = vector.broadcast %833 : f32 to vector<16x128xf32>
    %835 = arith.mulf %5, %834 : vector<16x128xf32>
    %836 = arith.addf %832, %835 : vector<16x128xf32>
    %c10_402 = arith.constant 10 : index
    %c3_403 = arith.constant 3 : index
    %837 = memref.load %arg5[%c10_402, %c3_403] : memref<16x16xf32, #tpu.memory_space<smem>>
    %838 = vector.broadcast %837 : f32 to vector<16x128xf32>
    %839 = arith.mulf %7, %838 : vector<16x128xf32>
    %840 = arith.addf %836, %839 : vector<16x128xf32>
    %c10_404 = arith.constant 10 : index
    %c4_405 = arith.constant 4 : index
    %841 = memref.load %arg5[%c10_404, %c4_405] : memref<16x16xf32, #tpu.memory_space<smem>>
    %842 = vector.broadcast %841 : f32 to vector<16x128xf32>
    %843 = arith.mulf %9, %842 : vector<16x128xf32>
    %844 = arith.addf %840, %843 : vector<16x128xf32>
    %c10_406 = arith.constant 10 : index
    %c5_407 = arith.constant 5 : index
    %845 = memref.load %arg5[%c10_406, %c5_407] : memref<16x16xf32, #tpu.memory_space<smem>>
    %846 = vector.broadcast %845 : f32 to vector<16x128xf32>
    %847 = arith.mulf %11, %846 : vector<16x128xf32>
    %848 = arith.addf %844, %847 : vector<16x128xf32>
    %c10_408 = arith.constant 10 : index
    %c6_409 = arith.constant 6 : index
    %849 = memref.load %arg5[%c10_408, %c6_409] : memref<16x16xf32, #tpu.memory_space<smem>>
    %850 = vector.broadcast %849 : f32 to vector<16x128xf32>
    %851 = arith.mulf %13, %850 : vector<16x128xf32>
    %852 = arith.addf %848, %851 : vector<16x128xf32>
    %c10_410 = arith.constant 10 : index
    %c7_411 = arith.constant 7 : index
    %853 = memref.load %arg5[%c10_410, %c7_411] : memref<16x16xf32, #tpu.memory_space<smem>>
    %854 = vector.broadcast %853 : f32 to vector<16x128xf32>
    %855 = arith.mulf %15, %854 : vector<16x128xf32>
    %856 = arith.addf %852, %855 : vector<16x128xf32>
    %c10_412 = arith.constant 10 : index
    %c8_413 = arith.constant 8 : index
    %857 = memref.load %arg5[%c10_412, %c8_413] : memref<16x16xf32, #tpu.memory_space<smem>>
    %858 = vector.broadcast %857 : f32 to vector<16x128xf32>
    %859 = arith.mulf %17, %858 : vector<16x128xf32>
    %860 = arith.addf %856, %859 : vector<16x128xf32>
    %c10_414 = arith.constant 10 : index
    %c9_415 = arith.constant 9 : index
    %861 = memref.load %arg5[%c10_414, %c9_415] : memref<16x16xf32, #tpu.memory_space<smem>>
    %862 = vector.broadcast %861 : f32 to vector<16x128xf32>
    %863 = arith.mulf %19, %862 : vector<16x128xf32>
    %864 = arith.addf %860, %863 : vector<16x128xf32>
    %c10_416 = arith.constant 10 : index
    %c10_417 = arith.constant 10 : index
    %865 = memref.load %arg5[%c10_416, %c10_417] : memref<16x16xf32, #tpu.memory_space<smem>>
    %866 = vector.broadcast %865 : f32 to vector<16x128xf32>
    %867 = arith.mulf %21, %866 : vector<16x128xf32>
    %868 = arith.addf %864, %867 : vector<16x128xf32>
    %c10_418 = arith.constant 10 : index
    %c11_419 = arith.constant 11 : index
    %869 = memref.load %arg5[%c10_418, %c11_419] : memref<16x16xf32, #tpu.memory_space<smem>>
    %870 = vector.broadcast %869 : f32 to vector<16x128xf32>
    %871 = arith.mulf %23, %870 : vector<16x128xf32>
    %872 = arith.addf %868, %871 : vector<16x128xf32>
    %c10_420 = arith.constant 10 : index
    %c12_421 = arith.constant 12 : index
    %873 = memref.load %arg5[%c10_420, %c12_421] : memref<16x16xf32, #tpu.memory_space<smem>>
    %874 = vector.broadcast %873 : f32 to vector<16x128xf32>
    %875 = arith.mulf %25, %874 : vector<16x128xf32>
    %876 = arith.addf %872, %875 : vector<16x128xf32>
    %c10_422 = arith.constant 10 : index
    %c13_423 = arith.constant 13 : index
    %877 = memref.load %arg5[%c10_422, %c13_423] : memref<16x16xf32, #tpu.memory_space<smem>>
    %878 = vector.broadcast %877 : f32 to vector<16x128xf32>
    %879 = arith.mulf %27, %878 : vector<16x128xf32>
    %880 = arith.addf %876, %879 : vector<16x128xf32>
    %c10_424 = arith.constant 10 : index
    %c14_425 = arith.constant 14 : index
    %881 = memref.load %arg5[%c10_424, %c14_425] : memref<16x16xf32, #tpu.memory_space<smem>>
    %882 = vector.broadcast %881 : f32 to vector<16x128xf32>
    %883 = arith.mulf %29, %882 : vector<16x128xf32>
    %884 = arith.addf %880, %883 : vector<16x128xf32>
    %c10_426 = arith.constant 10 : index
    %c15_427 = arith.constant 15 : index
    %885 = memref.load %arg5[%c10_426, %c15_427] : memref<16x16xf32, #tpu.memory_space<smem>>
    %886 = vector.broadcast %885 : f32 to vector<16x128xf32>
    %887 = arith.mulf %31, %886 : vector<16x128xf32>
    %888 = arith.addf %884, %887 : vector<16x128xf32>
    %c10_428 = arith.constant 10 : index
    %889 = memref.load %arg6[%c10_428] : memref<16xf32, #tpu.memory_space<smem>>
    %890 = vector.broadcast %889 : f32 to vector<16x128xf32>
    %891 = arith.addf %888, %890 : vector<16x128xf32>
    %c11_429 = arith.constant 11 : index
    %c0_430 = arith.constant 0 : index
    %892 = memref.load %arg5[%c11_429, %c0_430] : memref<16x16xf32, #tpu.memory_space<smem>>
    %893 = vector.broadcast %892 : f32 to vector<16x128xf32>
    %894 = arith.mulf %1, %893 : vector<16x128xf32>
    %c11_431 = arith.constant 11 : index
    %c1_432 = arith.constant 1 : index
    %895 = memref.load %arg5[%c11_431, %c1_432] : memref<16x16xf32, #tpu.memory_space<smem>>
    %896 = vector.broadcast %895 : f32 to vector<16x128xf32>
    %897 = arith.mulf %3, %896 : vector<16x128xf32>
    %898 = arith.addf %894, %897 : vector<16x128xf32>
    %c11_433 = arith.constant 11 : index
    %c2_434 = arith.constant 2 : index
    %899 = memref.load %arg5[%c11_433, %c2_434] : memref<16x16xf32, #tpu.memory_space<smem>>
    %900 = vector.broadcast %899 : f32 to vector<16x128xf32>
    %901 = arith.mulf %5, %900 : vector<16x128xf32>
    %902 = arith.addf %898, %901 : vector<16x128xf32>
    %c11_435 = arith.constant 11 : index
    %c3_436 = arith.constant 3 : index
    %903 = memref.load %arg5[%c11_435, %c3_436] : memref<16x16xf32, #tpu.memory_space<smem>>
    %904 = vector.broadcast %903 : f32 to vector<16x128xf32>
    %905 = arith.mulf %7, %904 : vector<16x128xf32>
    %906 = arith.addf %902, %905 : vector<16x128xf32>
    %c11_437 = arith.constant 11 : index
    %c4_438 = arith.constant 4 : index
    %907 = memref.load %arg5[%c11_437, %c4_438] : memref<16x16xf32, #tpu.memory_space<smem>>
    %908 = vector.broadcast %907 : f32 to vector<16x128xf32>
    %909 = arith.mulf %9, %908 : vector<16x128xf32>
    %910 = arith.addf %906, %909 : vector<16x128xf32>
    %c11_439 = arith.constant 11 : index
    %c5_440 = arith.constant 5 : index
    %911 = memref.load %arg5[%c11_439, %c5_440] : memref<16x16xf32, #tpu.memory_space<smem>>
    %912 = vector.broadcast %911 : f32 to vector<16x128xf32>
    %913 = arith.mulf %11, %912 : vector<16x128xf32>
    %914 = arith.addf %910, %913 : vector<16x128xf32>
    %c11_441 = arith.constant 11 : index
    %c6_442 = arith.constant 6 : index
    %915 = memref.load %arg5[%c11_441, %c6_442] : memref<16x16xf32, #tpu.memory_space<smem>>
    %916 = vector.broadcast %915 : f32 to vector<16x128xf32>
    %917 = arith.mulf %13, %916 : vector<16x128xf32>
    %918 = arith.addf %914, %917 : vector<16x128xf32>
    %c11_443 = arith.constant 11 : index
    %c7_444 = arith.constant 7 : index
    %919 = memref.load %arg5[%c11_443, %c7_444] : memref<16x16xf32, #tpu.memory_space<smem>>
    %920 = vector.broadcast %919 : f32 to vector<16x128xf32>
    %921 = arith.mulf %15, %920 : vector<16x128xf32>
    %922 = arith.addf %918, %921 : vector<16x128xf32>
    %c11_445 = arith.constant 11 : index
    %c8_446 = arith.constant 8 : index
    %923 = memref.load %arg5[%c11_445, %c8_446] : memref<16x16xf32, #tpu.memory_space<smem>>
    %924 = vector.broadcast %923 : f32 to vector<16x128xf32>
    %925 = arith.mulf %17, %924 : vector<16x128xf32>
    %926 = arith.addf %922, %925 : vector<16x128xf32>
    %c11_447 = arith.constant 11 : index
    %c9_448 = arith.constant 9 : index
    %927 = memref.load %arg5[%c11_447, %c9_448] : memref<16x16xf32, #tpu.memory_space<smem>>
    %928 = vector.broadcast %927 : f32 to vector<16x128xf32>
    %929 = arith.mulf %19, %928 : vector<16x128xf32>
    %930 = arith.addf %926, %929 : vector<16x128xf32>
    %c11_449 = arith.constant 11 : index
    %c10_450 = arith.constant 10 : index
    %931 = memref.load %arg5[%c11_449, %c10_450] : memref<16x16xf32, #tpu.memory_space<smem>>
    %932 = vector.broadcast %931 : f32 to vector<16x128xf32>
    %933 = arith.mulf %21, %932 : vector<16x128xf32>
    %934 = arith.addf %930, %933 : vector<16x128xf32>
    %c11_451 = arith.constant 11 : index
    %c11_452 = arith.constant 11 : index
    %935 = memref.load %arg5[%c11_451, %c11_452] : memref<16x16xf32, #tpu.memory_space<smem>>
    %936 = vector.broadcast %935 : f32 to vector<16x128xf32>
    %937 = arith.mulf %23, %936 : vector<16x128xf32>
    %938 = arith.addf %934, %937 : vector<16x128xf32>
    %c11_453 = arith.constant 11 : index
    %c12_454 = arith.constant 12 : index
    %939 = memref.load %arg5[%c11_453, %c12_454] : memref<16x16xf32, #tpu.memory_space<smem>>
    %940 = vector.broadcast %939 : f32 to vector<16x128xf32>
    %941 = arith.mulf %25, %940 : vector<16x128xf32>
    %942 = arith.addf %938, %941 : vector<16x128xf32>
    %c11_455 = arith.constant 11 : index
    %c13_456 = arith.constant 13 : index
    %943 = memref.load %arg5[%c11_455, %c13_456] : memref<16x16xf32, #tpu.memory_space<smem>>
    %944 = vector.broadcast %943 : f32 to vector<16x128xf32>
    %945 = arith.mulf %27, %944 : vector<16x128xf32>
    %946 = arith.addf %942, %945 : vector<16x128xf32>
    %c11_457 = arith.constant 11 : index
    %c14_458 = arith.constant 14 : index
    %947 = memref.load %arg5[%c11_457, %c14_458] : memref<16x16xf32, #tpu.memory_space<smem>>
    %948 = vector.broadcast %947 : f32 to vector<16x128xf32>
    %949 = arith.mulf %29, %948 : vector<16x128xf32>
    %950 = arith.addf %946, %949 : vector<16x128xf32>
    %c11_459 = arith.constant 11 : index
    %c15_460 = arith.constant 15 : index
    %951 = memref.load %arg5[%c11_459, %c15_460] : memref<16x16xf32, #tpu.memory_space<smem>>
    %952 = vector.broadcast %951 : f32 to vector<16x128xf32>
    %953 = arith.mulf %31, %952 : vector<16x128xf32>
    %954 = arith.addf %950, %953 : vector<16x128xf32>
    %c11_461 = arith.constant 11 : index
    %955 = memref.load %arg6[%c11_461] : memref<16xf32, #tpu.memory_space<smem>>
    %956 = vector.broadcast %955 : f32 to vector<16x128xf32>
    %957 = arith.addf %954, %956 : vector<16x128xf32>
    %c12_462 = arith.constant 12 : index
    %c0_463 = arith.constant 0 : index
    %958 = memref.load %arg5[%c12_462, %c0_463] : memref<16x16xf32, #tpu.memory_space<smem>>
    %959 = vector.broadcast %958 : f32 to vector<16x128xf32>
    %960 = arith.mulf %1, %959 : vector<16x128xf32>
    %c12_464 = arith.constant 12 : index
    %c1_465 = arith.constant 1 : index
    %961 = memref.load %arg5[%c12_464, %c1_465] : memref<16x16xf32, #tpu.memory_space<smem>>
    %962 = vector.broadcast %961 : f32 to vector<16x128xf32>
    %963 = arith.mulf %3, %962 : vector<16x128xf32>
    %964 = arith.addf %960, %963 : vector<16x128xf32>
    %c12_466 = arith.constant 12 : index
    %c2_467 = arith.constant 2 : index
    %965 = memref.load %arg5[%c12_466, %c2_467] : memref<16x16xf32, #tpu.memory_space<smem>>
    %966 = vector.broadcast %965 : f32 to vector<16x128xf32>
    %967 = arith.mulf %5, %966 : vector<16x128xf32>
    %968 = arith.addf %964, %967 : vector<16x128xf32>
    %c12_468 = arith.constant 12 : index
    %c3_469 = arith.constant 3 : index
    %969 = memref.load %arg5[%c12_468, %c3_469] : memref<16x16xf32, #tpu.memory_space<smem>>
    %970 = vector.broadcast %969 : f32 to vector<16x128xf32>
    %971 = arith.mulf %7, %970 : vector<16x128xf32>
    %972 = arith.addf %968, %971 : vector<16x128xf32>
    %c12_470 = arith.constant 12 : index
    %c4_471 = arith.constant 4 : index
    %973 = memref.load %arg5[%c12_470, %c4_471] : memref<16x16xf32, #tpu.memory_space<smem>>
    %974 = vector.broadcast %973 : f32 to vector<16x128xf32>
    %975 = arith.mulf %9, %974 : vector<16x128xf32>
    %976 = arith.addf %972, %975 : vector<16x128xf32>
    %c12_472 = arith.constant 12 : index
    %c5_473 = arith.constant 5 : index
    %977 = memref.load %arg5[%c12_472, %c5_473] : memref<16x16xf32, #tpu.memory_space<smem>>
    %978 = vector.broadcast %977 : f32 to vector<16x128xf32>
    %979 = arith.mulf %11, %978 : vector<16x128xf32>
    %980 = arith.addf %976, %979 : vector<16x128xf32>
    %c12_474 = arith.constant 12 : index
    %c6_475 = arith.constant 6 : index
    %981 = memref.load %arg5[%c12_474, %c6_475] : memref<16x16xf32, #tpu.memory_space<smem>>
    %982 = vector.broadcast %981 : f32 to vector<16x128xf32>
    %983 = arith.mulf %13, %982 : vector<16x128xf32>
    %984 = arith.addf %980, %983 : vector<16x128xf32>
    %c12_476 = arith.constant 12 : index
    %c7_477 = arith.constant 7 : index
    %985 = memref.load %arg5[%c12_476, %c7_477] : memref<16x16xf32, #tpu.memory_space<smem>>
    %986 = vector.broadcast %985 : f32 to vector<16x128xf32>
    %987 = arith.mulf %15, %986 : vector<16x128xf32>
    %988 = arith.addf %984, %987 : vector<16x128xf32>
    %c12_478 = arith.constant 12 : index
    %c8_479 = arith.constant 8 : index
    %989 = memref.load %arg5[%c12_478, %c8_479] : memref<16x16xf32, #tpu.memory_space<smem>>
    %990 = vector.broadcast %989 : f32 to vector<16x128xf32>
    %991 = arith.mulf %17, %990 : vector<16x128xf32>
    %992 = arith.addf %988, %991 : vector<16x128xf32>
    %c12_480 = arith.constant 12 : index
    %c9_481 = arith.constant 9 : index
    %993 = memref.load %arg5[%c12_480, %c9_481] : memref<16x16xf32, #tpu.memory_space<smem>>
    %994 = vector.broadcast %993 : f32 to vector<16x128xf32>
    %995 = arith.mulf %19, %994 : vector<16x128xf32>
    %996 = arith.addf %992, %995 : vector<16x128xf32>
    %c12_482 = arith.constant 12 : index
    %c10_483 = arith.constant 10 : index
    %997 = memref.load %arg5[%c12_482, %c10_483] : memref<16x16xf32, #tpu.memory_space<smem>>
    %998 = vector.broadcast %997 : f32 to vector<16x128xf32>
    %999 = arith.mulf %21, %998 : vector<16x128xf32>
    %1000 = arith.addf %996, %999 : vector<16x128xf32>
    %c12_484 = arith.constant 12 : index
    %c11_485 = arith.constant 11 : index
    %1001 = memref.load %arg5[%c12_484, %c11_485] : memref<16x16xf32, #tpu.memory_space<smem>>
    %1002 = vector.broadcast %1001 : f32 to vector<16x128xf32>
    %1003 = arith.mulf %23, %1002 : vector<16x128xf32>
    %1004 = arith.addf %1000, %1003 : vector<16x128xf32>
    %c12_486 = arith.constant 12 : index
    %c12_487 = arith.constant 12 : index
    %1005 = memref.load %arg5[%c12_486, %c12_487] : memref<16x16xf32, #tpu.memory_space<smem>>
    %1006 = vector.broadcast %1005 : f32 to vector<16x128xf32>
    %1007 = arith.mulf %25, %1006 : vector<16x128xf32>
    %1008 = arith.addf %1004, %1007 : vector<16x128xf32>
    %c12_488 = arith.constant 12 : index
    %c13_489 = arith.constant 13 : index
    %1009 = memref.load %arg5[%c12_488, %c13_489] : memref<16x16xf32, #tpu.memory_space<smem>>
    %1010 = vector.broadcast %1009 : f32 to vector<16x128xf32>
    %1011 = arith.mulf %27, %1010 : vector<16x128xf32>
    %1012 = arith.addf %1008, %1011 : vector<16x128xf32>
    %c12_490 = arith.constant 12 : index
    %c14_491 = arith.constant 14 : index
    %1013 = memref.load %arg5[%c12_490, %c14_491] : memref<16x16xf32, #tpu.memory_space<smem>>
    %1014 = vector.broadcast %1013 : f32 to vector<16x128xf32>
    %1015 = arith.mulf %29, %1014 : vector<16x128xf32>
    %1016 = arith.addf %1012, %1015 : vector<16x128xf32>
    %c12_492 = arith.constant 12 : index
    %c15_493 = arith.constant 15 : index
    %1017 = memref.load %arg5[%c12_492, %c15_493] : memref<16x16xf32, #tpu.memory_space<smem>>
    %1018 = vector.broadcast %1017 : f32 to vector<16x128xf32>
    %1019 = arith.mulf %31, %1018 : vector<16x128xf32>
    %1020 = arith.addf %1016, %1019 : vector<16x128xf32>
    %c12_494 = arith.constant 12 : index
    %1021 = memref.load %arg6[%c12_494] : memref<16xf32, #tpu.memory_space<smem>>
    %1022 = vector.broadcast %1021 : f32 to vector<16x128xf32>
    %1023 = arith.addf %1020, %1022 : vector<16x128xf32>
    %c13_495 = arith.constant 13 : index
    %c0_496 = arith.constant 0 : index
    %1024 = memref.load %arg5[%c13_495, %c0_496] : memref<16x16xf32, #tpu.memory_space<smem>>
    %1025 = vector.broadcast %1024 : f32 to vector<16x128xf32>
    %1026 = arith.mulf %1, %1025 : vector<16x128xf32>
    %c13_497 = arith.constant 13 : index
    %c1_498 = arith.constant 1 : index
    %1027 = memref.load %arg5[%c13_497, %c1_498] : memref<16x16xf32, #tpu.memory_space<smem>>
    %1028 = vector.broadcast %1027 : f32 to vector<16x128xf32>
    %1029 = arith.mulf %3, %1028 : vector<16x128xf32>
    %1030 = arith.addf %1026, %1029 : vector<16x128xf32>
    %c13_499 = arith.constant 13 : index
    %c2_500 = arith.constant 2 : index
    %1031 = memref.load %arg5[%c13_499, %c2_500] : memref<16x16xf32, #tpu.memory_space<smem>>
    %1032 = vector.broadcast %1031 : f32 to vector<16x128xf32>
    %1033 = arith.mulf %5, %1032 : vector<16x128xf32>
    %1034 = arith.addf %1030, %1033 : vector<16x128xf32>
    %c13_501 = arith.constant 13 : index
    %c3_502 = arith.constant 3 : index
    %1035 = memref.load %arg5[%c13_501, %c3_502] : memref<16x16xf32, #tpu.memory_space<smem>>
    %1036 = vector.broadcast %1035 : f32 to vector<16x128xf32>
    %1037 = arith.mulf %7, %1036 : vector<16x128xf32>
    %1038 = arith.addf %1034, %1037 : vector<16x128xf32>
    %c13_503 = arith.constant 13 : index
    %c4_504 = arith.constant 4 : index
    %1039 = memref.load %arg5[%c13_503, %c4_504] : memref<16x16xf32, #tpu.memory_space<smem>>
    %1040 = vector.broadcast %1039 : f32 to vector<16x128xf32>
    %1041 = arith.mulf %9, %1040 : vector<16x128xf32>
    %1042 = arith.addf %1038, %1041 : vector<16x128xf32>
    %c13_505 = arith.constant 13 : index
    %c5_506 = arith.constant 5 : index
    %1043 = memref.load %arg5[%c13_505, %c5_506] : memref<16x16xf32, #tpu.memory_space<smem>>
    %1044 = vector.broadcast %1043 : f32 to vector<16x128xf32>
    %1045 = arith.mulf %11, %1044 : vector<16x128xf32>
    %1046 = arith.addf %1042, %1045 : vector<16x128xf32>
    %c13_507 = arith.constant 13 : index
    %c6_508 = arith.constant 6 : index
    %1047 = memref.load %arg5[%c13_507, %c6_508] : memref<16x16xf32, #tpu.memory_space<smem>>
    %1048 = vector.broadcast %1047 : f32 to vector<16x128xf32>
    %1049 = arith.mulf %13, %1048 : vector<16x128xf32>
    %1050 = arith.addf %1046, %1049 : vector<16x128xf32>
    %c13_509 = arith.constant 13 : index
    %c7_510 = arith.constant 7 : index
    %1051 = memref.load %arg5[%c13_509, %c7_510] : memref<16x16xf32, #tpu.memory_space<smem>>
    %1052 = vector.broadcast %1051 : f32 to vector<16x128xf32>
    %1053 = arith.mulf %15, %1052 : vector<16x128xf32>
    %1054 = arith.addf %1050, %1053 : vector<16x128xf32>
    %c13_511 = arith.constant 13 : index
    %c8_512 = arith.constant 8 : index
    %1055 = memref.load %arg5[%c13_511, %c8_512] : memref<16x16xf32, #tpu.memory_space<smem>>
    %1056 = vector.broadcast %1055 : f32 to vector<16x128xf32>
    %1057 = arith.mulf %17, %1056 : vector<16x128xf32>
    %1058 = arith.addf %1054, %1057 : vector<16x128xf32>
    %c13_513 = arith.constant 13 : index
    %c9_514 = arith.constant 9 : index
    %1059 = memref.load %arg5[%c13_513, %c9_514] : memref<16x16xf32, #tpu.memory_space<smem>>
    %1060 = vector.broadcast %1059 : f32 to vector<16x128xf32>
    %1061 = arith.mulf %19, %1060 : vector<16x128xf32>
    %1062 = arith.addf %1058, %1061 : vector<16x128xf32>
    %c13_515 = arith.constant 13 : index
    %c10_516 = arith.constant 10 : index
    %1063 = memref.load %arg5[%c13_515, %c10_516] : memref<16x16xf32, #tpu.memory_space<smem>>
    %1064 = vector.broadcast %1063 : f32 to vector<16x128xf32>
    %1065 = arith.mulf %21, %1064 : vector<16x128xf32>
    %1066 = arith.addf %1062, %1065 : vector<16x128xf32>
    %c13_517 = arith.constant 13 : index
    %c11_518 = arith.constant 11 : index
    %1067 = memref.load %arg5[%c13_517, %c11_518] : memref<16x16xf32, #tpu.memory_space<smem>>
    %1068 = vector.broadcast %1067 : f32 to vector<16x128xf32>
    %1069 = arith.mulf %23, %1068 : vector<16x128xf32>
    %1070 = arith.addf %1066, %1069 : vector<16x128xf32>
    %c13_519 = arith.constant 13 : index
    %c12_520 = arith.constant 12 : index
    %1071 = memref.load %arg5[%c13_519, %c12_520] : memref<16x16xf32, #tpu.memory_space<smem>>
    %1072 = vector.broadcast %1071 : f32 to vector<16x128xf32>
    %1073 = arith.mulf %25, %1072 : vector<16x128xf32>
    %1074 = arith.addf %1070, %1073 : vector<16x128xf32>
    %c13_521 = arith.constant 13 : index
    %c13_522 = arith.constant 13 : index
    %1075 = memref.load %arg5[%c13_521, %c13_522] : memref<16x16xf32, #tpu.memory_space<smem>>
    %1076 = vector.broadcast %1075 : f32 to vector<16x128xf32>
    %1077 = arith.mulf %27, %1076 : vector<16x128xf32>
    %1078 = arith.addf %1074, %1077 : vector<16x128xf32>
    %c13_523 = arith.constant 13 : index
    %c14_524 = arith.constant 14 : index
    %1079 = memref.load %arg5[%c13_523, %c14_524] : memref<16x16xf32, #tpu.memory_space<smem>>
    %1080 = vector.broadcast %1079 : f32 to vector<16x128xf32>
    %1081 = arith.mulf %29, %1080 : vector<16x128xf32>
    %1082 = arith.addf %1078, %1081 : vector<16x128xf32>
    %c13_525 = arith.constant 13 : index
    %c15_526 = arith.constant 15 : index
    %1083 = memref.load %arg5[%c13_525, %c15_526] : memref<16x16xf32, #tpu.memory_space<smem>>
    %1084 = vector.broadcast %1083 : f32 to vector<16x128xf32>
    %1085 = arith.mulf %31, %1084 : vector<16x128xf32>
    %1086 = arith.addf %1082, %1085 : vector<16x128xf32>
    %c13_527 = arith.constant 13 : index
    %1087 = memref.load %arg6[%c13_527] : memref<16xf32, #tpu.memory_space<smem>>
    %1088 = vector.broadcast %1087 : f32 to vector<16x128xf32>
    %1089 = arith.addf %1086, %1088 : vector<16x128xf32>
    %c14_528 = arith.constant 14 : index
    %c0_529 = arith.constant 0 : index
    %1090 = memref.load %arg5[%c14_528, %c0_529] : memref<16x16xf32, #tpu.memory_space<smem>>
    %1091 = vector.broadcast %1090 : f32 to vector<16x128xf32>
    %1092 = arith.mulf %1, %1091 : vector<16x128xf32>
    %c14_530 = arith.constant 14 : index
    %c1_531 = arith.constant 1 : index
    %1093 = memref.load %arg5[%c14_530, %c1_531] : memref<16x16xf32, #tpu.memory_space<smem>>
    %1094 = vector.broadcast %1093 : f32 to vector<16x128xf32>
    %1095 = arith.mulf %3, %1094 : vector<16x128xf32>
    %1096 = arith.addf %1092, %1095 : vector<16x128xf32>
    %c14_532 = arith.constant 14 : index
    %c2_533 = arith.constant 2 : index
    %1097 = memref.load %arg5[%c14_532, %c2_533] : memref<16x16xf32, #tpu.memory_space<smem>>
    %1098 = vector.broadcast %1097 : f32 to vector<16x128xf32>
    %1099 = arith.mulf %5, %1098 : vector<16x128xf32>
    %1100 = arith.addf %1096, %1099 : vector<16x128xf32>
    %c14_534 = arith.constant 14 : index
    %c3_535 = arith.constant 3 : index
    %1101 = memref.load %arg5[%c14_534, %c3_535] : memref<16x16xf32, #tpu.memory_space<smem>>
    %1102 = vector.broadcast %1101 : f32 to vector<16x128xf32>
    %1103 = arith.mulf %7, %1102 : vector<16x128xf32>
    %1104 = arith.addf %1100, %1103 : vector<16x128xf32>
    %c14_536 = arith.constant 14 : index
    %c4_537 = arith.constant 4 : index
    %1105 = memref.load %arg5[%c14_536, %c4_537] : memref<16x16xf32, #tpu.memory_space<smem>>
    %1106 = vector.broadcast %1105 : f32 to vector<16x128xf32>
    %1107 = arith.mulf %9, %1106 : vector<16x128xf32>
    %1108 = arith.addf %1104, %1107 : vector<16x128xf32>
    %c14_538 = arith.constant 14 : index
    %c5_539 = arith.constant 5 : index
    %1109 = memref.load %arg5[%c14_538, %c5_539] : memref<16x16xf32, #tpu.memory_space<smem>>
    %1110 = vector.broadcast %1109 : f32 to vector<16x128xf32>
    %1111 = arith.mulf %11, %1110 : vector<16x128xf32>
    %1112 = arith.addf %1108, %1111 : vector<16x128xf32>
    %c14_540 = arith.constant 14 : index
    %c6_541 = arith.constant 6 : index
    %1113 = memref.load %arg5[%c14_540, %c6_541] : memref<16x16xf32, #tpu.memory_space<smem>>
    %1114 = vector.broadcast %1113 : f32 to vector<16x128xf32>
    %1115 = arith.mulf %13, %1114 : vector<16x128xf32>
    %1116 = arith.addf %1112, %1115 : vector<16x128xf32>
    %c14_542 = arith.constant 14 : index
    %c7_543 = arith.constant 7 : index
    %1117 = memref.load %arg5[%c14_542, %c7_543] : memref<16x16xf32, #tpu.memory_space<smem>>
    %1118 = vector.broadcast %1117 : f32 to vector<16x128xf32>
    %1119 = arith.mulf %15, %1118 : vector<16x128xf32>
    %1120 = arith.addf %1116, %1119 : vector<16x128xf32>
    %c14_544 = arith.constant 14 : index
    %c8_545 = arith.constant 8 : index
    %1121 = memref.load %arg5[%c14_544, %c8_545] : memref<16x16xf32, #tpu.memory_space<smem>>
    %1122 = vector.broadcast %1121 : f32 to vector<16x128xf32>
    %1123 = arith.mulf %17, %1122 : vector<16x128xf32>
    %1124 = arith.addf %1120, %1123 : vector<16x128xf32>
    %c14_546 = arith.constant 14 : index
    %c9_547 = arith.constant 9 : index
    %1125 = memref.load %arg5[%c14_546, %c9_547] : memref<16x16xf32, #tpu.memory_space<smem>>
    %1126 = vector.broadcast %1125 : f32 to vector<16x128xf32>
    %1127 = arith.mulf %19, %1126 : vector<16x128xf32>
    %1128 = arith.addf %1124, %1127 : vector<16x128xf32>
    %c14_548 = arith.constant 14 : index
    %c10_549 = arith.constant 10 : index
    %1129 = memref.load %arg5[%c14_548, %c10_549] : memref<16x16xf32, #tpu.memory_space<smem>>
    %1130 = vector.broadcast %1129 : f32 to vector<16x128xf32>
    %1131 = arith.mulf %21, %1130 : vector<16x128xf32>
    %1132 = arith.addf %1128, %1131 : vector<16x128xf32>
    %c14_550 = arith.constant 14 : index
    %c11_551 = arith.constant 11 : index
    %1133 = memref.load %arg5[%c14_550, %c11_551] : memref<16x16xf32, #tpu.memory_space<smem>>
    %1134 = vector.broadcast %1133 : f32 to vector<16x128xf32>
    %1135 = arith.mulf %23, %1134 : vector<16x128xf32>
    %1136 = arith.addf %1132, %1135 : vector<16x128xf32>
    %c14_552 = arith.constant 14 : index
    %c12_553 = arith.constant 12 : index
    %1137 = memref.load %arg5[%c14_552, %c12_553] : memref<16x16xf32, #tpu.memory_space<smem>>
    %1138 = vector.broadcast %1137 : f32 to vector<16x128xf32>
    %1139 = arith.mulf %25, %1138 : vector<16x128xf32>
    %1140 = arith.addf %1136, %1139 : vector<16x128xf32>
    %c14_554 = arith.constant 14 : index
    %c13_555 = arith.constant 13 : index
    %1141 = memref.load %arg5[%c14_554, %c13_555] : memref<16x16xf32, #tpu.memory_space<smem>>
    %1142 = vector.broadcast %1141 : f32 to vector<16x128xf32>
    %1143 = arith.mulf %27, %1142 : vector<16x128xf32>
    %1144 = arith.addf %1140, %1143 : vector<16x128xf32>
    %c14_556 = arith.constant 14 : index
    %c14_557 = arith.constant 14 : index
    %1145 = memref.load %arg5[%c14_556, %c14_557] : memref<16x16xf32, #tpu.memory_space<smem>>
    %1146 = vector.broadcast %1145 : f32 to vector<16x128xf32>
    %1147 = arith.mulf %29, %1146 : vector<16x128xf32>
    %1148 = arith.addf %1144, %1147 : vector<16x128xf32>
    %c14_558 = arith.constant 14 : index
    %c15_559 = arith.constant 15 : index
    %1149 = memref.load %arg5[%c14_558, %c15_559] : memref<16x16xf32, #tpu.memory_space<smem>>
    %1150 = vector.broadcast %1149 : f32 to vector<16x128xf32>
    %1151 = arith.mulf %31, %1150 : vector<16x128xf32>
    %1152 = arith.addf %1148, %1151 : vector<16x128xf32>
    %c14_560 = arith.constant 14 : index
    %1153 = memref.load %arg6[%c14_560] : memref<16xf32, #tpu.memory_space<smem>>
    %1154 = vector.broadcast %1153 : f32 to vector<16x128xf32>
    %1155 = arith.addf %1152, %1154 : vector<16x128xf32>
    %c15_561 = arith.constant 15 : index
    %c0_562 = arith.constant 0 : index
    %1156 = memref.load %arg5[%c15_561, %c0_562] : memref<16x16xf32, #tpu.memory_space<smem>>
    %1157 = vector.broadcast %1156 : f32 to vector<16x128xf32>
    %1158 = arith.mulf %1, %1157 : vector<16x128xf32>
    %c15_563 = arith.constant 15 : index
    %c1_564 = arith.constant 1 : index
    %1159 = memref.load %arg5[%c15_563, %c1_564] : memref<16x16xf32, #tpu.memory_space<smem>>
    %1160 = vector.broadcast %1159 : f32 to vector<16x128xf32>
    %1161 = arith.mulf %3, %1160 : vector<16x128xf32>
    %1162 = arith.addf %1158, %1161 : vector<16x128xf32>
    %c15_565 = arith.constant 15 : index
    %c2_566 = arith.constant 2 : index
    %1163 = memref.load %arg5[%c15_565, %c2_566] : memref<16x16xf32, #tpu.memory_space<smem>>
    %1164 = vector.broadcast %1163 : f32 to vector<16x128xf32>
    %1165 = arith.mulf %5, %1164 : vector<16x128xf32>
    %1166 = arith.addf %1162, %1165 : vector<16x128xf32>
    %c15_567 = arith.constant 15 : index
    %c3_568 = arith.constant 3 : index
    %1167 = memref.load %arg5[%c15_567, %c3_568] : memref<16x16xf32, #tpu.memory_space<smem>>
    %1168 = vector.broadcast %1167 : f32 to vector<16x128xf32>
    %1169 = arith.mulf %7, %1168 : vector<16x128xf32>
    %1170 = arith.addf %1166, %1169 : vector<16x128xf32>
    %c15_569 = arith.constant 15 : index
    %c4_570 = arith.constant 4 : index
    %1171 = memref.load %arg5[%c15_569, %c4_570] : memref<16x16xf32, #tpu.memory_space<smem>>
    %1172 = vector.broadcast %1171 : f32 to vector<16x128xf32>
    %1173 = arith.mulf %9, %1172 : vector<16x128xf32>
    %1174 = arith.addf %1170, %1173 : vector<16x128xf32>
    %c15_571 = arith.constant 15 : index
    %c5_572 = arith.constant 5 : index
    %1175 = memref.load %arg5[%c15_571, %c5_572] : memref<16x16xf32, #tpu.memory_space<smem>>
    %1176 = vector.broadcast %1175 : f32 to vector<16x128xf32>
    %1177 = arith.mulf %11, %1176 : vector<16x128xf32>
    %1178 = arith.addf %1174, %1177 : vector<16x128xf32>
    %c15_573 = arith.constant 15 : index
    %c6_574 = arith.constant 6 : index
    %1179 = memref.load %arg5[%c15_573, %c6_574] : memref<16x16xf32, #tpu.memory_space<smem>>
    %1180 = vector.broadcast %1179 : f32 to vector<16x128xf32>
    %1181 = arith.mulf %13, %1180 : vector<16x128xf32>
    %1182 = arith.addf %1178, %1181 : vector<16x128xf32>
    %c15_575 = arith.constant 15 : index
    %c7_576 = arith.constant 7 : index
    %1183 = memref.load %arg5[%c15_575, %c7_576] : memref<16x16xf32, #tpu.memory_space<smem>>
    %1184 = vector.broadcast %1183 : f32 to vector<16x128xf32>
    %1185 = arith.mulf %15, %1184 : vector<16x128xf32>
    %1186 = arith.addf %1182, %1185 : vector<16x128xf32>
    %c15_577 = arith.constant 15 : index
    %c8_578 = arith.constant 8 : index
    %1187 = memref.load %arg5[%c15_577, %c8_578] : memref<16x16xf32, #tpu.memory_space<smem>>
    %1188 = vector.broadcast %1187 : f32 to vector<16x128xf32>
    %1189 = arith.mulf %17, %1188 : vector<16x128xf32>
    %1190 = arith.addf %1186, %1189 : vector<16x128xf32>
    %c15_579 = arith.constant 15 : index
    %c9_580 = arith.constant 9 : index
    %1191 = memref.load %arg5[%c15_579, %c9_580] : memref<16x16xf32, #tpu.memory_space<smem>>
    %1192 = vector.broadcast %1191 : f32 to vector<16x128xf32>
    %1193 = arith.mulf %19, %1192 : vector<16x128xf32>
    %1194 = arith.addf %1190, %1193 : vector<16x128xf32>
    %c15_581 = arith.constant 15 : index
    %c10_582 = arith.constant 10 : index
    %1195 = memref.load %arg5[%c15_581, %c10_582] : memref<16x16xf32, #tpu.memory_space<smem>>
    %1196 = vector.broadcast %1195 : f32 to vector<16x128xf32>
    %1197 = arith.mulf %21, %1196 : vector<16x128xf32>
    %1198 = arith.addf %1194, %1197 : vector<16x128xf32>
    %c15_583 = arith.constant 15 : index
    %c11_584 = arith.constant 11 : index
    %1199 = memref.load %arg5[%c15_583, %c11_584] : memref<16x16xf32, #tpu.memory_space<smem>>
    %1200 = vector.broadcast %1199 : f32 to vector<16x128xf32>
    %1201 = arith.mulf %23, %1200 : vector<16x128xf32>
    %1202 = arith.addf %1198, %1201 : vector<16x128xf32>
    %c15_585 = arith.constant 15 : index
    %c12_586 = arith.constant 12 : index
    %1203 = memref.load %arg5[%c15_585, %c12_586] : memref<16x16xf32, #tpu.memory_space<smem>>
    %1204 = vector.broadcast %1203 : f32 to vector<16x128xf32>
    %1205 = arith.mulf %25, %1204 : vector<16x128xf32>
    %1206 = arith.addf %1202, %1205 : vector<16x128xf32>
    %c15_587 = arith.constant 15 : index
    %c13_588 = arith.constant 13 : index
    %1207 = memref.load %arg5[%c15_587, %c13_588] : memref<16x16xf32, #tpu.memory_space<smem>>
    %1208 = vector.broadcast %1207 : f32 to vector<16x128xf32>
    %1209 = arith.mulf %27, %1208 : vector<16x128xf32>
    %1210 = arith.addf %1206, %1209 : vector<16x128xf32>
    %c15_589 = arith.constant 15 : index
    %c14_590 = arith.constant 14 : index
    %1211 = memref.load %arg5[%c15_589, %c14_590] : memref<16x16xf32, #tpu.memory_space<smem>>
    %1212 = vector.broadcast %1211 : f32 to vector<16x128xf32>
    %1213 = arith.mulf %29, %1212 : vector<16x128xf32>
    %1214 = arith.addf %1210, %1213 : vector<16x128xf32>
    %c15_591 = arith.constant 15 : index
    %c15_592 = arith.constant 15 : index
    %1215 = memref.load %arg5[%c15_591, %c15_592] : memref<16x16xf32, #tpu.memory_space<smem>>
    %1216 = vector.broadcast %1215 : f32 to vector<16x128xf32>
    %1217 = arith.mulf %31, %1216 : vector<16x128xf32>
    %1218 = arith.addf %1214, %1217 : vector<16x128xf32>
    %c15_593 = arith.constant 15 : index
    %1219 = memref.load %arg6[%c15_593] : memref<16xf32, #tpu.memory_space<smem>>
    %1220 = vector.broadcast %1219 : f32 to vector<16x128xf32>
    %1221 = arith.addf %1218, %1220 : vector<16x128xf32>
    %cst_594 = arith.constant dense<0xFF800000> : vector<128xf32>
    %1222 = vector.multi_reduction <maximumf>, %165, %cst_594 [0] : vector<16x128xf32> to vector<128xf32>
    %1223 = vector.shape_cast %1222 : vector<128xf32> to vector<1x128xf32>
    %cst_595 = arith.constant dense<0x7F800000> : vector<128xf32>
    %1224 = vector.multi_reduction <minimumf>, %165, %cst_595 [0] : vector<16x128xf32> to vector<128xf32>
    %1225 = vector.shape_cast %1224 : vector<128xf32> to vector<1x128xf32>
    %1226 = vector.broadcast %1223 : vector<1x128xf32> to vector<16x128xf32>
    %1227 = arith.mulf %160, %1226 : vector<16x128xf32>
    %1228 = vector.broadcast %1225 : vector<1x128xf32> to vector<16x128xf32>
    %1229 = arith.mulf %160, %1228 : vector<16x128xf32>
    %1230 = arith.maximumf %1227, %1229 : vector<16x128xf32>
    %1231 = vector.extract_strided_slice %165 {offsets = [0, 0], sizes = [1, 128], strides = [1, 1]} : vector<16x128xf32> to vector<1x128xf32>
    %1232 = vector.shape_cast %1231 : vector<1x128xf32> to vector<128xf32>
    %1233 = vector.shape_cast %1232 : vector<128xf32> to vector<1x128xf32>
    %1234 = vector.broadcast %1233 : vector<1x128xf32> to vector<16x128xf32>
    %1235 = arith.mulf %160, %1234 : vector<16x128xf32>
    %1236 = arith.subf %1235, %1230 : vector<16x128xf32>
    %1237 = math.exp %1236 : vector<16x128xf32>
    %1238 = vector.extract_strided_slice %231 {offsets = [0, 0], sizes = [1, 128], strides = [1, 1]} : vector<16x128xf32> to vector<1x128xf32>
    %1239 = vector.shape_cast %1238 : vector<1x128xf32> to vector<128xf32>
    %1240 = vector.shape_cast %1239 : vector<128xf32> to vector<1x128xf32>
    %1241 = vector.broadcast %1240 : vector<1x128xf32> to vector<16x128xf32>
    %1242 = arith.mulf %1237, %1241 : vector<16x128xf32>
    %1243 = vector.extract_strided_slice %297 {offsets = [0, 0], sizes = [1, 128], strides = [1, 1]} : vector<16x128xf32> to vector<1x128xf32>
    %1244 = vector.shape_cast %1243 : vector<1x128xf32> to vector<128xf32>
    %1245 = vector.shape_cast %1244 : vector<128xf32> to vector<1x128xf32>
    %1246 = vector.broadcast %1245 : vector<1x128xf32> to vector<16x128xf32>
    %1247 = arith.mulf %1237, %1246 : vector<16x128xf32>
    %1248 = vector.extract_strided_slice %363 {offsets = [0, 0], sizes = [1, 128], strides = [1, 1]} : vector<16x128xf32> to vector<1x128xf32>
    %1249 = vector.shape_cast %1248 : vector<1x128xf32> to vector<128xf32>
    %1250 = vector.shape_cast %1249 : vector<128xf32> to vector<1x128xf32>
    %1251 = vector.broadcast %1250 : vector<1x128xf32> to vector<16x128xf32>
    %1252 = arith.mulf %1237, %1251 : vector<16x128xf32>
    %1253 = vector.extract_strided_slice %429 {offsets = [0, 0], sizes = [1, 128], strides = [1, 1]} : vector<16x128xf32> to vector<1x128xf32>
    %1254 = vector.shape_cast %1253 : vector<1x128xf32> to vector<128xf32>
    %1255 = vector.shape_cast %1254 : vector<128xf32> to vector<1x128xf32>
    %1256 = vector.broadcast %1255 : vector<1x128xf32> to vector<16x128xf32>
    %1257 = arith.mulf %1237, %1256 : vector<16x128xf32>
    %1258 = vector.extract_strided_slice %495 {offsets = [0, 0], sizes = [1, 128], strides = [1, 1]} : vector<16x128xf32> to vector<1x128xf32>
    %1259 = vector.shape_cast %1258 : vector<1x128xf32> to vector<128xf32>
    %1260 = vector.shape_cast %1259 : vector<128xf32> to vector<1x128xf32>
    %1261 = vector.broadcast %1260 : vector<1x128xf32> to vector<16x128xf32>
    %1262 = arith.mulf %1237, %1261 : vector<16x128xf32>
    %1263 = vector.extract_strided_slice %561 {offsets = [0, 0], sizes = [1, 128], strides = [1, 1]} : vector<16x128xf32> to vector<1x128xf32>
    %1264 = vector.shape_cast %1263 : vector<1x128xf32> to vector<128xf32>
    %1265 = vector.shape_cast %1264 : vector<128xf32> to vector<1x128xf32>
    %1266 = vector.broadcast %1265 : vector<1x128xf32> to vector<16x128xf32>
    %1267 = arith.mulf %1237, %1266 : vector<16x128xf32>
    %1268 = vector.extract_strided_slice %627 {offsets = [0, 0], sizes = [1, 128], strides = [1, 1]} : vector<16x128xf32> to vector<1x128xf32>
    %1269 = vector.shape_cast %1268 : vector<1x128xf32> to vector<128xf32>
    %1270 = vector.shape_cast %1269 : vector<128xf32> to vector<1x128xf32>
    %1271 = vector.broadcast %1270 : vector<1x128xf32> to vector<16x128xf32>
    %1272 = arith.mulf %1237, %1271 : vector<16x128xf32>
    %1273 = vector.extract_strided_slice %693 {offsets = [0, 0], sizes = [1, 128], strides = [1, 1]} : vector<16x128xf32> to vector<1x128xf32>
    %1274 = vector.shape_cast %1273 : vector<1x128xf32> to vector<128xf32>
    %1275 = vector.shape_cast %1274 : vector<128xf32> to vector<1x128xf32>
    %1276 = vector.broadcast %1275 : vector<1x128xf32> to vector<16x128xf32>
    %1277 = arith.mulf %1237, %1276 : vector<16x128xf32>
    %1278 = vector.extract_strided_slice %759 {offsets = [0, 0], sizes = [1, 128], strides = [1, 1]} : vector<16x128xf32> to vector<1x128xf32>
    %1279 = vector.shape_cast %1278 : vector<1x128xf32> to vector<128xf32>
    %1280 = vector.shape_cast %1279 : vector<128xf32> to vector<1x128xf32>
    %1281 = vector.broadcast %1280 : vector<1x128xf32> to vector<16x128xf32>
    %1282 = arith.mulf %1237, %1281 : vector<16x128xf32>
    %1283 = vector.extract_strided_slice %825 {offsets = [0, 0], sizes = [1, 128], strides = [1, 1]} : vector<16x128xf32> to vector<1x128xf32>
    %1284 = vector.shape_cast %1283 : vector<1x128xf32> to vector<128xf32>
    %1285 = vector.shape_cast %1284 : vector<128xf32> to vector<1x128xf32>
    %1286 = vector.broadcast %1285 : vector<1x128xf32> to vector<16x128xf32>
    %1287 = arith.mulf %1237, %1286 : vector<16x128xf32>
    %1288 = vector.extract_strided_slice %891 {offsets = [0, 0], sizes = [1, 128], strides = [1, 1]} : vector<16x128xf32> to vector<1x128xf32>
    %1289 = vector.shape_cast %1288 : vector<1x128xf32> to vector<128xf32>
    %1290 = vector.shape_cast %1289 : vector<128xf32> to vector<1x128xf32>
    %1291 = vector.broadcast %1290 : vector<1x128xf32> to vector<16x128xf32>
    %1292 = arith.mulf %1237, %1291 : vector<16x128xf32>
    %1293 = vector.extract_strided_slice %957 {offsets = [0, 0], sizes = [1, 128], strides = [1, 1]} : vector<16x128xf32> to vector<1x128xf32>
    %1294 = vector.shape_cast %1293 : vector<1x128xf32> to vector<128xf32>
    %1295 = vector.shape_cast %1294 : vector<128xf32> to vector<1x128xf32>
    %1296 = vector.broadcast %1295 : vector<1x128xf32> to vector<16x128xf32>
    %1297 = arith.mulf %1237, %1296 : vector<16x128xf32>
    %1298 = vector.extract_strided_slice %1023 {offsets = [0, 0], sizes = [1, 128], strides = [1, 1]} : vector<16x128xf32> to vector<1x128xf32>
    %1299 = vector.shape_cast %1298 : vector<1x128xf32> to vector<128xf32>
    %1300 = vector.shape_cast %1299 : vector<128xf32> to vector<1x128xf32>
    %1301 = vector.broadcast %1300 : vector<1x128xf32> to vector<16x128xf32>
    %1302 = arith.mulf %1237, %1301 : vector<16x128xf32>
    %1303 = vector.extract_strided_slice %1089 {offsets = [0, 0], sizes = [1, 128], strides = [1, 1]} : vector<16x128xf32> to vector<1x128xf32>
    %1304 = vector.shape_cast %1303 : vector<1x128xf32> to vector<128xf32>
    %1305 = vector.shape_cast %1304 : vector<128xf32> to vector<1x128xf32>
    %1306 = vector.broadcast %1305 : vector<1x128xf32> to vector<16x128xf32>
    %1307 = arith.mulf %1237, %1306 : vector<16x128xf32>
    %1308 = vector.extract_strided_slice %1155 {offsets = [0, 0], sizes = [1, 128], strides = [1, 1]} : vector<16x128xf32> to vector<1x128xf32>
    %1309 = vector.shape_cast %1308 : vector<1x128xf32> to vector<128xf32>
    %1310 = vector.shape_cast %1309 : vector<128xf32> to vector<1x128xf32>
    %1311 = vector.broadcast %1310 : vector<1x128xf32> to vector<16x128xf32>
    %1312 = arith.mulf %1237, %1311 : vector<16x128xf32>
    %1313 = vector.extract_strided_slice %1221 {offsets = [0, 0], sizes = [1, 128], strides = [1, 1]} : vector<16x128xf32> to vector<1x128xf32>
    %1314 = vector.shape_cast %1313 : vector<1x128xf32> to vector<128xf32>
    %1315 = vector.shape_cast %1314 : vector<128xf32> to vector<1x128xf32>
    %1316 = vector.broadcast %1315 : vector<1x128xf32> to vector<16x128xf32>
    %1317 = arith.mulf %1237, %1316 : vector<16x128xf32>
    %1318 = vector.extract_strided_slice %165 {offsets = [1, 0], sizes = [1, 128], strides = [1, 1]} : vector<16x128xf32> to vector<1x128xf32>
    %1319 = vector.shape_cast %1318 : vector<1x128xf32> to vector<128xf32>
    %1320 = vector.shape_cast %1319 : vector<128xf32> to vector<1x128xf32>
    %1321 = vector.broadcast %1320 : vector<1x128xf32> to vector<16x128xf32>
    %1322 = arith.mulf %160, %1321 : vector<16x128xf32>
    %1323 = arith.subf %1322, %1230 : vector<16x128xf32>
    %1324 = math.exp %1323 : vector<16x128xf32>
    %1325 = arith.addf %1237, %1324 : vector<16x128xf32>
    %1326 = vector.extract_strided_slice %231 {offsets = [1, 0], sizes = [1, 128], strides = [1, 1]} : vector<16x128xf32> to vector<1x128xf32>
    %1327 = vector.shape_cast %1326 : vector<1x128xf32> to vector<128xf32>
    %1328 = vector.shape_cast %1327 : vector<128xf32> to vector<1x128xf32>
    %1329 = vector.broadcast %1328 : vector<1x128xf32> to vector<16x128xf32>
    %1330 = arith.mulf %1324, %1329 : vector<16x128xf32>
    %1331 = arith.addf %1242, %1330 : vector<16x128xf32>
    %1332 = vector.extract_strided_slice %297 {offsets = [1, 0], sizes = [1, 128], strides = [1, 1]} : vector<16x128xf32> to vector<1x128xf32>
    %1333 = vector.shape_cast %1332 : vector<1x128xf32> to vector<128xf32>
    %1334 = vector.shape_cast %1333 : vector<128xf32> to vector<1x128xf32>
    %1335 = vector.broadcast %1334 : vector<1x128xf32> to vector<16x128xf32>
    %1336 = arith.mulf %1324, %1335 : vector<16x128xf32>
    %1337 = arith.addf %1247, %1336 : vector<16x128xf32>
    %1338 = vector.extract_strided_slice %363 {offsets = [1, 0], sizes = [1, 128], strides = [1, 1]} : vector<16x128xf32> to vector<1x128xf32>
    %1339 = vector.shape_cast %1338 : vector<1x128xf32> to vector<128xf32>
    %1340 = vector.shape_cast %1339 : vector<128xf32> to vector<1x128xf32>
    %1341 = vector.broadcast %1340 : vector<1x128xf32> to vector<16x128xf32>
    %1342 = arith.mulf %1324, %1341 : vector<16x128xf32>
    %1343 = arith.addf %1252, %1342 : vector<16x128xf32>
    %1344 = vector.extract_strided_slice %429 {offsets = [1, 0], sizes = [1, 128], strides = [1, 1]} : vector<16x128xf32> to vector<1x128xf32>
    %1345 = vector.shape_cast %1344 : vector<1x128xf32> to vector<128xf32>
    %1346 = vector.shape_cast %1345 : vector<128xf32> to vector<1x128xf32>
    %1347 = vector.broadcast %1346 : vector<1x128xf32> to vector<16x128xf32>
    %1348 = arith.mulf %1324, %1347 : vector<16x128xf32>
    %1349 = arith.addf %1257, %1348 : vector<16x128xf32>
    %1350 = vector.extract_strided_slice %495 {offsets = [1, 0], sizes = [1, 128], strides = [1, 1]} : vector<16x128xf32> to vector<1x128xf32>
    %1351 = vector.shape_cast %1350 : vector<1x128xf32> to vector<128xf32>
    %1352 = vector.shape_cast %1351 : vector<128xf32> to vector<1x128xf32>
    %1353 = vector.broadcast %1352 : vector<1x128xf32> to vector<16x128xf32>
    %1354 = arith.mulf %1324, %1353 : vector<16x128xf32>
    %1355 = arith.addf %1262, %1354 : vector<16x128xf32>
    %1356 = vector.extract_strided_slice %561 {offsets = [1, 0], sizes = [1, 128], strides = [1, 1]} : vector<16x128xf32> to vector<1x128xf32>
    %1357 = vector.shape_cast %1356 : vector<1x128xf32> to vector<128xf32>
    %1358 = vector.shape_cast %1357 : vector<128xf32> to vector<1x128xf32>
    %1359 = vector.broadcast %1358 : vector<1x128xf32> to vector<16x128xf32>
    %1360 = arith.mulf %1324, %1359 : vector<16x128xf32>
    %1361 = arith.addf %1267, %1360 : vector<16x128xf32>
    %1362 = vector.extract_strided_slice %627 {offsets = [1, 0], sizes = [1, 128], strides = [1, 1]} : vector<16x128xf32> to vector<1x128xf32>
    %1363 = vector.shape_cast %1362 : vector<1x128xf32> to vector<128xf32>
    %1364 = vector.shape_cast %1363 : vector<128xf32> to vector<1x128xf32>
    %1365 = vector.broadcast %1364 : vector<1x128xf32> to vector<16x128xf32>
    %1366 = arith.mulf %1324, %1365 : vector<16x128xf32>
    %1367 = arith.addf %1272, %1366 : vector<16x128xf32>
    %1368 = vector.extract_strided_slice %693 {offsets = [1, 0], sizes = [1, 128], strides = [1, 1]} : vector<16x128xf32> to vector<1x128xf32>
    %1369 = vector.shape_cast %1368 : vector<1x128xf32> to vector<128xf32>
    %1370 = vector.shape_cast %1369 : vector<128xf32> to vector<1x128xf32>
    %1371 = vector.broadcast %1370 : vector<1x128xf32> to vector<16x128xf32>
    %1372 = arith.mulf %1324, %1371 : vector<16x128xf32>
    %1373 = arith.addf %1277, %1372 : vector<16x128xf32>
    %1374 = vector.extract_strided_slice %759 {offsets = [1, 0], sizes = [1, 128], strides = [1, 1]} : vector<16x128xf32> to vector<1x128xf32>
    %1375 = vector.shape_cast %1374 : vector<1x128xf32> to vector<128xf32>
    %1376 = vector.shape_cast %1375 : vector<128xf32> to vector<1x128xf32>
    %1377 = vector.broadcast %1376 : vector<1x128xf32> to vector<16x128xf32>
    %1378 = arith.mulf %1324, %1377 : vector<16x128xf32>
    %1379 = arith.addf %1282, %1378 : vector<16x128xf32>
    %1380 = vector.extract_strided_slice %825 {offsets = [1, 0], sizes = [1, 128], strides = [1, 1]} : vector<16x128xf32> to vector<1x128xf32>
    %1381 = vector.shape_cast %1380 : vector<1x128xf32> to vector<128xf32>
    %1382 = vector.shape_cast %1381 : vector<128xf32> to vector<1x128xf32>
    %1383 = vector.broadcast %1382 : vector<1x128xf32> to vector<16x128xf32>
    %1384 = arith.mulf %1324, %1383 : vector<16x128xf32>
    %1385 = arith.addf %1287, %1384 : vector<16x128xf32>
    %1386 = vector.extract_strided_slice %891 {offsets = [1, 0], sizes = [1, 128], strides = [1, 1]} : vector<16x128xf32> to vector<1x128xf32>
    %1387 = vector.shape_cast %1386 : vector<1x128xf32> to vector<128xf32>
    %1388 = vector.shape_cast %1387 : vector<128xf32> to vector<1x128xf32>
    %1389 = vector.broadcast %1388 : vector<1x128xf32> to vector<16x128xf32>
    %1390 = arith.mulf %1324, %1389 : vector<16x128xf32>
    %1391 = arith.addf %1292, %1390 : vector<16x128xf32>
    %1392 = vector.extract_strided_slice %957 {offsets = [1, 0], sizes = [1, 128], strides = [1, 1]} : vector<16x128xf32> to vector<1x128xf32>
    %1393 = vector.shape_cast %1392 : vector<1x128xf32> to vector<128xf32>
    %1394 = vector.shape_cast %1393 : vector<128xf32> to vector<1x128xf32>
    %1395 = vector.broadcast %1394 : vector<1x128xf32> to vector<16x128xf32>
    %1396 = arith.mulf %1324, %1395 : vector<16x128xf32>
    %1397 = arith.addf %1297, %1396 : vector<16x128xf32>
    %1398 = vector.extract_strided_slice %1023 {offsets = [1, 0], sizes = [1, 128], strides = [1, 1]} : vector<16x128xf32> to vector<1x128xf32>
    %1399 = vector.shape_cast %1398 : vector<1x128xf32> to vector<128xf32>
    %1400 = vector.shape_cast %1399 : vector<128xf32> to vector<1x128xf32>
    %1401 = vector.broadcast %1400 : vector<1x128xf32> to vector<16x128xf32>
    %1402 = arith.mulf %1324, %1401 : vector<16x128xf32>
    %1403 = arith.addf %1302, %1402 : vector<16x128xf32>
    %1404 = vector.extract_strided_slice %1089 {offsets = [1, 0], sizes = [1, 128], strides = [1, 1]} : vector<16x128xf32> to vector<1x128xf32>
    %1405 = vector.shape_cast %1404 : vector<1x128xf32> to vector<128xf32>
    %1406 = vector.shape_cast %1405 : vector<128xf32> to vector<1x128xf32>
    %1407 = vector.broadcast %1406 : vector<1x128xf32> to vector<16x128xf32>
    %1408 = arith.mulf %1324, %1407 : vector<16x128xf32>
    %1409 = arith.addf %1307, %1408 : vector<16x128xf32>
    %1410 = vector.extract_strided_slice %1155 {offsets = [1, 0], sizes = [1, 128], strides = [1, 1]} : vector<16x128xf32> to vector<1x128xf32>
    %1411 = vector.shape_cast %1410 : vector<1x128xf32> to vector<128xf32>
    %1412 = vector.shape_cast %1411 : vector<128xf32> to vector<1x128xf32>
    %1413 = vector.broadcast %1412 : vector<1x128xf32> to vector<16x128xf32>
    %1414 = arith.mulf %1324, %1413 : vector<16x128xf32>
    %1415 = arith.addf %1312, %1414 : vector<16x128xf32>
    %1416 = vector.extract_strided_slice %1221 {offsets = [1, 0], sizes = [1, 128], strides = [1, 1]} : vector<16x128xf32> to vector<1x128xf32>
    %1417 = vector.shape_cast %1416 : vector<1x128xf32> to vector<128xf32>
    %1418 = vector.shape_cast %1417 : vector<128xf32> to vector<1x128xf32>
    %1419 = vector.broadcast %1418 : vector<1x128xf32> to vector<16x128xf32>
    %1420 = arith.mulf %1324, %1419 : vector<16x128xf32>
    %1421 = arith.addf %1317, %1420 : vector<16x128xf32>
    %1422 = vector.extract_strided_slice %165 {offsets = [2, 0], sizes = [1, 128], strides = [1, 1]} : vector<16x128xf32> to vector<1x128xf32>
    %1423 = vector.shape_cast %1422 : vector<1x128xf32> to vector<128xf32>
    %1424 = vector.shape_cast %1423 : vector<128xf32> to vector<1x128xf32>
    %1425 = vector.broadcast %1424 : vector<1x128xf32> to vector<16x128xf32>
    %1426 = arith.mulf %160, %1425 : vector<16x128xf32>
    %1427 = arith.subf %1426, %1230 : vector<16x128xf32>
    %1428 = math.exp %1427 : vector<16x128xf32>
    %1429 = arith.addf %1325, %1428 : vector<16x128xf32>
    %1430 = vector.extract_strided_slice %231 {offsets = [2, 0], sizes = [1, 128], strides = [1, 1]} : vector<16x128xf32> to vector<1x128xf32>
    %1431 = vector.shape_cast %1430 : vector<1x128xf32> to vector<128xf32>
    %1432 = vector.shape_cast %1431 : vector<128xf32> to vector<1x128xf32>
    %1433 = vector.broadcast %1432 : vector<1x128xf32> to vector<16x128xf32>
    %1434 = arith.mulf %1428, %1433 : vector<16x128xf32>
    %1435 = arith.addf %1331, %1434 : vector<16x128xf32>
    %1436 = vector.extract_strided_slice %297 {offsets = [2, 0], sizes = [1, 128], strides = [1, 1]} : vector<16x128xf32> to vector<1x128xf32>
    %1437 = vector.shape_cast %1436 : vector<1x128xf32> to vector<128xf32>
    %1438 = vector.shape_cast %1437 : vector<128xf32> to vector<1x128xf32>
    %1439 = vector.broadcast %1438 : vector<1x128xf32> to vector<16x128xf32>
    %1440 = arith.mulf %1428, %1439 : vector<16x128xf32>
    %1441 = arith.addf %1337, %1440 : vector<16x128xf32>
    %1442 = vector.extract_strided_slice %363 {offsets = [2, 0], sizes = [1, 128], strides = [1, 1]} : vector<16x128xf32> to vector<1x128xf32>
    %1443 = vector.shape_cast %1442 : vector<1x128xf32> to vector<128xf32>
    %1444 = vector.shape_cast %1443 : vector<128xf32> to vector<1x128xf32>
    %1445 = vector.broadcast %1444 : vector<1x128xf32> to vector<16x128xf32>
    %1446 = arith.mulf %1428, %1445 : vector<16x128xf32>
    %1447 = arith.addf %1343, %1446 : vector<16x128xf32>
    %1448 = vector.extract_strided_slice %429 {offsets = [2, 0], sizes = [1, 128], strides = [1, 1]} : vector<16x128xf32> to vector<1x128xf32>
    %1449 = vector.shape_cast %1448 : vector<1x128xf32> to vector<128xf32>
    %1450 = vector.shape_cast %1449 : vector<128xf32> to vector<1x128xf32>
    %1451 = vector.broadcast %1450 : vector<1x128xf32> to vector<16x128xf32>
    %1452 = arith.mulf %1428, %1451 : vector<16x128xf32>
    %1453 = arith.addf %1349, %1452 : vector<16x128xf32>
    %1454 = vector.extract_strided_slice %495 {offsets = [2, 0], sizes = [1, 128], strides = [1, 1]} : vector<16x128xf32> to vector<1x128xf32>
    %1455 = vector.shape_cast %1454 : vector<1x128xf32> to vector<128xf32>
    %1456 = vector.shape_cast %1455 : vector<128xf32> to vector<1x128xf32>
    %1457 = vector.broadcast %1456 : vector<1x128xf32> to vector<16x128xf32>
    %1458 = arith.mulf %1428, %1457 : vector<16x128xf32>
    %1459 = arith.addf %1355, %1458 : vector<16x128xf32>
    %1460 = vector.extract_strided_slice %561 {offsets = [2, 0], sizes = [1, 128], strides = [1, 1]} : vector<16x128xf32> to vector<1x128xf32>
    %1461 = vector.shape_cast %1460 : vector<1x128xf32> to vector<128xf32>
    %1462 = vector.shape_cast %1461 : vector<128xf32> to vector<1x128xf32>
    %1463 = vector.broadcast %1462 : vector<1x128xf32> to vector<16x128xf32>
    %1464 = arith.mulf %1428, %1463 : vector<16x128xf32>
    %1465 = arith.addf %1361, %1464 : vector<16x128xf32>
    %1466 = vector.extract_strided_slice %627 {offsets = [2, 0], sizes = [1, 128], strides = [1, 1]} : vector<16x128xf32> to vector<1x128xf32>
    %1467 = vector.shape_cast %1466 : vector<1x128xf32> to vector<128xf32>
    %1468 = vector.shape_cast %1467 : vector<128xf32> to vector<1x128xf32>
    %1469 = vector.broadcast %1468 : vector<1x128xf32> to vector<16x128xf32>
    %1470 = arith.mulf %1428, %1469 : vector<16x128xf32>
    %1471 = arith.addf %1367, %1470 : vector<16x128xf32>
    %1472 = vector.extract_strided_slice %693 {offsets = [2, 0], sizes = [1, 128], strides = [1, 1]} : vector<16x128xf32> to vector<1x128xf32>
    %1473 = vector.shape_cast %1472 : vector<1x128xf32> to vector<128xf32>
    %1474 = vector.shape_cast %1473 : vector<128xf32> to vector<1x128xf32>
    %1475 = vector.broadcast %1474 : vector<1x128xf32> to vector<16x128xf32>
    %1476 = arith.mulf %1428, %1475 : vector<16x128xf32>
    %1477 = arith.addf %1373, %1476 : vector<16x128xf32>
    %1478 = vector.extract_strided_slice %759 {offsets = [2, 0], sizes = [1, 128], strides = [1, 1]} : vector<16x128xf32> to vector<1x128xf32>
    %1479 = vector.shape_cast %1478 : vector<1x128xf32> to vector<128xf32>
    %1480 = vector.shape_cast %1479 : vector<128xf32> to vector<1x128xf32>
    %1481 = vector.broadcast %1480 : vector<1x128xf32> to vector<16x128xf32>
    %1482 = arith.mulf %1428, %1481 : vector<16x128xf32>
    %1483 = arith.addf %1379, %1482 : vector<16x128xf32>
    %1484 = vector.extract_strided_slice %825 {offsets = [2, 0], sizes = [1, 128], strides = [1, 1]} : vector<16x128xf32> to vector<1x128xf32>
    %1485 = vector.shape_cast %1484 : vector<1x128xf32> to vector<128xf32>
    %1486 = vector.shape_cast %1485 : vector<128xf32> to vector<1x128xf32>
    %1487 = vector.broadcast %1486 : vector<1x128xf32> to vector<16x128xf32>
    %1488 = arith.mulf %1428, %1487 : vector<16x128xf32>
    %1489 = arith.addf %1385, %1488 : vector<16x128xf32>
    %1490 = vector.extract_strided_slice %891 {offsets = [2, 0], sizes = [1, 128], strides = [1, 1]} : vector<16x128xf32> to vector<1x128xf32>
    %1491 = vector.shape_cast %1490 : vector<1x128xf32> to vector<128xf32>
    %1492 = vector.shape_cast %1491 : vector<128xf32> to vector<1x128xf32>
    %1493 = vector.broadcast %1492 : vector<1x128xf32> to vector<16x128xf32>
    %1494 = arith.mulf %1428, %1493 : vector<16x128xf32>
    %1495 = arith.addf %1391, %1494 : vector<16x128xf32>
    %1496 = vector.extract_strided_slice %957 {offsets = [2, 0], sizes = [1, 128], strides = [1, 1]} : vector<16x128xf32> to vector<1x128xf32>
    %1497 = vector.shape_cast %1496 : vector<1x128xf32> to vector<128xf32>
    %1498 = vector.shape_cast %1497 : vector<128xf32> to vector<1x128xf32>
    %1499 = vector.broadcast %1498 : vector<1x128xf32> to vector<16x128xf32>
    %1500 = arith.mulf %1428, %1499 : vector<16x128xf32>
    %1501 = arith.addf %1397, %1500 : vector<16x128xf32>
    %1502 = vector.extract_strided_slice %1023 {offsets = [2, 0], sizes = [1, 128], strides = [1, 1]} : vector<16x128xf32> to vector<1x128xf32>
    %1503 = vector.shape_cast %1502 : vector<1x128xf32> to vector<128xf32>
    %1504 = vector.shape_cast %1503 : vector<128xf32> to vector<1x128xf32>
    %1505 = vector.broadcast %1504 : vector<1x128xf32> to vector<16x128xf32>
    %1506 = arith.mulf %1428, %1505 : vector<16x128xf32>
    %1507 = arith.addf %1403, %1506 : vector<16x128xf32>
    %1508 = vector.extract_strided_slice %1089 {offsets = [2, 0], sizes = [1, 128], strides = [1, 1]} : vector<16x128xf32> to vector<1x128xf32>
    %1509 = vector.shape_cast %1508 : vector<1x128xf32> to vector<128xf32>
    %1510 = vector.shape_cast %1509 : vector<128xf32> to vector<1x128xf32>
    %1511 = vector.broadcast %1510 : vector<1x128xf32> to vector<16x128xf32>
    %1512 = arith.mulf %1428, %1511 : vector<16x128xf32>
    %1513 = arith.addf %1409, %1512 : vector<16x128xf32>
    %1514 = vector.extract_strided_slice %1155 {offsets = [2, 0], sizes = [1, 128], strides = [1, 1]} : vector<16x128xf32> to vector<1x128xf32>
    %1515 = vector.shape_cast %1514 : vector<1x128xf32> to vector<128xf32>
    %1516 = vector.shape_cast %1515 : vector<128xf32> to vector<1x128xf32>
    %1517 = vector.broadcast %1516 : vector<1x128xf32> to vector<16x128xf32>
    %1518 = arith.mulf %1428, %1517 : vector<16x128xf32>
    %1519 = arith.addf %1415, %1518 : vector<16x128xf32>
    %1520 = vector.extract_strided_slice %1221 {offsets = [2, 0], sizes = [1, 128], strides = [1, 1]} : vector<16x128xf32> to vector<1x128xf32>
    %1521 = vector.shape_cast %1520 : vector<1x128xf32> to vector<128xf32>
    %1522 = vector.shape_cast %1521 : vector<128xf32> to vector<1x128xf32>
    %1523 = vector.broadcast %1522 : vector<1x128xf32> to vector<16x128xf32>
    %1524 = arith.mulf %1428, %1523 : vector<16x128xf32>
    %1525 = arith.addf %1421, %1524 : vector<16x128xf32>
    %1526 = vector.extract_strided_slice %165 {offsets = [3, 0], sizes = [1, 128], strides = [1, 1]} : vector<16x128xf32> to vector<1x128xf32>
    %1527 = vector.shape_cast %1526 : vector<1x128xf32> to vector<128xf32>
    %1528 = vector.shape_cast %1527 : vector<128xf32> to vector<1x128xf32>
    %1529 = vector.broadcast %1528 : vector<1x128xf32> to vector<16x128xf32>
    %1530 = arith.mulf %160, %1529 : vector<16x128xf32>
    %1531 = arith.subf %1530, %1230 : vector<16x128xf32>
    %1532 = math.exp %1531 : vector<16x128xf32>
    %1533 = arith.addf %1429, %1532 : vector<16x128xf32>
    %1534 = vector.extract_strided_slice %231 {offsets = [3, 0], sizes = [1, 128], strides = [1, 1]} : vector<16x128xf32> to vector<1x128xf32>
    %1535 = vector.shape_cast %1534 : vector<1x128xf32> to vector<128xf32>
    %1536 = vector.shape_cast %1535 : vector<128xf32> to vector<1x128xf32>
    %1537 = vector.broadcast %1536 : vector<1x128xf32> to vector<16x128xf32>
    %1538 = arith.mulf %1532, %1537 : vector<16x128xf32>
    %1539 = arith.addf %1435, %1538 : vector<16x128xf32>
    %1540 = vector.extract_strided_slice %297 {offsets = [3, 0], sizes = [1, 128], strides = [1, 1]} : vector<16x128xf32> to vector<1x128xf32>
    %1541 = vector.shape_cast %1540 : vector<1x128xf32> to vector<128xf32>
    %1542 = vector.shape_cast %1541 : vector<128xf32> to vector<1x128xf32>
    %1543 = vector.broadcast %1542 : vector<1x128xf32> to vector<16x128xf32>
    %1544 = arith.mulf %1532, %1543 : vector<16x128xf32>
    %1545 = arith.addf %1441, %1544 : vector<16x128xf32>
    %1546 = vector.extract_strided_slice %363 {offsets = [3, 0], sizes = [1, 128], strides = [1, 1]} : vector<16x128xf32> to vector<1x128xf32>
    %1547 = vector.shape_cast %1546 : vector<1x128xf32> to vector<128xf32>
    %1548 = vector.shape_cast %1547 : vector<128xf32> to vector<1x128xf32>
    %1549 = vector.broadcast %1548 : vector<1x128xf32> to vector<16x128xf32>
    %1550 = arith.mulf %1532, %1549 : vector<16x128xf32>
    %1551 = arith.addf %1447, %1550 : vector<16x128xf32>
    %1552 = vector.extract_strided_slice %429 {offsets = [3, 0], sizes = [1, 128], strides = [1, 1]} : vector<16x128xf32> to vector<1x128xf32>
    %1553 = vector.shape_cast %1552 : vector<1x128xf32> to vector<128xf32>
    %1554 = vector.shape_cast %1553 : vector<128xf32> to vector<1x128xf32>
    %1555 = vector.broadcast %1554 : vector<1x128xf32> to vector<16x128xf32>
    %1556 = arith.mulf %1532, %1555 : vector<16x128xf32>
    %1557 = arith.addf %1453, %1556 : vector<16x128xf32>
    %1558 = vector.extract_strided_slice %495 {offsets = [3, 0], sizes = [1, 128], strides = [1, 1]} : vector<16x128xf32> to vector<1x128xf32>
    %1559 = vector.shape_cast %1558 : vector<1x128xf32> to vector<128xf32>
    %1560 = vector.shape_cast %1559 : vector<128xf32> to vector<1x128xf32>
    %1561 = vector.broadcast %1560 : vector<1x128xf32> to vector<16x128xf32>
    %1562 = arith.mulf %1532, %1561 : vector<16x128xf32>
    %1563 = arith.addf %1459, %1562 : vector<16x128xf32>
    %1564 = vector.extract_strided_slice %561 {offsets = [3, 0], sizes = [1, 128], strides = [1, 1]} : vector<16x128xf32> to vector<1x128xf32>
    %1565 = vector.shape_cast %1564 : vector<1x128xf32> to vector<128xf32>
    %1566 = vector.shape_cast %1565 : vector<128xf32> to vector<1x128xf32>
    %1567 = vector.broadcast %1566 : vector<1x128xf32> to vector<16x128xf32>
    %1568 = arith.mulf %1532, %1567 : vector<16x128xf32>
    %1569 = arith.addf %1465, %1568 : vector<16x128xf32>
    %1570 = vector.extract_strided_slice %627 {offsets = [3, 0], sizes = [1, 128], strides = [1, 1]} : vector<16x128xf32> to vector<1x128xf32>
    %1571 = vector.shape_cast %1570 : vector<1x128xf32> to vector<128xf32>
    %1572 = vector.shape_cast %1571 : vector<128xf32> to vector<1x128xf32>
    %1573 = vector.broadcast %1572 : vector<1x128xf32> to vector<16x128xf32>
    %1574 = arith.mulf %1532, %1573 : vector<16x128xf32>
    %1575 = arith.addf %1471, %1574 : vector<16x128xf32>
    %1576 = vector.extract_strided_slice %693 {offsets = [3, 0], sizes = [1, 128], strides = [1, 1]} : vector<16x128xf32> to vector<1x128xf32>
    %1577 = vector.shape_cast %1576 : vector<1x128xf32> to vector<128xf32>
    %1578 = vector.shape_cast %1577 : vector<128xf32> to vector<1x128xf32>
    %1579 = vector.broadcast %1578 : vector<1x128xf32> to vector<16x128xf32>
    %1580 = arith.mulf %1532, %1579 : vector<16x128xf32>
    %1581 = arith.addf %1477, %1580 : vector<16x128xf32>
    %1582 = vector.extract_strided_slice %759 {offsets = [3, 0], sizes = [1, 128], strides = [1, 1]} : vector<16x128xf32> to vector<1x128xf32>
    %1583 = vector.shape_cast %1582 : vector<1x128xf32> to vector<128xf32>
    %1584 = vector.shape_cast %1583 : vector<128xf32> to vector<1x128xf32>
    %1585 = vector.broadcast %1584 : vector<1x128xf32> to vector<16x128xf32>
    %1586 = arith.mulf %1532, %1585 : vector<16x128xf32>
    %1587 = arith.addf %1483, %1586 : vector<16x128xf32>
    %1588 = vector.extract_strided_slice %825 {offsets = [3, 0], sizes = [1, 128], strides = [1, 1]} : vector<16x128xf32> to vector<1x128xf32>
    %1589 = vector.shape_cast %1588 : vector<1x128xf32> to vector<128xf32>
    %1590 = vector.shape_cast %1589 : vector<128xf32> to vector<1x128xf32>
    %1591 = vector.broadcast %1590 : vector<1x128xf32> to vector<16x128xf32>
    %1592 = arith.mulf %1532, %1591 : vector<16x128xf32>
    %1593 = arith.addf %1489, %1592 : vector<16x128xf32>
    %1594 = vector.extract_strided_slice %891 {offsets = [3, 0], sizes = [1, 128], strides = [1, 1]} : vector<16x128xf32> to vector<1x128xf32>
    %1595 = vector.shape_cast %1594 : vector<1x128xf32> to vector<128xf32>
    %1596 = vector.shape_cast %1595 : vector<128xf32> to vector<1x128xf32>
    %1597 = vector.broadcast %1596 : vector<1x128xf32> to vector<16x128xf32>
    %1598 = arith.mulf %1532, %1597 : vector<16x128xf32>
    %1599 = arith.addf %1495, %1598 : vector<16x128xf32>
    %1600 = vector.extract_strided_slice %957 {offsets = [3, 0], sizes = [1, 128], strides = [1, 1]} : vector<16x128xf32> to vector<1x128xf32>
    %1601 = vector.shape_cast %1600 : vector<1x128xf32> to vector<128xf32>
    %1602 = vector.shape_cast %1601 : vector<128xf32> to vector<1x128xf32>
    %1603 = vector.broadcast %1602 : vector<1x128xf32> to vector<16x128xf32>
    %1604 = arith.mulf %1532, %1603 : vector<16x128xf32>
    %1605 = arith.addf %1501, %1604 : vector<16x128xf32>
    %1606 = vector.extract_strided_slice %1023 {offsets = [3, 0], sizes = [1, 128], strides = [1, 1]} : vector<16x128xf32> to vector<1x128xf32>
    %1607 = vector.shape_cast %1606 : vector<1x128xf32> to vector<128xf32>
    %1608 = vector.shape_cast %1607 : vector<128xf32> to vector<1x128xf32>
    %1609 = vector.broadcast %1608 : vector<1x128xf32> to vector<16x128xf32>
    %1610 = arith.mulf %1532, %1609 : vector<16x128xf32>
    %1611 = arith.addf %1507, %1610 : vector<16x128xf32>
    %1612 = vector.extract_strided_slice %1089 {offsets = [3, 0], sizes = [1, 128], strides = [1, 1]} : vector<16x128xf32> to vector<1x128xf32>
    %1613 = vector.shape_cast %1612 : vector<1x128xf32> to vector<128xf32>
    %1614 = vector.shape_cast %1613 : vector<128xf32> to vector<1x128xf32>
    %1615 = vector.broadcast %1614 : vector<1x128xf32> to vector<16x128xf32>
    %1616 = arith.mulf %1532, %1615 : vector<16x128xf32>
    %1617 = arith.addf %1513, %1616 : vector<16x128xf32>
    %1618 = vector.extract_strided_slice %1155 {offsets = [3, 0], sizes = [1, 128], strides = [1, 1]} : vector<16x128xf32> to vector<1x128xf32>
    %1619 = vector.shape_cast %1618 : vector<1x128xf32> to vector<128xf32>
    %1620 = vector.shape_cast %1619 : vector<128xf32> to vector<1x128xf32>
    %1621 = vector.broadcast %1620 : vector<1x128xf32> to vector<16x128xf32>
    %1622 = arith.mulf %1532, %1621 : vector<16x128xf32>
    %1623 = arith.addf %1519, %1622 : vector<16x128xf32>
    %1624 = vector.extract_strided_slice %1221 {offsets = [3, 0], sizes = [1, 128], strides = [1, 1]} : vector<16x128xf32> to vector<1x128xf32>
    %1625 = vector.shape_cast %1624 : vector<1x128xf32> to vector<128xf32>
    %1626 = vector.shape_cast %1625 : vector<128xf32> to vector<1x128xf32>
    %1627 = vector.broadcast %1626 : vector<1x128xf32> to vector<16x128xf32>
    %1628 = arith.mulf %1532, %1627 : vector<16x128xf32>
    %1629 = arith.addf %1525, %1628 : vector<16x128xf32>
    %1630 = vector.extract_strided_slice %165 {offsets = [4, 0], sizes = [1, 128], strides = [1, 1]} : vector<16x128xf32> to vector<1x128xf32>
    %1631 = vector.shape_cast %1630 : vector<1x128xf32> to vector<128xf32>
    %1632 = vector.shape_cast %1631 : vector<128xf32> to vector<1x128xf32>
    %1633 = vector.broadcast %1632 : vector<1x128xf32> to vector<16x128xf32>
    %1634 = arith.mulf %160, %1633 : vector<16x128xf32>
    %1635 = arith.subf %1634, %1230 : vector<16x128xf32>
    %1636 = math.exp %1635 : vector<16x128xf32>
    %1637 = arith.addf %1533, %1636 : vector<16x128xf32>
    %1638 = vector.extract_strided_slice %231 {offsets = [4, 0], sizes = [1, 128], strides = [1, 1]} : vector<16x128xf32> to vector<1x128xf32>
    %1639 = vector.shape_cast %1638 : vector<1x128xf32> to vector<128xf32>
    %1640 = vector.shape_cast %1639 : vector<128xf32> to vector<1x128xf32>
    %1641 = vector.broadcast %1640 : vector<1x128xf32> to vector<16x128xf32>
    %1642 = arith.mulf %1636, %1641 : vector<16x128xf32>
    %1643 = arith.addf %1539, %1642 : vector<16x128xf32>
    %1644 = vector.extract_strided_slice %297 {offsets = [4, 0], sizes = [1, 128], strides = [1, 1]} : vector<16x128xf32> to vector<1x128xf32>
    %1645 = vector.shape_cast %1644 : vector<1x128xf32> to vector<128xf32>
    %1646 = vector.shape_cast %1645 : vector<128xf32> to vector<1x128xf32>
    %1647 = vector.broadcast %1646 : vector<1x128xf32> to vector<16x128xf32>
    %1648 = arith.mulf %1636, %1647 : vector<16x128xf32>
    %1649 = arith.addf %1545, %1648 : vector<16x128xf32>
    %1650 = vector.extract_strided_slice %363 {offsets = [4, 0], sizes = [1, 128], strides = [1, 1]} : vector<16x128xf32> to vector<1x128xf32>
    %1651 = vector.shape_cast %1650 : vector<1x128xf32> to vector<128xf32>
    %1652 = vector.shape_cast %1651 : vector<128xf32> to vector<1x128xf32>
    %1653 = vector.broadcast %1652 : vector<1x128xf32> to vector<16x128xf32>
    %1654 = arith.mulf %1636, %1653 : vector<16x128xf32>
    %1655 = arith.addf %1551, %1654 : vector<16x128xf32>
    %1656 = vector.extract_strided_slice %429 {offsets = [4, 0], sizes = [1, 128], strides = [1, 1]} : vector<16x128xf32> to vector<1x128xf32>
    %1657 = vector.shape_cast %1656 : vector<1x128xf32> to vector<128xf32>
    %1658 = vector.shape_cast %1657 : vector<128xf32> to vector<1x128xf32>
    %1659 = vector.broadcast %1658 : vector<1x128xf32> to vector<16x128xf32>
    %1660 = arith.mulf %1636, %1659 : vector<16x128xf32>
    %1661 = arith.addf %1557, %1660 : vector<16x128xf32>
    %1662 = vector.extract_strided_slice %495 {offsets = [4, 0], sizes = [1, 128], strides = [1, 1]} : vector<16x128xf32> to vector<1x128xf32>
    %1663 = vector.shape_cast %1662 : vector<1x128xf32> to vector<128xf32>
    %1664 = vector.shape_cast %1663 : vector<128xf32> to vector<1x128xf32>
    %1665 = vector.broadcast %1664 : vector<1x128xf32> to vector<16x128xf32>
    %1666 = arith.mulf %1636, %1665 : vector<16x128xf32>
    %1667 = arith.addf %1563, %1666 : vector<16x128xf32>
    %1668 = vector.extract_strided_slice %561 {offsets = [4, 0], sizes = [1, 128], strides = [1, 1]} : vector<16x128xf32> to vector<1x128xf32>
    %1669 = vector.shape_cast %1668 : vector<1x128xf32> to vector<128xf32>
    %1670 = vector.shape_cast %1669 : vector<128xf32> to vector<1x128xf32>
    %1671 = vector.broadcast %1670 : vector<1x128xf32> to vector<16x128xf32>
    %1672 = arith.mulf %1636, %1671 : vector<16x128xf32>
    %1673 = arith.addf %1569, %1672 : vector<16x128xf32>
    %1674 = vector.extract_strided_slice %627 {offsets = [4, 0], sizes = [1, 128], strides = [1, 1]} : vector<16x128xf32> to vector<1x128xf32>
    %1675 = vector.shape_cast %1674 : vector<1x128xf32> to vector<128xf32>
    %1676 = vector.shape_cast %1675 : vector<128xf32> to vector<1x128xf32>
    %1677 = vector.broadcast %1676 : vector<1x128xf32> to vector<16x128xf32>
    %1678 = arith.mulf %1636, %1677 : vector<16x128xf32>
    %1679 = arith.addf %1575, %1678 : vector<16x128xf32>
    %1680 = vector.extract_strided_slice %693 {offsets = [4, 0], sizes = [1, 128], strides = [1, 1]} : vector<16x128xf32> to vector<1x128xf32>
    %1681 = vector.shape_cast %1680 : vector<1x128xf32> to vector<128xf32>
    %1682 = vector.shape_cast %1681 : vector<128xf32> to vector<1x128xf32>
    %1683 = vector.broadcast %1682 : vector<1x128xf32> to vector<16x128xf32>
    %1684 = arith.mulf %1636, %1683 : vector<16x128xf32>
    %1685 = arith.addf %1581, %1684 : vector<16x128xf32>
    %1686 = vector.extract_strided_slice %759 {offsets = [4, 0], sizes = [1, 128], strides = [1, 1]} : vector<16x128xf32> to vector<1x128xf32>
    %1687 = vector.shape_cast %1686 : vector<1x128xf32> to vector<128xf32>
    %1688 = vector.shape_cast %1687 : vector<128xf32> to vector<1x128xf32>
    %1689 = vector.broadcast %1688 : vector<1x128xf32> to vector<16x128xf32>
    %1690 = arith.mulf %1636, %1689 : vector<16x128xf32>
    %1691 = arith.addf %1587, %1690 : vector<16x128xf32>
    %1692 = vector.extract_strided_slice %825 {offsets = [4, 0], sizes = [1, 128], strides = [1, 1]} : vector<16x128xf32> to vector<1x128xf32>
    %1693 = vector.shape_cast %1692 : vector<1x128xf32> to vector<128xf32>
    %1694 = vector.shape_cast %1693 : vector<128xf32> to vector<1x128xf32>
    %1695 = vector.broadcast %1694 : vector<1x128xf32> to vector<16x128xf32>
    %1696 = arith.mulf %1636, %1695 : vector<16x128xf32>
    %1697 = arith.addf %1593, %1696 : vector<16x128xf32>
    %1698 = vector.extract_strided_slice %891 {offsets = [4, 0], sizes = [1, 128], strides = [1, 1]} : vector<16x128xf32> to vector<1x128xf32>
    %1699 = vector.shape_cast %1698 : vector<1x128xf32> to vector<128xf32>
    %1700 = vector.shape_cast %1699 : vector<128xf32> to vector<1x128xf32>
    %1701 = vector.broadcast %1700 : vector<1x128xf32> to vector<16x128xf32>
    %1702 = arith.mulf %1636, %1701 : vector<16x128xf32>
    %1703 = arith.addf %1599, %1702 : vector<16x128xf32>
    %1704 = vector.extract_strided_slice %957 {offsets = [4, 0], sizes = [1, 128], strides = [1, 1]} : vector<16x128xf32> to vector<1x128xf32>
    %1705 = vector.shape_cast %1704 : vector<1x128xf32> to vector<128xf32>
    %1706 = vector.shape_cast %1705 : vector<128xf32> to vector<1x128xf32>
    %1707 = vector.broadcast %1706 : vector<1x128xf32> to vector<16x128xf32>
    %1708 = arith.mulf %1636, %1707 : vector<16x128xf32>
    %1709 = arith.addf %1605, %1708 : vector<16x128xf32>
    %1710 = vector.extract_strided_slice %1023 {offsets = [4, 0], sizes = [1, 128], strides = [1, 1]} : vector<16x128xf32> to vector<1x128xf32>
    %1711 = vector.shape_cast %1710 : vector<1x128xf32> to vector<128xf32>
    %1712 = vector.shape_cast %1711 : vector<128xf32> to vector<1x128xf32>
    %1713 = vector.broadcast %1712 : vector<1x128xf32> to vector<16x128xf32>
    %1714 = arith.mulf %1636, %1713 : vector<16x128xf32>
    %1715 = arith.addf %1611, %1714 : vector<16x128xf32>
    %1716 = vector.extract_strided_slice %1089 {offsets = [4, 0], sizes = [1, 128], strides = [1, 1]} : vector<16x128xf32> to vector<1x128xf32>
    %1717 = vector.shape_cast %1716 : vector<1x128xf32> to vector<128xf32>
    %1718 = vector.shape_cast %1717 : vector<128xf32> to vector<1x128xf32>
    %1719 = vector.broadcast %1718 : vector<1x128xf32> to vector<16x128xf32>
    %1720 = arith.mulf %1636, %1719 : vector<16x128xf32>
    %1721 = arith.addf %1617, %1720 : vector<16x128xf32>
    %1722 = vector.extract_strided_slice %1155 {offsets = [4, 0], sizes = [1, 128], strides = [1, 1]} : vector<16x128xf32> to vector<1x128xf32>
    %1723 = vector.shape_cast %1722 : vector<1x128xf32> to vector<128xf32>
    %1724 = vector.shape_cast %1723 : vector<128xf32> to vector<1x128xf32>
    %1725 = vector.broadcast %1724 : vector<1x128xf32> to vector<16x128xf32>
    %1726 = arith.mulf %1636, %1725 : vector<16x128xf32>
    %1727 = arith.addf %1623, %1726 : vector<16x128xf32>
    %1728 = vector.extract_strided_slice %1221 {offsets = [4, 0], sizes = [1, 128], strides = [1, 1]} : vector<16x128xf32> to vector<1x128xf32>
    %1729 = vector.shape_cast %1728 : vector<1x128xf32> to vector<128xf32>
    %1730 = vector.shape_cast %1729 : vector<128xf32> to vector<1x128xf32>
    %1731 = vector.broadcast %1730 : vector<1x128xf32> to vector<16x128xf32>
    %1732 = arith.mulf %1636, %1731 : vector<16x128xf32>
    %1733 = arith.addf %1629, %1732 : vector<16x128xf32>
    %1734 = vector.extract_strided_slice %165 {offsets = [5, 0], sizes = [1, 128], strides = [1, 1]} : vector<16x128xf32> to vector<1x128xf32>
    %1735 = vector.shape_cast %1734 : vector<1x128xf32> to vector<128xf32>
    %1736 = vector.shape_cast %1735 : vector<128xf32> to vector<1x128xf32>
    %1737 = vector.broadcast %1736 : vector<1x128xf32> to vector<16x128xf32>
    %1738 = arith.mulf %160, %1737 : vector<16x128xf32>
    %1739 = arith.subf %1738, %1230 : vector<16x128xf32>
    %1740 = math.exp %1739 : vector<16x128xf32>
    %1741 = arith.addf %1637, %1740 : vector<16x128xf32>
    %1742 = vector.extract_strided_slice %231 {offsets = [5, 0], sizes = [1, 128], strides = [1, 1]} : vector<16x128xf32> to vector<1x128xf32>
    %1743 = vector.shape_cast %1742 : vector<1x128xf32> to vector<128xf32>
    %1744 = vector.shape_cast %1743 : vector<128xf32> to vector<1x128xf32>
    %1745 = vector.broadcast %1744 : vector<1x128xf32> to vector<16x128xf32>
    %1746 = arith.mulf %1740, %1745 : vector<16x128xf32>
    %1747 = arith.addf %1643, %1746 : vector<16x128xf32>
    %1748 = vector.extract_strided_slice %297 {offsets = [5, 0], sizes = [1, 128], strides = [1, 1]} : vector<16x128xf32> to vector<1x128xf32>
    %1749 = vector.shape_cast %1748 : vector<1x128xf32> to vector<128xf32>
    %1750 = vector.shape_cast %1749 : vector<128xf32> to vector<1x128xf32>
    %1751 = vector.broadcast %1750 : vector<1x128xf32> to vector<16x128xf32>
    %1752 = arith.mulf %1740, %1751 : vector<16x128xf32>
    %1753 = arith.addf %1649, %1752 : vector<16x128xf32>
    %1754 = vector.extract_strided_slice %363 {offsets = [5, 0], sizes = [1, 128], strides = [1, 1]} : vector<16x128xf32> to vector<1x128xf32>
    %1755 = vector.shape_cast %1754 : vector<1x128xf32> to vector<128xf32>
    %1756 = vector.shape_cast %1755 : vector<128xf32> to vector<1x128xf32>
    %1757 = vector.broadcast %1756 : vector<1x128xf32> to vector<16x128xf32>
    %1758 = arith.mulf %1740, %1757 : vector<16x128xf32>
    %1759 = arith.addf %1655, %1758 : vector<16x128xf32>
    %1760 = vector.extract_strided_slice %429 {offsets = [5, 0], sizes = [1, 128], strides = [1, 1]} : vector<16x128xf32> to vector<1x128xf32>
    %1761 = vector.shape_cast %1760 : vector<1x128xf32> to vector<128xf32>
    %1762 = vector.shape_cast %1761 : vector<128xf32> to vector<1x128xf32>
    %1763 = vector.broadcast %1762 : vector<1x128xf32> to vector<16x128xf32>
    %1764 = arith.mulf %1740, %1763 : vector<16x128xf32>
    %1765 = arith.addf %1661, %1764 : vector<16x128xf32>
    %1766 = vector.extract_strided_slice %495 {offsets = [5, 0], sizes = [1, 128], strides = [1, 1]} : vector<16x128xf32> to vector<1x128xf32>
    %1767 = vector.shape_cast %1766 : vector<1x128xf32> to vector<128xf32>
    %1768 = vector.shape_cast %1767 : vector<128xf32> to vector<1x128xf32>
    %1769 = vector.broadcast %1768 : vector<1x128xf32> to vector<16x128xf32>
    %1770 = arith.mulf %1740, %1769 : vector<16x128xf32>
    %1771 = arith.addf %1667, %1770 : vector<16x128xf32>
    %1772 = vector.extract_strided_slice %561 {offsets = [5, 0], sizes = [1, 128], strides = [1, 1]} : vector<16x128xf32> to vector<1x128xf32>
    %1773 = vector.shape_cast %1772 : vector<1x128xf32> to vector<128xf32>
    %1774 = vector.shape_cast %1773 : vector<128xf32> to vector<1x128xf32>
    %1775 = vector.broadcast %1774 : vector<1x128xf32> to vector<16x128xf32>
    %1776 = arith.mulf %1740, %1775 : vector<16x128xf32>
    %1777 = arith.addf %1673, %1776 : vector<16x128xf32>
    %1778 = vector.extract_strided_slice %627 {offsets = [5, 0], sizes = [1, 128], strides = [1, 1]} : vector<16x128xf32> to vector<1x128xf32>
    %1779 = vector.shape_cast %1778 : vector<1x128xf32> to vector<128xf32>
    %1780 = vector.shape_cast %1779 : vector<128xf32> to vector<1x128xf32>
    %1781 = vector.broadcast %1780 : vector<1x128xf32> to vector<16x128xf32>
    %1782 = arith.mulf %1740, %1781 : vector<16x128xf32>
    %1783 = arith.addf %1679, %1782 : vector<16x128xf32>
    %1784 = vector.extract_strided_slice %693 {offsets = [5, 0], sizes = [1, 128], strides = [1, 1]} : vector<16x128xf32> to vector<1x128xf32>
    %1785 = vector.shape_cast %1784 : vector<1x128xf32> to vector<128xf32>
    %1786 = vector.shape_cast %1785 : vector<128xf32> to vector<1x128xf32>
    %1787 = vector.broadcast %1786 : vector<1x128xf32> to vector<16x128xf32>
    %1788 = arith.mulf %1740, %1787 : vector<16x128xf32>
    %1789 = arith.addf %1685, %1788 : vector<16x128xf32>
    %1790 = vector.extract_strided_slice %759 {offsets = [5, 0], sizes = [1, 128], strides = [1, 1]} : vector<16x128xf32> to vector<1x128xf32>
    %1791 = vector.shape_cast %1790 : vector<1x128xf32> to vector<128xf32>
    %1792 = vector.shape_cast %1791 : vector<128xf32> to vector<1x128xf32>
    %1793 = vector.broadcast %1792 : vector<1x128xf32> to vector<16x128xf32>
    %1794 = arith.mulf %1740, %1793 : vector<16x128xf32>
    %1795 = arith.addf %1691, %1794 : vector<16x128xf32>
    %1796 = vector.extract_strided_slice %825 {offsets = [5, 0], sizes = [1, 128], strides = [1, 1]} : vector<16x128xf32> to vector<1x128xf32>
    %1797 = vector.shape_cast %1796 : vector<1x128xf32> to vector<128xf32>
    %1798 = vector.shape_cast %1797 : vector<128xf32> to vector<1x128xf32>
    %1799 = vector.broadcast %1798 : vector<1x128xf32> to vector<16x128xf32>
    %1800 = arith.mulf %1740, %1799 : vector<16x128xf32>
    %1801 = arith.addf %1697, %1800 : vector<16x128xf32>
    %1802 = vector.extract_strided_slice %891 {offsets = [5, 0], sizes = [1, 128], strides = [1, 1]} : vector<16x128xf32> to vector<1x128xf32>
    %1803 = vector.shape_cast %1802 : vector<1x128xf32> to vector<128xf32>
    %1804 = vector.shape_cast %1803 : vector<128xf32> to vector<1x128xf32>
    %1805 = vector.broadcast %1804 : vector<1x128xf32> to vector<16x128xf32>
    %1806 = arith.mulf %1740, %1805 : vector<16x128xf32>
    %1807 = arith.addf %1703, %1806 : vector<16x128xf32>
    %1808 = vector.extract_strided_slice %957 {offsets = [5, 0], sizes = [1, 128], strides = [1, 1]} : vector<16x128xf32> to vector<1x128xf32>
    %1809 = vector.shape_cast %1808 : vector<1x128xf32> to vector<128xf32>
    %1810 = vector.shape_cast %1809 : vector<128xf32> to vector<1x128xf32>
    %1811 = vector.broadcast %1810 : vector<1x128xf32> to vector<16x128xf32>
    %1812 = arith.mulf %1740, %1811 : vector<16x128xf32>
    %1813 = arith.addf %1709, %1812 : vector<16x128xf32>
    %1814 = vector.extract_strided_slice %1023 {offsets = [5, 0], sizes = [1, 128], strides = [1, 1]} : vector<16x128xf32> to vector<1x128xf32>
    %1815 = vector.shape_cast %1814 : vector<1x128xf32> to vector<128xf32>
    %1816 = vector.shape_cast %1815 : vector<128xf32> to vector<1x128xf32>
    %1817 = vector.broadcast %1816 : vector<1x128xf32> to vector<16x128xf32>
    %1818 = arith.mulf %1740, %1817 : vector<16x128xf32>
    %1819 = arith.addf %1715, %1818 : vector<16x128xf32>
    %1820 = vector.extract_strided_slice %1089 {offsets = [5, 0], sizes = [1, 128], strides = [1, 1]} : vector<16x128xf32> to vector<1x128xf32>
    %1821 = vector.shape_cast %1820 : vector<1x128xf32> to vector<128xf32>
    %1822 = vector.shape_cast %1821 : vector<128xf32> to vector<1x128xf32>
    %1823 = vector.broadcast %1822 : vector<1x128xf32> to vector<16x128xf32>
    %1824 = arith.mulf %1740, %1823 : vector<16x128xf32>
    %1825 = arith.addf %1721, %1824 : vector<16x128xf32>
    %1826 = vector.extract_strided_slice %1155 {offsets = [5, 0], sizes = [1, 128], strides = [1, 1]} : vector<16x128xf32> to vector<1x128xf32>
    %1827 = vector.shape_cast %1826 : vector<1x128xf32> to vector<128xf32>
    %1828 = vector.shape_cast %1827 : vector<128xf32> to vector<1x128xf32>
    %1829 = vector.broadcast %1828 : vector<1x128xf32> to vector<16x128xf32>
    %1830 = arith.mulf %1740, %1829 : vector<16x128xf32>
    %1831 = arith.addf %1727, %1830 : vector<16x128xf32>
    %1832 = vector.extract_strided_slice %1221 {offsets = [5, 0], sizes = [1, 128], strides = [1, 1]} : vector<16x128xf32> to vector<1x128xf32>
    %1833 = vector.shape_cast %1832 : vector<1x128xf32> to vector<128xf32>
    %1834 = vector.shape_cast %1833 : vector<128xf32> to vector<1x128xf32>
    %1835 = vector.broadcast %1834 : vector<1x128xf32> to vector<16x128xf32>
    %1836 = arith.mulf %1740, %1835 : vector<16x128xf32>
    %1837 = arith.addf %1733, %1836 : vector<16x128xf32>
    %1838 = vector.extract_strided_slice %165 {offsets = [6, 0], sizes = [1, 128], strides = [1, 1]} : vector<16x128xf32> to vector<1x128xf32>
    %1839 = vector.shape_cast %1838 : vector<1x128xf32> to vector<128xf32>
    %1840 = vector.shape_cast %1839 : vector<128xf32> to vector<1x128xf32>
    %1841 = vector.broadcast %1840 : vector<1x128xf32> to vector<16x128xf32>
    %1842 = arith.mulf %160, %1841 : vector<16x128xf32>
    %1843 = arith.subf %1842, %1230 : vector<16x128xf32>
    %1844 = math.exp %1843 : vector<16x128xf32>
    %1845 = arith.addf %1741, %1844 : vector<16x128xf32>
    %1846 = vector.extract_strided_slice %231 {offsets = [6, 0], sizes = [1, 128], strides = [1, 1]} : vector<16x128xf32> to vector<1x128xf32>
    %1847 = vector.shape_cast %1846 : vector<1x128xf32> to vector<128xf32>
    %1848 = vector.shape_cast %1847 : vector<128xf32> to vector<1x128xf32>
    %1849 = vector.broadcast %1848 : vector<1x128xf32> to vector<16x128xf32>
    %1850 = arith.mulf %1844, %1849 : vector<16x128xf32>
    %1851 = arith.addf %1747, %1850 : vector<16x128xf32>
    %1852 = vector.extract_strided_slice %297 {offsets = [6, 0], sizes = [1, 128], strides = [1, 1]} : vector<16x128xf32> to vector<1x128xf32>
    %1853 = vector.shape_cast %1852 : vector<1x128xf32> to vector<128xf32>
    %1854 = vector.shape_cast %1853 : vector<128xf32> to vector<1x128xf32>
    %1855 = vector.broadcast %1854 : vector<1x128xf32> to vector<16x128xf32>
    %1856 = arith.mulf %1844, %1855 : vector<16x128xf32>
    %1857 = arith.addf %1753, %1856 : vector<16x128xf32>
    %1858 = vector.extract_strided_slice %363 {offsets = [6, 0], sizes = [1, 128], strides = [1, 1]} : vector<16x128xf32> to vector<1x128xf32>
    %1859 = vector.shape_cast %1858 : vector<1x128xf32> to vector<128xf32>
    %1860 = vector.shape_cast %1859 : vector<128xf32> to vector<1x128xf32>
    %1861 = vector.broadcast %1860 : vector<1x128xf32> to vector<16x128xf32>
    %1862 = arith.mulf %1844, %1861 : vector<16x128xf32>
    %1863 = arith.addf %1759, %1862 : vector<16x128xf32>
    %1864 = vector.extract_strided_slice %429 {offsets = [6, 0], sizes = [1, 128], strides = [1, 1]} : vector<16x128xf32> to vector<1x128xf32>
    %1865 = vector.shape_cast %1864 : vector<1x128xf32> to vector<128xf32>
    %1866 = vector.shape_cast %1865 : vector<128xf32> to vector<1x128xf32>
    %1867 = vector.broadcast %1866 : vector<1x128xf32> to vector<16x128xf32>
    %1868 = arith.mulf %1844, %1867 : vector<16x128xf32>
    %1869 = arith.addf %1765, %1868 : vector<16x128xf32>
    %1870 = vector.extract_strided_slice %495 {offsets = [6, 0], sizes = [1, 128], strides = [1, 1]} : vector<16x128xf32> to vector<1x128xf32>
    %1871 = vector.shape_cast %1870 : vector<1x128xf32> to vector<128xf32>
    %1872 = vector.shape_cast %1871 : vector<128xf32> to vector<1x128xf32>
    %1873 = vector.broadcast %1872 : vector<1x128xf32> to vector<16x128xf32>
    %1874 = arith.mulf %1844, %1873 : vector<16x128xf32>
    %1875 = arith.addf %1771, %1874 : vector<16x128xf32>
    %1876 = vector.extract_strided_slice %561 {offsets = [6, 0], sizes = [1, 128], strides = [1, 1]} : vector<16x128xf32> to vector<1x128xf32>
    %1877 = vector.shape_cast %1876 : vector<1x128xf32> to vector<128xf32>
    %1878 = vector.shape_cast %1877 : vector<128xf32> to vector<1x128xf32>
    %1879 = vector.broadcast %1878 : vector<1x128xf32> to vector<16x128xf32>
    %1880 = arith.mulf %1844, %1879 : vector<16x128xf32>
    %1881 = arith.addf %1777, %1880 : vector<16x128xf32>
    %1882 = vector.extract_strided_slice %627 {offsets = [6, 0], sizes = [1, 128], strides = [1, 1]} : vector<16x128xf32> to vector<1x128xf32>
    %1883 = vector.shape_cast %1882 : vector<1x128xf32> to vector<128xf32>
    %1884 = vector.shape_cast %1883 : vector<128xf32> to vector<1x128xf32>
    %1885 = vector.broadcast %1884 : vector<1x128xf32> to vector<16x128xf32>
    %1886 = arith.mulf %1844, %1885 : vector<16x128xf32>
    %1887 = arith.addf %1783, %1886 : vector<16x128xf32>
    %1888 = vector.extract_strided_slice %693 {offsets = [6, 0], sizes = [1, 128], strides = [1, 1]} : vector<16x128xf32> to vector<1x128xf32>
    %1889 = vector.shape_cast %1888 : vector<1x128xf32> to vector<128xf32>
    %1890 = vector.shape_cast %1889 : vector<128xf32> to vector<1x128xf32>
    %1891 = vector.broadcast %1890 : vector<1x128xf32> to vector<16x128xf32>
    %1892 = arith.mulf %1844, %1891 : vector<16x128xf32>
    %1893 = arith.addf %1789, %1892 : vector<16x128xf32>
    %1894 = vector.extract_strided_slice %759 {offsets = [6, 0], sizes = [1, 128], strides = [1, 1]} : vector<16x128xf32> to vector<1x128xf32>
    %1895 = vector.shape_cast %1894 : vector<1x128xf32> to vector<128xf32>
    %1896 = vector.shape_cast %1895 : vector<128xf32> to vector<1x128xf32>
    %1897 = vector.broadcast %1896 : vector<1x128xf32> to vector<16x128xf32>
    %1898 = arith.mulf %1844, %1897 : vector<16x128xf32>
    %1899 = arith.addf %1795, %1898 : vector<16x128xf32>
    %1900 = vector.extract_strided_slice %825 {offsets = [6, 0], sizes = [1, 128], strides = [1, 1]} : vector<16x128xf32> to vector<1x128xf32>
    %1901 = vector.shape_cast %1900 : vector<1x128xf32> to vector<128xf32>
    %1902 = vector.shape_cast %1901 : vector<128xf32> to vector<1x128xf32>
    %1903 = vector.broadcast %1902 : vector<1x128xf32> to vector<16x128xf32>
    %1904 = arith.mulf %1844, %1903 : vector<16x128xf32>
    %1905 = arith.addf %1801, %1904 : vector<16x128xf32>
    %1906 = vector.extract_strided_slice %891 {offsets = [6, 0], sizes = [1, 128], strides = [1, 1]} : vector<16x128xf32> to vector<1x128xf32>
    %1907 = vector.shape_cast %1906 : vector<1x128xf32> to vector<128xf32>
    %1908 = vector.shape_cast %1907 : vector<128xf32> to vector<1x128xf32>
    %1909 = vector.broadcast %1908 : vector<1x128xf32> to vector<16x128xf32>
    %1910 = arith.mulf %1844, %1909 : vector<16x128xf32>
    %1911 = arith.addf %1807, %1910 : vector<16x128xf32>
    %1912 = vector.extract_strided_slice %957 {offsets = [6, 0], sizes = [1, 128], strides = [1, 1]} : vector<16x128xf32> to vector<1x128xf32>
    %1913 = vector.shape_cast %1912 : vector<1x128xf32> to vector<128xf32>
    %1914 = vector.shape_cast %1913 : vector<128xf32> to vector<1x128xf32>
    %1915 = vector.broadcast %1914 : vector<1x128xf32> to vector<16x128xf32>
    %1916 = arith.mulf %1844, %1915 : vector<16x128xf32>
    %1917 = arith.addf %1813, %1916 : vector<16x128xf32>
    %1918 = vector.extract_strided_slice %1023 {offsets = [6, 0], sizes = [1, 128], strides = [1, 1]} : vector<16x128xf32> to vector<1x128xf32>
    %1919 = vector.shape_cast %1918 : vector<1x128xf32> to vector<128xf32>
    %1920 = vector.shape_cast %1919 : vector<128xf32> to vector<1x128xf32>
    %1921 = vector.broadcast %1920 : vector<1x128xf32> to vector<16x128xf32>
    %1922 = arith.mulf %1844, %1921 : vector<16x128xf32>
    %1923 = arith.addf %1819, %1922 : vector<16x128xf32>
    %1924 = vector.extract_strided_slice %1089 {offsets = [6, 0], sizes = [1, 128], strides = [1, 1]} : vector<16x128xf32> to vector<1x128xf32>
    %1925 = vector.shape_cast %1924 : vector<1x128xf32> to vector<128xf32>
    %1926 = vector.shape_cast %1925 : vector<128xf32> to vector<1x128xf32>
    %1927 = vector.broadcast %1926 : vector<1x128xf32> to vector<16x128xf32>
    %1928 = arith.mulf %1844, %1927 : vector<16x128xf32>
    %1929 = arith.addf %1825, %1928 : vector<16x128xf32>
    %1930 = vector.extract_strided_slice %1155 {offsets = [6, 0], sizes = [1, 128], strides = [1, 1]} : vector<16x128xf32> to vector<1x128xf32>
    %1931 = vector.shape_cast %1930 : vector<1x128xf32> to vector<128xf32>
    %1932 = vector.shape_cast %1931 : vector<128xf32> to vector<1x128xf32>
    %1933 = vector.broadcast %1932 : vector<1x128xf32> to vector<16x128xf32>
    %1934 = arith.mulf %1844, %1933 : vector<16x128xf32>
    %1935 = arith.addf %1831, %1934 : vector<16x128xf32>
    %1936 = vector.extract_strided_slice %1221 {offsets = [6, 0], sizes = [1, 128], strides = [1, 1]} : vector<16x128xf32> to vector<1x128xf32>
    %1937 = vector.shape_cast %1936 : vector<1x128xf32> to vector<128xf32>
    %1938 = vector.shape_cast %1937 : vector<128xf32> to vector<1x128xf32>
    %1939 = vector.broadcast %1938 : vector<1x128xf32> to vector<16x128xf32>
    %1940 = arith.mulf %1844, %1939 : vector<16x128xf32>
    %1941 = arith.addf %1837, %1940 : vector<16x128xf32>
    %1942 = vector.extract_strided_slice %165 {offsets = [7, 0], sizes = [1, 128], strides = [1, 1]} : vector<16x128xf32> to vector<1x128xf32>
    %1943 = vector.shape_cast %1942 : vector<1x128xf32> to vector<128xf32>
    %1944 = vector.shape_cast %1943 : vector<128xf32> to vector<1x128xf32>
    %1945 = vector.broadcast %1944 : vector<1x128xf32> to vector<16x128xf32>
    %1946 = arith.mulf %160, %1945 : vector<16x128xf32>
    %1947 = arith.subf %1946, %1230 : vector<16x128xf32>
    %1948 = math.exp %1947 : vector<16x128xf32>
    %1949 = arith.addf %1845, %1948 : vector<16x128xf32>
    %1950 = vector.extract_strided_slice %231 {offsets = [7, 0], sizes = [1, 128], strides = [1, 1]} : vector<16x128xf32> to vector<1x128xf32>
    %1951 = vector.shape_cast %1950 : vector<1x128xf32> to vector<128xf32>
    %1952 = vector.shape_cast %1951 : vector<128xf32> to vector<1x128xf32>
    %1953 = vector.broadcast %1952 : vector<1x128xf32> to vector<16x128xf32>
    %1954 = arith.mulf %1948, %1953 : vector<16x128xf32>
    %1955 = arith.addf %1851, %1954 : vector<16x128xf32>
    %1956 = vector.extract_strided_slice %297 {offsets = [7, 0], sizes = [1, 128], strides = [1, 1]} : vector<16x128xf32> to vector<1x128xf32>
    %1957 = vector.shape_cast %1956 : vector<1x128xf32> to vector<128xf32>
    %1958 = vector.shape_cast %1957 : vector<128xf32> to vector<1x128xf32>
    %1959 = vector.broadcast %1958 : vector<1x128xf32> to vector<16x128xf32>
    %1960 = arith.mulf %1948, %1959 : vector<16x128xf32>
    %1961 = arith.addf %1857, %1960 : vector<16x128xf32>
    %1962 = vector.extract_strided_slice %363 {offsets = [7, 0], sizes = [1, 128], strides = [1, 1]} : vector<16x128xf32> to vector<1x128xf32>
    %1963 = vector.shape_cast %1962 : vector<1x128xf32> to vector<128xf32>
    %1964 = vector.shape_cast %1963 : vector<128xf32> to vector<1x128xf32>
    %1965 = vector.broadcast %1964 : vector<1x128xf32> to vector<16x128xf32>
    %1966 = arith.mulf %1948, %1965 : vector<16x128xf32>
    %1967 = arith.addf %1863, %1966 : vector<16x128xf32>
    %1968 = vector.extract_strided_slice %429 {offsets = [7, 0], sizes = [1, 128], strides = [1, 1]} : vector<16x128xf32> to vector<1x128xf32>
    %1969 = vector.shape_cast %1968 : vector<1x128xf32> to vector<128xf32>
    %1970 = vector.shape_cast %1969 : vector<128xf32> to vector<1x128xf32>
    %1971 = vector.broadcast %1970 : vector<1x128xf32> to vector<16x128xf32>
    %1972 = arith.mulf %1948, %1971 : vector<16x128xf32>
    %1973 = arith.addf %1869, %1972 : vector<16x128xf32>
    %1974 = vector.extract_strided_slice %495 {offsets = [7, 0], sizes = [1, 128], strides = [1, 1]} : vector<16x128xf32> to vector<1x128xf32>
    %1975 = vector.shape_cast %1974 : vector<1x128xf32> to vector<128xf32>
    %1976 = vector.shape_cast %1975 : vector<128xf32> to vector<1x128xf32>
    %1977 = vector.broadcast %1976 : vector<1x128xf32> to vector<16x128xf32>
    %1978 = arith.mulf %1948, %1977 : vector<16x128xf32>
    %1979 = arith.addf %1875, %1978 : vector<16x128xf32>
    %1980 = vector.extract_strided_slice %561 {offsets = [7, 0], sizes = [1, 128], strides = [1, 1]} : vector<16x128xf32> to vector<1x128xf32>
    %1981 = vector.shape_cast %1980 : vector<1x128xf32> to vector<128xf32>
    %1982 = vector.shape_cast %1981 : vector<128xf32> to vector<1x128xf32>
    %1983 = vector.broadcast %1982 : vector<1x128xf32> to vector<16x128xf32>
    %1984 = arith.mulf %1948, %1983 : vector<16x128xf32>
    %1985 = arith.addf %1881, %1984 : vector<16x128xf32>
    %1986 = vector.extract_strided_slice %627 {offsets = [7, 0], sizes = [1, 128], strides = [1, 1]} : vector<16x128xf32> to vector<1x128xf32>
    %1987 = vector.shape_cast %1986 : vector<1x128xf32> to vector<128xf32>
    %1988 = vector.shape_cast %1987 : vector<128xf32> to vector<1x128xf32>
    %1989 = vector.broadcast %1988 : vector<1x128xf32> to vector<16x128xf32>
    %1990 = arith.mulf %1948, %1989 : vector<16x128xf32>
    %1991 = arith.addf %1887, %1990 : vector<16x128xf32>
    %1992 = vector.extract_strided_slice %693 {offsets = [7, 0], sizes = [1, 128], strides = [1, 1]} : vector<16x128xf32> to vector<1x128xf32>
    %1993 = vector.shape_cast %1992 : vector<1x128xf32> to vector<128xf32>
    %1994 = vector.shape_cast %1993 : vector<128xf32> to vector<1x128xf32>
    %1995 = vector.broadcast %1994 : vector<1x128xf32> to vector<16x128xf32>
    %1996 = arith.mulf %1948, %1995 : vector<16x128xf32>
    %1997 = arith.addf %1893, %1996 : vector<16x128xf32>
    %1998 = vector.extract_strided_slice %759 {offsets = [7, 0], sizes = [1, 128], strides = [1, 1]} : vector<16x128xf32> to vector<1x128xf32>
    %1999 = vector.shape_cast %1998 : vector<1x128xf32> to vector<128xf32>
    %2000 = vector.shape_cast %1999 : vector<128xf32> to vector<1x128xf32>
    %2001 = vector.broadcast %2000 : vector<1x128xf32> to vector<16x128xf32>
    %2002 = arith.mulf %1948, %2001 : vector<16x128xf32>
    %2003 = arith.addf %1899, %2002 : vector<16x128xf32>
    %2004 = vector.extract_strided_slice %825 {offsets = [7, 0], sizes = [1, 128], strides = [1, 1]} : vector<16x128xf32> to vector<1x128xf32>
    %2005 = vector.shape_cast %2004 : vector<1x128xf32> to vector<128xf32>
    %2006 = vector.shape_cast %2005 : vector<128xf32> to vector<1x128xf32>
    %2007 = vector.broadcast %2006 : vector<1x128xf32> to vector<16x128xf32>
    %2008 = arith.mulf %1948, %2007 : vector<16x128xf32>
    %2009 = arith.addf %1905, %2008 : vector<16x128xf32>
    %2010 = vector.extract_strided_slice %891 {offsets = [7, 0], sizes = [1, 128], strides = [1, 1]} : vector<16x128xf32> to vector<1x128xf32>
    %2011 = vector.shape_cast %2010 : vector<1x128xf32> to vector<128xf32>
    %2012 = vector.shape_cast %2011 : vector<128xf32> to vector<1x128xf32>
    %2013 = vector.broadcast %2012 : vector<1x128xf32> to vector<16x128xf32>
    %2014 = arith.mulf %1948, %2013 : vector<16x128xf32>
    %2015 = arith.addf %1911, %2014 : vector<16x128xf32>
    %2016 = vector.extract_strided_slice %957 {offsets = [7, 0], sizes = [1, 128], strides = [1, 1]} : vector<16x128xf32> to vector<1x128xf32>
    %2017 = vector.shape_cast %2016 : vector<1x128xf32> to vector<128xf32>
    %2018 = vector.shape_cast %2017 : vector<128xf32> to vector<1x128xf32>
    %2019 = vector.broadcast %2018 : vector<1x128xf32> to vector<16x128xf32>
    %2020 = arith.mulf %1948, %2019 : vector<16x128xf32>
    %2021 = arith.addf %1917, %2020 : vector<16x128xf32>
    %2022 = vector.extract_strided_slice %1023 {offsets = [7, 0], sizes = [1, 128], strides = [1, 1]} : vector<16x128xf32> to vector<1x128xf32>
    %2023 = vector.shape_cast %2022 : vector<1x128xf32> to vector<128xf32>
    %2024 = vector.shape_cast %2023 : vector<128xf32> to vector<1x128xf32>
    %2025 = vector.broadcast %2024 : vector<1x128xf32> to vector<16x128xf32>
    %2026 = arith.mulf %1948, %2025 : vector<16x128xf32>
    %2027 = arith.addf %1923, %2026 : vector<16x128xf32>
    %2028 = vector.extract_strided_slice %1089 {offsets = [7, 0], sizes = [1, 128], strides = [1, 1]} : vector<16x128xf32> to vector<1x128xf32>
    %2029 = vector.shape_cast %2028 : vector<1x128xf32> to vector<128xf32>
    %2030 = vector.shape_cast %2029 : vector<128xf32> to vector<1x128xf32>
    %2031 = vector.broadcast %2030 : vector<1x128xf32> to vector<16x128xf32>
    %2032 = arith.mulf %1948, %2031 : vector<16x128xf32>
    %2033 = arith.addf %1929, %2032 : vector<16x128xf32>
    %2034 = vector.extract_strided_slice %1155 {offsets = [7, 0], sizes = [1, 128], strides = [1, 1]} : vector<16x128xf32> to vector<1x128xf32>
    %2035 = vector.shape_cast %2034 : vector<1x128xf32> to vector<128xf32>
    %2036 = vector.shape_cast %2035 : vector<128xf32> to vector<1x128xf32>
    %2037 = vector.broadcast %2036 : vector<1x128xf32> to vector<16x128xf32>
    %2038 = arith.mulf %1948, %2037 : vector<16x128xf32>
    %2039 = arith.addf %1935, %2038 : vector<16x128xf32>
    %2040 = vector.extract_strided_slice %1221 {offsets = [7, 0], sizes = [1, 128], strides = [1, 1]} : vector<16x128xf32> to vector<1x128xf32>
    %2041 = vector.shape_cast %2040 : vector<1x128xf32> to vector<128xf32>
    %2042 = vector.shape_cast %2041 : vector<128xf32> to vector<1x128xf32>
    %2043 = vector.broadcast %2042 : vector<1x128xf32> to vector<16x128xf32>
    %2044 = arith.mulf %1948, %2043 : vector<16x128xf32>
    %2045 = arith.addf %1941, %2044 : vector<16x128xf32>
    %2046 = vector.extract_strided_slice %165 {offsets = [8, 0], sizes = [1, 128], strides = [1, 1]} : vector<16x128xf32> to vector<1x128xf32>
    %2047 = vector.shape_cast %2046 : vector<1x128xf32> to vector<128xf32>
    %2048 = vector.shape_cast %2047 : vector<128xf32> to vector<1x128xf32>
    %2049 = vector.broadcast %2048 : vector<1x128xf32> to vector<16x128xf32>
    %2050 = arith.mulf %160, %2049 : vector<16x128xf32>
    %2051 = arith.subf %2050, %1230 : vector<16x128xf32>
    %2052 = math.exp %2051 : vector<16x128xf32>
    %2053 = arith.addf %1949, %2052 : vector<16x128xf32>
    %2054 = vector.extract_strided_slice %231 {offsets = [8, 0], sizes = [1, 128], strides = [1, 1]} : vector<16x128xf32> to vector<1x128xf32>
    %2055 = vector.shape_cast %2054 : vector<1x128xf32> to vector<128xf32>
    %2056 = vector.shape_cast %2055 : vector<128xf32> to vector<1x128xf32>
    %2057 = vector.broadcast %2056 : vector<1x128xf32> to vector<16x128xf32>
    %2058 = arith.mulf %2052, %2057 : vector<16x128xf32>
    %2059 = arith.addf %1955, %2058 : vector<16x128xf32>
    %2060 = vector.extract_strided_slice %297 {offsets = [8, 0], sizes = [1, 128], strides = [1, 1]} : vector<16x128xf32> to vector<1x128xf32>
    %2061 = vector.shape_cast %2060 : vector<1x128xf32> to vector<128xf32>
    %2062 = vector.shape_cast %2061 : vector<128xf32> to vector<1x128xf32>
    %2063 = vector.broadcast %2062 : vector<1x128xf32> to vector<16x128xf32>
    %2064 = arith.mulf %2052, %2063 : vector<16x128xf32>
    %2065 = arith.addf %1961, %2064 : vector<16x128xf32>
    %2066 = vector.extract_strided_slice %363 {offsets = [8, 0], sizes = [1, 128], strides = [1, 1]} : vector<16x128xf32> to vector<1x128xf32>
    %2067 = vector.shape_cast %2066 : vector<1x128xf32> to vector<128xf32>
    %2068 = vector.shape_cast %2067 : vector<128xf32> to vector<1x128xf32>
    %2069 = vector.broadcast %2068 : vector<1x128xf32> to vector<16x128xf32>
    %2070 = arith.mulf %2052, %2069 : vector<16x128xf32>
    %2071 = arith.addf %1967, %2070 : vector<16x128xf32>
    %2072 = vector.extract_strided_slice %429 {offsets = [8, 0], sizes = [1, 128], strides = [1, 1]} : vector<16x128xf32> to vector<1x128xf32>
    %2073 = vector.shape_cast %2072 : vector<1x128xf32> to vector<128xf32>
    %2074 = vector.shape_cast %2073 : vector<128xf32> to vector<1x128xf32>
    %2075 = vector.broadcast %2074 : vector<1x128xf32> to vector<16x128xf32>
    %2076 = arith.mulf %2052, %2075 : vector<16x128xf32>
    %2077 = arith.addf %1973, %2076 : vector<16x128xf32>
    %2078 = vector.extract_strided_slice %495 {offsets = [8, 0], sizes = [1, 128], strides = [1, 1]} : vector<16x128xf32> to vector<1x128xf32>
    %2079 = vector.shape_cast %2078 : vector<1x128xf32> to vector<128xf32>
    %2080 = vector.shape_cast %2079 : vector<128xf32> to vector<1x128xf32>
    %2081 = vector.broadcast %2080 : vector<1x128xf32> to vector<16x128xf32>
    %2082 = arith.mulf %2052, %2081 : vector<16x128xf32>
    %2083 = arith.addf %1979, %2082 : vector<16x128xf32>
    %2084 = vector.extract_strided_slice %561 {offsets = [8, 0], sizes = [1, 128], strides = [1, 1]} : vector<16x128xf32> to vector<1x128xf32>
    %2085 = vector.shape_cast %2084 : vector<1x128xf32> to vector<128xf32>
    %2086 = vector.shape_cast %2085 : vector<128xf32> to vector<1x128xf32>
    %2087 = vector.broadcast %2086 : vector<1x128xf32> to vector<16x128xf32>
    %2088 = arith.mulf %2052, %2087 : vector<16x128xf32>
    %2089 = arith.addf %1985, %2088 : vector<16x128xf32>
    %2090 = vector.extract_strided_slice %627 {offsets = [8, 0], sizes = [1, 128], strides = [1, 1]} : vector<16x128xf32> to vector<1x128xf32>
    %2091 = vector.shape_cast %2090 : vector<1x128xf32> to vector<128xf32>
    %2092 = vector.shape_cast %2091 : vector<128xf32> to vector<1x128xf32>
    %2093 = vector.broadcast %2092 : vector<1x128xf32> to vector<16x128xf32>
    %2094 = arith.mulf %2052, %2093 : vector<16x128xf32>
    %2095 = arith.addf %1991, %2094 : vector<16x128xf32>
    %2096 = vector.extract_strided_slice %693 {offsets = [8, 0], sizes = [1, 128], strides = [1, 1]} : vector<16x128xf32> to vector<1x128xf32>
    %2097 = vector.shape_cast %2096 : vector<1x128xf32> to vector<128xf32>
    %2098 = vector.shape_cast %2097 : vector<128xf32> to vector<1x128xf32>
    %2099 = vector.broadcast %2098 : vector<1x128xf32> to vector<16x128xf32>
    %2100 = arith.mulf %2052, %2099 : vector<16x128xf32>
    %2101 = arith.addf %1997, %2100 : vector<16x128xf32>
    %2102 = vector.extract_strided_slice %759 {offsets = [8, 0], sizes = [1, 128], strides = [1, 1]} : vector<16x128xf32> to vector<1x128xf32>
    %2103 = vector.shape_cast %2102 : vector<1x128xf32> to vector<128xf32>
    %2104 = vector.shape_cast %2103 : vector<128xf32> to vector<1x128xf32>
    %2105 = vector.broadcast %2104 : vector<1x128xf32> to vector<16x128xf32>
    %2106 = arith.mulf %2052, %2105 : vector<16x128xf32>
    %2107 = arith.addf %2003, %2106 : vector<16x128xf32>
    %2108 = vector.extract_strided_slice %825 {offsets = [8, 0], sizes = [1, 128], strides = [1, 1]} : vector<16x128xf32> to vector<1x128xf32>
    %2109 = vector.shape_cast %2108 : vector<1x128xf32> to vector<128xf32>
    %2110 = vector.shape_cast %2109 : vector<128xf32> to vector<1x128xf32>
    %2111 = vector.broadcast %2110 : vector<1x128xf32> to vector<16x128xf32>
    %2112 = arith.mulf %2052, %2111 : vector<16x128xf32>
    %2113 = arith.addf %2009, %2112 : vector<16x128xf32>
    %2114 = vector.extract_strided_slice %891 {offsets = [8, 0], sizes = [1, 128], strides = [1, 1]} : vector<16x128xf32> to vector<1x128xf32>
    %2115 = vector.shape_cast %2114 : vector<1x128xf32> to vector<128xf32>
    %2116 = vector.shape_cast %2115 : vector<128xf32> to vector<1x128xf32>
    %2117 = vector.broadcast %2116 : vector<1x128xf32> to vector<16x128xf32>
    %2118 = arith.mulf %2052, %2117 : vector<16x128xf32>
    %2119 = arith.addf %2015, %2118 : vector<16x128xf32>
    %2120 = vector.extract_strided_slice %957 {offsets = [8, 0], sizes = [1, 128], strides = [1, 1]} : vector<16x128xf32> to vector<1x128xf32>
    %2121 = vector.shape_cast %2120 : vector<1x128xf32> to vector<128xf32>
    %2122 = vector.shape_cast %2121 : vector<128xf32> to vector<1x128xf32>
    %2123 = vector.broadcast %2122 : vector<1x128xf32> to vector<16x128xf32>
    %2124 = arith.mulf %2052, %2123 : vector<16x128xf32>
    %2125 = arith.addf %2021, %2124 : vector<16x128xf32>
    %2126 = vector.extract_strided_slice %1023 {offsets = [8, 0], sizes = [1, 128], strides = [1, 1]} : vector<16x128xf32> to vector<1x128xf32>
    %2127 = vector.shape_cast %2126 : vector<1x128xf32> to vector<128xf32>
    %2128 = vector.shape_cast %2127 : vector<128xf32> to vector<1x128xf32>
    %2129 = vector.broadcast %2128 : vector<1x128xf32> to vector<16x128xf32>
    %2130 = arith.mulf %2052, %2129 : vector<16x128xf32>
    %2131 = arith.addf %2027, %2130 : vector<16x128xf32>
    %2132 = vector.extract_strided_slice %1089 {offsets = [8, 0], sizes = [1, 128], strides = [1, 1]} : vector<16x128xf32> to vector<1x128xf32>
    %2133 = vector.shape_cast %2132 : vector<1x128xf32> to vector<128xf32>
    %2134 = vector.shape_cast %2133 : vector<128xf32> to vector<1x128xf32>
    %2135 = vector.broadcast %2134 : vector<1x128xf32> to vector<16x128xf32>
    %2136 = arith.mulf %2052, %2135 : vector<16x128xf32>
    %2137 = arith.addf %2033, %2136 : vector<16x128xf32>
    %2138 = vector.extract_strided_slice %1155 {offsets = [8, 0], sizes = [1, 128], strides = [1, 1]} : vector<16x128xf32> to vector<1x128xf32>
    %2139 = vector.shape_cast %2138 : vector<1x128xf32> to vector<128xf32>
    %2140 = vector.shape_cast %2139 : vector<128xf32> to vector<1x128xf32>
    %2141 = vector.broadcast %2140 : vector<1x128xf32> to vector<16x128xf32>
    %2142 = arith.mulf %2052, %2141 : vector<16x128xf32>
    %2143 = arith.addf %2039, %2142 : vector<16x128xf32>
    %2144 = vector.extract_strided_slice %1221 {offsets = [8, 0], sizes = [1, 128], strides = [1, 1]} : vector<16x128xf32> to vector<1x128xf32>
    %2145 = vector.shape_cast %2144 : vector<1x128xf32> to vector<128xf32>
    %2146 = vector.shape_cast %2145 : vector<128xf32> to vector<1x128xf32>
    %2147 = vector.broadcast %2146 : vector<1x128xf32> to vector<16x128xf32>
    %2148 = arith.mulf %2052, %2147 : vector<16x128xf32>
    %2149 = arith.addf %2045, %2148 : vector<16x128xf32>
    %2150 = vector.extract_strided_slice %165 {offsets = [9, 0], sizes = [1, 128], strides = [1, 1]} : vector<16x128xf32> to vector<1x128xf32>
    %2151 = vector.shape_cast %2150 : vector<1x128xf32> to vector<128xf32>
    %2152 = vector.shape_cast %2151 : vector<128xf32> to vector<1x128xf32>
    %2153 = vector.broadcast %2152 : vector<1x128xf32> to vector<16x128xf32>
    %2154 = arith.mulf %160, %2153 : vector<16x128xf32>
    %2155 = arith.subf %2154, %1230 : vector<16x128xf32>
    %2156 = math.exp %2155 : vector<16x128xf32>
    %2157 = arith.addf %2053, %2156 : vector<16x128xf32>
    %2158 = vector.extract_strided_slice %231 {offsets = [9, 0], sizes = [1, 128], strides = [1, 1]} : vector<16x128xf32> to vector<1x128xf32>
    %2159 = vector.shape_cast %2158 : vector<1x128xf32> to vector<128xf32>
    %2160 = vector.shape_cast %2159 : vector<128xf32> to vector<1x128xf32>
    %2161 = vector.broadcast %2160 : vector<1x128xf32> to vector<16x128xf32>
    %2162 = arith.mulf %2156, %2161 : vector<16x128xf32>
    %2163 = arith.addf %2059, %2162 : vector<16x128xf32>
    %2164 = vector.extract_strided_slice %297 {offsets = [9, 0], sizes = [1, 128], strides = [1, 1]} : vector<16x128xf32> to vector<1x128xf32>
    %2165 = vector.shape_cast %2164 : vector<1x128xf32> to vector<128xf32>
    %2166 = vector.shape_cast %2165 : vector<128xf32> to vector<1x128xf32>
    %2167 = vector.broadcast %2166 : vector<1x128xf32> to vector<16x128xf32>
    %2168 = arith.mulf %2156, %2167 : vector<16x128xf32>
    %2169 = arith.addf %2065, %2168 : vector<16x128xf32>
    %2170 = vector.extract_strided_slice %363 {offsets = [9, 0], sizes = [1, 128], strides = [1, 1]} : vector<16x128xf32> to vector<1x128xf32>
    %2171 = vector.shape_cast %2170 : vector<1x128xf32> to vector<128xf32>
    %2172 = vector.shape_cast %2171 : vector<128xf32> to vector<1x128xf32>
    %2173 = vector.broadcast %2172 : vector<1x128xf32> to vector<16x128xf32>
    %2174 = arith.mulf %2156, %2173 : vector<16x128xf32>
    %2175 = arith.addf %2071, %2174 : vector<16x128xf32>
    %2176 = vector.extract_strided_slice %429 {offsets = [9, 0], sizes = [1, 128], strides = [1, 1]} : vector<16x128xf32> to vector<1x128xf32>
    %2177 = vector.shape_cast %2176 : vector<1x128xf32> to vector<128xf32>
    %2178 = vector.shape_cast %2177 : vector<128xf32> to vector<1x128xf32>
    %2179 = vector.broadcast %2178 : vector<1x128xf32> to vector<16x128xf32>
    %2180 = arith.mulf %2156, %2179 : vector<16x128xf32>
    %2181 = arith.addf %2077, %2180 : vector<16x128xf32>
    %2182 = vector.extract_strided_slice %495 {offsets = [9, 0], sizes = [1, 128], strides = [1, 1]} : vector<16x128xf32> to vector<1x128xf32>
    %2183 = vector.shape_cast %2182 : vector<1x128xf32> to vector<128xf32>
    %2184 = vector.shape_cast %2183 : vector<128xf32> to vector<1x128xf32>
    %2185 = vector.broadcast %2184 : vector<1x128xf32> to vector<16x128xf32>
    %2186 = arith.mulf %2156, %2185 : vector<16x128xf32>
    %2187 = arith.addf %2083, %2186 : vector<16x128xf32>
    %2188 = vector.extract_strided_slice %561 {offsets = [9, 0], sizes = [1, 128], strides = [1, 1]} : vector<16x128xf32> to vector<1x128xf32>
    %2189 = vector.shape_cast %2188 : vector<1x128xf32> to vector<128xf32>
    %2190 = vector.shape_cast %2189 : vector<128xf32> to vector<1x128xf32>
    %2191 = vector.broadcast %2190 : vector<1x128xf32> to vector<16x128xf32>
    %2192 = arith.mulf %2156, %2191 : vector<16x128xf32>
    %2193 = arith.addf %2089, %2192 : vector<16x128xf32>
    %2194 = vector.extract_strided_slice %627 {offsets = [9, 0], sizes = [1, 128], strides = [1, 1]} : vector<16x128xf32> to vector<1x128xf32>
    %2195 = vector.shape_cast %2194 : vector<1x128xf32> to vector<128xf32>
    %2196 = vector.shape_cast %2195 : vector<128xf32> to vector<1x128xf32>
    %2197 = vector.broadcast %2196 : vector<1x128xf32> to vector<16x128xf32>
    %2198 = arith.mulf %2156, %2197 : vector<16x128xf32>
    %2199 = arith.addf %2095, %2198 : vector<16x128xf32>
    %2200 = vector.extract_strided_slice %693 {offsets = [9, 0], sizes = [1, 128], strides = [1, 1]} : vector<16x128xf32> to vector<1x128xf32>
    %2201 = vector.shape_cast %2200 : vector<1x128xf32> to vector<128xf32>
    %2202 = vector.shape_cast %2201 : vector<128xf32> to vector<1x128xf32>
    %2203 = vector.broadcast %2202 : vector<1x128xf32> to vector<16x128xf32>
    %2204 = arith.mulf %2156, %2203 : vector<16x128xf32>
    %2205 = arith.addf %2101, %2204 : vector<16x128xf32>
    %2206 = vector.extract_strided_slice %759 {offsets = [9, 0], sizes = [1, 128], strides = [1, 1]} : vector<16x128xf32> to vector<1x128xf32>
    %2207 = vector.shape_cast %2206 : vector<1x128xf32> to vector<128xf32>
    %2208 = vector.shape_cast %2207 : vector<128xf32> to vector<1x128xf32>
    %2209 = vector.broadcast %2208 : vector<1x128xf32> to vector<16x128xf32>
    %2210 = arith.mulf %2156, %2209 : vector<16x128xf32>
    %2211 = arith.addf %2107, %2210 : vector<16x128xf32>
    %2212 = vector.extract_strided_slice %825 {offsets = [9, 0], sizes = [1, 128], strides = [1, 1]} : vector<16x128xf32> to vector<1x128xf32>
    %2213 = vector.shape_cast %2212 : vector<1x128xf32> to vector<128xf32>
    %2214 = vector.shape_cast %2213 : vector<128xf32> to vector<1x128xf32>
    %2215 = vector.broadcast %2214 : vector<1x128xf32> to vector<16x128xf32>
    %2216 = arith.mulf %2156, %2215 : vector<16x128xf32>
    %2217 = arith.addf %2113, %2216 : vector<16x128xf32>
    %2218 = vector.extract_strided_slice %891 {offsets = [9, 0], sizes = [1, 128], strides = [1, 1]} : vector<16x128xf32> to vector<1x128xf32>
    %2219 = vector.shape_cast %2218 : vector<1x128xf32> to vector<128xf32>
    %2220 = vector.shape_cast %2219 : vector<128xf32> to vector<1x128xf32>
    %2221 = vector.broadcast %2220 : vector<1x128xf32> to vector<16x128xf32>
    %2222 = arith.mulf %2156, %2221 : vector<16x128xf32>
    %2223 = arith.addf %2119, %2222 : vector<16x128xf32>
    %2224 = vector.extract_strided_slice %957 {offsets = [9, 0], sizes = [1, 128], strides = [1, 1]} : vector<16x128xf32> to vector<1x128xf32>
    %2225 = vector.shape_cast %2224 : vector<1x128xf32> to vector<128xf32>
    %2226 = vector.shape_cast %2225 : vector<128xf32> to vector<1x128xf32>
    %2227 = vector.broadcast %2226 : vector<1x128xf32> to vector<16x128xf32>
    %2228 = arith.mulf %2156, %2227 : vector<16x128xf32>
    %2229 = arith.addf %2125, %2228 : vector<16x128xf32>
    %2230 = vector.extract_strided_slice %1023 {offsets = [9, 0], sizes = [1, 128], strides = [1, 1]} : vector<16x128xf32> to vector<1x128xf32>
    %2231 = vector.shape_cast %2230 : vector<1x128xf32> to vector<128xf32>
    %2232 = vector.shape_cast %2231 : vector<128xf32> to vector<1x128xf32>
    %2233 = vector.broadcast %2232 : vector<1x128xf32> to vector<16x128xf32>
    %2234 = arith.mulf %2156, %2233 : vector<16x128xf32>
    %2235 = arith.addf %2131, %2234 : vector<16x128xf32>
    %2236 = vector.extract_strided_slice %1089 {offsets = [9, 0], sizes = [1, 128], strides = [1, 1]} : vector<16x128xf32> to vector<1x128xf32>
    %2237 = vector.shape_cast %2236 : vector<1x128xf32> to vector<128xf32>
    %2238 = vector.shape_cast %2237 : vector<128xf32> to vector<1x128xf32>
    %2239 = vector.broadcast %2238 : vector<1x128xf32> to vector<16x128xf32>
    %2240 = arith.mulf %2156, %2239 : vector<16x128xf32>
    %2241 = arith.addf %2137, %2240 : vector<16x128xf32>
    %2242 = vector.extract_strided_slice %1155 {offsets = [9, 0], sizes = [1, 128], strides = [1, 1]} : vector<16x128xf32> to vector<1x128xf32>
    %2243 = vector.shape_cast %2242 : vector<1x128xf32> to vector<128xf32>
    %2244 = vector.shape_cast %2243 : vector<128xf32> to vector<1x128xf32>
    %2245 = vector.broadcast %2244 : vector<1x128xf32> to vector<16x128xf32>
    %2246 = arith.mulf %2156, %2245 : vector<16x128xf32>
    %2247 = arith.addf %2143, %2246 : vector<16x128xf32>
    %2248 = vector.extract_strided_slice %1221 {offsets = [9, 0], sizes = [1, 128], strides = [1, 1]} : vector<16x128xf32> to vector<1x128xf32>
    %2249 = vector.shape_cast %2248 : vector<1x128xf32> to vector<128xf32>
    %2250 = vector.shape_cast %2249 : vector<128xf32> to vector<1x128xf32>
    %2251 = vector.broadcast %2250 : vector<1x128xf32> to vector<16x128xf32>
    %2252 = arith.mulf %2156, %2251 : vector<16x128xf32>
    %2253 = arith.addf %2149, %2252 : vector<16x128xf32>
    %2254 = vector.extract_strided_slice %165 {offsets = [10, 0], sizes = [1, 128], strides = [1, 1]} : vector<16x128xf32> to vector<1x128xf32>
    %2255 = vector.shape_cast %2254 : vector<1x128xf32> to vector<128xf32>
    %2256 = vector.shape_cast %2255 : vector<128xf32> to vector<1x128xf32>
    %2257 = vector.broadcast %2256 : vector<1x128xf32> to vector<16x128xf32>
    %2258 = arith.mulf %160, %2257 : vector<16x128xf32>
    %2259 = arith.subf %2258, %1230 : vector<16x128xf32>
    %2260 = math.exp %2259 : vector<16x128xf32>
    %2261 = arith.addf %2157, %2260 : vector<16x128xf32>
    %2262 = vector.extract_strided_slice %231 {offsets = [10, 0], sizes = [1, 128], strides = [1, 1]} : vector<16x128xf32> to vector<1x128xf32>
    %2263 = vector.shape_cast %2262 : vector<1x128xf32> to vector<128xf32>
    %2264 = vector.shape_cast %2263 : vector<128xf32> to vector<1x128xf32>
    %2265 = vector.broadcast %2264 : vector<1x128xf32> to vector<16x128xf32>
    %2266 = arith.mulf %2260, %2265 : vector<16x128xf32>
    %2267 = arith.addf %2163, %2266 : vector<16x128xf32>
    %2268 = vector.extract_strided_slice %297 {offsets = [10, 0], sizes = [1, 128], strides = [1, 1]} : vector<16x128xf32> to vector<1x128xf32>
    %2269 = vector.shape_cast %2268 : vector<1x128xf32> to vector<128xf32>
    %2270 = vector.shape_cast %2269 : vector<128xf32> to vector<1x128xf32>
    %2271 = vector.broadcast %2270 : vector<1x128xf32> to vector<16x128xf32>
    %2272 = arith.mulf %2260, %2271 : vector<16x128xf32>
    %2273 = arith.addf %2169, %2272 : vector<16x128xf32>
    %2274 = vector.extract_strided_slice %363 {offsets = [10, 0], sizes = [1, 128], strides = [1, 1]} : vector<16x128xf32> to vector<1x128xf32>
    %2275 = vector.shape_cast %2274 : vector<1x128xf32> to vector<128xf32>
    %2276 = vector.shape_cast %2275 : vector<128xf32> to vector<1x128xf32>
    %2277 = vector.broadcast %2276 : vector<1x128xf32> to vector<16x128xf32>
    %2278 = arith.mulf %2260, %2277 : vector<16x128xf32>
    %2279 = arith.addf %2175, %2278 : vector<16x128xf32>
    %2280 = vector.extract_strided_slice %429 {offsets = [10, 0], sizes = [1, 128], strides = [1, 1]} : vector<16x128xf32> to vector<1x128xf32>
    %2281 = vector.shape_cast %2280 : vector<1x128xf32> to vector<128xf32>
    %2282 = vector.shape_cast %2281 : vector<128xf32> to vector<1x128xf32>
    %2283 = vector.broadcast %2282 : vector<1x128xf32> to vector<16x128xf32>
    %2284 = arith.mulf %2260, %2283 : vector<16x128xf32>
    %2285 = arith.addf %2181, %2284 : vector<16x128xf32>
    %2286 = vector.extract_strided_slice %495 {offsets = [10, 0], sizes = [1, 128], strides = [1, 1]} : vector<16x128xf32> to vector<1x128xf32>
    %2287 = vector.shape_cast %2286 : vector<1x128xf32> to vector<128xf32>
    %2288 = vector.shape_cast %2287 : vector<128xf32> to vector<1x128xf32>
    %2289 = vector.broadcast %2288 : vector<1x128xf32> to vector<16x128xf32>
    %2290 = arith.mulf %2260, %2289 : vector<16x128xf32>
    %2291 = arith.addf %2187, %2290 : vector<16x128xf32>
    %2292 = vector.extract_strided_slice %561 {offsets = [10, 0], sizes = [1, 128], strides = [1, 1]} : vector<16x128xf32> to vector<1x128xf32>
    %2293 = vector.shape_cast %2292 : vector<1x128xf32> to vector<128xf32>
    %2294 = vector.shape_cast %2293 : vector<128xf32> to vector<1x128xf32>
    %2295 = vector.broadcast %2294 : vector<1x128xf32> to vector<16x128xf32>
    %2296 = arith.mulf %2260, %2295 : vector<16x128xf32>
    %2297 = arith.addf %2193, %2296 : vector<16x128xf32>
    %2298 = vector.extract_strided_slice %627 {offsets = [10, 0], sizes = [1, 128], strides = [1, 1]} : vector<16x128xf32> to vector<1x128xf32>
    %2299 = vector.shape_cast %2298 : vector<1x128xf32> to vector<128xf32>
    %2300 = vector.shape_cast %2299 : vector<128xf32> to vector<1x128xf32>
    %2301 = vector.broadcast %2300 : vector<1x128xf32> to vector<16x128xf32>
    %2302 = arith.mulf %2260, %2301 : vector<16x128xf32>
    %2303 = arith.addf %2199, %2302 : vector<16x128xf32>
    %2304 = vector.extract_strided_slice %693 {offsets = [10, 0], sizes = [1, 128], strides = [1, 1]} : vector<16x128xf32> to vector<1x128xf32>
    %2305 = vector.shape_cast %2304 : vector<1x128xf32> to vector<128xf32>
    %2306 = vector.shape_cast %2305 : vector<128xf32> to vector<1x128xf32>
    %2307 = vector.broadcast %2306 : vector<1x128xf32> to vector<16x128xf32>
    %2308 = arith.mulf %2260, %2307 : vector<16x128xf32>
    %2309 = arith.addf %2205, %2308 : vector<16x128xf32>
    %2310 = vector.extract_strided_slice %759 {offsets = [10, 0], sizes = [1, 128], strides = [1, 1]} : vector<16x128xf32> to vector<1x128xf32>
    %2311 = vector.shape_cast %2310 : vector<1x128xf32> to vector<128xf32>
    %2312 = vector.shape_cast %2311 : vector<128xf32> to vector<1x128xf32>
    %2313 = vector.broadcast %2312 : vector<1x128xf32> to vector<16x128xf32>
    %2314 = arith.mulf %2260, %2313 : vector<16x128xf32>
    %2315 = arith.addf %2211, %2314 : vector<16x128xf32>
    %2316 = vector.extract_strided_slice %825 {offsets = [10, 0], sizes = [1, 128], strides = [1, 1]} : vector<16x128xf32> to vector<1x128xf32>
    %2317 = vector.shape_cast %2316 : vector<1x128xf32> to vector<128xf32>
    %2318 = vector.shape_cast %2317 : vector<128xf32> to vector<1x128xf32>
    %2319 = vector.broadcast %2318 : vector<1x128xf32> to vector<16x128xf32>
    %2320 = arith.mulf %2260, %2319 : vector<16x128xf32>
    %2321 = arith.addf %2217, %2320 : vector<16x128xf32>
    %2322 = vector.extract_strided_slice %891 {offsets = [10, 0], sizes = [1, 128], strides = [1, 1]} : vector<16x128xf32> to vector<1x128xf32>
    %2323 = vector.shape_cast %2322 : vector<1x128xf32> to vector<128xf32>
    %2324 = vector.shape_cast %2323 : vector<128xf32> to vector<1x128xf32>
    %2325 = vector.broadcast %2324 : vector<1x128xf32> to vector<16x128xf32>
    %2326 = arith.mulf %2260, %2325 : vector<16x128xf32>
    %2327 = arith.addf %2223, %2326 : vector<16x128xf32>
    %2328 = vector.extract_strided_slice %957 {offsets = [10, 0], sizes = [1, 128], strides = [1, 1]} : vector<16x128xf32> to vector<1x128xf32>
    %2329 = vector.shape_cast %2328 : vector<1x128xf32> to vector<128xf32>
    %2330 = vector.shape_cast %2329 : vector<128xf32> to vector<1x128xf32>
    %2331 = vector.broadcast %2330 : vector<1x128xf32> to vector<16x128xf32>
    %2332 = arith.mulf %2260, %2331 : vector<16x128xf32>
    %2333 = arith.addf %2229, %2332 : vector<16x128xf32>
    %2334 = vector.extract_strided_slice %1023 {offsets = [10, 0], sizes = [1, 128], strides = [1, 1]} : vector<16x128xf32> to vector<1x128xf32>
    %2335 = vector.shape_cast %2334 : vector<1x128xf32> to vector<128xf32>
    %2336 = vector.shape_cast %2335 : vector<128xf32> to vector<1x128xf32>
    %2337 = vector.broadcast %2336 : vector<1x128xf32> to vector<16x128xf32>
    %2338 = arith.mulf %2260, %2337 : vector<16x128xf32>
    %2339 = arith.addf %2235, %2338 : vector<16x128xf32>
    %2340 = vector.extract_strided_slice %1089 {offsets = [10, 0], sizes = [1, 128], strides = [1, 1]} : vector<16x128xf32> to vector<1x128xf32>
    %2341 = vector.shape_cast %2340 : vector<1x128xf32> to vector<128xf32>
    %2342 = vector.shape_cast %2341 : vector<128xf32> to vector<1x128xf32>
    %2343 = vector.broadcast %2342 : vector<1x128xf32> to vector<16x128xf32>
    %2344 = arith.mulf %2260, %2343 : vector<16x128xf32>
    %2345 = arith.addf %2241, %2344 : vector<16x128xf32>
    %2346 = vector.extract_strided_slice %1155 {offsets = [10, 0], sizes = [1, 128], strides = [1, 1]} : vector<16x128xf32> to vector<1x128xf32>
    %2347 = vector.shape_cast %2346 : vector<1x128xf32> to vector<128xf32>
    %2348 = vector.shape_cast %2347 : vector<128xf32> to vector<1x128xf32>
    %2349 = vector.broadcast %2348 : vector<1x128xf32> to vector<16x128xf32>
    %2350 = arith.mulf %2260, %2349 : vector<16x128xf32>
    %2351 = arith.addf %2247, %2350 : vector<16x128xf32>
    %2352 = vector.extract_strided_slice %1221 {offsets = [10, 0], sizes = [1, 128], strides = [1, 1]} : vector<16x128xf32> to vector<1x128xf32>
    %2353 = vector.shape_cast %2352 : vector<1x128xf32> to vector<128xf32>
    %2354 = vector.shape_cast %2353 : vector<128xf32> to vector<1x128xf32>
    %2355 = vector.broadcast %2354 : vector<1x128xf32> to vector<16x128xf32>
    %2356 = arith.mulf %2260, %2355 : vector<16x128xf32>
    %2357 = arith.addf %2253, %2356 : vector<16x128xf32>
    %2358 = vector.extract_strided_slice %165 {offsets = [11, 0], sizes = [1, 128], strides = [1, 1]} : vector<16x128xf32> to vector<1x128xf32>
    %2359 = vector.shape_cast %2358 : vector<1x128xf32> to vector<128xf32>
    %2360 = vector.shape_cast %2359 : vector<128xf32> to vector<1x128xf32>
    %2361 = vector.broadcast %2360 : vector<1x128xf32> to vector<16x128xf32>
    %2362 = arith.mulf %160, %2361 : vector<16x128xf32>
    %2363 = arith.subf %2362, %1230 : vector<16x128xf32>
    %2364 = math.exp %2363 : vector<16x128xf32>
    %2365 = arith.addf %2261, %2364 : vector<16x128xf32>
    %2366 = vector.extract_strided_slice %231 {offsets = [11, 0], sizes = [1, 128], strides = [1, 1]} : vector<16x128xf32> to vector<1x128xf32>
    %2367 = vector.shape_cast %2366 : vector<1x128xf32> to vector<128xf32>
    %2368 = vector.shape_cast %2367 : vector<128xf32> to vector<1x128xf32>
    %2369 = vector.broadcast %2368 : vector<1x128xf32> to vector<16x128xf32>
    %2370 = arith.mulf %2364, %2369 : vector<16x128xf32>
    %2371 = arith.addf %2267, %2370 : vector<16x128xf32>
    %2372 = vector.extract_strided_slice %297 {offsets = [11, 0], sizes = [1, 128], strides = [1, 1]} : vector<16x128xf32> to vector<1x128xf32>
    %2373 = vector.shape_cast %2372 : vector<1x128xf32> to vector<128xf32>
    %2374 = vector.shape_cast %2373 : vector<128xf32> to vector<1x128xf32>
    %2375 = vector.broadcast %2374 : vector<1x128xf32> to vector<16x128xf32>
    %2376 = arith.mulf %2364, %2375 : vector<16x128xf32>
    %2377 = arith.addf %2273, %2376 : vector<16x128xf32>
    %2378 = vector.extract_strided_slice %363 {offsets = [11, 0], sizes = [1, 128], strides = [1, 1]} : vector<16x128xf32> to vector<1x128xf32>
    %2379 = vector.shape_cast %2378 : vector<1x128xf32> to vector<128xf32>
    %2380 = vector.shape_cast %2379 : vector<128xf32> to vector<1x128xf32>
    %2381 = vector.broadcast %2380 : vector<1x128xf32> to vector<16x128xf32>
    %2382 = arith.mulf %2364, %2381 : vector<16x128xf32>
    %2383 = arith.addf %2279, %2382 : vector<16x128xf32>
    %2384 = vector.extract_strided_slice %429 {offsets = [11, 0], sizes = [1, 128], strides = [1, 1]} : vector<16x128xf32> to vector<1x128xf32>
    %2385 = vector.shape_cast %2384 : vector<1x128xf32> to vector<128xf32>
    %2386 = vector.shape_cast %2385 : vector<128xf32> to vector<1x128xf32>
    %2387 = vector.broadcast %2386 : vector<1x128xf32> to vector<16x128xf32>
    %2388 = arith.mulf %2364, %2387 : vector<16x128xf32>
    %2389 = arith.addf %2285, %2388 : vector<16x128xf32>
    %2390 = vector.extract_strided_slice %495 {offsets = [11, 0], sizes = [1, 128], strides = [1, 1]} : vector<16x128xf32> to vector<1x128xf32>
    %2391 = vector.shape_cast %2390 : vector<1x128xf32> to vector<128xf32>
    %2392 = vector.shape_cast %2391 : vector<128xf32> to vector<1x128xf32>
    %2393 = vector.broadcast %2392 : vector<1x128xf32> to vector<16x128xf32>
    %2394 = arith.mulf %2364, %2393 : vector<16x128xf32>
    %2395 = arith.addf %2291, %2394 : vector<16x128xf32>
    %2396 = vector.extract_strided_slice %561 {offsets = [11, 0], sizes = [1, 128], strides = [1, 1]} : vector<16x128xf32> to vector<1x128xf32>
    %2397 = vector.shape_cast %2396 : vector<1x128xf32> to vector<128xf32>
    %2398 = vector.shape_cast %2397 : vector<128xf32> to vector<1x128xf32>
    %2399 = vector.broadcast %2398 : vector<1x128xf32> to vector<16x128xf32>
    %2400 = arith.mulf %2364, %2399 : vector<16x128xf32>
    %2401 = arith.addf %2297, %2400 : vector<16x128xf32>
    %2402 = vector.extract_strided_slice %627 {offsets = [11, 0], sizes = [1, 128], strides = [1, 1]} : vector<16x128xf32> to vector<1x128xf32>
    %2403 = vector.shape_cast %2402 : vector<1x128xf32> to vector<128xf32>
    %2404 = vector.shape_cast %2403 : vector<128xf32> to vector<1x128xf32>
    %2405 = vector.broadcast %2404 : vector<1x128xf32> to vector<16x128xf32>
    %2406 = arith.mulf %2364, %2405 : vector<16x128xf32>
    %2407 = arith.addf %2303, %2406 : vector<16x128xf32>
    %2408 = vector.extract_strided_slice %693 {offsets = [11, 0], sizes = [1, 128], strides = [1, 1]} : vector<16x128xf32> to vector<1x128xf32>
    %2409 = vector.shape_cast %2408 : vector<1x128xf32> to vector<128xf32>
    %2410 = vector.shape_cast %2409 : vector<128xf32> to vector<1x128xf32>
    %2411 = vector.broadcast %2410 : vector<1x128xf32> to vector<16x128xf32>
    %2412 = arith.mulf %2364, %2411 : vector<16x128xf32>
    %2413 = arith.addf %2309, %2412 : vector<16x128xf32>
    %2414 = vector.extract_strided_slice %759 {offsets = [11, 0], sizes = [1, 128], strides = [1, 1]} : vector<16x128xf32> to vector<1x128xf32>
    %2415 = vector.shape_cast %2414 : vector<1x128xf32> to vector<128xf32>
    %2416 = vector.shape_cast %2415 : vector<128xf32> to vector<1x128xf32>
    %2417 = vector.broadcast %2416 : vector<1x128xf32> to vector<16x128xf32>
    %2418 = arith.mulf %2364, %2417 : vector<16x128xf32>
    %2419 = arith.addf %2315, %2418 : vector<16x128xf32>
    %2420 = vector.extract_strided_slice %825 {offsets = [11, 0], sizes = [1, 128], strides = [1, 1]} : vector<16x128xf32> to vector<1x128xf32>
    %2421 = vector.shape_cast %2420 : vector<1x128xf32> to vector<128xf32>
    %2422 = vector.shape_cast %2421 : vector<128xf32> to vector<1x128xf32>
    %2423 = vector.broadcast %2422 : vector<1x128xf32> to vector<16x128xf32>
    %2424 = arith.mulf %2364, %2423 : vector<16x128xf32>
    %2425 = arith.addf %2321, %2424 : vector<16x128xf32>
    %2426 = vector.extract_strided_slice %891 {offsets = [11, 0], sizes = [1, 128], strides = [1, 1]} : vector<16x128xf32> to vector<1x128xf32>
    %2427 = vector.shape_cast %2426 : vector<1x128xf32> to vector<128xf32>
    %2428 = vector.shape_cast %2427 : vector<128xf32> to vector<1x128xf32>
    %2429 = vector.broadcast %2428 : vector<1x128xf32> to vector<16x128xf32>
    %2430 = arith.mulf %2364, %2429 : vector<16x128xf32>
    %2431 = arith.addf %2327, %2430 : vector<16x128xf32>
    %2432 = vector.extract_strided_slice %957 {offsets = [11, 0], sizes = [1, 128], strides = [1, 1]} : vector<16x128xf32> to vector<1x128xf32>
    %2433 = vector.shape_cast %2432 : vector<1x128xf32> to vector<128xf32>
    %2434 = vector.shape_cast %2433 : vector<128xf32> to vector<1x128xf32>
    %2435 = vector.broadcast %2434 : vector<1x128xf32> to vector<16x128xf32>
    %2436 = arith.mulf %2364, %2435 : vector<16x128xf32>
    %2437 = arith.addf %2333, %2436 : vector<16x128xf32>
    %2438 = vector.extract_strided_slice %1023 {offsets = [11, 0], sizes = [1, 128], strides = [1, 1]} : vector<16x128xf32> to vector<1x128xf32>
    %2439 = vector.shape_cast %2438 : vector<1x128xf32> to vector<128xf32>
    %2440 = vector.shape_cast %2439 : vector<128xf32> to vector<1x128xf32>
    %2441 = vector.broadcast %2440 : vector<1x128xf32> to vector<16x128xf32>
    %2442 = arith.mulf %2364, %2441 : vector<16x128xf32>
    %2443 = arith.addf %2339, %2442 : vector<16x128xf32>
    %2444 = vector.extract_strided_slice %1089 {offsets = [11, 0], sizes = [1, 128], strides = [1, 1]} : vector<16x128xf32> to vector<1x128xf32>
    %2445 = vector.shape_cast %2444 : vector<1x128xf32> to vector<128xf32>
    %2446 = vector.shape_cast %2445 : vector<128xf32> to vector<1x128xf32>
    %2447 = vector.broadcast %2446 : vector<1x128xf32> to vector<16x128xf32>
    %2448 = arith.mulf %2364, %2447 : vector<16x128xf32>
    %2449 = arith.addf %2345, %2448 : vector<16x128xf32>
    %2450 = vector.extract_strided_slice %1155 {offsets = [11, 0], sizes = [1, 128], strides = [1, 1]} : vector<16x128xf32> to vector<1x128xf32>
    %2451 = vector.shape_cast %2450 : vector<1x128xf32> to vector<128xf32>
    %2452 = vector.shape_cast %2451 : vector<128xf32> to vector<1x128xf32>
    %2453 = vector.broadcast %2452 : vector<1x128xf32> to vector<16x128xf32>
    %2454 = arith.mulf %2364, %2453 : vector<16x128xf32>
    %2455 = arith.addf %2351, %2454 : vector<16x128xf32>
    %2456 = vector.extract_strided_slice %1221 {offsets = [11, 0], sizes = [1, 128], strides = [1, 1]} : vector<16x128xf32> to vector<1x128xf32>
    %2457 = vector.shape_cast %2456 : vector<1x128xf32> to vector<128xf32>
    %2458 = vector.shape_cast %2457 : vector<128xf32> to vector<1x128xf32>
    %2459 = vector.broadcast %2458 : vector<1x128xf32> to vector<16x128xf32>
    %2460 = arith.mulf %2364, %2459 : vector<16x128xf32>
    %2461 = arith.addf %2357, %2460 : vector<16x128xf32>
    %2462 = vector.extract_strided_slice %165 {offsets = [12, 0], sizes = [1, 128], strides = [1, 1]} : vector<16x128xf32> to vector<1x128xf32>
    %2463 = vector.shape_cast %2462 : vector<1x128xf32> to vector<128xf32>
    %2464 = vector.shape_cast %2463 : vector<128xf32> to vector<1x128xf32>
    %2465 = vector.broadcast %2464 : vector<1x128xf32> to vector<16x128xf32>
    %2466 = arith.mulf %160, %2465 : vector<16x128xf32>
    %2467 = arith.subf %2466, %1230 : vector<16x128xf32>
    %2468 = math.exp %2467 : vector<16x128xf32>
    %2469 = arith.addf %2365, %2468 : vector<16x128xf32>
    %2470 = vector.extract_strided_slice %231 {offsets = [12, 0], sizes = [1, 128], strides = [1, 1]} : vector<16x128xf32> to vector<1x128xf32>
    %2471 = vector.shape_cast %2470 : vector<1x128xf32> to vector<128xf32>
    %2472 = vector.shape_cast %2471 : vector<128xf32> to vector<1x128xf32>
    %2473 = vector.broadcast %2472 : vector<1x128xf32> to vector<16x128xf32>
    %2474 = arith.mulf %2468, %2473 : vector<16x128xf32>
    %2475 = arith.addf %2371, %2474 : vector<16x128xf32>
    %2476 = vector.extract_strided_slice %297 {offsets = [12, 0], sizes = [1, 128], strides = [1, 1]} : vector<16x128xf32> to vector<1x128xf32>
    %2477 = vector.shape_cast %2476 : vector<1x128xf32> to vector<128xf32>
    %2478 = vector.shape_cast %2477 : vector<128xf32> to vector<1x128xf32>
    %2479 = vector.broadcast %2478 : vector<1x128xf32> to vector<16x128xf32>
    %2480 = arith.mulf %2468, %2479 : vector<16x128xf32>
    %2481 = arith.addf %2377, %2480 : vector<16x128xf32>
    %2482 = vector.extract_strided_slice %363 {offsets = [12, 0], sizes = [1, 128], strides = [1, 1]} : vector<16x128xf32> to vector<1x128xf32>
    %2483 = vector.shape_cast %2482 : vector<1x128xf32> to vector<128xf32>
    %2484 = vector.shape_cast %2483 : vector<128xf32> to vector<1x128xf32>
    %2485 = vector.broadcast %2484 : vector<1x128xf32> to vector<16x128xf32>
    %2486 = arith.mulf %2468, %2485 : vector<16x128xf32>
    %2487 = arith.addf %2383, %2486 : vector<16x128xf32>
    %2488 = vector.extract_strided_slice %429 {offsets = [12, 0], sizes = [1, 128], strides = [1, 1]} : vector<16x128xf32> to vector<1x128xf32>
    %2489 = vector.shape_cast %2488 : vector<1x128xf32> to vector<128xf32>
    %2490 = vector.shape_cast %2489 : vector<128xf32> to vector<1x128xf32>
    %2491 = vector.broadcast %2490 : vector<1x128xf32> to vector<16x128xf32>
    %2492 = arith.mulf %2468, %2491 : vector<16x128xf32>
    %2493 = arith.addf %2389, %2492 : vector<16x128xf32>
    %2494 = vector.extract_strided_slice %495 {offsets = [12, 0], sizes = [1, 128], strides = [1, 1]} : vector<16x128xf32> to vector<1x128xf32>
    %2495 = vector.shape_cast %2494 : vector<1x128xf32> to vector<128xf32>
    %2496 = vector.shape_cast %2495 : vector<128xf32> to vector<1x128xf32>
    %2497 = vector.broadcast %2496 : vector<1x128xf32> to vector<16x128xf32>
    %2498 = arith.mulf %2468, %2497 : vector<16x128xf32>
    %2499 = arith.addf %2395, %2498 : vector<16x128xf32>
    %2500 = vector.extract_strided_slice %561 {offsets = [12, 0], sizes = [1, 128], strides = [1, 1]} : vector<16x128xf32> to vector<1x128xf32>
    %2501 = vector.shape_cast %2500 : vector<1x128xf32> to vector<128xf32>
    %2502 = vector.shape_cast %2501 : vector<128xf32> to vector<1x128xf32>
    %2503 = vector.broadcast %2502 : vector<1x128xf32> to vector<16x128xf32>
    %2504 = arith.mulf %2468, %2503 : vector<16x128xf32>
    %2505 = arith.addf %2401, %2504 : vector<16x128xf32>
    %2506 = vector.extract_strided_slice %627 {offsets = [12, 0], sizes = [1, 128], strides = [1, 1]} : vector<16x128xf32> to vector<1x128xf32>
    %2507 = vector.shape_cast %2506 : vector<1x128xf32> to vector<128xf32>
    %2508 = vector.shape_cast %2507 : vector<128xf32> to vector<1x128xf32>
    %2509 = vector.broadcast %2508 : vector<1x128xf32> to vector<16x128xf32>
    %2510 = arith.mulf %2468, %2509 : vector<16x128xf32>
    %2511 = arith.addf %2407, %2510 : vector<16x128xf32>
    %2512 = vector.extract_strided_slice %693 {offsets = [12, 0], sizes = [1, 128], strides = [1, 1]} : vector<16x128xf32> to vector<1x128xf32>
    %2513 = vector.shape_cast %2512 : vector<1x128xf32> to vector<128xf32>
    %2514 = vector.shape_cast %2513 : vector<128xf32> to vector<1x128xf32>
    %2515 = vector.broadcast %2514 : vector<1x128xf32> to vector<16x128xf32>
    %2516 = arith.mulf %2468, %2515 : vector<16x128xf32>
    %2517 = arith.addf %2413, %2516 : vector<16x128xf32>
    %2518 = vector.extract_strided_slice %759 {offsets = [12, 0], sizes = [1, 128], strides = [1, 1]} : vector<16x128xf32> to vector<1x128xf32>
    %2519 = vector.shape_cast %2518 : vector<1x128xf32> to vector<128xf32>
    %2520 = vector.shape_cast %2519 : vector<128xf32> to vector<1x128xf32>
    %2521 = vector.broadcast %2520 : vector<1x128xf32> to vector<16x128xf32>
    %2522 = arith.mulf %2468, %2521 : vector<16x128xf32>
    %2523 = arith.addf %2419, %2522 : vector<16x128xf32>
    %2524 = vector.extract_strided_slice %825 {offsets = [12, 0], sizes = [1, 128], strides = [1, 1]} : vector<16x128xf32> to vector<1x128xf32>
    %2525 = vector.shape_cast %2524 : vector<1x128xf32> to vector<128xf32>
    %2526 = vector.shape_cast %2525 : vector<128xf32> to vector<1x128xf32>
    %2527 = vector.broadcast %2526 : vector<1x128xf32> to vector<16x128xf32>
    %2528 = arith.mulf %2468, %2527 : vector<16x128xf32>
    %2529 = arith.addf %2425, %2528 : vector<16x128xf32>
    %2530 = vector.extract_strided_slice %891 {offsets = [12, 0], sizes = [1, 128], strides = [1, 1]} : vector<16x128xf32> to vector<1x128xf32>
    %2531 = vector.shape_cast %2530 : vector<1x128xf32> to vector<128xf32>
    %2532 = vector.shape_cast %2531 : vector<128xf32> to vector<1x128xf32>
    %2533 = vector.broadcast %2532 : vector<1x128xf32> to vector<16x128xf32>
    %2534 = arith.mulf %2468, %2533 : vector<16x128xf32>
    %2535 = arith.addf %2431, %2534 : vector<16x128xf32>
    %2536 = vector.extract_strided_slice %957 {offsets = [12, 0], sizes = [1, 128], strides = [1, 1]} : vector<16x128xf32> to vector<1x128xf32>
    %2537 = vector.shape_cast %2536 : vector<1x128xf32> to vector<128xf32>
    %2538 = vector.shape_cast %2537 : vector<128xf32> to vector<1x128xf32>
    %2539 = vector.broadcast %2538 : vector<1x128xf32> to vector<16x128xf32>
    %2540 = arith.mulf %2468, %2539 : vector<16x128xf32>
    %2541 = arith.addf %2437, %2540 : vector<16x128xf32>
    %2542 = vector.extract_strided_slice %1023 {offsets = [12, 0], sizes = [1, 128], strides = [1, 1]} : vector<16x128xf32> to vector<1x128xf32>
    %2543 = vector.shape_cast %2542 : vector<1x128xf32> to vector<128xf32>
    %2544 = vector.shape_cast %2543 : vector<128xf32> to vector<1x128xf32>
    %2545 = vector.broadcast %2544 : vector<1x128xf32> to vector<16x128xf32>
    %2546 = arith.mulf %2468, %2545 : vector<16x128xf32>
    %2547 = arith.addf %2443, %2546 : vector<16x128xf32>
    %2548 = vector.extract_strided_slice %1089 {offsets = [12, 0], sizes = [1, 128], strides = [1, 1]} : vector<16x128xf32> to vector<1x128xf32>
    %2549 = vector.shape_cast %2548 : vector<1x128xf32> to vector<128xf32>
    %2550 = vector.shape_cast %2549 : vector<128xf32> to vector<1x128xf32>
    %2551 = vector.broadcast %2550 : vector<1x128xf32> to vector<16x128xf32>
    %2552 = arith.mulf %2468, %2551 : vector<16x128xf32>
    %2553 = arith.addf %2449, %2552 : vector<16x128xf32>
    %2554 = vector.extract_strided_slice %1155 {offsets = [12, 0], sizes = [1, 128], strides = [1, 1]} : vector<16x128xf32> to vector<1x128xf32>
    %2555 = vector.shape_cast %2554 : vector<1x128xf32> to vector<128xf32>
    %2556 = vector.shape_cast %2555 : vector<128xf32> to vector<1x128xf32>
    %2557 = vector.broadcast %2556 : vector<1x128xf32> to vector<16x128xf32>
    %2558 = arith.mulf %2468, %2557 : vector<16x128xf32>
    %2559 = arith.addf %2455, %2558 : vector<16x128xf32>
    %2560 = vector.extract_strided_slice %1221 {offsets = [12, 0], sizes = [1, 128], strides = [1, 1]} : vector<16x128xf32> to vector<1x128xf32>
    %2561 = vector.shape_cast %2560 : vector<1x128xf32> to vector<128xf32>
    %2562 = vector.shape_cast %2561 : vector<128xf32> to vector<1x128xf32>
    %2563 = vector.broadcast %2562 : vector<1x128xf32> to vector<16x128xf32>
    %2564 = arith.mulf %2468, %2563 : vector<16x128xf32>
    %2565 = arith.addf %2461, %2564 : vector<16x128xf32>
    %2566 = vector.extract_strided_slice %165 {offsets = [13, 0], sizes = [1, 128], strides = [1, 1]} : vector<16x128xf32> to vector<1x128xf32>
    %2567 = vector.shape_cast %2566 : vector<1x128xf32> to vector<128xf32>
    %2568 = vector.shape_cast %2567 : vector<128xf32> to vector<1x128xf32>
    %2569 = vector.broadcast %2568 : vector<1x128xf32> to vector<16x128xf32>
    %2570 = arith.mulf %160, %2569 : vector<16x128xf32>
    %2571 = arith.subf %2570, %1230 : vector<16x128xf32>
    %2572 = math.exp %2571 : vector<16x128xf32>
    %2573 = arith.addf %2469, %2572 : vector<16x128xf32>
    %2574 = vector.extract_strided_slice %231 {offsets = [13, 0], sizes = [1, 128], strides = [1, 1]} : vector<16x128xf32> to vector<1x128xf32>
    %2575 = vector.shape_cast %2574 : vector<1x128xf32> to vector<128xf32>
    %2576 = vector.shape_cast %2575 : vector<128xf32> to vector<1x128xf32>
    %2577 = vector.broadcast %2576 : vector<1x128xf32> to vector<16x128xf32>
    %2578 = arith.mulf %2572, %2577 : vector<16x128xf32>
    %2579 = arith.addf %2475, %2578 : vector<16x128xf32>
    %2580 = vector.extract_strided_slice %297 {offsets = [13, 0], sizes = [1, 128], strides = [1, 1]} : vector<16x128xf32> to vector<1x128xf32>
    %2581 = vector.shape_cast %2580 : vector<1x128xf32> to vector<128xf32>
    %2582 = vector.shape_cast %2581 : vector<128xf32> to vector<1x128xf32>
    %2583 = vector.broadcast %2582 : vector<1x128xf32> to vector<16x128xf32>
    %2584 = arith.mulf %2572, %2583 : vector<16x128xf32>
    %2585 = arith.addf %2481, %2584 : vector<16x128xf32>
    %2586 = vector.extract_strided_slice %363 {offsets = [13, 0], sizes = [1, 128], strides = [1, 1]} : vector<16x128xf32> to vector<1x128xf32>
    %2587 = vector.shape_cast %2586 : vector<1x128xf32> to vector<128xf32>
    %2588 = vector.shape_cast %2587 : vector<128xf32> to vector<1x128xf32>
    %2589 = vector.broadcast %2588 : vector<1x128xf32> to vector<16x128xf32>
    %2590 = arith.mulf %2572, %2589 : vector<16x128xf32>
    %2591 = arith.addf %2487, %2590 : vector<16x128xf32>
    %2592 = vector.extract_strided_slice %429 {offsets = [13, 0], sizes = [1, 128], strides = [1, 1]} : vector<16x128xf32> to vector<1x128xf32>
    %2593 = vector.shape_cast %2592 : vector<1x128xf32> to vector<128xf32>
    %2594 = vector.shape_cast %2593 : vector<128xf32> to vector<1x128xf32>
    %2595 = vector.broadcast %2594 : vector<1x128xf32> to vector<16x128xf32>
    %2596 = arith.mulf %2572, %2595 : vector<16x128xf32>
    %2597 = arith.addf %2493, %2596 : vector<16x128xf32>
    %2598 = vector.extract_strided_slice %495 {offsets = [13, 0], sizes = [1, 128], strides = [1, 1]} : vector<16x128xf32> to vector<1x128xf32>
    %2599 = vector.shape_cast %2598 : vector<1x128xf32> to vector<128xf32>
    %2600 = vector.shape_cast %2599 : vector<128xf32> to vector<1x128xf32>
    %2601 = vector.broadcast %2600 : vector<1x128xf32> to vector<16x128xf32>
    %2602 = arith.mulf %2572, %2601 : vector<16x128xf32>
    %2603 = arith.addf %2499, %2602 : vector<16x128xf32>
    %2604 = vector.extract_strided_slice %561 {offsets = [13, 0], sizes = [1, 128], strides = [1, 1]} : vector<16x128xf32> to vector<1x128xf32>
    %2605 = vector.shape_cast %2604 : vector<1x128xf32> to vector<128xf32>
    %2606 = vector.shape_cast %2605 : vector<128xf32> to vector<1x128xf32>
    %2607 = vector.broadcast %2606 : vector<1x128xf32> to vector<16x128xf32>
    %2608 = arith.mulf %2572, %2607 : vector<16x128xf32>
    %2609 = arith.addf %2505, %2608 : vector<16x128xf32>
    %2610 = vector.extract_strided_slice %627 {offsets = [13, 0], sizes = [1, 128], strides = [1, 1]} : vector<16x128xf32> to vector<1x128xf32>
    %2611 = vector.shape_cast %2610 : vector<1x128xf32> to vector<128xf32>
    %2612 = vector.shape_cast %2611 : vector<128xf32> to vector<1x128xf32>
    %2613 = vector.broadcast %2612 : vector<1x128xf32> to vector<16x128xf32>
    %2614 = arith.mulf %2572, %2613 : vector<16x128xf32>
    %2615 = arith.addf %2511, %2614 : vector<16x128xf32>
    %2616 = vector.extract_strided_slice %693 {offsets = [13, 0], sizes = [1, 128], strides = [1, 1]} : vector<16x128xf32> to vector<1x128xf32>
    %2617 = vector.shape_cast %2616 : vector<1x128xf32> to vector<128xf32>
    %2618 = vector.shape_cast %2617 : vector<128xf32> to vector<1x128xf32>
    %2619 = vector.broadcast %2618 : vector<1x128xf32> to vector<16x128xf32>
    %2620 = arith.mulf %2572, %2619 : vector<16x128xf32>
    %2621 = arith.addf %2517, %2620 : vector<16x128xf32>
    %2622 = vector.extract_strided_slice %759 {offsets = [13, 0], sizes = [1, 128], strides = [1, 1]} : vector<16x128xf32> to vector<1x128xf32>
    %2623 = vector.shape_cast %2622 : vector<1x128xf32> to vector<128xf32>
    %2624 = vector.shape_cast %2623 : vector<128xf32> to vector<1x128xf32>
    %2625 = vector.broadcast %2624 : vector<1x128xf32> to vector<16x128xf32>
    %2626 = arith.mulf %2572, %2625 : vector<16x128xf32>
    %2627 = arith.addf %2523, %2626 : vector<16x128xf32>
    %2628 = vector.extract_strided_slice %825 {offsets = [13, 0], sizes = [1, 128], strides = [1, 1]} : vector<16x128xf32> to vector<1x128xf32>
    %2629 = vector.shape_cast %2628 : vector<1x128xf32> to vector<128xf32>
    %2630 = vector.shape_cast %2629 : vector<128xf32> to vector<1x128xf32>
    %2631 = vector.broadcast %2630 : vector<1x128xf32> to vector<16x128xf32>
    %2632 = arith.mulf %2572, %2631 : vector<16x128xf32>
    %2633 = arith.addf %2529, %2632 : vector<16x128xf32>
    %2634 = vector.extract_strided_slice %891 {offsets = [13, 0], sizes = [1, 128], strides = [1, 1]} : vector<16x128xf32> to vector<1x128xf32>
    %2635 = vector.shape_cast %2634 : vector<1x128xf32> to vector<128xf32>
    %2636 = vector.shape_cast %2635 : vector<128xf32> to vector<1x128xf32>
    %2637 = vector.broadcast %2636 : vector<1x128xf32> to vector<16x128xf32>
    %2638 = arith.mulf %2572, %2637 : vector<16x128xf32>
    %2639 = arith.addf %2535, %2638 : vector<16x128xf32>
    %2640 = vector.extract_strided_slice %957 {offsets = [13, 0], sizes = [1, 128], strides = [1, 1]} : vector<16x128xf32> to vector<1x128xf32>
    %2641 = vector.shape_cast %2640 : vector<1x128xf32> to vector<128xf32>
    %2642 = vector.shape_cast %2641 : vector<128xf32> to vector<1x128xf32>
    %2643 = vector.broadcast %2642 : vector<1x128xf32> to vector<16x128xf32>
    %2644 = arith.mulf %2572, %2643 : vector<16x128xf32>
    %2645 = arith.addf %2541, %2644 : vector<16x128xf32>
    %2646 = vector.extract_strided_slice %1023 {offsets = [13, 0], sizes = [1, 128], strides = [1, 1]} : vector<16x128xf32> to vector<1x128xf32>
    %2647 = vector.shape_cast %2646 : vector<1x128xf32> to vector<128xf32>
    %2648 = vector.shape_cast %2647 : vector<128xf32> to vector<1x128xf32>
    %2649 = vector.broadcast %2648 : vector<1x128xf32> to vector<16x128xf32>
    %2650 = arith.mulf %2572, %2649 : vector<16x128xf32>
    %2651 = arith.addf %2547, %2650 : vector<16x128xf32>
    %2652 = vector.extract_strided_slice %1089 {offsets = [13, 0], sizes = [1, 128], strides = [1, 1]} : vector<16x128xf32> to vector<1x128xf32>
    %2653 = vector.shape_cast %2652 : vector<1x128xf32> to vector<128xf32>
    %2654 = vector.shape_cast %2653 : vector<128xf32> to vector<1x128xf32>
    %2655 = vector.broadcast %2654 : vector<1x128xf32> to vector<16x128xf32>
    %2656 = arith.mulf %2572, %2655 : vector<16x128xf32>
    %2657 = arith.addf %2553, %2656 : vector<16x128xf32>
    %2658 = vector.extract_strided_slice %1155 {offsets = [13, 0], sizes = [1, 128], strides = [1, 1]} : vector<16x128xf32> to vector<1x128xf32>
    %2659 = vector.shape_cast %2658 : vector<1x128xf32> to vector<128xf32>
    %2660 = vector.shape_cast %2659 : vector<128xf32> to vector<1x128xf32>
    %2661 = vector.broadcast %2660 : vector<1x128xf32> to vector<16x128xf32>
    %2662 = arith.mulf %2572, %2661 : vector<16x128xf32>
    %2663 = arith.addf %2559, %2662 : vector<16x128xf32>
    %2664 = vector.extract_strided_slice %1221 {offsets = [13, 0], sizes = [1, 128], strides = [1, 1]} : vector<16x128xf32> to vector<1x128xf32>
    %2665 = vector.shape_cast %2664 : vector<1x128xf32> to vector<128xf32>
    %2666 = vector.shape_cast %2665 : vector<128xf32> to vector<1x128xf32>
    %2667 = vector.broadcast %2666 : vector<1x128xf32> to vector<16x128xf32>
    %2668 = arith.mulf %2572, %2667 : vector<16x128xf32>
    %2669 = arith.addf %2565, %2668 : vector<16x128xf32>
    %2670 = vector.extract_strided_slice %165 {offsets = [14, 0], sizes = [1, 128], strides = [1, 1]} : vector<16x128xf32> to vector<1x128xf32>
    %2671 = vector.shape_cast %2670 : vector<1x128xf32> to vector<128xf32>
    %2672 = vector.shape_cast %2671 : vector<128xf32> to vector<1x128xf32>
    %2673 = vector.broadcast %2672 : vector<1x128xf32> to vector<16x128xf32>
    %2674 = arith.mulf %160, %2673 : vector<16x128xf32>
    %2675 = arith.subf %2674, %1230 : vector<16x128xf32>
    %2676 = math.exp %2675 : vector<16x128xf32>
    %2677 = arith.addf %2573, %2676 : vector<16x128xf32>
    %2678 = vector.extract_strided_slice %231 {offsets = [14, 0], sizes = [1, 128], strides = [1, 1]} : vector<16x128xf32> to vector<1x128xf32>
    %2679 = vector.shape_cast %2678 : vector<1x128xf32> to vector<128xf32>
    %2680 = vector.shape_cast %2679 : vector<128xf32> to vector<1x128xf32>
    %2681 = vector.broadcast %2680 : vector<1x128xf32> to vector<16x128xf32>
    %2682 = arith.mulf %2676, %2681 : vector<16x128xf32>
    %2683 = arith.addf %2579, %2682 : vector<16x128xf32>
    %2684 = vector.extract_strided_slice %297 {offsets = [14, 0], sizes = [1, 128], strides = [1, 1]} : vector<16x128xf32> to vector<1x128xf32>
    %2685 = vector.shape_cast %2684 : vector<1x128xf32> to vector<128xf32>
    %2686 = vector.shape_cast %2685 : vector<128xf32> to vector<1x128xf32>
    %2687 = vector.broadcast %2686 : vector<1x128xf32> to vector<16x128xf32>
    %2688 = arith.mulf %2676, %2687 : vector<16x128xf32>
    %2689 = arith.addf %2585, %2688 : vector<16x128xf32>
    %2690 = vector.extract_strided_slice %363 {offsets = [14, 0], sizes = [1, 128], strides = [1, 1]} : vector<16x128xf32> to vector<1x128xf32>
    %2691 = vector.shape_cast %2690 : vector<1x128xf32> to vector<128xf32>
    %2692 = vector.shape_cast %2691 : vector<128xf32> to vector<1x128xf32>
    %2693 = vector.broadcast %2692 : vector<1x128xf32> to vector<16x128xf32>
    %2694 = arith.mulf %2676, %2693 : vector<16x128xf32>
    %2695 = arith.addf %2591, %2694 : vector<16x128xf32>
    %2696 = vector.extract_strided_slice %429 {offsets = [14, 0], sizes = [1, 128], strides = [1, 1]} : vector<16x128xf32> to vector<1x128xf32>
    %2697 = vector.shape_cast %2696 : vector<1x128xf32> to vector<128xf32>
    %2698 = vector.shape_cast %2697 : vector<128xf32> to vector<1x128xf32>
    %2699 = vector.broadcast %2698 : vector<1x128xf32> to vector<16x128xf32>
    %2700 = arith.mulf %2676, %2699 : vector<16x128xf32>
    %2701 = arith.addf %2597, %2700 : vector<16x128xf32>
    %2702 = vector.extract_strided_slice %495 {offsets = [14, 0], sizes = [1, 128], strides = [1, 1]} : vector<16x128xf32> to vector<1x128xf32>
    %2703 = vector.shape_cast %2702 : vector<1x128xf32> to vector<128xf32>
    %2704 = vector.shape_cast %2703 : vector<128xf32> to vector<1x128xf32>
    %2705 = vector.broadcast %2704 : vector<1x128xf32> to vector<16x128xf32>
    %2706 = arith.mulf %2676, %2705 : vector<16x128xf32>
    %2707 = arith.addf %2603, %2706 : vector<16x128xf32>
    %2708 = vector.extract_strided_slice %561 {offsets = [14, 0], sizes = [1, 128], strides = [1, 1]} : vector<16x128xf32> to vector<1x128xf32>
    %2709 = vector.shape_cast %2708 : vector<1x128xf32> to vector<128xf32>
    %2710 = vector.shape_cast %2709 : vector<128xf32> to vector<1x128xf32>
    %2711 = vector.broadcast %2710 : vector<1x128xf32> to vector<16x128xf32>
    %2712 = arith.mulf %2676, %2711 : vector<16x128xf32>
    %2713 = arith.addf %2609, %2712 : vector<16x128xf32>
    %2714 = vector.extract_strided_slice %627 {offsets = [14, 0], sizes = [1, 128], strides = [1, 1]} : vector<16x128xf32> to vector<1x128xf32>
    %2715 = vector.shape_cast %2714 : vector<1x128xf32> to vector<128xf32>
    %2716 = vector.shape_cast %2715 : vector<128xf32> to vector<1x128xf32>
    %2717 = vector.broadcast %2716 : vector<1x128xf32> to vector<16x128xf32>
    %2718 = arith.mulf %2676, %2717 : vector<16x128xf32>
    %2719 = arith.addf %2615, %2718 : vector<16x128xf32>
    %2720 = vector.extract_strided_slice %693 {offsets = [14, 0], sizes = [1, 128], strides = [1, 1]} : vector<16x128xf32> to vector<1x128xf32>
    %2721 = vector.shape_cast %2720 : vector<1x128xf32> to vector<128xf32>
    %2722 = vector.shape_cast %2721 : vector<128xf32> to vector<1x128xf32>
    %2723 = vector.broadcast %2722 : vector<1x128xf32> to vector<16x128xf32>
    %2724 = arith.mulf %2676, %2723 : vector<16x128xf32>
    %2725 = arith.addf %2621, %2724 : vector<16x128xf32>
    %2726 = vector.extract_strided_slice %759 {offsets = [14, 0], sizes = [1, 128], strides = [1, 1]} : vector<16x128xf32> to vector<1x128xf32>
    %2727 = vector.shape_cast %2726 : vector<1x128xf32> to vector<128xf32>
    %2728 = vector.shape_cast %2727 : vector<128xf32> to vector<1x128xf32>
    %2729 = vector.broadcast %2728 : vector<1x128xf32> to vector<16x128xf32>
    %2730 = arith.mulf %2676, %2729 : vector<16x128xf32>
    %2731 = arith.addf %2627, %2730 : vector<16x128xf32>
    %2732 = vector.extract_strided_slice %825 {offsets = [14, 0], sizes = [1, 128], strides = [1, 1]} : vector<16x128xf32> to vector<1x128xf32>
    %2733 = vector.shape_cast %2732 : vector<1x128xf32> to vector<128xf32>
    %2734 = vector.shape_cast %2733 : vector<128xf32> to vector<1x128xf32>
    %2735 = vector.broadcast %2734 : vector<1x128xf32> to vector<16x128xf32>
    %2736 = arith.mulf %2676, %2735 : vector<16x128xf32>
    %2737 = arith.addf %2633, %2736 : vector<16x128xf32>
    %2738 = vector.extract_strided_slice %891 {offsets = [14, 0], sizes = [1, 128], strides = [1, 1]} : vector<16x128xf32> to vector<1x128xf32>
    %2739 = vector.shape_cast %2738 : vector<1x128xf32> to vector<128xf32>
    %2740 = vector.shape_cast %2739 : vector<128xf32> to vector<1x128xf32>
    %2741 = vector.broadcast %2740 : vector<1x128xf32> to vector<16x128xf32>
    %2742 = arith.mulf %2676, %2741 : vector<16x128xf32>
    %2743 = arith.addf %2639, %2742 : vector<16x128xf32>
    %2744 = vector.extract_strided_slice %957 {offsets = [14, 0], sizes = [1, 128], strides = [1, 1]} : vector<16x128xf32> to vector<1x128xf32>
    %2745 = vector.shape_cast %2744 : vector<1x128xf32> to vector<128xf32>
    %2746 = vector.shape_cast %2745 : vector<128xf32> to vector<1x128xf32>
    %2747 = vector.broadcast %2746 : vector<1x128xf32> to vector<16x128xf32>
    %2748 = arith.mulf %2676, %2747 : vector<16x128xf32>
    %2749 = arith.addf %2645, %2748 : vector<16x128xf32>
    %2750 = vector.extract_strided_slice %1023 {offsets = [14, 0], sizes = [1, 128], strides = [1, 1]} : vector<16x128xf32> to vector<1x128xf32>
    %2751 = vector.shape_cast %2750 : vector<1x128xf32> to vector<128xf32>
    %2752 = vector.shape_cast %2751 : vector<128xf32> to vector<1x128xf32>
    %2753 = vector.broadcast %2752 : vector<1x128xf32> to vector<16x128xf32>
    %2754 = arith.mulf %2676, %2753 : vector<16x128xf32>
    %2755 = arith.addf %2651, %2754 : vector<16x128xf32>
    %2756 = vector.extract_strided_slice %1089 {offsets = [14, 0], sizes = [1, 128], strides = [1, 1]} : vector<16x128xf32> to vector<1x128xf32>
    %2757 = vector.shape_cast %2756 : vector<1x128xf32> to vector<128xf32>
    %2758 = vector.shape_cast %2757 : vector<128xf32> to vector<1x128xf32>
    %2759 = vector.broadcast %2758 : vector<1x128xf32> to vector<16x128xf32>
    %2760 = arith.mulf %2676, %2759 : vector<16x128xf32>
    %2761 = arith.addf %2657, %2760 : vector<16x128xf32>
    %2762 = vector.extract_strided_slice %1155 {offsets = [14, 0], sizes = [1, 128], strides = [1, 1]} : vector<16x128xf32> to vector<1x128xf32>
    %2763 = vector.shape_cast %2762 : vector<1x128xf32> to vector<128xf32>
    %2764 = vector.shape_cast %2763 : vector<128xf32> to vector<1x128xf32>
    %2765 = vector.broadcast %2764 : vector<1x128xf32> to vector<16x128xf32>
    %2766 = arith.mulf %2676, %2765 : vector<16x128xf32>
    %2767 = arith.addf %2663, %2766 : vector<16x128xf32>
    %2768 = vector.extract_strided_slice %1221 {offsets = [14, 0], sizes = [1, 128], strides = [1, 1]} : vector<16x128xf32> to vector<1x128xf32>
    %2769 = vector.shape_cast %2768 : vector<1x128xf32> to vector<128xf32>
    %2770 = vector.shape_cast %2769 : vector<128xf32> to vector<1x128xf32>
    %2771 = vector.broadcast %2770 : vector<1x128xf32> to vector<16x128xf32>
    %2772 = arith.mulf %2676, %2771 : vector<16x128xf32>
    %2773 = arith.addf %2669, %2772 : vector<16x128xf32>
    %2774 = vector.extract_strided_slice %165 {offsets = [15, 0], sizes = [1, 128], strides = [1, 1]} : vector<16x128xf32> to vector<1x128xf32>
    %2775 = vector.shape_cast %2774 : vector<1x128xf32> to vector<128xf32>
    %2776 = vector.shape_cast %2775 : vector<128xf32> to vector<1x128xf32>
    %2777 = vector.broadcast %2776 : vector<1x128xf32> to vector<16x128xf32>
    %2778 = arith.mulf %160, %2777 : vector<16x128xf32>
    %2779 = arith.subf %2778, %1230 : vector<16x128xf32>
    %2780 = math.exp %2779 : vector<16x128xf32>
    %2781 = arith.addf %2677, %2780 : vector<16x128xf32>
    %2782 = vector.extract_strided_slice %231 {offsets = [15, 0], sizes = [1, 128], strides = [1, 1]} : vector<16x128xf32> to vector<1x128xf32>
    %2783 = vector.shape_cast %2782 : vector<1x128xf32> to vector<128xf32>
    %2784 = vector.shape_cast %2783 : vector<128xf32> to vector<1x128xf32>
    %2785 = vector.broadcast %2784 : vector<1x128xf32> to vector<16x128xf32>
    %2786 = arith.mulf %2780, %2785 : vector<16x128xf32>
    %2787 = arith.addf %2683, %2786 : vector<16x128xf32>
    %2788 = vector.extract_strided_slice %297 {offsets = [15, 0], sizes = [1, 128], strides = [1, 1]} : vector<16x128xf32> to vector<1x128xf32>
    %2789 = vector.shape_cast %2788 : vector<1x128xf32> to vector<128xf32>
    %2790 = vector.shape_cast %2789 : vector<128xf32> to vector<1x128xf32>
    %2791 = vector.broadcast %2790 : vector<1x128xf32> to vector<16x128xf32>
    %2792 = arith.mulf %2780, %2791 : vector<16x128xf32>
    %2793 = arith.addf %2689, %2792 : vector<16x128xf32>
    %2794 = vector.extract_strided_slice %363 {offsets = [15, 0], sizes = [1, 128], strides = [1, 1]} : vector<16x128xf32> to vector<1x128xf32>
    %2795 = vector.shape_cast %2794 : vector<1x128xf32> to vector<128xf32>
    %2796 = vector.shape_cast %2795 : vector<128xf32> to vector<1x128xf32>
    %2797 = vector.broadcast %2796 : vector<1x128xf32> to vector<16x128xf32>
    %2798 = arith.mulf %2780, %2797 : vector<16x128xf32>
    %2799 = arith.addf %2695, %2798 : vector<16x128xf32>
    %2800 = vector.extract_strided_slice %429 {offsets = [15, 0], sizes = [1, 128], strides = [1, 1]} : vector<16x128xf32> to vector<1x128xf32>
    %2801 = vector.shape_cast %2800 : vector<1x128xf32> to vector<128xf32>
    %2802 = vector.shape_cast %2801 : vector<128xf32> to vector<1x128xf32>
    %2803 = vector.broadcast %2802 : vector<1x128xf32> to vector<16x128xf32>
    %2804 = arith.mulf %2780, %2803 : vector<16x128xf32>
    %2805 = arith.addf %2701, %2804 : vector<16x128xf32>
    %2806 = vector.extract_strided_slice %495 {offsets = [15, 0], sizes = [1, 128], strides = [1, 1]} : vector<16x128xf32> to vector<1x128xf32>
    %2807 = vector.shape_cast %2806 : vector<1x128xf32> to vector<128xf32>
    %2808 = vector.shape_cast %2807 : vector<128xf32> to vector<1x128xf32>
    %2809 = vector.broadcast %2808 : vector<1x128xf32> to vector<16x128xf32>
    %2810 = arith.mulf %2780, %2809 : vector<16x128xf32>
    %2811 = arith.addf %2707, %2810 : vector<16x128xf32>
    %2812 = vector.extract_strided_slice %561 {offsets = [15, 0], sizes = [1, 128], strides = [1, 1]} : vector<16x128xf32> to vector<1x128xf32>
    %2813 = vector.shape_cast %2812 : vector<1x128xf32> to vector<128xf32>
    %2814 = vector.shape_cast %2813 : vector<128xf32> to vector<1x128xf32>
    %2815 = vector.broadcast %2814 : vector<1x128xf32> to vector<16x128xf32>
    %2816 = arith.mulf %2780, %2815 : vector<16x128xf32>
    %2817 = arith.addf %2713, %2816 : vector<16x128xf32>
    %2818 = vector.extract_strided_slice %627 {offsets = [15, 0], sizes = [1, 128], strides = [1, 1]} : vector<16x128xf32> to vector<1x128xf32>
    %2819 = vector.shape_cast %2818 : vector<1x128xf32> to vector<128xf32>
    %2820 = vector.shape_cast %2819 : vector<128xf32> to vector<1x128xf32>
    %2821 = vector.broadcast %2820 : vector<1x128xf32> to vector<16x128xf32>
    %2822 = arith.mulf %2780, %2821 : vector<16x128xf32>
    %2823 = arith.addf %2719, %2822 : vector<16x128xf32>
    %2824 = vector.extract_strided_slice %693 {offsets = [15, 0], sizes = [1, 128], strides = [1, 1]} : vector<16x128xf32> to vector<1x128xf32>
    %2825 = vector.shape_cast %2824 : vector<1x128xf32> to vector<128xf32>
    %2826 = vector.shape_cast %2825 : vector<128xf32> to vector<1x128xf32>
    %2827 = vector.broadcast %2826 : vector<1x128xf32> to vector<16x128xf32>
    %2828 = arith.mulf %2780, %2827 : vector<16x128xf32>
    %2829 = arith.addf %2725, %2828 : vector<16x128xf32>
    %2830 = vector.extract_strided_slice %759 {offsets = [15, 0], sizes = [1, 128], strides = [1, 1]} : vector<16x128xf32> to vector<1x128xf32>
    %2831 = vector.shape_cast %2830 : vector<1x128xf32> to vector<128xf32>
    %2832 = vector.shape_cast %2831 : vector<128xf32> to vector<1x128xf32>
    %2833 = vector.broadcast %2832 : vector<1x128xf32> to vector<16x128xf32>
    %2834 = arith.mulf %2780, %2833 : vector<16x128xf32>
    %2835 = arith.addf %2731, %2834 : vector<16x128xf32>
    %2836 = vector.extract_strided_slice %825 {offsets = [15, 0], sizes = [1, 128], strides = [1, 1]} : vector<16x128xf32> to vector<1x128xf32>
    %2837 = vector.shape_cast %2836 : vector<1x128xf32> to vector<128xf32>
    %2838 = vector.shape_cast %2837 : vector<128xf32> to vector<1x128xf32>
    %2839 = vector.broadcast %2838 : vector<1x128xf32> to vector<16x128xf32>
    %2840 = arith.mulf %2780, %2839 : vector<16x128xf32>
    %2841 = arith.addf %2737, %2840 : vector<16x128xf32>
    %2842 = vector.extract_strided_slice %891 {offsets = [15, 0], sizes = [1, 128], strides = [1, 1]} : vector<16x128xf32> to vector<1x128xf32>
    %2843 = vector.shape_cast %2842 : vector<1x128xf32> to vector<128xf32>
    %2844 = vector.shape_cast %2843 : vector<128xf32> to vector<1x128xf32>
    %2845 = vector.broadcast %2844 : vector<1x128xf32> to vector<16x128xf32>
    %2846 = arith.mulf %2780, %2845 : vector<16x128xf32>
    %2847 = arith.addf %2743, %2846 : vector<16x128xf32>
    %2848 = vector.extract_strided_slice %957 {offsets = [15, 0], sizes = [1, 128], strides = [1, 1]} : vector<16x128xf32> to vector<1x128xf32>
    %2849 = vector.shape_cast %2848 : vector<1x128xf32> to vector<128xf32>
    %2850 = vector.shape_cast %2849 : vector<128xf32> to vector<1x128xf32>
    %2851 = vector.broadcast %2850 : vector<1x128xf32> to vector<16x128xf32>
    %2852 = arith.mulf %2780, %2851 : vector<16x128xf32>
    %2853 = arith.addf %2749, %2852 : vector<16x128xf32>
    %2854 = vector.extract_strided_slice %1023 {offsets = [15, 0], sizes = [1, 128], strides = [1, 1]} : vector<16x128xf32> to vector<1x128xf32>
    %2855 = vector.shape_cast %2854 : vector<1x128xf32> to vector<128xf32>
    %2856 = vector.shape_cast %2855 : vector<128xf32> to vector<1x128xf32>
    %2857 = vector.broadcast %2856 : vector<1x128xf32> to vector<16x128xf32>
    %2858 = arith.mulf %2780, %2857 : vector<16x128xf32>
    %2859 = arith.addf %2755, %2858 : vector<16x128xf32>
    %2860 = vector.extract_strided_slice %1089 {offsets = [15, 0], sizes = [1, 128], strides = [1, 1]} : vector<16x128xf32> to vector<1x128xf32>
    %2861 = vector.shape_cast %2860 : vector<1x128xf32> to vector<128xf32>
    %2862 = vector.shape_cast %2861 : vector<128xf32> to vector<1x128xf32>
    %2863 = vector.broadcast %2862 : vector<1x128xf32> to vector<16x128xf32>
    %2864 = arith.mulf %2780, %2863 : vector<16x128xf32>
    %2865 = arith.addf %2761, %2864 : vector<16x128xf32>
    %2866 = vector.extract_strided_slice %1155 {offsets = [15, 0], sizes = [1, 128], strides = [1, 1]} : vector<16x128xf32> to vector<1x128xf32>
    %2867 = vector.shape_cast %2866 : vector<1x128xf32> to vector<128xf32>
    %2868 = vector.shape_cast %2867 : vector<128xf32> to vector<1x128xf32>
    %2869 = vector.broadcast %2868 : vector<1x128xf32> to vector<16x128xf32>
    %2870 = arith.mulf %2780, %2869 : vector<16x128xf32>
    %2871 = arith.addf %2767, %2870 : vector<16x128xf32>
    %2872 = vector.extract_strided_slice %1221 {offsets = [15, 0], sizes = [1, 128], strides = [1, 1]} : vector<16x128xf32> to vector<1x128xf32>
    %2873 = vector.shape_cast %2872 : vector<1x128xf32> to vector<128xf32>
    %2874 = vector.shape_cast %2873 : vector<128xf32> to vector<1x128xf32>
    %2875 = vector.broadcast %2874 : vector<1x128xf32> to vector<16x128xf32>
    %2876 = arith.mulf %2780, %2875 : vector<16x128xf32>
    %2877 = arith.addf %2773, %2876 : vector<16x128xf32>
    %2878 = tpu.reciprocal %2781 {approx = true} : vector<16x128xf32> -> vector<16x128xf32>
    %2879 = arith.mulf %2781, %2878 : vector<16x128xf32>
    %cst_596 = arith.constant 2.000000e+00 : f32
    %2880 = vector.broadcast %cst_596 : f32 to vector<16x128xf32>
    %2881 = arith.subf %2880, %2879 : vector<16x128xf32>
    %2882 = arith.mulf %2878, %2881 : vector<16x128xf32>
    %2883 = arith.mulf %2787, %2882 : vector<16x128xf32>
    %c0_597 = arith.constant 0 : index
    %c0_598 = arith.constant 0 : index
    %c0_599 = arith.constant 0 : index
    %2884 = vector.load %arg7[%c0_597, %c0_598, %c0_599] : memref<16x16x128xf32, #tpu.memory_space<vmem>>, vector<1x16x128xf32>
    %2885 = vector.shape_cast %2884 : vector<1x16x128xf32> to vector<16x128xf32>
    %2886 = vector.shape_cast %2883 : vector<16x128xf32> to vector<1x16x128xf32>
    tpu.vector_store %arg7[%c0_597, %c0_598, %c0_599], %2886 {strides = array<i32>} : memref<16x16x128xf32, #tpu.memory_space<vmem>>, vector<1x16x128xf32>,
    %2887 = arith.mulf %2793, %2882 : vector<16x128xf32>
    %c1_600 = arith.constant 1 : index
    %c0_601 = arith.constant 0 : index
    %c0_602 = arith.constant 0 : index
    %2888 = vector.load %arg7[%c1_600, %c0_601, %c0_602] : memref<16x16x128xf32, #tpu.memory_space<vmem>>, vector<1x16x128xf32>
    %2889 = vector.shape_cast %2888 : vector<1x16x128xf32> to vector<16x128xf32>
    %2890 = vector.shape_cast %2887 : vector<16x128xf32> to vector<1x16x128xf32>
    tpu.vector_store %arg7[%c1_600, %c0_601, %c0_602], %2890 {strides = array<i32>} : memref<16x16x128xf32, #tpu.memory_space<vmem>>, vector<1x16x128xf32>,
    %2891 = arith.mulf %2799, %2882 : vector<16x128xf32>
    %c2_603 = arith.constant 2 : index
    %c0_604 = arith.constant 0 : index
    %c0_605 = arith.constant 0 : index
    %2892 = vector.load %arg7[%c2_603, %c0_604, %c0_605] : memref<16x16x128xf32, #tpu.memory_space<vmem>>, vector<1x16x128xf32>
    %2893 = vector.shape_cast %2892 : vector<1x16x128xf32> to vector<16x128xf32>
    %2894 = vector.shape_cast %2891 : vector<16x128xf32> to vector<1x16x128xf32>
    tpu.vector_store %arg7[%c2_603, %c0_604, %c0_605], %2894 {strides = array<i32>} : memref<16x16x128xf32, #tpu.memory_space<vmem>>, vector<1x16x128xf32>,
    %2895 = arith.mulf %2805, %2882 : vector<16x128xf32>
    %c3_606 = arith.constant 3 : index
    %c0_607 = arith.constant 0 : index
    %c0_608 = arith.constant 0 : index
    %2896 = vector.load %arg7[%c3_606, %c0_607, %c0_608] : memref<16x16x128xf32, #tpu.memory_space<vmem>>, vector<1x16x128xf32>
    %2897 = vector.shape_cast %2896 : vector<1x16x128xf32> to vector<16x128xf32>
    %2898 = vector.shape_cast %2895 : vector<16x128xf32> to vector<1x16x128xf32>
    tpu.vector_store %arg7[%c3_606, %c0_607, %c0_608], %2898 {strides = array<i32>} : memref<16x16x128xf32, #tpu.memory_space<vmem>>, vector<1x16x128xf32>,
    %2899 = arith.mulf %2811, %2882 : vector<16x128xf32>
    %c4_609 = arith.constant 4 : index
    %c0_610 = arith.constant 0 : index
    %c0_611 = arith.constant 0 : index
    %2900 = vector.load %arg7[%c4_609, %c0_610, %c0_611] : memref<16x16x128xf32, #tpu.memory_space<vmem>>, vector<1x16x128xf32>
    %2901 = vector.shape_cast %2900 : vector<1x16x128xf32> to vector<16x128xf32>
    %2902 = vector.shape_cast %2899 : vector<16x128xf32> to vector<1x16x128xf32>
    tpu.vector_store %arg7[%c4_609, %c0_610, %c0_611], %2902 {strides = array<i32>} : memref<16x16x128xf32, #tpu.memory_space<vmem>>, vector<1x16x128xf32>,
    %2903 = arith.mulf %2817, %2882 : vector<16x128xf32>
    %c5_612 = arith.constant 5 : index
    %c0_613 = arith.constant 0 : index
    %c0_614 = arith.constant 0 : index
    %2904 = vector.load %arg7[%c5_612, %c0_613, %c0_614] : memref<16x16x128xf32, #tpu.memory_space<vmem>>, vector<1x16x128xf32>
    %2905 = vector.shape_cast %2904 : vector<1x16x128xf32> to vector<16x128xf32>
    %2906 = vector.shape_cast %2903 : vector<16x128xf32> to vector<1x16x128xf32>
    tpu.vector_store %arg7[%c5_612, %c0_613, %c0_614], %2906 {strides = array<i32>} : memref<16x16x128xf32, #tpu.memory_space<vmem>>, vector<1x16x128xf32>,
    %2907 = arith.mulf %2823, %2882 : vector<16x128xf32>
    %c6_615 = arith.constant 6 : index
    %c0_616 = arith.constant 0 : index
    %c0_617 = arith.constant 0 : index
    %2908 = vector.load %arg7[%c6_615, %c0_616, %c0_617] : memref<16x16x128xf32, #tpu.memory_space<vmem>>, vector<1x16x128xf32>
    %2909 = vector.shape_cast %2908 : vector<1x16x128xf32> to vector<16x128xf32>
    %2910 = vector.shape_cast %2907 : vector<16x128xf32> to vector<1x16x128xf32>
    tpu.vector_store %arg7[%c6_615, %c0_616, %c0_617], %2910 {strides = array<i32>} : memref<16x16x128xf32, #tpu.memory_space<vmem>>, vector<1x16x128xf32>,
    %2911 = arith.mulf %2829, %2882 : vector<16x128xf32>
    %c7_618 = arith.constant 7 : index
    %c0_619 = arith.constant 0 : index
    %c0_620 = arith.constant 0 : index
    %2912 = vector.load %arg7[%c7_618, %c0_619, %c0_620] : memref<16x16x128xf32, #tpu.memory_space<vmem>>, vector<1x16x128xf32>
    %2913 = vector.shape_cast %2912 : vector<1x16x128xf32> to vector<16x128xf32>
    %2914 = vector.shape_cast %2911 : vector<16x128xf32> to vector<1x16x128xf32>
    tpu.vector_store %arg7[%c7_618, %c0_619, %c0_620], %2914 {strides = array<i32>} : memref<16x16x128xf32, #tpu.memory_space<vmem>>, vector<1x16x128xf32>,
    %2915 = arith.mulf %2835, %2882 : vector<16x128xf32>
    %c8_621 = arith.constant 8 : index
    %c0_622 = arith.constant 0 : index
    %c0_623 = arith.constant 0 : index
    %2916 = vector.load %arg7[%c8_621, %c0_622, %c0_623] : memref<16x16x128xf32, #tpu.memory_space<vmem>>, vector<1x16x128xf32>
    %2917 = vector.shape_cast %2916 : vector<1x16x128xf32> to vector<16x128xf32>
    %2918 = vector.shape_cast %2915 : vector<16x128xf32> to vector<1x16x128xf32>
    tpu.vector_store %arg7[%c8_621, %c0_622, %c0_623], %2918 {strides = array<i32>} : memref<16x16x128xf32, #tpu.memory_space<vmem>>, vector<1x16x128xf32>,
    %2919 = arith.mulf %2841, %2882 : vector<16x128xf32>
    %c9_624 = arith.constant 9 : index
    %c0_625 = arith.constant 0 : index
    %c0_626 = arith.constant 0 : index
    %2920 = vector.load %arg7[%c9_624, %c0_625, %c0_626] : memref<16x16x128xf32, #tpu.memory_space<vmem>>, vector<1x16x128xf32>
    %2921 = vector.shape_cast %2920 : vector<1x16x128xf32> to vector<16x128xf32>
    %2922 = vector.shape_cast %2919 : vector<16x128xf32> to vector<1x16x128xf32>
    tpu.vector_store %arg7[%c9_624, %c0_625, %c0_626], %2922 {strides = array<i32>} : memref<16x16x128xf32, #tpu.memory_space<vmem>>, vector<1x16x128xf32>,
    %2923 = arith.mulf %2847, %2882 : vector<16x128xf32>
    %c10_627 = arith.constant 10 : index
    %c0_628 = arith.constant 0 : index
    %c0_629 = arith.constant 0 : index
    %2924 = vector.load %arg7[%c10_627, %c0_628, %c0_629] : memref<16x16x128xf32, #tpu.memory_space<vmem>>, vector<1x16x128xf32>
    %2925 = vector.shape_cast %2924 : vector<1x16x128xf32> to vector<16x128xf32>
    %2926 = vector.shape_cast %2923 : vector<16x128xf32> to vector<1x16x128xf32>
    tpu.vector_store %arg7[%c10_627, %c0_628, %c0_629], %2926 {strides = array<i32>} : memref<16x16x128xf32, #tpu.memory_space<vmem>>, vector<1x16x128xf32>,
    %2927 = arith.mulf %2853, %2882 : vector<16x128xf32>
    %c11_630 = arith.constant 11 : index
    %c0_631 = arith.constant 0 : index
    %c0_632 = arith.constant 0 : index
    %2928 = vector.load %arg7[%c11_630, %c0_631, %c0_632] : memref<16x16x128xf32, #tpu.memory_space<vmem>>, vector<1x16x128xf32>
    %2929 = vector.shape_cast %2928 : vector<1x16x128xf32> to vector<16x128xf32>
    %2930 = vector.shape_cast %2927 : vector<16x128xf32> to vector<1x16x128xf32>
    tpu.vector_store %arg7[%c11_630, %c0_631, %c0_632], %2930 {strides = array<i32>} : memref<16x16x128xf32, #tpu.memory_space<vmem>>, vector<1x16x128xf32>,
    %2931 = arith.mulf %2859, %2882 : vector<16x128xf32>
    %c12_633 = arith.constant 12 : index
    %c0_634 = arith.constant 0 : index
    %c0_635 = arith.constant 0 : index
    %2932 = vector.load %arg7[%c12_633, %c0_634, %c0_635] : memref<16x16x128xf32, #tpu.memory_space<vmem>>, vector<1x16x128xf32>
    %2933 = vector.shape_cast %2932 : vector<1x16x128xf32> to vector<16x128xf32>
    %2934 = vector.shape_cast %2931 : vector<16x128xf32> to vector<1x16x128xf32>
    tpu.vector_store %arg7[%c12_633, %c0_634, %c0_635], %2934 {strides = array<i32>} : memref<16x16x128xf32, #tpu.memory_space<vmem>>, vector<1x16x128xf32>,
    %2935 = arith.mulf %2865, %2882 : vector<16x128xf32>
    %c13_636 = arith.constant 13 : index
    %c0_637 = arith.constant 0 : index
    %c0_638 = arith.constant 0 : index
    %2936 = vector.load %arg7[%c13_636, %c0_637, %c0_638] : memref<16x16x128xf32, #tpu.memory_space<vmem>>, vector<1x16x128xf32>
    %2937 = vector.shape_cast %2936 : vector<1x16x128xf32> to vector<16x128xf32>
    %2938 = vector.shape_cast %2935 : vector<16x128xf32> to vector<1x16x128xf32>
    tpu.vector_store %arg7[%c13_636, %c0_637, %c0_638], %2938 {strides = array<i32>} : memref<16x16x128xf32, #tpu.memory_space<vmem>>, vector<1x16x128xf32>,
    %2939 = arith.mulf %2871, %2882 : vector<16x128xf32>
    %c14_639 = arith.constant 14 : index
    %c0_640 = arith.constant 0 : index
    %c0_641 = arith.constant 0 : index
    %2940 = vector.load %arg7[%c14_639, %c0_640, %c0_641] : memref<16x16x128xf32, #tpu.memory_space<vmem>>, vector<1x16x128xf32>
    %2941 = vector.shape_cast %2940 : vector<1x16x128xf32> to vector<16x128xf32>
    %2942 = vector.shape_cast %2939 : vector<16x128xf32> to vector<1x16x128xf32>
    tpu.vector_store %arg7[%c14_639, %c0_640, %c0_641], %2942 {strides = array<i32>} : memref<16x16x128xf32, #tpu.memory_space<vmem>>, vector<1x16x128xf32>,
    %2943 = arith.mulf %2877, %2882 : vector<16x128xf32>
    %c15_642 = arith.constant 15 : index
    %c0_643 = arith.constant 0 : index
    %c0_644 = arith.constant 0 : index
    %2944 = vector.load %arg7[%c15_642, %c0_643, %c0_644] : memref<16x16x128xf32, #tpu.memory_space<vmem>>, vector<1x16x128xf32>
    %2945 = vector.shape_cast %2944 : vector<1x16x128xf32> to vector<16x128xf32>
    %2946 = vector.shape_cast %2943 : vector<16x128xf32> to vector<1x16x128xf32>
    tpu.vector_store %arg7[%c15_642, %c0_643, %c0_644], %2946 {strides = array<i32>} : memref<16x16x128xf32, #tpu.memory_space<vmem>>, vector<1x16x128xf32>,
    return
  }
  func.func @transform_0(%arg0: i32) -> (i32, i32, i32) {
    %c0_i32 = arith.constant 0 : i32
    %c0_i32_0 = arith.constant 0 : i32
    %c0_i32_1 = arith.constant 0 : i32
    return %c0_i32, %c0_i32_0, %arg0 : i32, i32, i32
  }
  func.func @transform_1(%arg0: i32) -> i32 {
    %c0_i32 = arith.constant 0 : i32
    %c0_i32_0 = arith.constant 0 : i32
    return %c0_i32 : i32
  }
  func.func @transform_2(%arg0: i32) -> i32 {
    %c0_i32 = arith.constant 0 : i32
    %c0_i32_0 = arith.constant 0 : i32
    return %c0_i32 : i32
  }
  func.func @transform_3(%arg0: i32) -> i32 {
    %c0_i32 = arith.constant 0 : i32
    %c0_i32_0 = arith.constant 0 : i32
    return %c0_i32 : i32
  }
  func.func @transform_4(%arg0: i32) -> (i32, i32) {
    %c0_i32 = arith.constant 0 : i32
    %c0_i32_0 = arith.constant 0 : i32
    %c0_i32_1 = arith.constant 0 : i32
    return %c0_i32, %c0_i32_0 : i32, i32
  }
  func.func @transform_5(%arg0: i32) -> i32 {
    %c0_i32 = arith.constant 0 : i32
    %c0_i32_0 = arith.constant 0 : i32
    return %c0_i32 : i32
  }
  func.func @transform_6(%arg0: i32) -> (i32, i32, i32) {
    %c0_i32 = arith.constant 0 : i32
    %c0_i32_0 = arith.constant 0 : i32
    %c0_i32_1 = arith.constant 0 : i32
    return %c0_i32, %c0_i32_0, %arg0 : i32, i32, i32
  }
}

</mosaic_0001>

<llo_original>
// kernel: kdim_self_attention.1
$region0: #{kdim_self_attention.1}
  #allocation0 [shape = 'u32[]', space=smem, size = 0x4, offset = 0x4, fixed_abs, tag = 'smem constant byte address 0x4 - core index']
  #allocation1 [shape = 'u32[144,128]{1,0:T(1,128)}', space=vmem, size = 0x12000, scoped, tag = 'internal scratch']
  %s0 = inlined_call_operand.vmem [shape: f32[16,16,128], index: 0, kind: input, shape index: {}]
  %s1 = inlined_call_operand.vmem [shape: f32[16], index: 1, kind: input, shape index: {}]
  %s2 = inlined_call_operand.vmem [shape: f32[16], index: 2, kind: input, shape index: {}]
  %s3 = inlined_call_operand.vmem [shape: f32[2], index: 3, kind: input, shape index: {}]
  %s4 = inlined_call_operand.vmem [shape: f32[16,16], index: 4, kind: input, shape index: {}]
  %s5 = inlined_call_operand.vmem [shape: f32[16], index: 5, kind: input, shape index: {}]
  %s6 = inlined_call_operand.vmem [shape: f32[16,16,128], index: 6, kind: output, shape index: {}]
  %s7 = sld [smem:[#allocation0]]
  $region54: #{kdim_self_attention.1} parent=0
    _
  %s9 = ssub.s32 1, %s7
  %s10 = scalar_select 0, %s9, %s7
  $region1: #{kdim_self_attention.1} parent=0
    #allocation2 [shape = 'u8[512]{0}', space=smem, size = 0x200, scoped, tag = 'input window, operand 1, single buffered']
    #allocation3 [shape = 's32[1]{0}', space=sflag, size = 0x4, scoped, tag = 'scoped memory for kdim_self_attention.1']
    #allocation4 [shape = 'u8[512]{0}', space=smem, size = 0x200, scoped, tag = 'input window, operand 2, single buffered']
    #allocation5 [shape = 's32[1]{0}', space=sflag, size = 0x4, scoped, tag = 'scoped memory for kdim_self_attention.1']
    #allocation6 [shape = 'u8[512]{0}', space=smem, size = 0x200, scoped, tag = 'input window, operand 3, single buffered']
    #allocation7 [shape = 'u8[8192]{0}', space=smem, size = 0x2000, scoped, tag = 'input window, operand 4, single buffered']
    #allocation8 [shape = 's32[1]{0}', space=sflag, size = 0x4, scoped, tag = 'scoped memory for kdim_self_attention.1']
    #allocation9 [shape = 'u8[512]{0}', space=smem, size = 0x200, scoped, tag = 'input window, operand 5, single buffered']
    %11 = vsyncpa [#allocation3], 0
    %12 = vsyncpa [#allocation5], 0
    %13 = vsyncpa [#allocation8], 0
    // Predicated region
    $region2: #{kdim_self_attention.1} parent=1 // pred_check
      _
    $region3: #{kdim_self_attention.1} parent=1 // pred_check_branch
      %15 = sbr.rel (0) target = $region5
    $region4: #{kdim_self_attention.1} parent=1 // pred_region
      _
    $region5: #{kdim_self_attention.1} parent=1 // pred_fallthru
      _
    // Predicated region
    $region6: #{kdim_self_attention.1} parent=1 // pred_check
      _
    $region7: #{kdim_self_attention.1} parent=1 // pred_check_branch
      %17 = sbr.rel (0) target = $region9
    $region8: #{kdim_self_attention.1} parent=1 // pred_region
      %s19 = ssub.s32 16, 16
      %20 = vsyncadd [#allocation3], %s19
      %s22 = sshll.u32 %s1, 4
      %s23 = int_to_ptr.vmem [resolvable:$true] %s22
      %25 = dma.vmem_to_smem %s23, 16, [#allocation2], [#allocation3]
    $region9: #{kdim_self_attention.1} parent=1 // pred_fallthru
      _
    // Predicated region
    $region10: #{kdim_self_attention.1} parent=1 // pred_check
      _
    $region11: #{kdim_self_attention.1} parent=1 // pred_check_branch
      %27 = sbr.rel (0) target = $region13
    $region12: #{kdim_self_attention.1} parent=1 // pred_region
      %s29 = ssub.s32 16, 16
      %30 = vsyncadd [#allocation5], %s29
      %s32 = sshll.u32 %s2, 4
      %s33 = int_to_ptr.vmem [resolvable:$true] %s32
      %35 = dma.vmem_to_smem %s33, 16, [#allocation4], [#allocation5]
    $region13: #{kdim_self_attention.1} parent=1 // pred_fallthru
      _
    // Predicated region
    $region14: #{kdim_self_attention.1} parent=1 // pred_check
      _
    $region15: #{kdim_self_attention.1} parent=1 // pred_check_branch
      %37 = sbr.rel (0) target = $region17
    $region16: #{kdim_self_attention.1} parent=1 // pred_region
      %s39 = ssub.s32 16, 16
      %40 = vsyncadd [#allocation5], %s39
      %s42 = sshll.u32 %s3, 4
      %s43 = int_to_ptr.vmem [resolvable:$true] %s42
      %45 = dma.vmem_to_smem %s43, 16, [#allocation6], [#allocation5]
    $region17: #{kdim_self_attention.1} parent=1 // pred_fallthru
      _
    // Predicated region
    $region18: #{kdim_self_attention.1} parent=1 // pred_check
      _
    $region19: #{kdim_self_attention.1} parent=1 // pred_check_branch
      %47 = sbr.rel (0) target = $region21
    $region20: #{kdim_self_attention.1} parent=1 // pred_region
      %s49 = ssub.s32 256, 256
      %50 = vsyncadd [#allocation8], %s49
      %s51 = sshll.u32 %s4, 4
      %s52 = int_to_ptr.vmem [resolvable:$true] %s51
      %57 = dma.vmem_to_smem %s52, 256, [#allocation7], [#allocation8], 128, 128, 8
    $region21: #{kdim_self_attention.1} parent=1 // pred_fallthru
      _
    // Predicated region
    $region22: #{kdim_self_attention.1} parent=1 // pred_check
      _
    $region23: #{kdim_self_attention.1} parent=1 // pred_check_branch
      %59 = sbr.rel (0) target = $region25
    $region24: #{kdim_self_attention.1} parent=1 // pred_region
      %s61 = ssub.s32 16, 16
      %62 = vsyncadd [#allocation8], %s61
      %s64 = sshll.u32 %s5, 4
      %s65 = int_to_ptr.vmem [resolvable:$true] %s64
      %67 = dma.vmem_to_smem %s65, 16, [#allocation9], [#allocation8]
    $region25: #{kdim_self_attention.1} parent=1 // pred_fallthru
      _
    // Predicated region
    $region26: #{kdim_self_attention.1} parent=1 // pred_check
      _
    $region27: #{kdim_self_attention.1} parent=1 // pred_check_branch
      %69 = sbr.rel (0) target = $region29
    $region28: #{kdim_self_attention.1} parent=1 // pred_region
      %70 = dma.done [#allocation3], 16
    $region29: #{kdim_self_attention.1} parent=1 // pred_fallthru
      _
    // Predicated region
    $region30: #{kdim_self_attention.1} parent=1 // pred_check
      _
    $region31: #{kdim_self_attention.1} parent=1 // pred_check_branch
      %72 = sbr.rel (0) target = $region33
    $region32: #{kdim_self_attention.1} parent=1 // pred_region
      %73 = dma.done [#allocation5], 16
    $region33: #{kdim_self_attention.1} parent=1 // pred_fallthru
      _
    // Predicated region
    $region34: #{kdim_self_attention.1} parent=1 // pred_check
      _
    $region35: #{kdim_self_attention.1} parent=1 // pred_check_branch
      %75 = sbr.rel (0) target = $region37
    $region36: #{kdim_self_attention.1} parent=1 // pred_region
      %76 = dma.done [#allocation5], 16
    $region37: #{kdim_self_attention.1} parent=1 // pred_fallthru
      _
    // Predicated region
    $region38: #{kdim_self_attention.1} parent=1 // pred_check
      _
    $region39: #{kdim_self_attention.1} parent=1 // pred_check_branch
      %78 = sbr.rel (0) target = $region41
    $region40: #{kdim_self_attention.1} parent=1 // pred_region
      %79 = dma.done [#allocation8], 256
    $region41: #{kdim_self_attention.1} parent=1 // pred_fallthru
      _
    // Predicated region
    $region42: #{kdim_self_attention.1} parent=1 // pred_check
      _
    $region43: #{kdim_self_attention.1} parent=1 // pred_check_branch
      %81 = sbr.rel (0) target = $region45
    $region44: #{kdim_self_attention.1} parent=1 // pred_region
      %82 = dma.done [#allocation8], 16
    $region45: #{kdim_self_attention.1} parent=1 // pred_fallthru
      _
    %83 = sfence
    %v84 = vld [vmem:[%s0] sm:$0xff]
    %v85 = vld [vmem:[%s0 + $0x8] sm:$0xff]
    %s86 = scalar_lea.vmem %s0, 16
    %v87 = vld [vmem:[%s86] sm:$0xff]
    %v88 = vld [vmem:[%s86 + $0x8] sm:$0xff]
    %s89 = scalar_lea.vmem %s0, 32
    %v90 = vld [vmem:[%s89] sm:$0xff]
    %v91 = vld [vmem:[%s89 + $0x8] sm:$0xff]
    %s92 = scalar_lea.vmem %s0, 48
    %v93 = vld [vmem:[%s92] sm:$0xff]
    %v94 = vld [vmem:[%s92 + $0x8] sm:$0xff]
    %s95 = scalar_lea.vmem %s0, 64
    %v96 = vld [vmem:[%s95] sm:$0xff]
    %v97 = vld [vmem:[%s95 + $0x8] sm:$0xff]
    %s98 = scalar_lea.vmem %s0, 80
    %v99 = vld [vmem:[%s98] sm:$0xff]
    %v100 = vld [vmem:[%s98 + $0x8] sm:$0xff]
    %s101 = scalar_lea.vmem %s0, 96
    %v102 = vld [vmem:[%s101] sm:$0xff]
    %v103 = vld [vmem:[%s101 + $0x8] sm:$0xff]
    %s104 = scalar_lea.vmem %s0, 112
    %v105 = vld [vmem:[%s104] sm:$0xff]
    %v106 = vld [vmem:[%s104 + $0x8] sm:$0xff]
    %s107 = scalar_lea.vmem %s0, 128
    %v108 = vld [vmem:[%s107] sm:$0xff]
    %v109 = vld [vmem:[%s107 + $0x8] sm:$0xff]
    %s110 = scalar_lea.vmem %s0, 144
    %v111 = vld [vmem:[%s110] sm:$0xff]
    %v112 = vld [vmem:[%s110 + $0x8] sm:$0xff]
    %s113 = scalar_lea.vmem %s0, 160
    %v114 = vld [vmem:[%s113] sm:$0xff]
    %v115 = vld [vmem:[%s113 + $0x8] sm:$0xff]
    %s116 = scalar_lea.vmem %s0, 176
    %v117 = vld [vmem:[%s116] sm:$0xff]
    %v118 = vld [vmem:[%s116 + $0x8] sm:$0xff]
    %s119 = scalar_lea.vmem %s0, 192
    %v120 = vld [vmem:[%s119] sm:$0xff]
    %v121 = vld [vmem:[%s119 + $0x8] sm:$0xff]
    %s122 = scalar_lea.vmem %s0, 208
    %v123 = vld [vmem:[%s122] sm:$0xff]
    %v124 = vld [vmem:[%s122 + $0x8] sm:$0xff]
    %s125 = scalar_lea.vmem %s0, 224
    %v126 = vld [vmem:[%s125] sm:$0xff]
    %v127 = vld [vmem:[%s125 + $0x8] sm:$0xff]
    %s128 = scalar_lea.vmem %s0, 240
    %v129 = vld [vmem:[%s128] sm:$0xff]
    %v130 = vld [vmem:[%s128 + $0x8] sm:$0xff]
    %s131 = sld [smem:[#allocation2]]
    %v132 = vstv %s131
    %v133 = vmul.f32 %v84, %v132
    %v134 = vmul.f32 %v85, %v132
    %s135 = sld [smem:[#allocation4]]
    %v136 = vstv %s135
    %v137 = vmul.f32 %v84, %v136
    %v138 = vmul.f32 %v85, %v136
    %s139 = sld [smem:[#allocation2 + $0x1]]
    %v140 = vstv %s139
    %v141 = vmul.f32 %v87, %v140
    %v142 = vmul.f32 %v88, %v140
    %v143 = vadd.f32 %v133, %v141
    %v144 = vadd.f32 %v134, %v142
    %s145 = sld [smem:[#allocation4 + $0x1]]
    %v146 = vstv %s145
    %v147 = vmul.f32 %v87, %v146
    %v148 = vmul.f32 %v88, %v146
    %v149 = vadd.f32 %v137, %v147
    %v150 = vadd.f32 %v138, %v148
    %s151 = sld [smem:[#allocation2 + $0x2]]
    %v152 = vstv %s151
    %v153 = vmul.f32 %v90, %v152
    %v154 = vmul.f32 %v91, %v152
    %v155 = vadd.f32 %v143, %v153
    %v156 = vadd.f32 %v144, %v154
    %s157 = sld [smem:[#allocation4 + $0x2]]
    %v158 = vstv %s157
    %v159 = vmul.f32 %v90, %v158
    %v160 = vmul.f32 %v91, %v158
    %v161 = vadd.f32 %v149, %v159
    %v162 = vadd.f32 %v150, %v160
    %s163 = sld [smem:[#allocation2 + $0x3]]
    %v164 = vstv %s163
    %v165 = vmul.f32 %v93, %v164
    %v166 = vmul.f32 %v94, %v164
    %v167 = vadd.f32 %v155, %v165
    %v168 = vadd.f32 %v156, %v166
    %s169 = sld [smem:[#allocation4 + $0x3]]
    %v170 = vstv %s169
    %v171 = vmul.f32 %v93, %v170
    %v172 = vmul.f32 %v94, %v170
    %v173 = vadd.f32 %v161, %v171
    %v174 = vadd.f32 %v162, %v172
    %s175 = sld [smem:[#allocation2 + $0x4]]
    %v176 = vstv %s175
    %v177 = vmul.f32 %v96, %v176
    %v178 = vmul.f32 %v97, %v176
    %v179 = vadd.f32 %v167, %v177
    %v180 = vadd.f32 %v168, %v178
    %s181 = sld [smem:[#allocation4 + $0x4]]
    %v182 = vstv %s181
    %v183 = vmul.f32 %v96, %v182
    %v184 = vmul.f32 %v97, %v182
    %v185 = vadd.f32 %v173, %v183
    %v186 = vadd.f32 %v174, %v184
    %s187 = sld [smem:[#allocation2 + $0x5]]
    %v188 = vstv %s187
    %v189 = vmul.f32 %v99, %v188
    %v190 = vmul.f32 %v100, %v188
    %v191 = vadd.f32 %v179, %v189
    %v192 = vadd.f32 %v180, %v190
    %s193 = sld [smem:[#allocation4 + $0x5]]
    %v194 = vstv %s193
    %v195 = vmul.f32 %v99, %v194
    %v196 = vmul.f32 %v100, %v194
    %v197 = vadd.f32 %v185, %v195
    %v198 = vadd.f32 %v186, %v196
    %s199 = sld [smem:[#allocation2 + $0x6]]
    %v200 = vstv %s199
    %v201 = vmul.f32 %v102, %v200
    %v202 = vmul.f32 %v103, %v200
    %v203 = vadd.f32 %v191, %v201
    %v204 = vadd.f32 %v192, %v202
    %s205 = sld [smem:[#allocation4 + $0x6]]
    %v206 = vstv %s205
    %v207 = vmul.f32 %v102, %v206
    %v208 = vmul.f32 %v103, %v206
    %v209 = vadd.f32 %v197, %v207
    %v210 = vadd.f32 %v198, %v208
    %s211 = sld [smem:[#allocation2 + $0x7]]
    %v212 = vstv %s211
    %v213 = vmul.f32 %v105, %v212
    %v214 = vmul.f32 %v106, %v212
    %v215 = vadd.f32 %v203, %v213
    %v216 = vadd.f32 %v204, %v214
    %s217 = sld [smem:[#allocation4 + $0x7]]
    %v218 = vstv %s217
    %v219 = vmul.f32 %v105, %v218
    %v220 = vmul.f32 %v106, %v218
    %v221 = vadd.f32 %v209, %v219
    %v222 = vadd.f32 %v210, %v220
    %s223 = sld [smem:[#allocation2 + $0x8]]
    %v224 = vstv %s223
    %v225 = vmul.f32 %v108, %v224
    %v226 = vmul.f32 %v109, %v224
    %v227 = vadd.f32 %v215, %v225
    %v228 = vadd.f32 %v216, %v226
    %s229 = sld [smem:[#allocation4 + $0x8]]
    %v230 = vstv %s229
    %v231 = vmul.f32 %v108, %v230
    %v232 = vmul.f32 %v109, %v230
    %v233 = vadd.f32 %v221, %v231
    %v234 = vadd.f32 %v222, %v232
    %s235 = sld [smem:[#allocation2 + $0x9]]
    %v236 = vstv %s235
    %v237 = vmul.f32 %v111, %v236
    %v238 = vmul.f32 %v112, %v236
    %v239 = vadd.f32 %v227, %v237
    %v240 = vadd.f32 %v228, %v238
    %s241 = sld [smem:[#allocation4 + $0x9]]
    %v242 = vstv %s241
    %v243 = vmul.f32 %v111, %v242
    %v244 = vmul.f32 %v112, %v242
    %v245 = vadd.f32 %v233, %v243
    %v246 = vadd.f32 %v234, %v244
    %s247 = sld [smem:[#allocation2 + $0xa]]
    %v248 = vstv %s247
    %v249 = vmul.f32 %v114, %v248
    %v250 = vmul.f32 %v115, %v248
    %v251 = vadd.f32 %v239, %v249
    %v252 = vadd.f32 %v240, %v250
    %s253 = sld [smem:[#allocation4 + $0xa]]
    %v254 = vstv %s253
    %v255 = vmul.f32 %v114, %v254
    %v256 = vmul.f32 %v115, %v254
    %v257 = vadd.f32 %v245, %v255
    %v258 = vadd.f32 %v246, %v256
    %s259 = sld [smem:[#allocation2 + $0xb]]
    %v260 = vstv %s259
    %v261 = vmul.f32 %v117, %v260
    %v262 = vmul.f32 %v118, %v260
    %v263 = vadd.f32 %v251, %v261
    %v264 = vadd.f32 %v252, %v262
    %s265 = sld [smem:[#allocation4 + $0xb]]
    %v266 = vstv %s265
    %v267 = vmul.f32 %v117, %v266
    %v268 = vmul.f32 %v118, %v266
    %v269 = vadd.f32 %v257, %v267
    %v270 = vadd.f32 %v258, %v268
    %s271 = sld [smem:[#allocation2 + $0xc]]
    %v272 = vstv %s271
    %v273 = vmul.f32 %v120, %v272
    %v274 = vmul.f32 %v121, %v272
    %v275 = vadd.f32 %v263, %v273
    %v276 = vadd.f32 %v264, %v274
    %s277 = sld [smem:[#allocation4 + $0xc]]
    %v278 = vstv %s277
    %v279 = vmul.f32 %v120, %v278
    %v280 = vmul.f32 %v121, %v278
    %v281 = vadd.f32 %v269, %v279
    %v282 = vadd.f32 %v270, %v280
    %s283 = sld [smem:[#allocation2 + $0xd]]
    %v284 = vstv %s283
    %v285 = vmul.f32 %v123, %v284
    %v286 = vmul.f32 %v124, %v284
    %v287 = vadd.f32 %v275, %v285
    %v288 = vadd.f32 %v276, %v286
    %s289 = sld [smem:[#allocation4 + $0xd]]
    %v290 = vstv %s289
    %v291 = vmul.f32 %v123, %v290
    %v292 = vmul.f32 %v124, %v290
    %v293 = vadd.f32 %v281, %v291
    %v294 = vadd.f32 %v282, %v292
    %s295 = sld [smem:[#allocation2 + $0xe]]
    %v296 = vstv %s295
    %v297 = vmul.f32 %v126, %v296
    %v298 = vmul.f32 %v127, %v296
    %v299 = vadd.f32 %v287, %v297
    %v300 = vadd.f32 %v288, %v298
    %s301 = sld [smem:[#allocation4 + $0xe]]
    %v302 = vstv %s301
    %v303 = vmul.f32 %v126, %v302
    %v304 = vmul.f32 %v127, %v302
    %v305 = vadd.f32 %v293, %v303
    %v306 = vadd.f32 %v294, %v304
    %s307 = sld [smem:[#allocation2 + $0xf]]
    %v308 = vstv %s307
    %v309 = vmul.f32 %v129, %v308
    %v310 = vmul.f32 %v130, %v308
    %v311 = vadd.f32 %v299, %v309
    %v312 = vadd.f32 %v300, %v310
    %s313 = sld [smem:[#allocation4 + $0xf]]
    %v314 = vstv %s313
    %v315 = vmul.f32 %v129, %v314
    %v316 = vmul.f32 %v130, %v314
    %v317 = vadd.f32 %v305, %v315
    %v318 = vadd.f32 %v306, %v316
    %s319 = sld [smem:[#allocation6]]
    %v320 = vstv %s319
    %v321 = vadd.f32 %v311, %v320
    %v322 = vadd.f32 %v312, %v320
    %s323 = sld [smem:[#allocation6 + $0x1]]
    %v324 = vstv %s323
    %v325 = vadd.f32 %v317, %v324
    %v326 = vadd.f32 %v318, %v324
    %v327 = vmul.f32 %v325, 0.25
    %v328 = vmul.f32 %v326, 0.25
    %s329 = sld [smem:[#allocation7]]
    %v330 = vstv %s329
    %v331 = vmul.f32 %v84, %v330
    %v332 = vmul.f32 %v85, %v330
    %s333 = sld [smem:[#allocation7 + $0x1]]
    %v334 = vstv %s333
    %v335 = vmul.f32 %v87, %v334
    %v336 = vmul.f32 %v88, %v334
    %v337 = vadd.f32 %v331, %v335
    %v338 = vadd.f32 %v332, %v336
    %s339 = sld [smem:[#allocation7 + $0x2]]
    %v340 = vstv %s339
    %v341 = vmul.f32 %v90, %v340
    %v342 = vmul.f32 %v91, %v340
    %v343 = vadd.f32 %v337, %v341
    %v344 = vadd.f32 %v338, %v342
    %s345 = sld [smem:[#allocation7 + $0x3]]
    %v346 = vstv %s345
    %v347 = vmul.f32 %v93, %v346
    %v348 = vmul.f32 %v94, %v346
    %v349 = vadd.f32 %v343, %v347
    %v350 = vadd.f32 %v344, %v348
    %s351 = sld [smem:[#allocation7 + $0x4]]
    %v352 = vstv %s351
    %v353 = vmul.f32 %v96, %v352
    %v354 = vmul.f32 %v97, %v352
    %v355 = vadd.f32 %v349, %v353
    %v356 = vadd.f32 %v350, %v354
    %s357 = sld [smem:[#allocation7 + $0x5]]
    %v358 = vstv %s357
    %v359 = vmul.f32 %v99, %v358
    %v360 = vmul.f32 %v100, %v358
    %v361 = vadd.f32 %v355, %v359
    %v362 = vadd.f32 %v356, %v360
    %s363 = sld [smem:[#allocation7 + $0x6]]
    %v364 = vstv %s363
    %v365 = vmul.f32 %v102, %v364
    %v366 = vmul.f32 %v103, %v364
    %v367 = vadd.f32 %v361, %v365
    %v368 = vadd.f32 %v362, %v366
    %s369 = sld [smem:[#allocation7 + $0x7]]
    %v370 = vstv %s369
    %v371 = vmul.f32 %v105, %v370
    %v372 = vmul.f32 %v106, %v370
    %v373 = vadd.f32 %v367, %v371
    %v374 = vadd.f32 %v368, %v372
    %s375 = sld [smem:[#allocation7 + $0x8]]
    %v376 = vstv %s375
    %v377 = vmul.f32 %v108, %v376
    %v378 = vmul.f32 %v109, %v376
    %v379 = vadd.f32 %v373, %v377
    %v380 = vadd.f32 %v374, %v378
    %s381 = sld [smem:[#allocation7 + $0x9]]
    %v382 = vstv %s381
    %v383 = vmul.f32 %v111, %v382
    %v384 = vmul.f32 %v112, %v382
    %v385 = vadd.f32 %v379, %v383
    %v386 = vadd.f32 %v380, %v384
    %s387 = sld [smem:[#allocation7 + $0xa]]
    %v388 = vstv %s387
    %v389 = vmul.f32 %v114, %v388
    %v390 = vmul.f32 %v115, %v388
    %v391 = vadd.f32 %v385, %v389
    %v392 = vadd.f32 %v386, %v390
    %s393 = sld [smem:[#allocation7 + $0xb]]
    %v394 = vstv %s393
    %v395 = vmul.f32 %v117, %v394
    %v396 = vmul.f32 %v118, %v394
    %v397 = vadd.f32 %v391, %v395
    %v398 = vadd.f32 %v392, %v396
    %s399 = sld [smem:[#allocation7 + $0xc]]
    %v400 = vstv %s399
    %v401 = vmul.f32 %v120, %v400
    %v402 = vmul.f32 %v121, %v400
    %v403 = vadd.f32 %v397, %v401
    %v404 = vadd.f32 %v398, %v402
    %s405 = sld [smem:[#allocation7 + $0xd]]
    %v406 = vstv %s405
    %v407 = vmul.f32 %v123, %v406
    %v408 = vmul.f32 %v124, %v406
    %v409 = vadd.f32 %v403, %v407
    %v410 = vadd.f32 %v404, %v408
    %s411 = sld [smem:[#allocation7 + $0xe]]
    %v412 = vstv %s411
    %v413 = vmul.f32 %v126, %v412
    %v414 = vmul.f32 %v127, %v412
    %v415 = vadd.f32 %v409, %v413
    %v416 = vadd.f32 %v410, %v414
    %s417 = sld [smem:[#allocation7 + $0xf]]
    %v418 = vstv %s417
    %v419 = vmul.f32 %v129, %v418
    %v420 = vmul.f32 %v130, %v418
    %v421 = vadd.f32 %v415, %v419
    %v422 = vadd.f32 %v416, %v420
    %s423 = sld [smem:[#allocation9]]
    %v424 = vstv %s423
    %v425 = vadd.f32 %v421, %v424
    %v426 = vadd.f32 %v422, %v424
    %s427 = sld [smem:[#allocation7 + $0x80]]
    %v428 = vstv %s427
    %v429 = vmul.f32 %v84, %v428
    %v430 = vmul.f32 %v85, %v428
    %s431 = sld [smem:[#allocation7 + $0x81]]
    %v432 = vstv %s431
    %v433 = vmul.f32 %v87, %v432
    %v434 = vmul.f32 %v88, %v432
    %v435 = vadd.f32 %v429, %v433
    %v436 = vadd.f32 %v430, %v434
    %s437 = sld [smem:[#allocation7 + $0x82]]
    %v438 = vstv %s437
    %v439 = vmul.f32 %v90, %v438
    %v440 = vmul.f32 %v91, %v438
    %v441 = vadd.f32 %v435, %v439
    %v442 = vadd.f32 %v436, %v440
    %s443 = sld [smem:[#allocation7 + $0x83]]
    %v444 = vstv %s443
    %v445 = vmul.f32 %v93, %v444
    %v446 = vmul.f32 %v94, %v444
    %v447 = vadd.f32 %v441, %v445
    %v448 = vadd.f32 %v442, %v446
    %s449 = sld [smem:[#allocation7 + $0x84]]
    %v450 = vstv %s449
    %v451 = vmul.f32 %v96, %v450
    %v452 = vmul.f32 %v97, %v450
    %v453 = vadd.f32 %v447, %v451
    %v454 = vadd.f32 %v448, %v452
    %s455 = sld [smem:[#allocation7 + $0x85]]
    %v456 = vstv %s455
    %v457 = vmul.f32 %v99, %v456
    %v458 = vmul.f32 %v100, %v456
    %v459 = vadd.f32 %v453, %v457
    %v460 = vadd.f32 %v454, %v458
    %s461 = sld [smem:[#allocation7 + $0x86]]
    %v462 = vstv %s461
    %v463 = vmul.f32 %v102, %v462
    %v464 = vmul.f32 %v103, %v462
    %v465 = vadd.f32 %v459, %v463
    %v466 = vadd.f32 %v460, %v464
    %s467 = sld [smem:[#allocation7 + $0x87]]
    %v468 = vstv %s467
    %v469 = vmul.f32 %v105, %v468
    %v470 = vmul.f32 %v106, %v468
    %v471 = vadd.f32 %v465, %v469
    %v472 = vadd.f32 %v466, %v470
    %s473 = sld [smem:[#allocation7 + $0x88]]
    %v474 = vstv %s473
    %v475 = vmul.f32 %v108, %v474
    %v476 = vmul.f32 %v109, %v474
    %v477 = vadd.f32 %v471, %v475
    %v478 = vadd.f32 %v472, %v476
    %s479 = sld [smem:[#allocation7 + $0x89]]
    %v480 = vstv %s479
    %v481 = vmul.f32 %v111, %v480
    %v482 = vmul.f32 %v112, %v480
    %v483 = vadd.f32 %v477, %v481
    %v484 = vadd.f32 %v478, %v482
    %s485 = sld [smem:[#allocation7 + $0x8a]]
    %v486 = vstv %s485
    %v487 = vmul.f32 %v114, %v486
    %v488 = vmul.f32 %v115, %v486
    %v489 = vadd.f32 %v483, %v487
    %v490 = vadd.f32 %v484, %v488
    %s491 = sld [smem:[#allocation7 + $0x8b]]
    %v492 = vstv %s491
    %v493 = vmul.f32 %v117, %v492
    %v494 = vmul.f32 %v118, %v492
    %v495 = vadd.f32 %v489, %v493
    %v496 = vadd.f32 %v490, %v494
    %s497 = sld [smem:[#allocation7 + $0x8c]]
    %v498 = vstv %s497
    %v499 = vmul.f32 %v120, %v498
    %v500 = vmul.f32 %v121, %v498
    %v501 = vadd.f32 %v495, %v499
    %v502 = vadd.f32 %v496, %v500
    %s503 = sld [smem:[#allocation7 + $0x8d]]
    %v504 = vstv %s503
    %v505 = vmul.f32 %v123, %v504
    %v506 = vmul.f32 %v124, %v504
    %v507 = vadd.f32 %v501, %v505
    %v508 = vadd.f32 %v502, %v506
    %s509 = sld [smem:[#allocation7 + $0x8e]]
    %v510 = vstv %s509
    %v511 = vmul.f32 %v126, %v510
    %v512 = vmul.f32 %v127, %v510
    %v513 = vadd.f32 %v507, %v511
    %v514 = vadd.f32 %v508, %v512
    %s515 = sld [smem:[#allocation7 + $0x8f]]
    %v516 = vstv %s515
    %v517 = vmul.f32 %v129, %v516
    %v518 = vmul.f32 %v130, %v516
    %v519 = vadd.f32 %v513, %v517
    %v520 = vadd.f32 %v514, %v518
    %s521 = sld [smem:[#allocation9 + $0x1]]
    %v522 = vstv %s521
    %v523 = vadd.f32 %v519, %v522
    %v524 = vadd.f32 %v520, %v522
    %s525 = sld [smem:[#allocation7 + $0x100]]
    %v526 = vstv %s525
    %v527 = vmul.f32 %v84, %v526
    %v528 = vmul.f32 %v85, %v526
    %s529 = sld [smem:[#allocation7 + $0x101]]
    %v530 = vstv %s529
    %v531 = vmul.f32 %v87, %v530
    %v532 = vmul.f32 %v88, %v530
    %v533 = vadd.f32 %v527, %v531
    %v534 = vadd.f32 %v528, %v532
    %s535 = sld [smem:[#allocation7 + $0x102]]
    %v536 = vstv %s535
    %v537 = vmul.f32 %v90, %v536
    %v538 = vmul.f32 %v91, %v536
    %v539 = vadd.f32 %v533, %v537
    %v540 = vadd.f32 %v534, %v538
    %s541 = sld [smem:[#allocation7 + $0x103]]
    %v542 = vstv %s541
    %v543 = vmul.f32 %v93, %v542
    %v544 = vmul.f32 %v94, %v542
    %v545 = vadd.f32 %v539, %v543
    %v546 = vadd.f32 %v540, %v544
    %s547 = sld [smem:[#allocation7 + $0x104]]
    %v548 = vstv %s547
    %v549 = vmul.f32 %v96, %v548
    %v550 = vmul.f32 %v97, %v548
    %v551 = vadd.f32 %v545, %v549
    %v552 = vadd.f32 %v546, %v550
    %s553 = sld [smem:[#allocation7 + $0x105]]
    %v554 = vstv %s553
    %v555 = vmul.f32 %v99, %v554
    %v556 = vmul.f32 %v100, %v554
    %v557 = vadd.f32 %v551, %v555
    %v558 = vadd.f32 %v552, %v556
    %s559 = sld [smem:[#allocation7 + $0x106]]
    %v560 = vstv %s559
    %v561 = vmul.f32 %v102, %v560
    %v562 = vmul.f32 %v103, %v560
    %v563 = vadd.f32 %v557, %v561
    %v564 = vadd.f32 %v558, %v562
    %s565 = sld [smem:[#allocation7 + $0x107]]
    %v566 = vstv %s565
    %v567 = vmul.f32 %v105, %v566
    %v568 = vmul.f32 %v106, %v566
    %v569 = vadd.f32 %v563, %v567
    %v570 = vadd.f32 %v564, %v568
    %s571 = sld [smem:[#allocation7 + $0x108]]
    %v572 = vstv %s571
    %v573 = vmul.f32 %v108, %v572
    %v574 = vmul.f32 %v109, %v572
    %v575 = vadd.f32 %v569, %v573
    %v576 = vadd.f32 %v570, %v574
    %s577 = sld [smem:[#allocation7 + $0x109]]
    %v578 = vstv %s577
    %v579 = vmul.f32 %v111, %v578
    %v580 = vmul.f32 %v112, %v578
    %v581 = vadd.f32 %v575, %v579
    %v582 = vadd.f32 %v576, %v580
    %s583 = sld [smem:[#allocation7 + $0x10a]]
    %v584 = vstv %s583
    %v585 = vmul.f32 %v114, %v584
    %v586 = vmul.f32 %v115, %v584
    %v587 = vadd.f32 %v581, %v585
    %v588 = vadd.f32 %v582, %v586
    %s589 = sld [smem:[#allocation7 + $0x10b]]
    %v590 = vstv %s589
    %v591 = vmul.f32 %v117, %v590
    %v592 = vmul.f32 %v118, %v590
    %v593 = vadd.f32 %v587, %v591
    %v594 = vadd.f32 %v588, %v592
    %s595 = sld [smem:[#allocation7 + $0x10c]]
    %v596 = vstv %s595
    %v597 = vmul.f32 %v120, %v596
    %v598 = vmul.f32 %v121, %v596
    %v599 = vadd.f32 %v593, %v597
    %v600 = vadd.f32 %v594, %v598
    %s601 = sld [smem:[#allocation7 + $0x10d]]
    %v602 = vstv %s601
    %v603 = vmul.f32 %v123, %v602
    %v604 = vmul.f32 %v124, %v602
    %v605 = vadd.f32 %v599, %v603
    %v606 = vadd.f32 %v600, %v604
    %s607 = sld [smem:[#allocation7 + $0x10e]]
    %v608 = vstv %s607
    %v609 = vmul.f32 %v126, %v608
    %v610 = vmul.f32 %v127, %v608
    %v611 = vadd.f32 %v605, %v609
    %v612 = vadd.f32 %v606, %v610
    %s613 = sld [smem:[#allocation7 + $0x10f]]
    %v614 = vstv %s613
    %v615 = vmul.f32 %v129, %v614
    %v616 = vmul.f32 %v130, %v614
    %v617 = vadd.f32 %v611, %v615
    %v618 = vadd.f32 %v612, %v616
    %s619 = sld [smem:[#allocation9 + $0x2]]
    %v620 = vstv %s619
    %v621 = vadd.f32 %v617, %v620
    %v622 = vadd.f32 %v618, %v620
    %s623 = sld [smem:[#allocation7 + $0x180]]
    %v624 = vstv %s623
    %v625 = vmul.f32 %v84, %v624
    %v626 = vmul.f32 %v85, %v624
    %s627 = sld [smem:[#allocation7 + $0x181]]
    %v628 = vstv %s627
    %v629 = vmul.f32 %v87, %v628
    %v630 = vmul.f32 %v88, %v628
    %v631 = vadd.f32 %v625, %v629
    %v632 = vadd.f32 %v626, %v630
    %s633 = sld [smem:[#allocation7 + $0x182]]
    %v634 = vstv %s633
    %v635 = vmul.f32 %v90, %v634
    %v636 = vmul.f32 %v91, %v634
    %v637 = vadd.f32 %v631, %v635
    %v638 = vadd.f32 %v632, %v636
    %s639 = sld [smem:[#allocation7 + $0x183]]
    %v640 = vstv %s639
    %v641 = vmul.f32 %v93, %v640
    %v642 = vmul.f32 %v94, %v640
    %v643 = vadd.f32 %v637, %v641
    %v644 = vadd.f32 %v638, %v642
    %s645 = sld [smem:[#allocation7 + $0x184]]
    %v646 = vstv %s645
    %v647 = vmul.f32 %v96, %v646
    %v648 = vmul.f32 %v97, %v646
    %v649 = vadd.f32 %v643, %v647
    %v650 = vadd.f32 %v644, %v648
    %s651 = sld [smem:[#allocation7 + $0x185]]
    %v652 = vstv %s651
    %v653 = vmul.f32 %v99, %v652
    %v654 = vmul.f32 %v100, %v652
    %v655 = vadd.f32 %v649, %v653
    %v656 = vadd.f32 %v650, %v654
    %s657 = sld [smem:[#allocation7 + $0x186]]
    %v658 = vstv %s657
    %v659 = vmul.f32 %v102, %v658
    %v660 = vmul.f32 %v103, %v658
    %v661 = vadd.f32 %v655, %v659
    %v662 = vadd.f32 %v656, %v660
    %s663 = sld [smem:[#allocation7 + $0x187]]
    %v664 = vstv %s663
    %v665 = vmul.f32 %v105, %v664
    %v666 = vmul.f32 %v106, %v664
    %v667 = vadd.f32 %v661, %v665
    %v668 = vadd.f32 %v662, %v666
    %s669 = sld [smem:[#allocation7 + $0x188]]
    %v670 = vstv %s669
    %v671 = vmul.f32 %v108, %v670
    %v672 = vmul.f32 %v109, %v670
    %v673 = vadd.f32 %v667, %v671
    %v674 = vadd.f32 %v668, %v672
    %s675 = sld [smem:[#allocation7 + $0x189]]
    %v676 = vstv %s675
    %v677 = vmul.f32 %v111, %v676
    %v678 = vmul.f32 %v112, %v676
    %v679 = vadd.f32 %v673, %v677
    %v680 = vadd.f32 %v674, %v678
    %s681 = sld [smem:[#allocation7 + $0x18a]]
    %v682 = vstv %s681
    %v683 = vmul.f32 %v114, %v682
    %v684 = vmul.f32 %v115, %v682
    %v685 = vadd.f32 %v679, %v683
    %v686 = vadd.f32 %v680, %v684
    %s687 = sld [smem:[#allocation7 + $0x18b]]
    %v688 = vstv %s687
    %v689 = vmul.f32 %v117, %v688
    %v690 = vmul.f32 %v118, %v688
    %v691 = vadd.f32 %v685, %v689
    %v692 = vadd.f32 %v686, %v690
    %s693 = sld [smem:[#allocation7 + $0x18c]]
    %v694 = vstv %s693
    %v695 = vmul.f32 %v120, %v694
    %v696 = vmul.f32 %v121, %v694
    %v697 = vadd.f32 %v691, %v695
    %v698 = vadd.f32 %v692, %v696
    %s699 = sld [smem:[#allocation7 + $0x18d]]
    %v700 = vstv %s699
    %v701 = vmul.f32 %v123, %v700
    %v702 = vmul.f32 %v124, %v700
    %v703 = vadd.f32 %v697, %v701
    %v704 = vadd.f32 %v698, %v702
    %s705 = sld [smem:[#allocation7 + $0x18e]]
    %v706 = vstv %s705
    %v707 = vmul.f32 %v126, %v706
    %v708 = vmul.f32 %v127, %v706
    %v709 = vadd.f32 %v703, %v707
    %v710 = vadd.f32 %v704, %v708
    %s711 = sld [smem:[#allocation7 + $0x18f]]
    %v712 = vstv %s711
    %v713 = vmul.f32 %v129, %v712
    %v714 = vmul.f32 %v130, %v712
    %v715 = vadd.f32 %v709, %v713
    %v716 = vadd.f32 %v710, %v714
    %s717 = sld [smem:[#allocation9 + $0x3]]
    %v718 = vstv %s717
    %v719 = vadd.f32 %v715, %v718
    %v720 = vadd.f32 %v716, %v718
    %s721 = sld [smem:[#allocation7 + $0x200]]
    %v722 = vstv %s721
    %v723 = vmul.f32 %v84, %v722
    %v724 = vmul.f32 %v85, %v722
    %s725 = sld [smem:[#allocation7 + $0x201]]
    %v726 = vstv %s725
    %v727 = vmul.f32 %v87, %v726
    %v728 = vmul.f32 %v88, %v726
    %v729 = vadd.f32 %v723, %v727
    %v730 = vadd.f32 %v724, %v728
    %s731 = sld [smem:[#allocation7 + $0x202]]
    %v732 = vstv %s731
    %v733 = vmul.f32 %v90, %v732
    %v734 = vmul.f32 %v91, %v732
    %v735 = vadd.f32 %v729, %v733
    %v736 = vadd.f32 %v730, %v734
    %s737 = sld [smem:[#allocation7 + $0x203]]
    %v738 = vstv %s737
    %v739 = vmul.f32 %v93, %v738
    %v740 = vmul.f32 %v94, %v738
    %v741 = vadd.f32 %v735, %v739
    %v742 = vadd.f32 %v736, %v740
    %s743 = sld [smem:[#allocation7 + $0x204]]
    %v744 = vstv %s743
    %v745 = vmul.f32 %v96, %v744
    %v746 = vmul.f32 %v97, %v744
    %v747 = vadd.f32 %v741, %v745
    %v748 = vadd.f32 %v742, %v746
    %s749 = sld [smem:[#allocation7 + $0x205]]
    %v750 = vstv %s749
    %v751 = vmul.f32 %v99, %v750
    %v752 = vmul.f32 %v100, %v750
    %v753 = vadd.f32 %v747, %v751
    %v754 = vadd.f32 %v748, %v752
    %s755 = sld [smem:[#allocation7 + $0x206]]
    %v756 = vstv %s755
    %v757 = vmul.f32 %v102, %v756
    %v758 = vmul.f32 %v103, %v756
    %v759 = vadd.f32 %v753, %v757
    %v760 = vadd.f32 %v754, %v758
    %s761 = sld [smem:[#allocation7 + $0x207]]
    %v762 = vstv %s761
    %v763 = vmul.f32 %v105, %v762
    %v764 = vmul.f32 %v106, %v762
    %v765 = vadd.f32 %v759, %v763
    %v766 = vadd.f32 %v760, %v764
    %s767 = sld [smem:[#allocation7 + $0x208]]
    %v768 = vstv %s767
    %v769 = vmul.f32 %v108, %v768
    %v770 = vmul.f32 %v109, %v768
    %v771 = vadd.f32 %v765, %v769
    %v772 = vadd.f32 %v766, %v770
    %s773 = sld [smem:[#allocation7 + $0x209]]
    %v774 = vstv %s773
    %v775 = vmul.f32 %v111, %v774
    %v776 = vmul.f32 %v112, %v774
    %v777 = vadd.f32 %v771, %v775
    %v778 = vadd.f32 %v772, %v776
    %s779 = sld [smem:[#allocation7 + $0x20a]]
    %v780 = vstv %s779
    %v781 = vmul.f32 %v114, %v780
    %v782 = vmul.f32 %v115, %v780
    %v783 = vadd.f32 %v777, %v781
    %v784 = vadd.f32 %v778, %v782
    %s785 = sld [smem:[#allocation7 + $0x20b]]
    %v786 = vstv %s785
    %v787 = vmul.f32 %v117, %v786
    %v788 = vmul.f32 %v118, %v786
    %v789 = vadd.f32 %v783, %v787
    %v790 = vadd.f32 %v784, %v788
    %s791 = sld [smem:[#allocation7 + $0x20c]]
    %v792 = vstv %s791
    %v793 = vmul.f32 %v120, %v792
    %v794 = vmul.f32 %v121, %v792
    %v795 = vadd.f32 %v789, %v793
    %v796 = vadd.f32 %v790, %v794
    %s797 = sld [smem:[#allocation7 + $0x20d]]
    %v798 = vstv %s797
    %v799 = vmul.f32 %v123, %v798
    %v800 = vmul.f32 %v124, %v798
    %v801 = vadd.f32 %v795, %v799
    %v802 = vadd.f32 %v796, %v800
    %s803 = sld [smem:[#allocation7 + $0x20e]]
    %v804 = vstv %s803
    %v805 = vmul.f32 %v126, %v804
    %v806 = vmul.f32 %v127, %v804
    %v807 = vadd.f32 %v801, %v805
    %v808 = vadd.f32 %v802, %v806
    %s809 = sld [smem:[#allocation7 + $0x20f]]
    %v810 = vstv %s809
    %v811 = vmul.f32 %v129, %v810
    %v812 = vmul.f32 %v130, %v810
    %v813 = vadd.f32 %v807, %v811
    %v814 = vadd.f32 %v808, %v812
    %s815 = sld [smem:[#allocation9 + $0x4]]
    %v816 = vstv %s815
    %v817 = vadd.f32 %v813, %v816
    %v818 = vadd.f32 %v814, %v816
    %s819 = sld [smem:[#allocation7 + $0x280]]
    %v820 = vstv %s819
    %v821 = vmul.f32 %v84, %v820
    %v822 = vmul.f32 %v85, %v820
    %s823 = sld [smem:[#allocation7 + $0x281]]
    %v824 = vstv %s823
    %v825 = vmul.f32 %v87, %v824
    %v826 = vmul.f32 %v88, %v824
    %v827 = vadd.f32 %v821, %v825
    %v828 = vadd.f32 %v822, %v826
    %s829 = sld [smem:[#allocation7 + $0x282]]
    %v830 = vstv %s829
    %v831 = vmul.f32 %v90, %v830
    %v832 = vmul.f32 %v91, %v830
    %v833 = vadd.f32 %v827, %v831
    %v834 = vadd.f32 %v828, %v832
    %s835 = sld [smem:[#allocation7 + $0x283]]
    %v836 = vstv %s835
    %v837 = vmul.f32 %v93, %v836
    %v838 = vmul.f32 %v94, %v836
    %v839 = vadd.f32 %v833, %v837
    %v840 = vadd.f32 %v834, %v838
    %s841 = sld [smem:[#allocation7 + $0x284]]
    %v842 = vstv %s841
    %v843 = vmul.f32 %v96, %v842
    %v844 = vmul.f32 %v97, %v842
    %v845 = vadd.f32 %v839, %v843
    %v846 = vadd.f32 %v840, %v844
    %s847 = sld [smem:[#allocation7 + $0x285]]
    %v848 = vstv %s847
    %v849 = vmul.f32 %v99, %v848
    %v850 = vmul.f32 %v100, %v848
    %v851 = vadd.f32 %v845, %v849
    %v852 = vadd.f32 %v846, %v850
    %s853 = sld [smem:[#allocation7 + $0x286]]
    %v854 = vstv %s853
    %v855 = vmul.f32 %v102, %v854
    %v856 = vmul.f32 %v103, %v854
    %v857 = vadd.f32 %v851, %v855
    %v858 = vadd.f32 %v852, %v856
    %s859 = sld [smem:[#allocation7 + $0x287]]
    %v860 = vstv %s859
    %v861 = vmul.f32 %v105, %v860
    %v862 = vmul.f32 %v106, %v860
    %v863 = vadd.f32 %v857, %v861
    %v864 = vadd.f32 %v858, %v862
    %s865 = sld [smem:[#allocation7 + $0x288]]
    %v866 = vstv %s865
    %v867 = vmul.f32 %v108, %v866
    %v868 = vmul.f32 %v109, %v866
    %v869 = vadd.f32 %v863, %v867
    %v870 = vadd.f32 %v864, %v868
    %s871 = sld [smem:[#allocation7 + $0x289]]
    %v872 = vstv %s871
    %v873 = vmul.f32 %v111, %v872
    %v874 = vmul.f32 %v112, %v872
    %v875 = vadd.f32 %v869, %v873
    %v876 = vadd.f32 %v870, %v874
    %s877 = sld [smem:[#allocation7 + $0x28a]]
    %v878 = vstv %s877
    %v879 = vmul.f32 %v114, %v878
    %v880 = vmul.f32 %v115, %v878
    %v881 = vadd.f32 %v875, %v879
    %v882 = vadd.f32 %v876, %v880
    %s883 = sld [smem:[#allocation7 + $0x28b]]
    %v884 = vstv %s883
    %v885 = vmul.f32 %v117, %v884
    %v886 = vmul.f32 %v118, %v884
    %v887 = vadd.f32 %v881, %v885
    %v888 = vadd.f32 %v882, %v886
    %s889 = sld [smem:[#allocation7 + $0x28c]]
    %v890 = vstv %s889
    %v891 = vmul.f32 %v120, %v890
    %v892 = vmul.f32 %v121, %v890
    %v893 = vadd.f32 %v887, %v891
    %v894 = vadd.f32 %v888, %v892
    %s895 = sld [smem:[#allocation7 + $0x28d]]
    %v896 = vstv %s895
    %v897 = vmul.f32 %v123, %v896
    %v898 = vmul.f32 %v124, %v896
    %v899 = vadd.f32 %v893, %v897
    %v900 = vadd.f32 %v894, %v898
    %s901 = sld [smem:[#allocation7 + $0x28e]]
    %v902 = vstv %s901
    %v903 = vmul.f32 %v126, %v902
    %v904 = vmul.f32 %v127, %v902
    %v905 = vadd.f32 %v899, %v903
    %v906 = vadd.f32 %v900, %v904
    %s907 = sld [smem:[#allocation7 + $0x28f]]
    %v908 = vstv %s907
    %v909 = vmul.f32 %v129, %v908
    %v910 = vmul.f32 %v130, %v908
    %v911 = vadd.f32 %v905, %v909
    %v912 = vadd.f32 %v906, %v910
    %s913 = sld [smem:[#allocation9 + $0x5]]
    %v914 = vstv %s913
    %v915 = vadd.f32 %v911, %v914
    %v916 = vadd.f32 %v912, %v914
    %s917 = sld [smem:[#allocation7 + $0x300]]
    %v918 = vstv %s917
    %v919 = vmul.f32 %v84, %v918
    %v920 = vmul.f32 %v85, %v918
    %s921 = sld [smem:[#allocation7 + $0x301]]
    %v922 = vstv %s921
    %v923 = vmul.f32 %v87, %v922
    %v924 = vmul.f32 %v88, %v922
    %v925 = vadd.f32 %v919, %v923
    %v926 = vadd.f32 %v920, %v924
    %s927 = sld [smem:[#allocation7 + $0x302]]
    %v928 = vstv %s927
    %v929 = vmul.f32 %v90, %v928
    %v930 = vmul.f32 %v91, %v928
    %v931 = vadd.f32 %v925, %v929
    %v932 = vadd.f32 %v926, %v930
    %s933 = sld [smem:[#allocation7 + $0x303]]
    %v934 = vstv %s933
    %v935 = vmul.f32 %v93, %v934
    %v936 = vmul.f32 %v94, %v934
    %v937 = vadd.f32 %v931, %v935
    %v938 = vadd.f32 %v932, %v936
    %s939 = sld [smem:[#allocation7 + $0x304]]
    %v940 = vstv %s939
    %v941 = vmul.f32 %v96, %v940
    %v942 = vmul.f32 %v97, %v940
    %v943 = vadd.f32 %v937, %v941
    %v944 = vadd.f32 %v938, %v942
    %s945 = sld [smem:[#allocation7 + $0x305]]
    %v946 = vstv %s945
    %v947 = vmul.f32 %v99, %v946
    %v948 = vmul.f32 %v100, %v946
    %v949 = vadd.f32 %v943, %v947
    %v950 = vadd.f32 %v944, %v948
    %s951 = sld [smem:[#allocation7 + $0x306]]
    %v952 = vstv %s951
    %v953 = vmul.f32 %v102, %v952
    %v954 = vmul.f32 %v103, %v952
    %v955 = vadd.f32 %v949, %v953
    %v956 = vadd.f32 %v950, %v954
    %s957 = sld [smem:[#allocation7 + $0x307]]
    %v958 = vstv %s957
    %v959 = vmul.f32 %v105, %v958
    %v960 = vmul.f32 %v106, %v958
    %v961 = vadd.f32 %v955, %v959
    %v962 = vadd.f32 %v956, %v960
    %s963 = sld [smem:[#allocation7 + $0x308]]
    %v964 = vstv %s963
    %v965 = vmul.f32 %v108, %v964
    %v966 = vmul.f32 %v109, %v964
    %v967 = vadd.f32 %v961, %v965
    %v968 = vadd.f32 %v962, %v966
    %s969 = sld [smem:[#allocation7 + $0x309]]
    %v970 = vstv %s969
    %v971 = vmul.f32 %v111, %v970
    %v972 = vmul.f32 %v112, %v970
    %v973 = vadd.f32 %v967, %v971
    %v974 = vadd.f32 %v968, %v972
    %s975 = sld [smem:[#allocation7 + $0x30a]]
    %v976 = vstv %s975
    %v977 = vmul.f32 %v114, %v976
    %v978 = vmul.f32 %v115, %v976
    %v979 = vadd.f32 %v973, %v977
    %v980 = vadd.f32 %v974, %v978
    %s981 = sld [smem:[#allocation7 + $0x30b]]
    %v982 = vstv %s981
    %v983 = vmul.f32 %v117, %v982
    %v984 = vmul.f32 %v118, %v982
    %v985 = vadd.f32 %v979, %v983
    %v986 = vadd.f32 %v980, %v984
    %s987 = sld [smem:[#allocation7 + $0x30c]]
    %v988 = vstv %s987
    %v989 = vmul.f32 %v120, %v988
    %v990 = vmul.f32 %v121, %v988
    %v991 = vadd.f32 %v985, %v989
    %v992 = vadd.f32 %v986, %v990
    %s993 = sld [smem:[#allocation7 + $0x30d]]
    %v994 = vstv %s993
    %v995 = vmul.f32 %v123, %v994
    %v996 = vmul.f32 %v124, %v994
    %v997 = vadd.f32 %v991, %v995
    %v998 = vadd.f32 %v992, %v996
    %s999 = sld [smem:[#allocation7 + $0x30e]]
    %v1000 = vstv %s999
    %v1001 = vmul.f32 %v126, %v1000
    %v1002 = vmul.f32 %v127, %v1000
    %v1003 = vadd.f32 %v997, %v1001
    %v1004 = vadd.f32 %v998, %v1002
    %s1005 = sld [smem:[#allocation7 + $0x30f]]
    %v1006 = vstv %s1005
    %v1007 = vmul.f32 %v129, %v1006
    %v1008 = vmul.f32 %v130, %v1006
    %v1009 = vadd.f32 %v1003, %v1007
    %v1010 = vadd.f32 %v1004, %v1008
    %s1011 = sld [smem:[#allocation9 + $0x6]]
    %v1012 = vstv %s1011
    %v1013 = vadd.f32 %v1009, %v1012
    %v1014 = vadd.f32 %v1010, %v1012
    %s1015 = sld [smem:[#allocation7 + $0x380]]
    %v1016 = vstv %s1015
    %v1017 = vmul.f32 %v84, %v1016
    %v1018 = vmul.f32 %v85, %v1016
    %s1019 = sld [smem:[#allocation7 + $0x381]]
    %v1020 = vstv %s1019
    %v1021 = vmul.f32 %v87, %v1020
    %v1022 = vmul.f32 %v88, %v1020
    %v1023 = vadd.f32 %v1017, %v1021
    %v1024 = vadd.f32 %v1018, %v1022
    %s1025 = sld [smem:[#allocation7 + $0x382]]
    %v1026 = vstv %s1025
    %v1027 = vmul.f32 %v90, %v1026
    %v1028 = vmul.f32 %v91, %v1026
    %v1029 = vadd.f32 %v1023, %v1027
    %v1030 = vadd.f32 %v1024, %v1028
    %s1031 = sld [smem:[#allocation7 + $0x383]]
    %v1032 = vstv %s1031
    %v1033 = vmul.f32 %v93, %v1032
    %v1034 = vmul.f32 %v94, %v1032
    %v1035 = vadd.f32 %v1029, %v1033
    %v1036 = vadd.f32 %v1030, %v1034
    %s1037 = sld [smem:[#allocation7 + $0x384]]
    %v1038 = vstv %s1037
    %v1039 = vmul.f32 %v96, %v1038
    %v1040 = vmul.f32 %v97, %v1038
    %v1041 = vadd.f32 %v1035, %v1039
    %v1042 = vadd.f32 %v1036, %v1040
    %s1043 = sld [smem:[#allocation7 + $0x385]]
    %v1044 = vstv %s1043
    %v1045 = vmul.f32 %v99, %v1044
    %v1046 = vmul.f32 %v100, %v1044
    %v1047 = vadd.f32 %v1041, %v1045
    %v1048 = vadd.f32 %v1042, %v1046
    %s1049 = sld [smem:[#allocation7 + $0x386]]
    %v1050 = vstv %s1049
    %v1051 = vmul.f32 %v102, %v1050
    %v1052 = vmul.f32 %v103, %v1050
    %v1053 = vadd.f32 %v1047, %v1051
    %v1054 = vadd.f32 %v1048, %v1052
    %s1055 = sld [smem:[#allocation7 + $0x387]]
    %v1056 = vstv %s1055
    %v1057 = vmul.f32 %v105, %v1056
    %v1058 = vmul.f32 %v106, %v1056
    %v1059 = vadd.f32 %v1053, %v1057
    %v1060 = vadd.f32 %v1054, %v1058
    %s1061 = sld [smem:[#allocation7 + $0x388]]
    %v1062 = vstv %s1061
    %v1063 = vmul.f32 %v108, %v1062
    %v1064 = vmul.f32 %v109, %v1062
    %v1065 = vadd.f32 %v1059, %v1063
    %v1066 = vadd.f32 %v1060, %v1064
    %s1067 = sld [smem:[#allocation7 + $0x389]]
    %v1068 = vstv %s1067
    %v1069 = vmul.f32 %v111, %v1068
    %v1070 = vmul.f32 %v112, %v1068
    %v1071 = vadd.f32 %v1065, %v1069
    %v1072 = vadd.f32 %v1066, %v1070
    %s1073 = sld [smem:[#allocation7 + $0x38a]]
    %v1074 = vstv %s1073
    %v1075 = vmul.f32 %v114, %v1074
    %v1076 = vmul.f32 %v115, %v1074
    %v1077 = vadd.f32 %v1071, %v1075
    %v1078 = vadd.f32 %v1072, %v1076
    %s1079 = sld [smem:[#allocation7 + $0x38b]]
    %v1080 = vstv %s1079
    %v1081 = vmul.f32 %v117, %v1080
    %v1082 = vmul.f32 %v118, %v1080
    %v1083 = vadd.f32 %v1077, %v1081
    %v1084 = vadd.f32 %v1078, %v1082
    %s1085 = sld [smem:[#allocation7 + $0x38c]]
    %v1086 = vstv %s1085
    %v1087 = vmul.f32 %v120, %v1086
    %v1088 = vmul.f32 %v121, %v1086
    %v1089 = vadd.f32 %v1083, %v1087
    %v1090 = vadd.f32 %v1084, %v1088
    %s1091 = sld [smem:[#allocation7 + $0x38d]]
    %v1092 = vstv %s1091
    %v1093 = vmul.f32 %v123, %v1092
    %v1094 = vmul.f32 %v124, %v1092
    %v1095 = vadd.f32 %v1089, %v1093
    %v1096 = vadd.f32 %v1090, %v1094
    %s1097 = sld [smem:[#allocation7 + $0x38e]]
    %v1098 = vstv %s1097
    %v1099 = vmul.f32 %v126, %v1098
    %v1100 = vmul.f32 %v127, %v1098
    %v1101 = vadd.f32 %v1095, %v1099
    %v1102 = vadd.f32 %v1096, %v1100
    %s1103 = sld [smem:[#allocation7 + $0x38f]]
    %v1104 = vstv %s1103
    %v1105 = vmul.f32 %v129, %v1104
    %v1106 = vmul.f32 %v130, %v1104
    %v1107 = vadd.f32 %v1101, %v1105
    %v1108 = vadd.f32 %v1102, %v1106
    %s1109 = sld [smem:[#allocation9 + $0x7]]
    %v1110 = vstv %s1109
    %v1111 = vadd.f32 %v1107, %v1110
    %v1112 = vadd.f32 %v1108, %v1110
    %s1113 = sld [smem:[#allocation7 + $0x400]]
    %v1114 = vstv %s1113
    %v1115 = vmul.f32 %v84, %v1114
    %v1116 = vmul.f32 %v85, %v1114
    %s1117 = sld [smem:[#allocation7 + $0x401]]
    %v1118 = vstv %s1117
    %v1119 = vmul.f32 %v87, %v1118
    %v1120 = vmul.f32 %v88, %v1118
    %v1121 = vadd.f32 %v1115, %v1119
    %v1122 = vadd.f32 %v1116, %v1120
    %s1123 = sld [smem:[#allocation7 + $0x402]]
    %v1124 = vstv %s1123
    %v1125 = vmul.f32 %v90, %v1124
    %v1126 = vmul.f32 %v91, %v1124
    %v1127 = vadd.f32 %v1121, %v1125
    %v1128 = vadd.f32 %v1122, %v1126
    %s1129 = sld [smem:[#allocation7 + $0x403]]
    %v1130 = vstv %s1129
    %v1131 = vmul.f32 %v93, %v1130
    %v1132 = vmul.f32 %v94, %v1130
    %v1133 = vadd.f32 %v1127, %v1131
    %v1134 = vadd.f32 %v1128, %v1132
    %s1135 = sld [smem:[#allocation7 + $0x404]]
    %v1136 = vstv %s1135
    %v1137 = vmul.f32 %v96, %v1136
    %v1138 = vmul.f32 %v97, %v1136
    %v1139 = vadd.f32 %v1133, %v1137
    %v1140 = vadd.f32 %v1134, %v1138
    %s1141 = sld [smem:[#allocation7 + $0x405]]
    %v1142 = vstv %s1141
    %v1143 = vmul.f32 %v99, %v1142
    %v1144 = vmul.f32 %v100, %v1142
    %v1145 = vadd.f32 %v1139, %v1143
    %v1146 = vadd.f32 %v1140, %v1144
    %s1147 = sld [smem:[#allocation7 + $0x406]]
    %v1148 = vstv %s1147
    %v1149 = vmul.f32 %v102, %v1148
    %v1150 = vmul.f32 %v103, %v1148
    %v1151 = vadd.f32 %v1145, %v1149
    %v1152 = vadd.f32 %v1146, %v1150
    %s1153 = sld [smem:[#allocation7 + $0x407]]
    %v1154 = vstv %s1153
    %v1155 = vmul.f32 %v105, %v1154
    %v1156 = vmul.f32 %v106, %v1154
    %v1157 = vadd.f32 %v1151, %v1155
    %v1158 = vadd.f32 %v1152, %v1156
    %s1159 = sld [smem:[#allocation7 + $0x408]]
    %v1160 = vstv %s1159
    %v1161 = vmul.f32 %v108, %v1160
    %v1162 = vmul.f32 %v109, %v1160
    %v1163 = vadd.f32 %v1157, %v1161
    %v1164 = vadd.f32 %v1158, %v1162
    %s1165 = sld [smem:[#allocation7 + $0x409]]
    %v1166 = vstv %s1165
    %v1167 = vmul.f32 %v111, %v1166
    %v1168 = vmul.f32 %v112, %v1166
    %v1169 = vadd.f32 %v1163, %v1167
    %v1170 = vadd.f32 %v1164, %v1168
    %s1171 = sld [smem:[#allocation7 + $0x40a]]
    %v1172 = vstv %s1171
    %v1173 = vmul.f32 %v114, %v1172
    %v1174 = vmul.f32 %v115, %v1172
    %v1175 = vadd.f32 %v1169, %v1173
    %v1176 = vadd.f32 %v1170, %v1174
    %s1177 = sld [smem:[#allocation7 + $0x40b]]
    %v1178 = vstv %s1177
    %v1179 = vmul.f32 %v117, %v1178
    %v1180 = vmul.f32 %v118, %v1178
    %v1181 = vadd.f32 %v1175, %v1179
    %v1182 = vadd.f32 %v1176, %v1180
    %s1183 = sld [smem:[#allocation7 + $0x40c]]
    %v1184 = vstv %s1183
    %v1185 = vmul.f32 %v120, %v1184
    %v1186 = vmul.f32 %v121, %v1184
    %v1187 = vadd.f32 %v1181, %v1185
    %v1188 = vadd.f32 %v1182, %v1186
    %s1189 = sld [smem:[#allocation7 + $0x40d]]
    %v1190 = vstv %s1189
    %v1191 = vmul.f32 %v123, %v1190
    %v1192 = vmul.f32 %v124, %v1190
    %v1193 = vadd.f32 %v1187, %v1191
    %v1194 = vadd.f32 %v1188, %v1192
    %s1195 = sld [smem:[#allocation7 + $0x40e]]
    %v1196 = vstv %s1195
    %v1197 = vmul.f32 %v126, %v1196
    %v1198 = vmul.f32 %v127, %v1196
    %v1199 = vadd.f32 %v1193, %v1197
    %v1200 = vadd.f32 %v1194, %v1198
    %s1201 = sld [smem:[#allocation7 + $0x40f]]
    %v1202 = vstv %s1201
    %v1203 = vmul.f32 %v129, %v1202
    %v1204 = vmul.f32 %v130, %v1202
    %v1205 = vadd.f32 %v1199, %v1203
    %v1206 = vadd.f32 %v1200, %v1204
    %s1207 = sld [smem:[#allocation9 + $0x8]]
    %v1208 = vstv %s1207
    %v1209 = vadd.f32 %v1205, %v1208
    %v1210 = vadd.f32 %v1206, %v1208
    %s1211 = sld [smem:[#allocation7 + $0x480]]
    %v1212 = vstv %s1211
    %v1213 = vmul.f32 %v84, %v1212
    %v1214 = vmul.f32 %v85, %v1212
    %s1215 = sld [smem:[#allocation7 + $0x481]]
    %v1216 = vstv %s1215
    %v1217 = vmul.f32 %v87, %v1216
    %v1218 = vmul.f32 %v88, %v1216
    %v1219 = vadd.f32 %v1213, %v1217
    %v1220 = vadd.f32 %v1214, %v1218
    %s1221 = sld [smem:[#allocation7 + $0x482]]
    %v1222 = vstv %s1221
    %v1223 = vmul.f32 %v90, %v1222
    %v1224 = vmul.f32 %v91, %v1222
    %v1225 = vadd.f32 %v1219, %v1223
    %v1226 = vadd.f32 %v1220, %v1224
    %s1227 = sld [smem:[#allocation7 + $0x483]]
    %v1228 = vstv %s1227
    %v1229 = vmul.f32 %v93, %v1228
    %v1230 = vmul.f32 %v94, %v1228
    %v1231 = vadd.f32 %v1225, %v1229
    %v1232 = vadd.f32 %v1226, %v1230
    %s1233 = sld [smem:[#allocation7 + $0x484]]
    %v1234 = vstv %s1233
    %v1235 = vmul.f32 %v96, %v1234
    %v1236 = vmul.f32 %v97, %v1234
    %v1237 = vadd.f32 %v1231, %v1235
    %v1238 = vadd.f32 %v1232, %v1236
    %s1239 = sld [smem:[#allocation7 + $0x485]]
    %v1240 = vstv %s1239
    %v1241 = vmul.f32 %v99, %v1240
    %v1242 = vmul.f32 %v100, %v1240
    %v1243 = vadd.f32 %v1237, %v1241
    %v1244 = vadd.f32 %v1238, %v1242
    %s1245 = sld [smem:[#allocation7 + $0x486]]
    %v1246 = vstv %s1245
    %v1247 = vmul.f32 %v102, %v1246
    %v1248 = vmul.f32 %v103, %v1246
    %v1249 = vadd.f32 %v1243, %v1247
    %v1250 = vadd.f32 %v1244, %v1248
    %s1251 = sld [smem:[#allocation7 + $0x487]]
    %v1252 = vstv %s1251
    %v1253 = vmul.f32 %v105, %v1252
    %v1254 = vmul.f32 %v106, %v1252
    %v1255 = vadd.f32 %v1249, %v1253
    %v1256 = vadd.f32 %v1250, %v1254
    %s1257 = sld [smem:[#allocation7 + $0x488]]
    %v1258 = vstv %s1257
    %v1259 = vmul.f32 %v108, %v1258
    %v1260 = vmul.f32 %v109, %v1258
    %v1261 = vadd.f32 %v1255, %v1259
    %v1262 = vadd.f32 %v1256, %v1260
    %s1263 = sld [smem:[#allocation7 + $0x489]]
    %v1264 = vstv %s1263
    %v1265 = vmul.f32 %v111, %v1264
    %v1266 = vmul.f32 %v112, %v1264
    %v1267 = vadd.f32 %v1261, %v1265
    %v1268 = vadd.f32 %v1262, %v1266
    %s1269 = sld [smem:[#allocation7 + $0x48a]]
    %v1270 = vstv %s1269
    %v1271 = vmul.f32 %v114, %v1270
    %v1272 = vmul.f32 %v115, %v1270
    %v1273 = vadd.f32 %v1267, %v1271
    %v1274 = vadd.f32 %v1268, %v1272
    %s1275 = sld [smem:[#allocation7 + $0x48b]]
    %v1276 = vstv %s1275
    %v1277 = vmul.f32 %v117, %v1276
    %v1278 = vmul.f32 %v118, %v1276
    %v1279 = vadd.f32 %v1273, %v1277
    %v1280 = vadd.f32 %v1274, %v1278
    %s1281 = sld [smem:[#allocation7 + $0x48c]]
    %v1282 = vstv %s1281
    %v1283 = vmul.f32 %v120, %v1282
    %v1284 = vmul.f32 %v121, %v1282
    %v1285 = vadd.f32 %v1279, %v1283
    %v1286 = vadd.f32 %v1280, %v1284
    %s1287 = sld [smem:[#allocation7 + $0x48d]]
    %v1288 = vstv %s1287
    %v1289 = vmul.f32 %v123, %v1288
    %v1290 = vmul.f32 %v124, %v1288
    %v1291 = vadd.f32 %v1285, %v1289
    %v1292 = vadd.f32 %v1286, %v1290
    %s1293 = sld [smem:[#allocation7 + $0x48e]]
    %v1294 = vstv %s1293
    %v1295 = vmul.f32 %v126, %v1294
    %v1296 = vmul.f32 %v127, %v1294
    %v1297 = vadd.f32 %v1291, %v1295
    %v1298 = vadd.f32 %v1292, %v1296
    %s1299 = sld [smem:[#allocation7 + $0x48f]]
    %v1300 = vstv %s1299
    %v1301 = vmul.f32 %v129, %v1300
    %v1302 = vmul.f32 %v130, %v1300
    %v1303 = vadd.f32 %v1297, %v1301
    %v1304 = vadd.f32 %v1298, %v1302
    %s1305 = sld [smem:[#allocation9 + $0x9]]
    %v1306 = vstv %s1305
    %v1307 = vadd.f32 %v1303, %v1306
    %v1308 = vadd.f32 %v1304, %v1306
    %s1309 = sld [smem:[#allocation7 + $0x500]]
    %v1310 = vstv %s1309
    %v1311 = vmul.f32 %v84, %v1310
    %v1312 = vmul.f32 %v85, %v1310
    %s1313 = sld [smem:[#allocation7 + $0x501]]
    %v1314 = vstv %s1313
    %v1315 = vmul.f32 %v87, %v1314
    %v1316 = vmul.f32 %v88, %v1314
    %v1317 = vadd.f32 %v1311, %v1315
    %v1318 = vadd.f32 %v1312, %v1316
    %s1319 = sld [smem:[#allocation7 + $0x502]]
    %v1320 = vstv %s1319
    %v1321 = vmul.f32 %v90, %v1320
    %v1322 = vmul.f32 %v91, %v1320
    %v1323 = vadd.f32 %v1317, %v1321
    %v1324 = vadd.f32 %v1318, %v1322
    %s1325 = sld [smem:[#allocation7 + $0x503]]
    %v1326 = vstv %s1325
    %v1327 = vmul.f32 %v93, %v1326
    %v1328 = vmul.f32 %v94, %v1326
    %v1329 = vadd.f32 %v1323, %v1327
    %v1330 = vadd.f32 %v1324, %v1328
    %s1331 = sld [smem:[#allocation7 + $0x504]]
    %v1332 = vstv %s1331
    %v1333 = vmul.f32 %v96, %v1332
    %v1334 = vmul.f32 %v97, %v1332
    %v1335 = vadd.f32 %v1329, %v1333
    %v1336 = vadd.f32 %v1330, %v1334
    %s1337 = sld [smem:[#allocation7 + $0x505]]
    %v1338 = vstv %s1337
    %v1339 = vmul.f32 %v99, %v1338
    %v1340 = vmul.f32 %v100, %v1338
    %v1341 = vadd.f32 %v1335, %v1339
    %v1342 = vadd.f32 %v1336, %v1340
    %s1343 = sld [smem:[#allocation7 + $0x506]]
    %v1344 = vstv %s1343
    %v1345 = vmul.f32 %v102, %v1344
    %v1346 = vmul.f32 %v103, %v1344
    %v1347 = vadd.f32 %v1341, %v1345
    %v1348 = vadd.f32 %v1342, %v1346
    %s1349 = sld [smem:[#allocation7 + $0x507]]
    %v1350 = vstv %s1349
    %v1351 = vmul.f32 %v105, %v1350
    %v1352 = vmul.f32 %v106, %v1350
    %v1353 = vadd.f32 %v1347, %v1351
    %v1354 = vadd.f32 %v1348, %v1352
    %s1355 = sld [smem:[#allocation7 + $0x508]]
    %v1356 = vstv %s1355
    %v1357 = vmul.f32 %v108, %v1356
    %v1358 = vmul.f32 %v109, %v1356
    %v1359 = vadd.f32 %v1353, %v1357
    %v1360 = vadd.f32 %v1354, %v1358
    %s1361 = sld [smem:[#allocation7 + $0x509]]
    %v1362 = vstv %s1361
    %v1363 = vmul.f32 %v111, %v1362
    %v1364 = vmul.f32 %v112, %v1362
    %v1365 = vadd.f32 %v1359, %v1363
    %v1366 = vadd.f32 %v1360, %v1364
    %s1367 = sld [smem:[#allocation7 + $0x50a]]
    %v1368 = vstv %s1367
    %v1369 = vmul.f32 %v114, %v1368
    %v1370 = vmul.f32 %v115, %v1368
    %v1371 = vadd.f32 %v1365, %v1369
    %v1372 = vadd.f32 %v1366, %v1370
    %s1373 = sld [smem:[#allocation7 + $0x50b]]
    %v1374 = vstv %s1373
    %v1375 = vmul.f32 %v117, %v1374
    %v1376 = vmul.f32 %v118, %v1374
    %v1377 = vadd.f32 %v1371, %v1375
    %v1378 = vadd.f32 %v1372, %v1376
    %s1379 = sld [smem:[#allocation7 + $0x50c]]
    %v1380 = vstv %s1379
    %v1381 = vmul.f32 %v120, %v1380
    %v1382 = vmul.f32 %v121, %v1380
    %v1383 = vadd.f32 %v1377, %v1381
    %v1384 = vadd.f32 %v1378, %v1382
    %s1385 = sld [smem:[#allocation7 + $0x50d]]
    %v1386 = vstv %s1385
    %v1387 = vmul.f32 %v123, %v1386
    %v1388 = vmul.f32 %v124, %v1386
    %v1389 = vadd.f32 %v1383, %v1387
    %v1390 = vadd.f32 %v1384, %v1388
    %s1391 = sld [smem:[#allocation7 + $0x50e]]
    %v1392 = vstv %s1391
    %v1393 = vmul.f32 %v126, %v1392
    %v1394 = vmul.f32 %v127, %v1392
    %v1395 = vadd.f32 %v1389, %v1393
    %v1396 = vadd.f32 %v1390, %v1394
    %s1397 = sld [smem:[#allocation7 + $0x50f]]
    %v1398 = vstv %s1397
    %v1399 = vmul.f32 %v129, %v1398
    %v1400 = vmul.f32 %v130, %v1398
    %v1401 = vadd.f32 %v1395, %v1399
    %v1402 = vadd.f32 %v1396, %v1400
    %s1403 = sld [smem:[#allocation9 + $0xa]]
    %v1404 = vstv %s1403
    %v1405 = vadd.f32 %v1401, %v1404
    %v1406 = vadd.f32 %v1402, %v1404
    %s1407 = sld [smem:[#allocation7 + $0x580]]
    %v1408 = vstv %s1407
    %v1409 = vmul.f32 %v84, %v1408
    %v1410 = vmul.f32 %v85, %v1408
    %s1411 = sld [smem:[#allocation7 + $0x581]]
    %v1412 = vstv %s1411
    %v1413 = vmul.f32 %v87, %v1412
    %v1414 = vmul.f32 %v88, %v1412
    %v1415 = vadd.f32 %v1409, %v1413
    %v1416 = vadd.f32 %v1410, %v1414
    %s1417 = sld [smem:[#allocation7 + $0x582]]
    %v1418 = vstv %s1417
    %v1419 = vmul.f32 %v90, %v1418
    %v1420 = vmul.f32 %v91, %v1418
    %v1421 = vadd.f32 %v1415, %v1419
    %v1422 = vadd.f32 %v1416, %v1420
    %s1423 = sld [smem:[#allocation7 + $0x583]]
    %v1424 = vstv %s1423
    %v1425 = vmul.f32 %v93, %v1424
    %v1426 = vmul.f32 %v94, %v1424
    %v1427 = vadd.f32 %v1421, %v1425
    %v1428 = vadd.f32 %v1422, %v1426
    %s1429 = sld [smem:[#allocation7 + $0x584]]
    %v1430 = vstv %s1429
    %v1431 = vmul.f32 %v96, %v1430
    %v1432 = vmul.f32 %v97, %v1430
    %v1433 = vadd.f32 %v1427, %v1431
    %v1434 = vadd.f32 %v1428, %v1432
    %s1435 = sld [smem:[#allocation7 + $0x585]]
    %v1436 = vstv %s1435
    %v1437 = vmul.f32 %v99, %v1436
    %v1438 = vmul.f32 %v100, %v1436
    %v1439 = vadd.f32 %v1433, %v1437
    %v1440 = vadd.f32 %v1434, %v1438
    %s1441 = sld [smem:[#allocation7 + $0x586]]
    %v1442 = vstv %s1441
    %v1443 = vmul.f32 %v102, %v1442
    %v1444 = vmul.f32 %v103, %v1442
    %v1445 = vadd.f32 %v1439, %v1443
    %v1446 = vadd.f32 %v1440, %v1444
    %s1447 = sld [smem:[#allocation7 + $0x587]]
    %v1448 = vstv %s1447
    %v1449 = vmul.f32 %v105, %v1448
    %v1450 = vmul.f32 %v106, %v1448
    %v1451 = vadd.f32 %v1445, %v1449
    %v1452 = vadd.f32 %v1446, %v1450
    %s1453 = sld [smem:[#allocation7 + $0x588]]
    %v1454 = vstv %s1453
    %v1455 = vmul.f32 %v108, %v1454
    %v1456 = vmul.f32 %v109, %v1454
    %v1457 = vadd.f32 %v1451, %v1455
    %v1458 = vadd.f32 %v1452, %v1456
    %s1459 = sld [smem:[#allocation7 + $0x589]]
    %v1460 = vstv %s1459
    %v1461 = vmul.f32 %v111, %v1460
    %v1462 = vmul.f32 %v112, %v1460
    %v1463 = vadd.f32 %v1457, %v1461
    %v1464 = vadd.f32 %v1458, %v1462
    %s1465 = sld [smem:[#allocation7 + $0x58a]]
    %v1466 = vstv %s1465
    %v1467 = vmul.f32 %v114, %v1466
    %v1468 = vmul.f32 %v115, %v1466
    %v1469 = vadd.f32 %v1463, %v1467
    %v1470 = vadd.f32 %v1464, %v1468
    %s1471 = sld [smem:[#allocation7 + $0x58b]]
    %v1472 = vstv %s1471
    %v1473 = vmul.f32 %v117, %v1472
    %v1474 = vmul.f32 %v118, %v1472
    %v1475 = vadd.f32 %v1469, %v1473
    %v1476 = vadd.f32 %v1470, %v1474
    %s1477 = sld [smem:[#allocation7 + $0x58c]]
    %v1478 = vstv %s1477
    %v1479 = vmul.f32 %v120, %v1478
    %v1480 = vmul.f32 %v121, %v1478
    %v1481 = vadd.f32 %v1475, %v1479
    %v1482 = vadd.f32 %v1476, %v1480
    %s1483 = sld [smem:[#allocation7 + $0x58d]]
    %v1484 = vstv %s1483
    %v1485 = vmul.f32 %v123, %v1484
    %v1486 = vmul.f32 %v124, %v1484
    %v1487 = vadd.f32 %v1481, %v1485
    %v1488 = vadd.f32 %v1482, %v1486
    %s1489 = sld [smem:[#allocation7 + $0x58e]]
    %v1490 = vstv %s1489
    %v1491 = vmul.f32 %v126, %v1490
    %v1492 = vmul.f32 %v127, %v1490
    %v1493 = vadd.f32 %v1487, %v1491
    %v1494 = vadd.f32 %v1488, %v1492
    %s1495 = sld [smem:[#allocation7 + $0x58f]]
    %v1496 = vstv %s1495
    %v1497 = vmul.f32 %v129, %v1496
    %v1498 = vmul.f32 %v130, %v1496
    %v1499 = vadd.f32 %v1493, %v1497
    %v1500 = vadd.f32 %v1494, %v1498
    %s1501 = sld [smem:[#allocation9 + $0xb]]
    %v1502 = vstv %s1501
    %v1503 = vadd.f32 %v1499, %v1502
    %v1504 = vadd.f32 %v1500, %v1502
    %s1505 = sld [smem:[#allocation7 + $0x600]]
    %v1506 = vstv %s1505
    %v1507 = vmul.f32 %v84, %v1506
    %v1508 = vmul.f32 %v85, %v1506
    %s1509 = sld [smem:[#allocation7 + $0x601]]
    %v1510 = vstv %s1509
    %v1511 = vmul.f32 %v87, %v1510
    %v1512 = vmul.f32 %v88, %v1510
    %v1513 = vadd.f32 %v1507, %v1511
    %v1514 = vadd.f32 %v1508, %v1512
    %s1515 = sld [smem:[#allocation7 + $0x602]]
    %v1516 = vstv %s1515
    %v1517 = vmul.f32 %v90, %v1516
    %v1518 = vmul.f32 %v91, %v1516
    %v1519 = vadd.f32 %v1513, %v1517
    %v1520 = vadd.f32 %v1514, %v1518
    %s1521 = sld [smem:[#allocation7 + $0x603]]
    %v1522 = vstv %s1521
    %v1523 = vmul.f32 %v93, %v1522
    %v1524 = vmul.f32 %v94, %v1522
    %v1525 = vadd.f32 %v1519, %v1523
    %v1526 = vadd.f32 %v1520, %v1524
    %s1527 = sld [smem:[#allocation7 + $0x604]]
    %v1528 = vstv %s1527
    %v1529 = vmul.f32 %v96, %v1528
    %v1530 = vmul.f32 %v97, %v1528
    %v1531 = vadd.f32 %v1525, %v1529
    %v1532 = vadd.f32 %v1526, %v1530
    %s1533 = sld [smem:[#allocation7 + $0x605]]
    %v1534 = vstv %s1533
    %v1535 = vmul.f32 %v99, %v1534
    %v1536 = vmul.f32 %v100, %v1534
    %v1537 = vadd.f32 %v1531, %v1535
    %v1538 = vadd.f32 %v1532, %v1536
    %s1539 = sld [smem:[#allocation7 + $0x606]]
    %v1540 = vstv %s1539
    %v1541 = vmul.f32 %v102, %v1540
    %v1542 = vmul.f32 %v103, %v1540
    %v1543 = vadd.f32 %v1537, %v1541
    %v1544 = vadd.f32 %v1538, %v1542
    %s1545 = sld [smem:[#allocation7 + $0x607]]
    %v1546 = vstv %s1545
    %v1547 = vmul.f32 %v105, %v1546
    %v1548 = vmul.f32 %v106, %v1546
    %v1549 = vadd.f32 %v1543, %v1547
    %v1550 = vadd.f32 %v1544, %v1548
    %s1551 = sld [smem:[#allocation7 + $0x608]]
    %v1552 = vstv %s1551
    %v1553 = vmul.f32 %v108, %v1552
    %v1554 = vmul.f32 %v109, %v1552
    %v1555 = vadd.f32 %v1549, %v1553
    %v1556 = vadd.f32 %v1550, %v1554
    %s1557 = sld [smem:[#allocation7 + $0x609]]
    %v1558 = vstv %s1557
    %v1559 = vmul.f32 %v111, %v1558
    %v1560 = vmul.f32 %v112, %v1558
    %v1561 = vadd.f32 %v1555, %v1559
    %v1562 = vadd.f32 %v1556, %v1560
    %s1563 = sld [smem:[#allocation7 + $0x60a]]
    %v1564 = vstv %s1563
    %v1565 = vmul.f32 %v114, %v1564
    %v1566 = vmul.f32 %v115, %v1564
    %v1567 = vadd.f32 %v1561, %v1565
    %v1568 = vadd.f32 %v1562, %v1566
    %s1569 = sld [smem:[#allocation7 + $0x60b]]
    %v1570 = vstv %s1569
    %v1571 = vmul.f32 %v117, %v1570
    %v1572 = vmul.f32 %v118, %v1570
    %v1573 = vadd.f32 %v1567, %v1571
    %v1574 = vadd.f32 %v1568, %v1572
    %s1575 = sld [smem:[#allocation7 + $0x60c]]
    %v1576 = vstv %s1575
    %v1577 = vmul.f32 %v120, %v1576
    %v1578 = vmul.f32 %v121, %v1576
    %v1579 = vadd.f32 %v1573, %v1577
    %v1580 = vadd.f32 %v1574, %v1578
    %s1581 = sld [smem:[#allocation7 + $0x60d]]
    %v1582 = vstv %s1581
    %v1583 = vmul.f32 %v123, %v1582
    %v1584 = vmul.f32 %v124, %v1582
    %v1585 = vadd.f32 %v1579, %v1583
    %v1586 = vadd.f32 %v1580, %v1584
    %s1587 = sld [smem:[#allocation7 + $0x60e]]
    %v1588 = vstv %s1587
    %v1589 = vmul.f32 %v126, %v1588
    %v1590 = vmul.f32 %v127, %v1588
    %v1591 = vadd.f32 %v1585, %v1589
    %v1592 = vadd.f32 %v1586, %v1590
    %s1593 = sld [smem:[#allocation7 + $0x60f]]
    %v1594 = vstv %s1593
    %v1595 = vmul.f32 %v129, %v1594
    %v1596 = vmul.f32 %v130, %v1594
    %v1597 = vadd.f32 %v1591, %v1595
    %v1598 = vadd.f32 %v1592, %v1596
    %s1599 = sld [smem:[#allocation9 + $0xc]]
    %v1600 = vstv %s1599
    %v1601 = vadd.f32 %v1597, %v1600
    %v1602 = vadd.f32 %v1598, %v1600
    %s1603 = sld [smem:[#allocation7 + $0x680]]
    %v1604 = vstv %s1603
    %v1605 = vmul.f32 %v84, %v1604
    %v1606 = vmul.f32 %v85, %v1604
    %s1607 = sld [smem:[#allocation7 + $0x681]]
    %v1608 = vstv %s1607
    %v1609 = vmul.f32 %v87, %v1608
    %v1610 = vmul.f32 %v88, %v1608
    %v1611 = vadd.f32 %v1605, %v1609
    %v1612 = vadd.f32 %v1606, %v1610
    %s1613 = sld [smem:[#allocation7 + $0x682]]
    %v1614 = vstv %s1613
    %v1615 = vmul.f32 %v90, %v1614
    %v1616 = vmul.f32 %v91, %v1614
    %v1617 = vadd.f32 %v1611, %v1615
    %v1618 = vadd.f32 %v1612, %v1616
    %s1619 = sld [smem:[#allocation7 + $0x683]]
    %v1620 = vstv %s1619
    %v1621 = vmul.f32 %v93, %v1620
    %v1622 = vmul.f32 %v94, %v1620
    %v1623 = vadd.f32 %v1617, %v1621
    %v1624 = vadd.f32 %v1618, %v1622
    %s1625 = sld [smem:[#allocation7 + $0x684]]
    %v1626 = vstv %s1625
    %v1627 = vmul.f32 %v96, %v1626
    %v1628 = vmul.f32 %v97, %v1626
    %v1629 = vadd.f32 %v1623, %v1627
    %v1630 = vadd.f32 %v1624, %v1628
    %s1631 = sld [smem:[#allocation7 + $0x685]]
    %v1632 = vstv %s1631
    %v1633 = vmul.f32 %v99, %v1632
    %v1634 = vmul.f32 %v100, %v1632
    %v1635 = vadd.f32 %v1629, %v1633
    %v1636 = vadd.f32 %v1630, %v1634
    %s1637 = sld [smem:[#allocation7 + $0x686]]
    %v1638 = vstv %s1637
    %v1639 = vmul.f32 %v102, %v1638
    %v1640 = vmul.f32 %v103, %v1638
    %v1641 = vadd.f32 %v1635, %v1639
    %v1642 = vadd.f32 %v1636, %v1640
    %s1643 = sld [smem:[#allocation7 + $0x687]]
    %v1644 = vstv %s1643
    %v1645 = vmul.f32 %v105, %v1644
    %v1646 = vmul.f32 %v106, %v1644
    %v1647 = vadd.f32 %v1641, %v1645
    %v1648 = vadd.f32 %v1642, %v1646
    %s1649 = sld [smem:[#allocation7 + $0x688]]
    %v1650 = vstv %s1649
    %v1651 = vmul.f32 %v108, %v1650
    %v1652 = vmul.f32 %v109, %v1650
    %v1653 = vadd.f32 %v1647, %v1651
    %v1654 = vadd.f32 %v1648, %v1652
    %s1655 = sld [smem:[#allocation7 + $0x689]]
    %v1656 = vstv %s1655
    %v1657 = vmul.f32 %v111, %v1656
    %v1658 = vmul.f32 %v112, %v1656
    %v1659 = vadd.f32 %v1653, %v1657
    %v1660 = vadd.f32 %v1654, %v1658
    %s1661 = sld [smem:[#allocation7 + $0x68a]]
    %v1662 = vstv %s1661
    %v1663 = vmul.f32 %v114, %v1662
    %v1664 = vmul.f32 %v115, %v1662
    %v1665 = vadd.f32 %v1659, %v1663
    %v1666 = vadd.f32 %v1660, %v1664
    %s1667 = sld [smem:[#allocation7 + $0x68b]]
    %v1668 = vstv %s1667
    %v1669 = vmul.f32 %v117, %v1668
    %v1670 = vmul.f32 %v118, %v1668
    %v1671 = vadd.f32 %v1665, %v1669
    %v1672 = vadd.f32 %v1666, %v1670
    %s1673 = sld [smem:[#allocation7 + $0x68c]]
    %v1674 = vstv %s1673
    %v1675 = vmul.f32 %v120, %v1674
    %v1676 = vmul.f32 %v121, %v1674
    %v1677 = vadd.f32 %v1671, %v1675
    %v1678 = vadd.f32 %v1672, %v1676
    %s1679 = sld [smem:[#allocation7 + $0x68d]]
    %v1680 = vstv %s1679
    %v1681 = vmul.f32 %v123, %v1680
    %v1682 = vmul.f32 %v124, %v1680
    %v1683 = vadd.f32 %v1677, %v1681
    %v1684 = vadd.f32 %v1678, %v1682
    %s1685 = sld [smem:[#allocation7 + $0x68e]]
    %v1686 = vstv %s1685
    %v1687 = vmul.f32 %v126, %v1686
    %v1688 = vmul.f32 %v127, %v1686
    %v1689 = vadd.f32 %v1683, %v1687
    %v1690 = vadd.f32 %v1684, %v1688
    %s1691 = sld [smem:[#allocation7 + $0x68f]]
    %v1692 = vstv %s1691
    %v1693 = vmul.f32 %v129, %v1692
    %v1694 = vmul.f32 %v130, %v1692
    %v1695 = vadd.f32 %v1689, %v1693
    %v1696 = vadd.f32 %v1690, %v1694
    %s1697 = sld [smem:[#allocation9 + $0xd]]
    %v1698 = vstv %s1697
    %v1699 = vadd.f32 %v1695, %v1698
    %v1700 = vadd.f32 %v1696, %v1698
    %s1701 = sld [smem:[#allocation7 + $0x700]]
    %v1702 = vstv %s1701
    %v1703 = vmul.f32 %v84, %v1702
    %v1704 = vmul.f32 %v85, %v1702
    %s1705 = sld [smem:[#allocation7 + $0x701]]
    %v1706 = vstv %s1705
    %v1707 = vmul.f32 %v87, %v1706
    %v1708 = vmul.f32 %v88, %v1706
    %v1709 = vadd.f32 %v1703, %v1707
    %v1710 = vadd.f32 %v1704, %v1708
    %s1711 = sld [smem:[#allocation7 + $0x702]]
    %v1712 = vstv %s1711
    %v1713 = vmul.f32 %v90, %v1712
    %v1714 = vmul.f32 %v91, %v1712
    %v1715 = vadd.f32 %v1709, %v1713
    %v1716 = vadd.f32 %v1710, %v1714
    %s1717 = sld [smem:[#allocation7 + $0x703]]
    %v1718 = vstv %s1717
    %v1719 = vmul.f32 %v93, %v1718
    %v1720 = vmul.f32 %v94, %v1718
    %v1721 = vadd.f32 %v1715, %v1719
    %v1722 = vadd.f32 %v1716, %v1720
    %s1723 = sld [smem:[#allocation7 + $0x704]]
    %v1724 = vstv %s1723
    %v1725 = vmul.f32 %v96, %v1724
    %v1726 = vmul.f32 %v97, %v1724
    %v1727 = vadd.f32 %v1721, %v1725
    %v1728 = vadd.f32 %v1722, %v1726
    %s1729 = sld [smem:[#allocation7 + $0x705]]
    %v1730 = vstv %s1729
    %v1731 = vmul.f32 %v99, %v1730
    %v1732 = vmul.f32 %v100, %v1730
    %v1733 = vadd.f32 %v1727, %v1731
    %v1734 = vadd.f32 %v1728, %v1732
    %s1735 = sld [smem:[#allocation7 + $0x706]]
    %v1736 = vstv %s1735
    %v1737 = vmul.f32 %v102, %v1736
    %v1738 = vmul.f32 %v103, %v1736
    %v1739 = vadd.f32 %v1733, %v1737
    %v1740 = vadd.f32 %v1734, %v1738
    %s1741 = sld [smem:[#allocation7 + $0x707]]
    %v1742 = vstv %s1741
    %v1743 = vmul.f32 %v105, %v1742
    %v1744 = vmul.f32 %v106, %v1742
    %v1745 = vadd.f32 %v1739, %v1743
    %v1746 = vadd.f32 %v1740, %v1744
    %s1747 = sld [smem:[#allocation7 + $0x708]]
    %v1748 = vstv %s1747
    %v1749 = vmul.f32 %v108, %v1748
    %v1750 = vmul.f32 %v109, %v1748
    %v1751 = vadd.f32 %v1745, %v1749
    %v1752 = vadd.f32 %v1746, %v1750
    %s1753 = sld [smem:[#allocation7 + $0x709]]
    %v1754 = vstv %s1753
    %v1755 = vmul.f32 %v111, %v1754
    %v1756 = vmul.f32 %v112, %v1754
    %v1757 = vadd.f32 %v1751, %v1755
    %v1758 = vadd.f32 %v1752, %v1756
    %s1759 = sld [smem:[#allocation7 + $0x70a]]
    %v1760 = vstv %s1759
    %v1761 = vmul.f32 %v114, %v1760
    %v1762 = vmul.f32 %v115, %v1760
    %v1763 = vadd.f32 %v1757, %v1761
    %v1764 = vadd.f32 %v1758, %v1762
    %s1765 = sld [smem:[#allocation7 + $0x70b]]
    %v1766 = vstv %s1765
    %v1767 = vmul.f32 %v117, %v1766
    %v1768 = vmul.f32 %v118, %v1766
    %v1769 = vadd.f32 %v1763, %v1767
    %v1770 = vadd.f32 %v1764, %v1768
    %s1771 = sld [smem:[#allocation7 + $0x70c]]
    %v1772 = vstv %s1771
    %v1773 = vmul.f32 %v120, %v1772
    %v1774 = vmul.f32 %v121, %v1772
    %v1775 = vadd.f32 %v1769, %v1773
    %v1776 = vadd.f32 %v1770, %v1774
    %s1777 = sld [smem:[#allocation7 + $0x70d]]
    %v1778 = vstv %s1777
    %v1779 = vmul.f32 %v123, %v1778
    %v1780 = vmul.f32 %v124, %v1778
    %v1781 = vadd.f32 %v1775, %v1779
    %v1782 = vadd.f32 %v1776, %v1780
    %s1783 = sld [smem:[#allocation7 + $0x70e]]
    %v1784 = vstv %s1783
    %v1785 = vmul.f32 %v126, %v1784
    %v1786 = vmul.f32 %v127, %v1784
    %v1787 = vadd.f32 %v1781, %v1785
    %v1788 = vadd.f32 %v1782, %v1786
    %s1789 = sld [smem:[#allocation7 + $0x70f]]
    %v1790 = vstv %s1789
    %v1791 = vmul.f32 %v129, %v1790
    %v1792 = vmul.f32 %v130, %v1790
    %v1793 = vadd.f32 %v1787, %v1791
    %v1794 = vadd.f32 %v1788, %v1792
    %s1795 = sld [smem:[#allocation9 + $0xe]]
    %v1796 = vstv %s1795
    %v1797 = vadd.f32 %v1793, %v1796
    %v1798 = vadd.f32 %v1794, %v1796
    %s1799 = sld [smem:[#allocation7 + $0x780]]
    %v1800 = vstv %s1799
    %v1801 = vmul.f32 %v84, %v1800
    %v1802 = vmul.f32 %v85, %v1800
    %s1803 = sld [smem:[#allocation7 + $0x781]]
    %v1804 = vstv %s1803
    %v1805 = vmul.f32 %v87, %v1804
    %v1806 = vmul.f32 %v88, %v1804
    %v1807 = vadd.f32 %v1801, %v1805
    %v1808 = vadd.f32 %v1802, %v1806
    %s1809 = sld [smem:[#allocation7 + $0x782]]
    %v1810 = vstv %s1809
    %v1811 = vmul.f32 %v90, %v1810
    %v1812 = vmul.f32 %v91, %v1810
    %v1813 = vadd.f32 %v1807, %v1811
    %v1814 = vadd.f32 %v1808, %v1812
    %s1815 = sld [smem:[#allocation7 + $0x783]]
    %v1816 = vstv %s1815
    %v1817 = vmul.f32 %v93, %v1816
    %v1818 = vmul.f32 %v94, %v1816
    %v1819 = vadd.f32 %v1813, %v1817
    %v1820 = vadd.f32 %v1814, %v1818
    %s1821 = sld [smem:[#allocation7 + $0x784]]
    %v1822 = vstv %s1821
    %v1823 = vmul.f32 %v96, %v1822
    %v1824 = vmul.f32 %v97, %v1822
    %v1825 = vadd.f32 %v1819, %v1823
    %v1826 = vadd.f32 %v1820, %v1824
    %s1827 = sld [smem:[#allocation7 + $0x785]]
    %v1828 = vstv %s1827
    %v1829 = vmul.f32 %v99, %v1828
    %v1830 = vmul.f32 %v100, %v1828
    %v1831 = vadd.f32 %v1825, %v1829
    %v1832 = vadd.f32 %v1826, %v1830
    %s1833 = sld [smem:[#allocation7 + $0x786]]
    %v1834 = vstv %s1833
    %v1835 = vmul.f32 %v102, %v1834
    %v1836 = vmul.f32 %v103, %v1834
    %v1837 = vadd.f32 %v1831, %v1835
    %v1838 = vadd.f32 %v1832, %v1836
    %s1839 = sld [smem:[#allocation7 + $0x787]]
    %v1840 = vstv %s1839
    %v1841 = vmul.f32 %v105, %v1840
    %v1842 = vmul.f32 %v106, %v1840
    %v1843 = vadd.f32 %v1837, %v1841
    %v1844 = vadd.f32 %v1838, %v1842
    %s1845 = sld [smem:[#allocation7 + $0x788]]
    %v1846 = vstv %s1845
    %v1847 = vmul.f32 %v108, %v1846
    %v1848 = vmul.f32 %v109, %v1846
    %v1849 = vadd.f32 %v1843, %v1847
    %v1850 = vadd.f32 %v1844, %v1848
    %s1851 = sld [smem:[#allocation7 + $0x789]]
    %v1852 = vstv %s1851
    %v1853 = vmul.f32 %v111, %v1852
    %v1854 = vmul.f32 %v112, %v1852
    %v1855 = vadd.f32 %v1849, %v1853
    %v1856 = vadd.f32 %v1850, %v1854
    %s1857 = sld [smem:[#allocation7 + $0x78a]]
    %v1858 = vstv %s1857
    %v1859 = vmul.f32 %v114, %v1858
    %v1860 = vmul.f32 %v115, %v1858
    %v1861 = vadd.f32 %v1855, %v1859
    %v1862 = vadd.f32 %v1856, %v1860
    %s1863 = sld [smem:[#allocation7 + $0x78b]]
    %v1864 = vstv %s1863
    %v1865 = vmul.f32 %v117, %v1864
    %v1866 = vmul.f32 %v118, %v1864
    %v1867 = vadd.f32 %v1861, %v1865
    %v1868 = vadd.f32 %v1862, %v1866
    %s1869 = sld [smem:[#allocation7 + $0x78c]]
    %v1870 = vstv %s1869
    %v1871 = vmul.f32 %v120, %v1870
    %v1872 = vmul.f32 %v121, %v1870
    %v1873 = vadd.f32 %v1867, %v1871
    %v1874 = vadd.f32 %v1868, %v1872
    %s1875 = sld [smem:[#allocation7 + $0x78d]]
    %v1876 = vstv %s1875
    %v1877 = vmul.f32 %v123, %v1876
    %v1878 = vmul.f32 %v124, %v1876
    %v1879 = vadd.f32 %v1873, %v1877
    %v1880 = vadd.f32 %v1874, %v1878
    %s1881 = sld [smem:[#allocation7 + $0x78e]]
    %v1882 = vstv %s1881
    %v1883 = vmul.f32 %v126, %v1882
    %v1884 = vmul.f32 %v127, %v1882
    %v1885 = vadd.f32 %v1879, %v1883
    %v1886 = vadd.f32 %v1880, %v1884
    %s1887 = sld [smem:[#allocation7 + $0x78f]]
    %v1888 = vstv %s1887
    %v1889 = vmul.f32 %v129, %v1888
    %v1890 = vmul.f32 %v130, %v1888
    %v1891 = vadd.f32 %v1885, %v1889
    %v1892 = vadd.f32 %v1886, %v1890
    %s1893 = sld [smem:[#allocation9 + $0xf]]
    %v1894 = vstv %s1893
    %v1895 = vadd.f32 %v1891, %v1894
    %v1896 = vadd.f32 %v1892, %v1894
    %v1897 = vmax.f32 %v327, %v328
    %v1898 = vrot.slane %v1897, 4
    %v1899 = vmax.f32 %v1897, %v1898
    %v1900 = vrot.slane %v1899, 2
    %v1901 = vmax.f32 %v1899, %v1900
    %v1902 = vrot.slane %v1901, 1
    %v1903 = vmax.f32 %v1901, %v1902
    %v1904 = vmin.f32 %v327, %v328
    %v1905 = vrot.slane %v1904, 4
    %v1906 = vmin.f32 %v1904, %v1905
    %v1907 = vrot.slane %v1906, 2
    %v1908 = vmin.f32 %v1906, %v1907
    %v1909 = vrot.slane %v1908, 1
    %v1910 = vmin.f32 %v1908, %v1909
    %v1911 = vmul.f32 %v321, %v1903
    %v1912 = vmul.f32 %v322, %v1903
    %v1913 = vmul.f32 %v321, %v1910
    %v1914 = vmul.f32 %v322, %v1910
    %v1915 = vmax.f32 %v1911, %v1913
    %v1916 = vmax.f32 %v1912, %v1914
    %v1917 = vlaneseq
    %v1918 = vshrl.u32 %v1917, 7
    %v1919 = vsub.s32 0, %v1918
    %v1920 = vrot.slane %v327, %v1919
    %v1921 = vmul.f32 %v321, %v1920
    %v1922 = vmul.f32 %v322, %v1920
    %v1923 = vsub.f32 %v1921, %v1915
    %v1924 = vsub.f32 %v1922, %v1916
    %v1925 = vmul.f32 %v1923, 1.442695
    %v1926 = vpow.pop %v1925
    %v1927 = vmul.f32 %v1924, 1.442695
    %v1928 = vpow.pop %v1927
    %v1929 = vlaneseq
    %v1930 = vshrl.u32 %v1929, 7
    %v1931 = vsub.s32 0, %v1930
    %v1932 = vrot.slane %v425, %v1931
    %v1933 = vmul.f32 %v1926, %v1932
    %v1934 = vmul.f32 %v1928, %v1932
    %v1935 = vlaneseq
    %v1936 = vshrl.u32 %v1935, 7
    %v1937 = vsub.s32 0, %v1936
    %v1938 = vrot.slane %v523, %v1937
    %v1939 = vmul.f32 %v1926, %v1938
    %v1940 = vmul.f32 %v1928, %v1938
    %v1941 = vlaneseq
    %v1942 = vshrl.u32 %v1941, 7
    %v1943 = vsub.s32 0, %v1942
    %v1944 = vrot.slane %v621, %v1943
    %v1945 = vmul.f32 %v1926, %v1944
    %v1946 = vmul.f32 %v1928, %v1944
    %v1947 = vlaneseq
    %v1948 = vshrl.u32 %v1947, 7
    %v1949 = vsub.s32 0, %v1948
    %v1950 = vrot.slane %v719, %v1949
    %v1951 = vmul.f32 %v1926, %v1950
    %v1952 = vmul.f32 %v1928, %v1950
    %v1953 = vlaneseq
    %v1954 = vshrl.u32 %v1953, 7
    %v1955 = vsub.s32 0, %v1954
    %v1956 = vrot.slane %v817, %v1955
    %v1957 = vmul.f32 %v1926, %v1956
    %v1958 = vmul.f32 %v1928, %v1956
    %v1959 = vlaneseq
    %v1960 = vshrl.u32 %v1959, 7
    %v1961 = vsub.s32 0, %v1960
    %v1962 = vrot.slane %v915, %v1961
    %v1963 = vmul.f32 %v1926, %v1962
    %v1964 = vmul.f32 %v1928, %v1962
    %v1965 = vlaneseq
    %v1966 = vshrl.u32 %v1965, 7
    %v1967 = vsub.s32 0, %v1966
    %v1968 = vrot.slane %v1013, %v1967
    %v1969 = vmul.f32 %v1926, %v1968
    %v1970 = vmul.f32 %v1928, %v1968
    %v1971 = vlaneseq
    %v1972 = vshrl.u32 %v1971, 7
    %v1973 = vsub.s32 0, %v1972
    %v1974 = vrot.slane %v1111, %v1973
    %v1975 = vmul.f32 %v1926, %v1974
    %v1976 = vmul.f32 %v1928, %v1974
    %v1977 = vlaneseq
    %v1978 = vshrl.u32 %v1977, 7
    %v1979 = vsub.s32 0, %v1978
    %v1980 = vrot.slane %v1209, %v1979
    %v1981 = vmul.f32 %v1926, %v1980
    %v1982 = vmul.f32 %v1928, %v1980
    %v1983 = vlaneseq
    %v1984 = vshrl.u32 %v1983, 7
    %v1985 = vsub.s32 0, %v1984
    %v1986 = vrot.slane %v1307, %v1985
    %v1987 = vmul.f32 %v1926, %v1986
    %v1988 = vmul.f32 %v1928, %v1986
    %v1989 = vlaneseq
    %v1990 = vshrl.u32 %v1989, 7
    %v1991 = vsub.s32 0, %v1990
    %v1992 = vrot.slane %v1405, %v1991
    %v1993 = vmul.f32 %v1926, %v1992
    %v1994 = vmul.f32 %v1928, %v1992
    %v1995 = vlaneseq
    %v1996 = vshrl.u32 %v1995, 7
    %v1997 = vsub.s32 0, %v1996
    %v1998 = vrot.slane %v1503, %v1997
    %v1999 = vmul.f32 %v1926, %v1998
    %v2000 = vmul.f32 %v1928, %v1998
    %v2001 = vlaneseq
    %v2002 = vshrl.u32 %v2001, 7
    %v2003 = vsub.s32 0, %v2002
    %v2004 = vrot.slane %v1601, %v2003
    %v2005 = vmul.f32 %v1926, %v2004
    %v2006 = vmul.f32 %v1928, %v2004
    %v2007 = vlaneseq
    %v2008 = vshrl.u32 %v2007, 7
    %v2009 = vsub.s32 0, %v2008
    %v2010 = vrot.slane %v1699, %v2009
    %v2011 = vmul.f32 %v1926, %v2010
    %v2012 = vmul.f32 %v1928, %v2010
    %v2013 = vlaneseq
    %v2014 = vshrl.u32 %v2013, 7
    %v2015 = vsub.s32 0, %v2014
    %v2016 = vrot.slane %v1797, %v2015
    %v2017 = vmul.f32 %v1926, %v2016
    %v2018 = vmul.f32 %v1928, %v2016
    %v2019 = vlaneseq
    %v2020 = vshrl.u32 %v2019, 7
    %v2021 = vsub.s32 0, %v2020
    %v2022 = vrot.slane %v1895, %v2021
    %v2023 = vmul.f32 %v1926, %v2022
    %v2024 = vmul.f32 %v1928, %v2022
    %v2025 = vlaneseq
    %v2026 = vshrl.u32 %v2025, 7
    %v2027 = vsub.s32 1, %v2026
    %v2028 = vrot.slane %v327, %v2027
    %v2029 = vmul.f32 %v321, %v2028
    %v2030 = vmul.f32 %v322, %v2028
    %v2031 = vsub.f32 %v2029, %v1915
    %v2032 = vsub.f32 %v2030, %v1916
    %v2033 = vmul.f32 %v2031, 1.442695
    %v2034 = vpow.pop %v2033
    %v2035 = vmul.f32 %v2032, 1.442695
    %v2036 = vpow.pop %v2035
    %v2037 = vadd.f32 %v1926, %v2034
    %v2038 = vadd.f32 %v1928, %v2036
    %v2039 = vlaneseq
    %v2040 = vshrl.u32 %v2039, 7
    %v2041 = vsub.s32 1, %v2040
    %v2042 = vrot.slane %v425, %v2041
    %v2043 = vmul.f32 %v2034, %v2042
    %v2044 = vmul.f32 %v2036, %v2042
    %v2045 = vadd.f32 %v1933, %v2043
    %v2046 = vadd.f32 %v1934, %v2044
    %v2047 = vlaneseq
    %v2048 = vshrl.u32 %v2047, 7
    %v2049 = vsub.s32 1, %v2048
    %v2050 = vrot.slane %v523, %v2049
    %v2051 = vmul.f32 %v2034, %v2050
    %v2052 = vmul.f32 %v2036, %v2050
    %v2053 = vadd.f32 %v1939, %v2051
    %v2054 = vadd.f32 %v1940, %v2052
    %v2055 = vlaneseq
    %v2056 = vshrl.u32 %v2055, 7
    %v2057 = vsub.s32 1, %v2056
    %v2058 = vrot.slane %v621, %v2057
    %v2059 = vmul.f32 %v2034, %v2058
    %v2060 = vmul.f32 %v2036, %v2058
    %v2061 = vadd.f32 %v1945, %v2059
    %v2062 = vadd.f32 %v1946, %v2060
    %v2063 = vlaneseq
    %v2064 = vshrl.u32 %v2063, 7
    %v2065 = vsub.s32 1, %v2064
    %v2066 = vrot.slane %v719, %v2065
    %v2067 = vmul.f32 %v2034, %v2066
    %v2068 = vmul.f32 %v2036, %v2066
    %v2069 = vadd.f32 %v1951, %v2067
    %v2070 = vadd.f32 %v1952, %v2068
    %v2071 = vlaneseq
    %v2072 = vshrl.u32 %v2071, 7
    %v2073 = vsub.s32 1, %v2072
    %v2074 = vrot.slane %v817, %v2073
    %v2075 = vmul.f32 %v2034, %v2074
    %v2076 = vmul.f32 %v2036, %v2074
    %v2077 = vadd.f32 %v1957, %v2075
    %v2078 = vadd.f32 %v1958, %v2076
    %v2079 = vlaneseq
    %v2080 = vshrl.u32 %v2079, 7
    %v2081 = vsub.s32 1, %v2080
    %v2082 = vrot.slane %v915, %v2081
    %v2083 = vmul.f32 %v2034, %v2082
    %v2084 = vmul.f32 %v2036, %v2082
    %v2085 = vadd.f32 %v1963, %v2083
    %v2086 = vadd.f32 %v1964, %v2084
    %v2087 = vlaneseq
    %v2088 = vshrl.u32 %v2087, 7
    %v2089 = vsub.s32 1, %v2088
    %v2090 = vrot.slane %v1013, %v2089
    %v2091 = vmul.f32 %v2034, %v2090
    %v2092 = vmul.f32 %v2036, %v2090
    %v2093 = vadd.f32 %v1969, %v2091
    %v2094 = vadd.f32 %v1970, %v2092
    %v2095 = vlaneseq
    %v2096 = vshrl.u32 %v2095, 7
    %v2097 = vsub.s32 1, %v2096
    %v2098 = vrot.slane %v1111, %v2097
    %v2099 = vmul.f32 %v2034, %v2098
    %v2100 = vmul.f32 %v2036, %v2098
    %v2101 = vadd.f32 %v1975, %v2099
    %v2102 = vadd.f32 %v1976, %v2100
    %v2103 = vlaneseq
    %v2104 = vshrl.u32 %v2103, 7
    %v2105 = vsub.s32 1, %v2104
    %v2106 = vrot.slane %v1209, %v2105
    %v2107 = vmul.f32 %v2034, %v2106
    %v2108 = vmul.f32 %v2036, %v2106
    %v2109 = vadd.f32 %v1981, %v2107
    %v2110 = vadd.f32 %v1982, %v2108
    %v2111 = vlaneseq
    %v2112 = vshrl.u32 %v2111, 7
    %v2113 = vsub.s32 1, %v2112
    %v2114 = vrot.slane %v1307, %v2113
    %v2115 = vmul.f32 %v2034, %v2114
    %v2116 = vmul.f32 %v2036, %v2114
    %v2117 = vadd.f32 %v1987, %v2115
    %v2118 = vadd.f32 %v1988, %v2116
    %v2119 = vlaneseq
    %v2120 = vshrl.u32 %v2119, 7
    %v2121 = vsub.s32 1, %v2120
    %v2122 = vrot.slane %v1405, %v2121
    %v2123 = vmul.f32 %v2034, %v2122
    %v2124 = vmul.f32 %v2036, %v2122
    %v2125 = vadd.f32 %v1993, %v2123
    %v2126 = vadd.f32 %v1994, %v2124
    %v2127 = vlaneseq
    %v2128 = vshrl.u32 %v2127, 7
    %v2129 = vsub.s32 1, %v2128
    %v2130 = vrot.slane %v1503, %v2129
    %v2131 = vmul.f32 %v2034, %v2130
    %v2132 = vmul.f32 %v2036, %v2130
    %v2133 = vadd.f32 %v1999, %v2131
    %v2134 = vadd.f32 %v2000, %v2132
    %v2135 = vlaneseq
    %v2136 = vshrl.u32 %v2135, 7
    %v2137 = vsub.s32 1, %v2136
    %v2138 = vrot.slane %v1601, %v2137
    %v2139 = vmul.f32 %v2034, %v2138
    %v2140 = vmul.f32 %v2036, %v2138
    %v2141 = vadd.f32 %v2005, %v2139
    %v2142 = vadd.f32 %v2006, %v2140
    %v2143 = vlaneseq
    %v2144 = vshrl.u32 %v2143, 7
    %v2145 = vsub.s32 1, %v2144
    %v2146 = vrot.slane %v1699, %v2145
    %v2147 = vmul.f32 %v2034, %v2146
    %v2148 = vmul.f32 %v2036, %v2146
    %v2149 = vadd.f32 %v2011, %v2147
    %v2150 = vadd.f32 %v2012, %v2148
    %v2151 = vlaneseq
    %v2152 = vshrl.u32 %v2151, 7
    %v2153 = vsub.s32 1, %v2152
    %v2154 = vrot.slane %v1797, %v2153
    %v2155 = vmul.f32 %v2034, %v2154
    %v2156 = vmul.f32 %v2036, %v2154
    %v2157 = vadd.f32 %v2017, %v2155
    %v2158 = vadd.f32 %v2018, %v2156
    %v2159 = vlaneseq
    %v2160 = vshrl.u32 %v2159, 7
    %v2161 = vsub.s32 1, %v2160
    %v2162 = vrot.slane %v1895, %v2161
    %v2163 = vmul.f32 %v2034, %v2162
    %v2164 = vmul.f32 %v2036, %v2162
    %v2165 = vadd.f32 %v2023, %v2163
    %v2166 = vadd.f32 %v2024, %v2164
    %v2167 = vlaneseq
    %v2168 = vshrl.u32 %v2167, 7
    %v2169 = vsub.s32 2, %v2168
    %v2170 = vrot.slane %v327, %v2169
    %v2171 = vmul.f32 %v321, %v2170
    %v2172 = vmul.f32 %v322, %v2170
    %v2173 = vsub.f32 %v2171, %v1915
    %v2174 = vsub.f32 %v2172, %v1916
    %v2175 = vmul.f32 %v2173, 1.442695
    %v2176 = vpow.pop %v2175
    %v2177 = vmul.f32 %v2174, 1.442695
    %v2178 = vpow.pop %v2177
    %v2179 = vadd.f32 %v2037, %v2176
    %v2180 = vadd.f32 %v2038, %v2178
    %v2181 = vlaneseq
    %v2182 = vshrl.u32 %v2181, 7
    %v2183 = vsub.s32 2, %v2182
    %v2184 = vrot.slane %v425, %v2183
    %v2185 = vmul.f32 %v2176, %v2184
    %v2186 = vmul.f32 %v2178, %v2184
    %v2187 = vadd.f32 %v2045, %v2185
    %v2188 = vadd.f32 %v2046, %v2186
    %v2189 = vlaneseq
    %v2190 = vshrl.u32 %v2189, 7
    %v2191 = vsub.s32 2, %v2190
    %v2192 = vrot.slane %v523, %v2191
    %v2193 = vmul.f32 %v2176, %v2192
    %v2194 = vmul.f32 %v2178, %v2192
    %v2195 = vadd.f32 %v2053, %v2193
    %v2196 = vadd.f32 %v2054, %v2194
    %v2197 = vlaneseq
    %v2198 = vshrl.u32 %v2197, 7
    %v2199 = vsub.s32 2, %v2198
    %v2200 = vrot.slane %v621, %v2199
    %v2201 = vmul.f32 %v2176, %v2200
    %v2202 = vmul.f32 %v2178, %v2200
    %v2203 = vadd.f32 %v2061, %v2201
    %v2204 = vadd.f32 %v2062, %v2202
    %v2205 = vlaneseq
    %v2206 = vshrl.u32 %v2205, 7
    %v2207 = vsub.s32 2, %v2206
    %v2208 = vrot.slane %v719, %v2207
    %v2209 = vmul.f32 %v2176, %v2208
    %v2210 = vmul.f32 %v2178, %v2208
    %v2211 = vadd.f32 %v2069, %v2209
    %v2212 = vadd.f32 %v2070, %v2210
    %v2213 = vlaneseq
    %v2214 = vshrl.u32 %v2213, 7
    %v2215 = vsub.s32 2, %v2214
    %v2216 = vrot.slane %v817, %v2215
    %v2217 = vmul.f32 %v2176, %v2216
    %v2218 = vmul.f32 %v2178, %v2216
    %v2219 = vadd.f32 %v2077, %v2217
    %v2220 = vadd.f32 %v2078, %v2218
    %v2221 = vlaneseq
    %v2222 = vshrl.u32 %v2221, 7
    %v2223 = vsub.s32 2, %v2222
    %v2224 = vrot.slane %v915, %v2223
    %v2225 = vmul.f32 %v2176, %v2224
    %v2226 = vmul.f32 %v2178, %v2224
    %v2227 = vadd.f32 %v2085, %v2225
    %v2228 = vadd.f32 %v2086, %v2226
    %v2229 = vlaneseq
    %v2230 = vshrl.u32 %v2229, 7
    %v2231 = vsub.s32 2, %v2230
    %v2232 = vrot.slane %v1013, %v2231
    %v2233 = vmul.f32 %v2176, %v2232
    %v2234 = vmul.f32 %v2178, %v2232
    %v2235 = vadd.f32 %v2093, %v2233
    %v2236 = vadd.f32 %v2094, %v2234
    %v2237 = vlaneseq
    %v2238 = vshrl.u32 %v2237, 7
    %v2239 = vsub.s32 2, %v2238
    %v2240 = vrot.slane %v1111, %v2239
    %v2241 = vmul.f32 %v2176, %v2240
    %v2242 = vmul.f32 %v2178, %v2240
    %v2243 = vadd.f32 %v2101, %v2241
    %v2244 = vadd.f32 %v2102, %v2242
    %v2245 = vlaneseq
    %v2246 = vshrl.u32 %v2245, 7
    %v2247 = vsub.s32 2, %v2246
    %v2248 = vrot.slane %v1209, %v2247
    %v2249 = vmul.f32 %v2176, %v2248
    %v2250 = vmul.f32 %v2178, %v2248
    %v2251 = vadd.f32 %v2109, %v2249
    %v2252 = vadd.f32 %v2110, %v2250
    %v2253 = vlaneseq
    %v2254 = vshrl.u32 %v2253, 7
    %v2255 = vsub.s32 2, %v2254
    %v2256 = vrot.slane %v1307, %v2255
    %v2257 = vmul.f32 %v2176, %v2256
    %v2258 = vmul.f32 %v2178, %v2256
    %v2259 = vadd.f32 %v2117, %v2257
    %v2260 = vadd.f32 %v2118, %v2258
    %v2261 = vlaneseq
    %v2262 = vshrl.u32 %v2261, 7
    %v2263 = vsub.s32 2, %v2262
    %v2264 = vrot.slane %v1405, %v2263
    %v2265 = vmul.f32 %v2176, %v2264
    %v2266 = vmul.f32 %v2178, %v2264
    %v2267 = vadd.f32 %v2125, %v2265
    %v2268 = vadd.f32 %v2126, %v2266
    %v2269 = vlaneseq
    %v2270 = vshrl.u32 %v2269, 7
    %v2271 = vsub.s32 2, %v2270
    %v2272 = vrot.slane %v1503, %v2271
    %v2273 = vmul.f32 %v2176, %v2272
    %v2274 = vmul.f32 %v2178, %v2272
    %v2275 = vadd.f32 %v2133, %v2273
    %v2276 = vadd.f32 %v2134, %v2274
    %v2277 = vlaneseq
    %v2278 = vshrl.u32 %v2277, 7
    %v2279 = vsub.s32 2, %v2278
    %v2280 = vrot.slane %v1601, %v2279
    %v2281 = vmul.f32 %v2176, %v2280
    %v2282 = vmul.f32 %v2178, %v2280
    %v2283 = vadd.f32 %v2141, %v2281
    %v2284 = vadd.f32 %v2142, %v2282
    %v2285 = vlaneseq
    %v2286 = vshrl.u32 %v2285, 7
    %v2287 = vsub.s32 2, %v2286
    %v2288 = vrot.slane %v1699, %v2287
    %v2289 = vmul.f32 %v2176, %v2288
    %v2290 = vmul.f32 %v2178, %v2288
    %v2291 = vadd.f32 %v2149, %v2289
    %v2292 = vadd.f32 %v2150, %v2290
    %v2293 = vlaneseq
    %v2294 = vshrl.u32 %v2293, 7
    %v2295 = vsub.s32 2, %v2294
    %v2296 = vrot.slane %v1797, %v2295
    %v2297 = vmul.f32 %v2176, %v2296
    %v2298 = vmul.f32 %v2178, %v2296
    %v2299 = vadd.f32 %v2157, %v2297
    %v2300 = vadd.f32 %v2158, %v2298
    %v2301 = vlaneseq
    %v2302 = vshrl.u32 %v2301, 7
    %v2303 = vsub.s32 2, %v2302
    %v2304 = vrot.slane %v1895, %v2303
    %v2305 = vmul.f32 %v2176, %v2304
    %v2306 = vmul.f32 %v2178, %v2304
    %v2307 = vadd.f32 %v2165, %v2305
    %v2308 = vadd.f32 %v2166, %v2306
    %v2309 = vlaneseq
    %v2310 = vshrl.u32 %v2309, 7
    %v2311 = vsub.s32 3, %v2310
    %v2312 = vrot.slane %v327, %v2311
    %v2313 = vmul.f32 %v321, %v2312
    %v2314 = vmul.f32 %v322, %v2312
    %v2315 = vsub.f32 %v2313, %v1915
    %v2316 = vsub.f32 %v2314, %v1916
    %v2317 = vmul.f32 %v2315, 1.442695
    %v2318 = vpow.pop %v2317
    %v2319 = vmul.f32 %v2316, 1.442695
    %v2320 = vpow.pop %v2319
    %v2321 = vadd.f32 %v2179, %v2318
    %v2322 = vadd.f32 %v2180, %v2320
    %v2323 = vlaneseq
    %v2324 = vshrl.u32 %v2323, 7
    %v2325 = vsub.s32 3, %v2324
    %v2326 = vrot.slane %v425, %v2325
    %v2327 = vmul.f32 %v2318, %v2326
    %v2328 = vmul.f32 %v2320, %v2326
    %v2329 = vadd.f32 %v2187, %v2327
    %v2330 = vadd.f32 %v2188, %v2328
    %v2331 = vlaneseq
    %v2332 = vshrl.u32 %v2331, 7
    %v2333 = vsub.s32 3, %v2332
    %v2334 = vrot.slane %v523, %v2333
    %v2335 = vmul.f32 %v2318, %v2334
    %v2336 = vmul.f32 %v2320, %v2334
    %v2337 = vadd.f32 %v2195, %v2335
    %v2338 = vadd.f32 %v2196, %v2336
    %v2339 = vlaneseq
    %v2340 = vshrl.u32 %v2339, 7
    %v2341 = vsub.s32 3, %v2340
    %v2342 = vrot.slane %v621, %v2341
    %v2343 = vmul.f32 %v2318, %v2342
    %v2344 = vmul.f32 %v2320, %v2342
    %v2345 = vadd.f32 %v2203, %v2343
    %v2346 = vadd.f32 %v2204, %v2344
    %v2347 = vlaneseq
    %v2348 = vshrl.u32 %v2347, 7
    %v2349 = vsub.s32 3, %v2348
    %v2350 = vrot.slane %v719, %v2349
    %v2351 = vmul.f32 %v2318, %v2350
    %v2352 = vmul.f32 %v2320, %v2350
    %v2353 = vadd.f32 %v2211, %v2351
    %v2354 = vadd.f32 %v2212, %v2352
    %v2355 = vlaneseq
    %v2356 = vshrl.u32 %v2355, 7
    %v2357 = vsub.s32 3, %v2356
    %v2358 = vrot.slane %v817, %v2357
    %v2359 = vmul.f32 %v2318, %v2358
    %v2360 = vmul.f32 %v2320, %v2358
    %v2361 = vadd.f32 %v2219, %v2359
    %v2362 = vadd.f32 %v2220, %v2360
    %v2363 = vlaneseq
    %v2364 = vshrl.u32 %v2363, 7
    %v2365 = vsub.s32 3, %v2364
    %v2366 = vrot.slane %v915, %v2365
    %v2367 = vmul.f32 %v2318, %v2366
    %v2368 = vmul.f32 %v2320, %v2366
    %v2369 = vadd.f32 %v2227, %v2367
    %v2370 = vadd.f32 %v2228, %v2368
    %v2371 = vlaneseq
    %v2372 = vshrl.u32 %v2371, 7
    %v2373 = vsub.s32 3, %v2372
    %v2374 = vrot.slane %v1013, %v2373
    %v2375 = vmul.f32 %v2318, %v2374
    %v2376 = vmul.f32 %v2320, %v2374
    %v2377 = vadd.f32 %v2235, %v2375
    %v2378 = vadd.f32 %v2236, %v2376
    %v2379 = vlaneseq
    %v2380 = vshrl.u32 %v2379, 7
    %v2381 = vsub.s32 3, %v2380
    %v2382 = vrot.slane %v1111, %v2381
    %v2383 = vmul.f32 %v2318, %v2382
    %v2384 = vmul.f32 %v2320, %v2382
    %v2385 = vadd.f32 %v2243, %v2383
    %v2386 = vadd.f32 %v2244, %v2384
    %v2387 = vlaneseq
    %v2388 = vshrl.u32 %v2387, 7
    %v2389 = vsub.s32 3, %v2388
    %v2390 = vrot.slane %v1209, %v2389
    %v2391 = vmul.f32 %v2318, %v2390
    %v2392 = vmul.f32 %v2320, %v2390
    %v2393 = vadd.f32 %v2251, %v2391
    %v2394 = vadd.f32 %v2252, %v2392
    %v2395 = vlaneseq
    %v2396 = vshrl.u32 %v2395, 7
    %v2397 = vsub.s32 3, %v2396
    %v2398 = vrot.slane %v1307, %v2397
    %v2399 = vmul.f32 %v2318, %v2398
    %v2400 = vmul.f32 %v2320, %v2398
    %v2401 = vadd.f32 %v2259, %v2399
    %v2402 = vadd.f32 %v2260, %v2400
    %v2403 = vlaneseq
    %v2404 = vshrl.u32 %v2403, 7
    %v2405 = vsub.s32 3, %v2404
    %v2406 = vrot.slane %v1405, %v2405
    %v2407 = vmul.f32 %v2318, %v2406
    %v2408 = vmul.f32 %v2320, %v2406
    %v2409 = vadd.f32 %v2267, %v2407
    %v2410 = vadd.f32 %v2268, %v2408
    %v2411 = vlaneseq
    %v2412 = vshrl.u32 %v2411, 7
    %v2413 = vsub.s32 3, %v2412
    %v2414 = vrot.slane %v1503, %v2413
    %v2415 = vmul.f32 %v2318, %v2414
    %v2416 = vmul.f32 %v2320, %v2414
    %v2417 = vadd.f32 %v2275, %v2415
    %v2418 = vadd.f32 %v2276, %v2416
    %v2419 = vlaneseq
    %v2420 = vshrl.u32 %v2419, 7
    %v2421 = vsub.s32 3, %v2420
    %v2422 = vrot.slane %v1601, %v2421
    %v2423 = vmul.f32 %v2318, %v2422
    %v2424 = vmul.f32 %v2320, %v2422
    %v2425 = vadd.f32 %v2283, %v2423
    %v2426 = vadd.f32 %v2284, %v2424
    %v2427 = vlaneseq
    %v2428 = vshrl.u32 %v2427, 7
    %v2429 = vsub.s32 3, %v2428
    %v2430 = vrot.slane %v1699, %v2429
    %v2431 = vmul.f32 %v2318, %v2430
    %v2432 = vmul.f32 %v2320, %v2430
    %v2433 = vadd.f32 %v2291, %v2431
    %v2434 = vadd.f32 %v2292, %v2432
    %v2435 = vlaneseq
    %v2436 = vshrl.u32 %v2435, 7
    %v2437 = vsub.s32 3, %v2436
    %v2438 = vrot.slane %v1797, %v2437
    %v2439 = vmul.f32 %v2318, %v2438
    %v2440 = vmul.f32 %v2320, %v2438
    %v2441 = vadd.f32 %v2299, %v2439
    %v2442 = vadd.f32 %v2300, %v2440
    %v2443 = vlaneseq
    %v2444 = vshrl.u32 %v2443, 7
    %v2445 = vsub.s32 3, %v2444
    %v2446 = vrot.slane %v1895, %v2445
    %v2447 = vmul.f32 %v2318, %v2446
    %v2448 = vmul.f32 %v2320, %v2446
    %v2449 = vadd.f32 %v2307, %v2447
    %v2450 = vadd.f32 %v2308, %v2448
    %v2451 = vlaneseq
    %v2452 = vshrl.u32 %v2451, 7
    %v2453 = vsub.s32 4, %v2452
    %v2454 = vrot.slane %v327, %v2453
    %v2455 = vmul.f32 %v321, %v2454
    %v2456 = vmul.f32 %v322, %v2454
    %v2457 = vsub.f32 %v2455, %v1915
    %v2458 = vsub.f32 %v2456, %v1916
    %v2459 = vmul.f32 %v2457, 1.442695
    %v2460 = vpow.pop %v2459
    %v2461 = vmul.f32 %v2458, 1.442695
    %v2462 = vpow.pop %v2461
    %v2463 = vadd.f32 %v2321, %v2460
    %v2464 = vadd.f32 %v2322, %v2462
    %v2465 = vlaneseq
    %v2466 = vshrl.u32 %v2465, 7
    %v2467 = vsub.s32 4, %v2466
    %v2468 = vrot.slane %v425, %v2467
    %v2469 = vmul.f32 %v2460, %v2468
    %v2470 = vmul.f32 %v2462, %v2468
    %v2471 = vadd.f32 %v2329, %v2469
    %v2472 = vadd.f32 %v2330, %v2470
    %v2473 = vlaneseq
    %v2474 = vshrl.u32 %v2473, 7
    %v2475 = vsub.s32 4, %v2474
    %v2476 = vrot.slane %v523, %v2475
    %v2477 = vmul.f32 %v2460, %v2476
    %v2478 = vmul.f32 %v2462, %v2476
    %v2479 = vadd.f32 %v2337, %v2477
    %v2480 = vadd.f32 %v2338, %v2478
    %v2481 = vlaneseq
    %v2482 = vshrl.u32 %v2481, 7
    %v2483 = vsub.s32 4, %v2482
    %v2484 = vrot.slane %v621, %v2483
    %v2485 = vmul.f32 %v2460, %v2484
    %v2486 = vmul.f32 %v2462, %v2484
    %v2487 = vadd.f32 %v2345, %v2485
    %v2488 = vadd.f32 %v2346, %v2486
    %v2489 = vlaneseq
    %v2490 = vshrl.u32 %v2489, 7
    %v2491 = vsub.s32 4, %v2490
    %v2492 = vrot.slane %v719, %v2491
    %v2493 = vmul.f32 %v2460, %v2492
    %v2494 = vmul.f32 %v2462, %v2492
    %v2495 = vadd.f32 %v2353, %v2493
    %v2496 = vadd.f32 %v2354, %v2494
    %v2497 = vlaneseq
    %v2498 = vshrl.u32 %v2497, 7
    %v2499 = vsub.s32 4, %v2498
    %v2500 = vrot.slane %v817, %v2499
    %v2501 = vmul.f32 %v2460, %v2500
    %v2502 = vmul.f32 %v2462, %v2500
    %v2503 = vadd.f32 %v2361, %v2501
    %v2504 = vadd.f32 %v2362, %v2502
    %v2505 = vlaneseq
    %v2506 = vshrl.u32 %v2505, 7
    %v2507 = vsub.s32 4, %v2506
    %v2508 = vrot.slane %v915, %v2507
    %v2509 = vmul.f32 %v2460, %v2508
    %v2510 = vmul.f32 %v2462, %v2508
    %v2511 = vadd.f32 %v2369, %v2509
    %v2512 = vadd.f32 %v2370, %v2510
    %v2513 = vlaneseq
    %v2514 = vshrl.u32 %v2513, 7
    %v2515 = vsub.s32 4, %v2514
    %v2516 = vrot.slane %v1013, %v2515
    %v2517 = vmul.f32 %v2460, %v2516
    %v2518 = vmul.f32 %v2462, %v2516
    %v2519 = vadd.f32 %v2377, %v2517
    %v2520 = vadd.f32 %v2378, %v2518
    %v2521 = vlaneseq
    %v2522 = vshrl.u32 %v2521, 7
    %v2523 = vsub.s32 4, %v2522
    %v2524 = vrot.slane %v1111, %v2523
    %v2525 = vmul.f32 %v2460, %v2524
    %v2526 = vmul.f32 %v2462, %v2524
    %v2527 = vadd.f32 %v2385, %v2525
    %v2528 = vadd.f32 %v2386, %v2526
    %v2529 = vlaneseq
    %v2530 = vshrl.u32 %v2529, 7
    %v2531 = vsub.s32 4, %v2530
    %v2532 = vrot.slane %v1209, %v2531
    %v2533 = vmul.f32 %v2460, %v2532
    %v2534 = vmul.f32 %v2462, %v2532
    %v2535 = vadd.f32 %v2393, %v2533
    %v2536 = vadd.f32 %v2394, %v2534
    %v2537 = vlaneseq
    %v2538 = vshrl.u32 %v2537, 7
    %v2539 = vsub.s32 4, %v2538
    %v2540 = vrot.slane %v1307, %v2539
    %v2541 = vmul.f32 %v2460, %v2540
    %v2542 = vmul.f32 %v2462, %v2540
    %v2543 = vadd.f32 %v2401, %v2541
    %v2544 = vadd.f32 %v2402, %v2542
    %v2545 = vlaneseq
    %v2546 = vshrl.u32 %v2545, 7
    %v2547 = vsub.s32 4, %v2546
    %v2548 = vrot.slane %v1405, %v2547
    %v2549 = vmul.f32 %v2460, %v2548
    %v2550 = vmul.f32 %v2462, %v2548
    %v2551 = vadd.f32 %v2409, %v2549
    %v2552 = vadd.f32 %v2410, %v2550
    %v2553 = vlaneseq
    %v2554 = vshrl.u32 %v2553, 7
    %v2555 = vsub.s32 4, %v2554
    %v2556 = vrot.slane %v1503, %v2555
    %v2557 = vmul.f32 %v2460, %v2556
    %v2558 = vmul.f32 %v2462, %v2556
    %v2559 = vadd.f32 %v2417, %v2557
    %v2560 = vadd.f32 %v2418, %v2558
    %v2561 = vlaneseq
    %v2562 = vshrl.u32 %v2561, 7
    %v2563 = vsub.s32 4, %v2562
    %v2564 = vrot.slane %v1601, %v2563
    %v2565 = vmul.f32 %v2460, %v2564
    %v2566 = vmul.f32 %v2462, %v2564
    %v2567 = vadd.f32 %v2425, %v2565
    %v2568 = vadd.f32 %v2426, %v2566
    %v2569 = vlaneseq
    %v2570 = vshrl.u32 %v2569, 7
    %v2571 = vsub.s32 4, %v2570
    %v2572 = vrot.slane %v1699, %v2571
    %v2573 = vmul.f32 %v2460, %v2572
    %v2574 = vmul.f32 %v2462, %v2572
    %v2575 = vadd.f32 %v2433, %v2573
    %v2576 = vadd.f32 %v2434, %v2574
    %v2577 = vlaneseq
    %v2578 = vshrl.u32 %v2577, 7
    %v2579 = vsub.s32 4, %v2578
    %v2580 = vrot.slane %v1797, %v2579
    %v2581 = vmul.f32 %v2460, %v2580
    %v2582 = vmul.f32 %v2462, %v2580
    %v2583 = vadd.f32 %v2441, %v2581
    %v2584 = vadd.f32 %v2442, %v2582
    %v2585 = vlaneseq
    %v2586 = vshrl.u32 %v2585, 7
    %v2587 = vsub.s32 4, %v2586
    %v2588 = vrot.slane %v1895, %v2587
    %v2589 = vmul.f32 %v2460, %v2588
    %v2590 = vmul.f32 %v2462, %v2588
    %v2591 = vadd.f32 %v2449, %v2589
    %v2592 = vadd.f32 %v2450, %v2590
    %v2593 = vlaneseq
    %v2594 = vshrl.u32 %v2593, 7
    %v2595 = vsub.s32 5, %v2594
    %v2596 = vrot.slane %v327, %v2595
    %v2597 = vmul.f32 %v321, %v2596
    %v2598 = vmul.f32 %v322, %v2596
    %v2599 = vsub.f32 %v2597, %v1915
    %v2600 = vsub.f32 %v2598, %v1916
    %v2601 = vmul.f32 %v2599, 1.442695
    %v2602 = vpow.pop %v2601
    %v2603 = vmul.f32 %v2600, 1.442695
    %v2604 = vpow.pop %v2603
    %v2605 = vadd.f32 %v2463, %v2602
    %v2606 = vadd.f32 %v2464, %v2604
    %v2607 = vlaneseq
    %v2608 = vshrl.u32 %v2607, 7
    %v2609 = vsub.s32 5, %v2608
    %v2610 = vrot.slane %v425, %v2609
    %v2611 = vmul.f32 %v2602, %v2610
    %v2612 = vmul.f32 %v2604, %v2610
    %v2613 = vadd.f32 %v2471, %v2611
    %v2614 = vadd.f32 %v2472, %v2612
    %v2615 = vlaneseq
    %v2616 = vshrl.u32 %v2615, 7
    %v2617 = vsub.s32 5, %v2616
    %v2618 = vrot.slane %v523, %v2617
    %v2619 = vmul.f32 %v2602, %v2618
    %v2620 = vmul.f32 %v2604, %v2618
    %v2621 = vadd.f32 %v2479, %v2619
    %v2622 = vadd.f32 %v2480, %v2620
    %v2623 = vlaneseq
    %v2624 = vshrl.u32 %v2623, 7
    %v2625 = vsub.s32 5, %v2624
    %v2626 = vrot.slane %v621, %v2625
    %v2627 = vmul.f32 %v2602, %v2626
    %v2628 = vmul.f32 %v2604, %v2626
    %v2629 = vadd.f32 %v2487, %v2627
    %v2630 = vadd.f32 %v2488, %v2628
    %v2631 = vlaneseq
    %v2632 = vshrl.u32 %v2631, 7
    %v2633 = vsub.s32 5, %v2632
    %v2634 = vrot.slane %v719, %v2633
    %v2635 = vmul.f32 %v2602, %v2634
    %v2636 = vmul.f32 %v2604, %v2634
    %v2637 = vadd.f32 %v2495, %v2635
    %v2638 = vadd.f32 %v2496, %v2636
    %v2639 = vlaneseq
    %v2640 = vshrl.u32 %v2639, 7
    %v2641 = vsub.s32 5, %v2640
    %v2642 = vrot.slane %v817, %v2641
    %v2643 = vmul.f32 %v2602, %v2642
    %v2644 = vmul.f32 %v2604, %v2642
    %v2645 = vadd.f32 %v2503, %v2643
    %v2646 = vadd.f32 %v2504, %v2644
    %v2647 = vlaneseq
    %v2648 = vshrl.u32 %v2647, 7
    %v2649 = vsub.s32 5, %v2648
    %v2650 = vrot.slane %v915, %v2649
    %v2651 = vmul.f32 %v2602, %v2650
    %v2652 = vmul.f32 %v2604, %v2650
    %v2653 = vadd.f32 %v2511, %v2651
    %v2654 = vadd.f32 %v2512, %v2652
    %v2655 = vlaneseq
    %v2656 = vshrl.u32 %v2655, 7
    %v2657 = vsub.s32 5, %v2656
    %v2658 = vrot.slane %v1013, %v2657
    %v2659 = vmul.f32 %v2602, %v2658
    %v2660 = vmul.f32 %v2604, %v2658
    %v2661 = vadd.f32 %v2519, %v2659
    %v2662 = vadd.f32 %v2520, %v2660
    %v2663 = vlaneseq
    %v2664 = vshrl.u32 %v2663, 7
    %v2665 = vsub.s32 5, %v2664
    %v2666 = vrot.slane %v1111, %v2665
    %v2667 = vmul.f32 %v2602, %v2666
    %v2668 = vmul.f32 %v2604, %v2666
    %v2669 = vadd.f32 %v2527, %v2667
    %v2670 = vadd.f32 %v2528, %v2668
    %v2671 = vlaneseq
    %v2672 = vshrl.u32 %v2671, 7
    %v2673 = vsub.s32 5, %v2672
    %v2674 = vrot.slane %v1209, %v2673
    %v2675 = vmul.f32 %v2602, %v2674
    %v2676 = vmul.f32 %v2604, %v2674
    %v2677 = vadd.f32 %v2535, %v2675
    %v2678 = vadd.f32 %v2536, %v2676
    %v2679 = vlaneseq
    %v2680 = vshrl.u32 %v2679, 7
    %v2681 = vsub.s32 5, %v2680
    %v2682 = vrot.slane %v1307, %v2681
    %v2683 = vmul.f32 %v2602, %v2682
    %v2684 = vmul.f32 %v2604, %v2682
    %v2685 = vadd.f32 %v2543, %v2683
    %v2686 = vadd.f32 %v2544, %v2684
    %v2687 = vlaneseq
    %v2688 = vshrl.u32 %v2687, 7
    %v2689 = vsub.s32 5, %v2688
    %v2690 = vrot.slane %v1405, %v2689
    %v2691 = vmul.f32 %v2602, %v2690
    %v2692 = vmul.f32 %v2604, %v2690
    %v2693 = vadd.f32 %v2551, %v2691
    %v2694 = vadd.f32 %v2552, %v2692
    %v2695 = vlaneseq
    %v2696 = vshrl.u32 %v2695, 7
    %v2697 = vsub.s32 5, %v2696
    %v2698 = vrot.slane %v1503, %v2697
    %v2699 = vmul.f32 %v2602, %v2698
    %v2700 = vmul.f32 %v2604, %v2698
    %v2701 = vadd.f32 %v2559, %v2699
    %v2702 = vadd.f32 %v2560, %v2700
    %v2703 = vlaneseq
    %v2704 = vshrl.u32 %v2703, 7
    %v2705 = vsub.s32 5, %v2704
    %v2706 = vrot.slane %v1601, %v2705
    %v2707 = vmul.f32 %v2602, %v2706
    %v2708 = vmul.f32 %v2604, %v2706
    %v2709 = vadd.f32 %v2567, %v2707
    %v2710 = vadd.f32 %v2568, %v2708
    %v2711 = vlaneseq
    %v2712 = vshrl.u32 %v2711, 7
    %v2713 = vsub.s32 5, %v2712
    %v2714 = vrot.slane %v1699, %v2713
    %v2715 = vmul.f32 %v2602, %v2714
    %v2716 = vmul.f32 %v2604, %v2714
    %v2717 = vadd.f32 %v2575, %v2715
    %v2718 = vadd.f32 %v2576, %v2716
    %v2719 = vlaneseq
    %v2720 = vshrl.u32 %v2719, 7
    %v2721 = vsub.s32 5, %v2720
    %v2722 = vrot.slane %v1797, %v2721
    %v2723 = vmul.f32 %v2602, %v2722
    %v2724 = vmul.f32 %v2604, %v2722
    %v2725 = vadd.f32 %v2583, %v2723
    %v2726 = vadd.f32 %v2584, %v2724
    %v2727 = vlaneseq
    %v2728 = vshrl.u32 %v2727, 7
    %v2729 = vsub.s32 5, %v2728
    %v2730 = vrot.slane %v1895, %v2729
    %v2731 = vmul.f32 %v2602, %v2730
    %v2732 = vmul.f32 %v2604, %v2730
    %v2733 = vadd.f32 %v2591, %v2731
    %v2734 = vadd.f32 %v2592, %v2732
    %v2735 = vlaneseq
    %v2736 = vshrl.u32 %v2735, 7
    %v2737 = vsub.s32 6, %v2736
    %v2738 = vrot.slane %v327, %v2737
    %v2739 = vmul.f32 %v321, %v2738
    %v2740 = vmul.f32 %v322, %v2738
    %v2741 = vsub.f32 %v2739, %v1915
    %v2742 = vsub.f32 %v2740, %v1916
    %v2743 = vmul.f32 %v2741, 1.442695
    %v2744 = vpow.pop %v2743
    %v2745 = vmul.f32 %v2742, 1.442695
    %v2746 = vpow.pop %v2745
    %v2747 = vadd.f32 %v2605, %v2744
    %v2748 = vadd.f32 %v2606, %v2746
    %v2749 = vlaneseq
    %v2750 = vshrl.u32 %v2749, 7
    %v2751 = vsub.s32 6, %v2750
    %v2752 = vrot.slane %v425, %v2751
    %v2753 = vmul.f32 %v2744, %v2752
    %v2754 = vmul.f32 %v2746, %v2752
    %v2755 = vadd.f32 %v2613, %v2753
    %v2756 = vadd.f32 %v2614, %v2754
    %v2757 = vlaneseq
    %v2758 = vshrl.u32 %v2757, 7
    %v2759 = vsub.s32 6, %v2758
    %v2760 = vrot.slane %v523, %v2759
    %v2761 = vmul.f32 %v2744, %v2760
    %v2762 = vmul.f32 %v2746, %v2760
    %v2763 = vadd.f32 %v2621, %v2761
    %v2764 = vadd.f32 %v2622, %v2762
    %v2765 = vlaneseq
    %v2766 = vshrl.u32 %v2765, 7
    %v2767 = vsub.s32 6, %v2766
    %v2768 = vrot.slane %v621, %v2767
    %v2769 = vmul.f32 %v2744, %v2768
    %v2770 = vmul.f32 %v2746, %v2768
    %v2771 = vadd.f32 %v2629, %v2769
    %v2772 = vadd.f32 %v2630, %v2770
    %v2773 = vlaneseq
    %v2774 = vshrl.u32 %v2773, 7
    %v2775 = vsub.s32 6, %v2774
    %v2776 = vrot.slane %v719, %v2775
    %v2777 = vmul.f32 %v2744, %v2776
    %v2778 = vmul.f32 %v2746, %v2776
    %v2779 = vadd.f32 %v2637, %v2777
    %v2780 = vadd.f32 %v2638, %v2778
    %v2781 = vlaneseq
    %v2782 = vshrl.u32 %v2781, 7
    %v2783 = vsub.s32 6, %v2782
    %v2784 = vrot.slane %v817, %v2783
    %v2785 = vmul.f32 %v2744, %v2784
    %v2786 = vmul.f32 %v2746, %v2784
    %v2787 = vadd.f32 %v2645, %v2785
    %v2788 = vadd.f32 %v2646, %v2786
    %v2789 = vlaneseq
    %v2790 = vshrl.u32 %v2789, 7
    %v2791 = vsub.s32 6, %v2790
    %v2792 = vrot.slane %v915, %v2791
    %v2793 = vmul.f32 %v2744, %v2792
    %v2794 = vmul.f32 %v2746, %v2792
    %v2795 = vadd.f32 %v2653, %v2793
    %v2796 = vadd.f32 %v2654, %v2794
    %v2797 = vlaneseq
    %v2798 = vshrl.u32 %v2797, 7
    %v2799 = vsub.s32 6, %v2798
    %v2800 = vrot.slane %v1013, %v2799
    %v2801 = vmul.f32 %v2744, %v2800
    %v2802 = vmul.f32 %v2746, %v2800
    %v2803 = vadd.f32 %v2661, %v2801
    %v2804 = vadd.f32 %v2662, %v2802
    %v2805 = vlaneseq
    %v2806 = vshrl.u32 %v2805, 7
    %v2807 = vsub.s32 6, %v2806
    %v2808 = vrot.slane %v1111, %v2807
    %v2809 = vmul.f32 %v2744, %v2808
    %v2810 = vmul.f32 %v2746, %v2808
    %v2811 = vadd.f32 %v2669, %v2809
    %v2812 = vadd.f32 %v2670, %v2810
    %v2813 = vlaneseq
    %v2814 = vshrl.u32 %v2813, 7
    %v2815 = vsub.s32 6, %v2814
    %v2816 = vrot.slane %v1209, %v2815
    %v2817 = vmul.f32 %v2744, %v2816
    %v2818 = vmul.f32 %v2746, %v2816
    %v2819 = vadd.f32 %v2677, %v2817
    %v2820 = vadd.f32 %v2678, %v2818
    %v2821 = vlaneseq
    %v2822 = vshrl.u32 %v2821, 7
    %v2823 = vsub.s32 6, %v2822
    %v2824 = vrot.slane %v1307, %v2823
    %v2825 = vmul.f32 %v2744, %v2824
    %v2826 = vmul.f32 %v2746, %v2824
    %v2827 = vadd.f32 %v2685, %v2825
    %v2828 = vadd.f32 %v2686, %v2826
    %v2829 = vlaneseq
    %v2830 = vshrl.u32 %v2829, 7
    %v2831 = vsub.s32 6, %v2830
    %v2832 = vrot.slane %v1405, %v2831
    %v2833 = vmul.f32 %v2744, %v2832
    %v2834 = vmul.f32 %v2746, %v2832
    %v2835 = vadd.f32 %v2693, %v2833
    %v2836 = vadd.f32 %v2694, %v2834
    %v2837 = vlaneseq
    %v2838 = vshrl.u32 %v2837, 7
    %v2839 = vsub.s32 6, %v2838
    %v2840 = vrot.slane %v1503, %v2839
    %v2841 = vmul.f32 %v2744, %v2840
    %v2842 = vmul.f32 %v2746, %v2840
    %v2843 = vadd.f32 %v2701, %v2841
    %v2844 = vadd.f32 %v2702, %v2842
    %v2845 = vlaneseq
    %v2846 = vshrl.u32 %v2845, 7
    %v2847 = vsub.s32 6, %v2846
    %v2848 = vrot.slane %v1601, %v2847
    %v2849 = vmul.f32 %v2744, %v2848
    %v2850 = vmul.f32 %v2746, %v2848
    %v2851 = vadd.f32 %v2709, %v2849
    %v2852 = vadd.f32 %v2710, %v2850
    %v2853 = vlaneseq
    %v2854 = vshrl.u32 %v2853, 7
    %v2855 = vsub.s32 6, %v2854
    %v2856 = vrot.slane %v1699, %v2855
    %v2857 = vmul.f32 %v2744, %v2856
    %v2858 = vmul.f32 %v2746, %v2856
    %v2859 = vadd.f32 %v2717, %v2857
    %v2860 = vadd.f32 %v2718, %v2858
    %v2861 = vlaneseq
    %v2862 = vshrl.u32 %v2861, 7
    %v2863 = vsub.s32 6, %v2862
    %v2864 = vrot.slane %v1797, %v2863
    %v2865 = vmul.f32 %v2744, %v2864
    %v2866 = vmul.f32 %v2746, %v2864
    %v2867 = vadd.f32 %v2725, %v2865
    %v2868 = vadd.f32 %v2726, %v2866
    %v2869 = vlaneseq
    %v2870 = vshrl.u32 %v2869, 7
    %v2871 = vsub.s32 6, %v2870
    %v2872 = vrot.slane %v1895, %v2871
    %v2873 = vmul.f32 %v2744, %v2872
    %v2874 = vmul.f32 %v2746, %v2872
    %v2875 = vadd.f32 %v2733, %v2873
    %v2876 = vadd.f32 %v2734, %v2874
    %v2877 = vlaneseq
    %v2878 = vshrl.u32 %v2877, 7
    %v2879 = vsub.s32 7, %v2878
    %v2880 = vrot.slane %v327, %v2879
    %v2881 = vmul.f32 %v321, %v2880
    %v2882 = vmul.f32 %v322, %v2880
    %v2883 = vsub.f32 %v2881, %v1915
    %v2884 = vsub.f32 %v2882, %v1916
    %v2885 = vmul.f32 %v2883, 1.442695
    %v2886 = vpow.pop %v2885
    %v2887 = vmul.f32 %v2884, 1.442695
    %v2888 = vpow.pop %v2887
    %v2889 = vadd.f32 %v2747, %v2886
    %v2890 = vadd.f32 %v2748, %v2888
    %v2891 = vlaneseq
    %v2892 = vshrl.u32 %v2891, 7
    %v2893 = vsub.s32 7, %v2892
    %v2894 = vrot.slane %v425, %v2893
    %v2895 = vmul.f32 %v2886, %v2894
    %v2896 = vmul.f32 %v2888, %v2894
    %v2897 = vadd.f32 %v2755, %v2895
    %v2898 = vadd.f32 %v2756, %v2896
    %v2899 = vlaneseq
    %v2900 = vshrl.u32 %v2899, 7
    %v2901 = vsub.s32 7, %v2900
    %v2902 = vrot.slane %v523, %v2901
    %v2903 = vmul.f32 %v2886, %v2902
    %v2904 = vmul.f32 %v2888, %v2902
    %v2905 = vadd.f32 %v2763, %v2903
    %v2906 = vadd.f32 %v2764, %v2904
    %v2907 = vlaneseq
    %v2908 = vshrl.u32 %v2907, 7
    %v2909 = vsub.s32 7, %v2908
    %v2910 = vrot.slane %v621, %v2909
    %v2911 = vmul.f32 %v2886, %v2910
    %v2912 = vmul.f32 %v2888, %v2910
    %v2913 = vadd.f32 %v2771, %v2911
    %v2914 = vadd.f32 %v2772, %v2912
    %v2915 = vlaneseq
    %v2916 = vshrl.u32 %v2915, 7
    %v2917 = vsub.s32 7, %v2916
    %v2918 = vrot.slane %v719, %v2917
    %v2919 = vmul.f32 %v2886, %v2918
    %v2920 = vmul.f32 %v2888, %v2918
    %v2921 = vadd.f32 %v2779, %v2919
    %v2922 = vadd.f32 %v2780, %v2920
    %v2923 = vlaneseq
    %v2924 = vshrl.u32 %v2923, 7
    %v2925 = vsub.s32 7, %v2924
    %v2926 = vrot.slane %v817, %v2925
    %v2927 = vmul.f32 %v2886, %v2926
    %v2928 = vmul.f32 %v2888, %v2926
    %v2929 = vadd.f32 %v2787, %v2927
    %v2930 = vadd.f32 %v2788, %v2928
    %v2931 = vlaneseq
    %v2932 = vshrl.u32 %v2931, 7
    %v2933 = vsub.s32 7, %v2932
    %v2934 = vrot.slane %v915, %v2933
    %v2935 = vmul.f32 %v2886, %v2934
    %v2936 = vmul.f32 %v2888, %v2934
    %v2937 = vadd.f32 %v2795, %v2935
    %v2938 = vadd.f32 %v2796, %v2936
    %v2939 = vlaneseq
    %v2940 = vshrl.u32 %v2939, 7
    %v2941 = vsub.s32 7, %v2940
    %v2942 = vrot.slane %v1013, %v2941
    %v2943 = vmul.f32 %v2886, %v2942
    %v2944 = vmul.f32 %v2888, %v2942
    %v2945 = vadd.f32 %v2803, %v2943
    %v2946 = vadd.f32 %v2804, %v2944
    %v2947 = vlaneseq
    %v2948 = vshrl.u32 %v2947, 7
    %v2949 = vsub.s32 7, %v2948
    %v2950 = vrot.slane %v1111, %v2949
    %v2951 = vmul.f32 %v2886, %v2950
    %v2952 = vmul.f32 %v2888, %v2950
    %v2953 = vadd.f32 %v2811, %v2951
    %v2954 = vadd.f32 %v2812, %v2952
    %v2955 = vlaneseq
    %v2956 = vshrl.u32 %v2955, 7
    %v2957 = vsub.s32 7, %v2956
    %v2958 = vrot.slane %v1209, %v2957
    %v2959 = vmul.f32 %v2886, %v2958
    %v2960 = vmul.f32 %v2888, %v2958
    %v2961 = vadd.f32 %v2819, %v2959
    %v2962 = vadd.f32 %v2820, %v2960
    %v2963 = vlaneseq
    %v2964 = vshrl.u32 %v2963, 7
    %v2965 = vsub.s32 7, %v2964
    %v2966 = vrot.slane %v1307, %v2965
    %v2967 = vmul.f32 %v2886, %v2966
    %v2968 = vmul.f32 %v2888, %v2966
    %v2969 = vadd.f32 %v2827, %v2967
    %v2970 = vadd.f32 %v2828, %v2968
    %v2971 = vlaneseq
    %v2972 = vshrl.u32 %v2971, 7
    %v2973 = vsub.s32 7, %v2972
    %v2974 = vrot.slane %v1405, %v2973
    %v2975 = vmul.f32 %v2886, %v2974
    %v2976 = vmul.f32 %v2888, %v2974
    %v2977 = vadd.f32 %v2835, %v2975
    %v2978 = vadd.f32 %v2836, %v2976
    %v2979 = vlaneseq
    %v2980 = vshrl.u32 %v2979, 7
    %v2981 = vsub.s32 7, %v2980
    %v2982 = vrot.slane %v1503, %v2981
    %v2983 = vmul.f32 %v2886, %v2982
    %v2984 = vmul.f32 %v2888, %v2982
    %v2985 = vadd.f32 %v2843, %v2983
    %v2986 = vadd.f32 %v2844, %v2984
    %v2987 = vlaneseq
    %v2988 = vshrl.u32 %v2987, 7
    %v2989 = vsub.s32 7, %v2988
    %v2990 = vrot.slane %v1601, %v2989
    %v2991 = vmul.f32 %v2886, %v2990
    %v2992 = vmul.f32 %v2888, %v2990
    %v2993 = vadd.f32 %v2851, %v2991
    %v2994 = vadd.f32 %v2852, %v2992
    %v2995 = vlaneseq
    %v2996 = vshrl.u32 %v2995, 7
    %v2997 = vsub.s32 7, %v2996
    %v2998 = vrot.slane %v1699, %v2997
    %v2999 = vmul.f32 %v2886, %v2998
    %v3000 = vmul.f32 %v2888, %v2998
    %v3001 = vadd.f32 %v2859, %v2999
    %v3002 = vadd.f32 %v2860, %v3000
    %v3003 = vlaneseq
    %v3004 = vshrl.u32 %v3003, 7
    %v3005 = vsub.s32 7, %v3004
    %v3006 = vrot.slane %v1797, %v3005
    %v3007 = vmul.f32 %v2886, %v3006
    %v3008 = vmul.f32 %v2888, %v3006
    %v3009 = vadd.f32 %v2867, %v3007
    %v3010 = vadd.f32 %v2868, %v3008
    %v3011 = vlaneseq
    %v3012 = vshrl.u32 %v3011, 7
    %v3013 = vsub.s32 7, %v3012
    %v3014 = vrot.slane %v1895, %v3013
    %v3015 = vmul.f32 %v2886, %v3014
    %v3016 = vmul.f32 %v2888, %v3014
    %v3017 = vadd.f32 %v2875, %v3015
    %v3018 = vadd.f32 %v2876, %v3016
    %v3019 = vlaneseq
    %v3020 = vshrl.u32 %v3019, 7
    %v3021 = vsub.s32 0, %v3020
    %v3022 = vrot.slane %v328, %v3021
    %v3023 = vmul.f32 %v321, %v3022
    %v3024 = vmul.f32 %v322, %v3022
    %v3025 = vsub.f32 %v3023, %v1915
    %v3026 = vsub.f32 %v3024, %v1916
    %v3027 = vmul.f32 %v3025, 1.442695
    %v3028 = vpow.pop %v3027
    %v3029 = vmul.f32 %v3026, 1.442695
    %v3030 = vpow.pop %v3029
    %v3031 = vadd.f32 %v2889, %v3028
    %v3032 = vadd.f32 %v2890, %v3030
    %v3033 = vlaneseq
    %v3034 = vshrl.u32 %v3033, 7
    %v3035 = vsub.s32 0, %v3034
    %v3036 = vrot.slane %v426, %v3035
    %v3037 = vmul.f32 %v3028, %v3036
    %v3038 = vmul.f32 %v3030, %v3036
    %v3039 = vadd.f32 %v2897, %v3037
    %v3040 = vadd.f32 %v2898, %v3038
    %v3041 = vlaneseq
    %v3042 = vshrl.u32 %v3041, 7
    %v3043 = vsub.s32 0, %v3042
    %v3044 = vrot.slane %v524, %v3043
    %v3045 = vmul.f32 %v3028, %v3044
    %v3046 = vmul.f32 %v3030, %v3044
    %v3047 = vadd.f32 %v2905, %v3045
    %v3048 = vadd.f32 %v2906, %v3046
    %v3049 = vlaneseq
    %v3050 = vshrl.u32 %v3049, 7
    %v3051 = vsub.s32 0, %v3050
    %v3052 = vrot.slane %v622, %v3051
    %v3053 = vmul.f32 %v3028, %v3052
    %v3054 = vmul.f32 %v3030, %v3052
    %v3055 = vadd.f32 %v2913, %v3053
    %v3056 = vadd.f32 %v2914, %v3054
    %v3057 = vlaneseq
    %v3058 = vshrl.u32 %v3057, 7
    %v3059 = vsub.s32 0, %v3058
    %v3060 = vrot.slane %v720, %v3059
    %v3061 = vmul.f32 %v3028, %v3060
    %v3062 = vmul.f32 %v3030, %v3060
    %v3063 = vadd.f32 %v2921, %v3061
    %v3064 = vadd.f32 %v2922, %v3062
    %v3065 = vlaneseq
    %v3066 = vshrl.u32 %v3065, 7
    %v3067 = vsub.s32 0, %v3066
    %v3068 = vrot.slane %v818, %v3067
    %v3069 = vmul.f32 %v3028, %v3068
    %v3070 = vmul.f32 %v3030, %v3068
    %v3071 = vadd.f32 %v2929, %v3069
    %v3072 = vadd.f32 %v2930, %v3070
    %v3073 = vlaneseq
    %v3074 = vshrl.u32 %v3073, 7
    %v3075 = vsub.s32 0, %v3074
    %v3076 = vrot.slane %v916, %v3075
    %v3077 = vmul.f32 %v3028, %v3076
    %v3078 = vmul.f32 %v3030, %v3076
    %v3079 = vadd.f32 %v2937, %v3077
    %v3080 = vadd.f32 %v2938, %v3078
    %v3081 = vlaneseq
    %v3082 = vshrl.u32 %v3081, 7
    %v3083 = vsub.s32 0, %v3082
    %v3084 = vrot.slane %v1014, %v3083
    %v3085 = vmul.f32 %v3028, %v3084
    %v3086 = vmul.f32 %v3030, %v3084
    %v3087 = vadd.f32 %v2945, %v3085
    %v3088 = vadd.f32 %v2946, %v3086
    %v3089 = vlaneseq
    %v3090 = vshrl.u32 %v3089, 7
    %v3091 = vsub.s32 0, %v3090
    %v3092 = vrot.slane %v1112, %v3091
    %v3093 = vmul.f32 %v3028, %v3092
    %v3094 = vmul.f32 %v3030, %v3092
    %v3095 = vadd.f32 %v2953, %v3093
    %v3096 = vadd.f32 %v2954, %v3094
    %v3097 = vlaneseq
    %v3098 = vshrl.u32 %v3097, 7
    %v3099 = vsub.s32 0, %v3098
    %v3100 = vrot.slane %v1210, %v3099
    %v3101 = vmul.f32 %v3028, %v3100
    %v3102 = vmul.f32 %v3030, %v3100
    %v3103 = vadd.f32 %v2961, %v3101
    %v3104 = vadd.f32 %v2962, %v3102
    %v3105 = vlaneseq
    %v3106 = vshrl.u32 %v3105, 7
    %v3107 = vsub.s32 0, %v3106
    %v3108 = vrot.slane %v1308, %v3107
    %v3109 = vmul.f32 %v3028, %v3108
    %v3110 = vmul.f32 %v3030, %v3108
    %v3111 = vadd.f32 %v2969, %v3109
    %v3112 = vadd.f32 %v2970, %v3110
    %v3113 = vlaneseq
    %v3114 = vshrl.u32 %v3113, 7
    %v3115 = vsub.s32 0, %v3114
    %v3116 = vrot.slane %v1406, %v3115
    %v3117 = vmul.f32 %v3028, %v3116
    %v3118 = vmul.f32 %v3030, %v3116
    %v3119 = vadd.f32 %v2977, %v3117
    %v3120 = vadd.f32 %v2978, %v3118
    %v3121 = vlaneseq
    %v3122 = vshrl.u32 %v3121, 7
    %v3123 = vsub.s32 0, %v3122
    %v3124 = vrot.slane %v1504, %v3123
    %v3125 = vmul.f32 %v3028, %v3124
    %v3126 = vmul.f32 %v3030, %v3124
    %v3127 = vadd.f32 %v2985, %v3125
    %v3128 = vadd.f32 %v2986, %v3126
    %v3129 = vlaneseq
    %v3130 = vshrl.u32 %v3129, 7
    %v3131 = vsub.s32 0, %v3130
    %v3132 = vrot.slane %v1602, %v3131
    %v3133 = vmul.f32 %v3028, %v3132
    %v3134 = vmul.f32 %v3030, %v3132
    %v3135 = vadd.f32 %v2993, %v3133
    %v3136 = vadd.f32 %v2994, %v3134
    %v3137 = vlaneseq
    %v3138 = vshrl.u32 %v3137, 7
    %v3139 = vsub.s32 0, %v3138
    %v3140 = vrot.slane %v1700, %v3139
    %v3141 = vmul.f32 %v3028, %v3140
    %v3142 = vmul.f32 %v3030, %v3140
    %v3143 = vadd.f32 %v3001, %v3141
    %v3144 = vadd.f32 %v3002, %v3142
    %v3145 = vlaneseq
    %v3146 = vshrl.u32 %v3145, 7
    %v3147 = vsub.s32 0, %v3146
    %v3148 = vrot.slane %v1798, %v3147
    %v3149 = vmul.f32 %v3028, %v3148
    %v3150 = vmul.f32 %v3030, %v3148
    %v3151 = vadd.f32 %v3009, %v3149
    %v3152 = vadd.f32 %v3010, %v3150
    %v3153 = vlaneseq
    %v3154 = vshrl.u32 %v3153, 7
    %v3155 = vsub.s32 0, %v3154
    %v3156 = vrot.slane %v1896, %v3155
    %v3157 = vmul.f32 %v3028, %v3156
    %v3158 = vmul.f32 %v3030, %v3156
    %v3159 = vadd.f32 %v3017, %v3157
    %v3160 = vadd.f32 %v3018, %v3158
    %v3161 = vlaneseq
    %v3162 = vshrl.u32 %v3161, 7
    %v3163 = vsub.s32 1, %v3162
    %v3164 = vrot.slane %v328, %v3163
    %v3165 = vmul.f32 %v321, %v3164
    %v3166 = vmul.f32 %v322, %v3164
    %v3167 = vsub.f32 %v3165, %v1915
    %v3168 = vsub.f32 %v3166, %v1916
    %v3169 = vmul.f32 %v3167, 1.442695
    %v3170 = vpow.pop %v3169
    %v3171 = vmul.f32 %v3168, 1.442695
    %v3172 = vpow.pop %v3171
    %v3173 = vadd.f32 %v3031, %v3170
    %v3174 = vadd.f32 %v3032, %v3172
    %v3175 = vlaneseq
    %v3176 = vshrl.u32 %v3175, 7
    %v3177 = vsub.s32 1, %v3176
    %v3178 = vrot.slane %v426, %v3177
    %v3179 = vmul.f32 %v3170, %v3178
    %v3180 = vmul.f32 %v3172, %v3178
    %v3181 = vadd.f32 %v3039, %v3179
    %v3182 = vadd.f32 %v3040, %v3180
    %v3183 = vlaneseq
    %v3184 = vshrl.u32 %v3183, 7
    %v3185 = vsub.s32 1, %v3184
    %v3186 = vrot.slane %v524, %v3185
    %v3187 = vmul.f32 %v3170, %v3186
    %v3188 = vmul.f32 %v3172, %v3186
    %v3189 = vadd.f32 %v3047, %v3187
    %v3190 = vadd.f32 %v3048, %v3188
    %v3191 = vlaneseq
    %v3192 = vshrl.u32 %v3191, 7
    %v3193 = vsub.s32 1, %v3192
    %v3194 = vrot.slane %v622, %v3193
    %v3195 = vmul.f32 %v3170, %v3194
    %v3196 = vmul.f32 %v3172, %v3194
    %v3197 = vadd.f32 %v3055, %v3195
    %v3198 = vadd.f32 %v3056, %v3196
    %v3199 = vlaneseq
    %v3200 = vshrl.u32 %v3199, 7
    %v3201 = vsub.s32 1, %v3200
    %v3202 = vrot.slane %v720, %v3201
    %v3203 = vmul.f32 %v3170, %v3202
    %v3204 = vmul.f32 %v3172, %v3202
    %v3205 = vadd.f32 %v3063, %v3203
    %v3206 = vadd.f32 %v3064, %v3204
    %v3207 = vlaneseq
    %v3208 = vshrl.u32 %v3207, 7
    %v3209 = vsub.s32 1, %v3208
    %v3210 = vrot.slane %v818, %v3209
    %v3211 = vmul.f32 %v3170, %v3210
    %v3212 = vmul.f32 %v3172, %v3210
    %v3213 = vadd.f32 %v3071, %v3211
    %v3214 = vadd.f32 %v3072, %v3212
    %v3215 = vlaneseq
    %v3216 = vshrl.u32 %v3215, 7
    %v3217 = vsub.s32 1, %v3216
    %v3218 = vrot.slane %v916, %v3217
    %v3219 = vmul.f32 %v3170, %v3218
    %v3220 = vmul.f32 %v3172, %v3218
    %v3221 = vadd.f32 %v3079, %v3219
    %v3222 = vadd.f32 %v3080, %v3220
    %v3223 = vlaneseq
    %v3224 = vshrl.u32 %v3223, 7
    %v3225 = vsub.s32 1, %v3224
    %v3226 = vrot.slane %v1014, %v3225
    %v3227 = vmul.f32 %v3170, %v3226
    %v3228 = vmul.f32 %v3172, %v3226
    %v3229 = vadd.f32 %v3087, %v3227
    %v3230 = vadd.f32 %v3088, %v3228
    %v3231 = vlaneseq
    %v3232 = vshrl.u32 %v3231, 7
    %v3233 = vsub.s32 1, %v3232
    %v3234 = vrot.slane %v1112, %v3233
    %v3235 = vmul.f32 %v3170, %v3234
    %v3236 = vmul.f32 %v3172, %v3234
    %v3237 = vadd.f32 %v3095, %v3235
    %v3238 = vadd.f32 %v3096, %v3236
    %v3239 = vlaneseq
    %v3240 = vshrl.u32 %v3239, 7
    %v3241 = vsub.s32 1, %v3240
    %v3242 = vrot.slane %v1210, %v3241
    %v3243 = vmul.f32 %v3170, %v3242
    %v3244 = vmul.f32 %v3172, %v3242
    %v3245 = vadd.f32 %v3103, %v3243
    %v3246 = vadd.f32 %v3104, %v3244
    %v3247 = vlaneseq
    %v3248 = vshrl.u32 %v3247, 7
    %v3249 = vsub.s32 1, %v3248
    %v3250 = vrot.slane %v1308, %v3249
    %v3251 = vmul.f32 %v3170, %v3250
    %v3252 = vmul.f32 %v3172, %v3250
    %v3253 = vadd.f32 %v3111, %v3251
    %v3254 = vadd.f32 %v3112, %v3252
    %v3255 = vlaneseq
    %v3256 = vshrl.u32 %v3255, 7
    %v3257 = vsub.s32 1, %v3256
    %v3258 = vrot.slane %v1406, %v3257
    %v3259 = vmul.f32 %v3170, %v3258
    %v3260 = vmul.f32 %v3172, %v3258
    %v3261 = vadd.f32 %v3119, %v3259
    %v3262 = vadd.f32 %v3120, %v3260
    %v3263 = vlaneseq
    %v3264 = vshrl.u32 %v3263, 7
    %v3265 = vsub.s32 1, %v3264
    %v3266 = vrot.slane %v1504, %v3265
    %v3267 = vmul.f32 %v3170, %v3266
    %v3268 = vmul.f32 %v3172, %v3266
    %v3269 = vadd.f32 %v3127, %v3267
    %v3270 = vadd.f32 %v3128, %v3268
    %v3271 = vlaneseq
    %v3272 = vshrl.u32 %v3271, 7
    %v3273 = vsub.s32 1, %v3272
    %v3274 = vrot.slane %v1602, %v3273
    %v3275 = vmul.f32 %v3170, %v3274
    %v3276 = vmul.f32 %v3172, %v3274
    %v3277 = vadd.f32 %v3135, %v3275
    %v3278 = vadd.f32 %v3136, %v3276
    %v3279 = vlaneseq
    %v3280 = vshrl.u32 %v3279, 7
    %v3281 = vsub.s32 1, %v3280
    %v3282 = vrot.slane %v1700, %v3281
    %v3283 = vmul.f32 %v3170, %v3282
    %v3284 = vmul.f32 %v3172, %v3282
    %v3285 = vadd.f32 %v3143, %v3283
    %v3286 = vadd.f32 %v3144, %v3284
    %v3287 = vlaneseq
    %v3288 = vshrl.u32 %v3287, 7
    %v3289 = vsub.s32 1, %v3288
    %v3290 = vrot.slane %v1798, %v3289
    %v3291 = vmul.f32 %v3170, %v3290
    %v3292 = vmul.f32 %v3172, %v3290
    %v3293 = vadd.f32 %v3151, %v3291
    %v3294 = vadd.f32 %v3152, %v3292
    %v3295 = vlaneseq
    %v3296 = vshrl.u32 %v3295, 7
    %v3297 = vsub.s32 1, %v3296
    %v3298 = vrot.slane %v1896, %v3297
    %v3299 = vmul.f32 %v3170, %v3298
    %v3300 = vmul.f32 %v3172, %v3298
    %v3301 = vadd.f32 %v3159, %v3299
    %v3302 = vadd.f32 %v3160, %v3300
    %v3303 = vlaneseq
    %v3304 = vshrl.u32 %v3303, 7
    %v3305 = vsub.s32 2, %v3304
    %v3306 = vrot.slane %v328, %v3305
    %v3307 = vmul.f32 %v321, %v3306
    %v3308 = vmul.f32 %v322, %v3306
    %v3309 = vsub.f32 %v3307, %v1915
    %v3310 = vsub.f32 %v3308, %v1916
    %v3311 = vmul.f32 %v3309, 1.442695
    %v3312 = vpow.pop %v3311
    %v3313 = vmul.f32 %v3310, 1.442695
    %v3314 = vpow.pop %v3313
    %v3315 = vadd.f32 %v3173, %v3312
    %v3316 = vadd.f32 %v3174, %v3314
    %v3317 = vlaneseq
    %v3318 = vshrl.u32 %v3317, 7
    %v3319 = vsub.s32 2, %v3318
    %v3320 = vrot.slane %v426, %v3319
    %v3321 = vmul.f32 %v3312, %v3320
    %v3322 = vmul.f32 %v3314, %v3320
    %v3323 = vadd.f32 %v3181, %v3321
    %v3324 = vadd.f32 %v3182, %v3322
    %v3325 = vlaneseq
    %v3326 = vshrl.u32 %v3325, 7
    %v3327 = vsub.s32 2, %v3326
    %v3328 = vrot.slane %v524, %v3327
    %v3329 = vmul.f32 %v3312, %v3328
    %v3330 = vmul.f32 %v3314, %v3328
    %v3331 = vadd.f32 %v3189, %v3329
    %v3332 = vadd.f32 %v3190, %v3330
    %v3333 = vlaneseq
    %v3334 = vshrl.u32 %v3333, 7
    %v3335 = vsub.s32 2, %v3334
    %v3336 = vrot.slane %v622, %v3335
    %v3337 = vmul.f32 %v3312, %v3336
    %v3338 = vmul.f32 %v3314, %v3336
    %v3339 = vadd.f32 %v3197, %v3337
    %v3340 = vadd.f32 %v3198, %v3338
    %v3341 = vlaneseq
    %v3342 = vshrl.u32 %v3341, 7
    %v3343 = vsub.s32 2, %v3342
    %v3344 = vrot.slane %v720, %v3343
    %v3345 = vmul.f32 %v3312, %v3344
    %v3346 = vmul.f32 %v3314, %v3344
    %v3347 = vadd.f32 %v3205, %v3345
    %v3348 = vadd.f32 %v3206, %v3346
    %v3349 = vlaneseq
    %v3350 = vshrl.u32 %v3349, 7
    %v3351 = vsub.s32 2, %v3350
    %v3352 = vrot.slane %v818, %v3351
    %v3353 = vmul.f32 %v3312, %v3352
    %v3354 = vmul.f32 %v3314, %v3352
    %v3355 = vadd.f32 %v3213, %v3353
    %v3356 = vadd.f32 %v3214, %v3354
    %v3357 = vlaneseq
    %v3358 = vshrl.u32 %v3357, 7
    %v3359 = vsub.s32 2, %v3358
    %v3360 = vrot.slane %v916, %v3359
    %v3361 = vmul.f32 %v3312, %v3360
    %v3362 = vmul.f32 %v3314, %v3360
    %v3363 = vadd.f32 %v3221, %v3361
    %v3364 = vadd.f32 %v3222, %v3362
    %v3365 = vlaneseq
    %v3366 = vshrl.u32 %v3365, 7
    %v3367 = vsub.s32 2, %v3366
    %v3368 = vrot.slane %v1014, %v3367
    %v3369 = vmul.f32 %v3312, %v3368
    %v3370 = vmul.f32 %v3314, %v3368
    %v3371 = vadd.f32 %v3229, %v3369
    %v3372 = vadd.f32 %v3230, %v3370
    %v3373 = vlaneseq
    %v3374 = vshrl.u32 %v3373, 7
    %v3375 = vsub.s32 2, %v3374
    %v3376 = vrot.slane %v1112, %v3375
    %v3377 = vmul.f32 %v3312, %v3376
    %v3378 = vmul.f32 %v3314, %v3376
    %v3379 = vadd.f32 %v3237, %v3377
    %v3380 = vadd.f32 %v3238, %v3378
    %v3381 = vlaneseq
    %v3382 = vshrl.u32 %v3381, 7
    %v3383 = vsub.s32 2, %v3382
    %v3384 = vrot.slane %v1210, %v3383
    %v3385 = vmul.f32 %v3312, %v3384
    %v3386 = vmul.f32 %v3314, %v3384
    %v3387 = vadd.f32 %v3245, %v3385
    %v3388 = vadd.f32 %v3246, %v3386
    %v3389 = vlaneseq
    %v3390 = vshrl.u32 %v3389, 7
    %v3391 = vsub.s32 2, %v3390
    %v3392 = vrot.slane %v1308, %v3391
    %v3393 = vmul.f32 %v3312, %v3392
    %v3394 = vmul.f32 %v3314, %v3392
    %v3395 = vadd.f32 %v3253, %v3393
    %v3396 = vadd.f32 %v3254, %v3394
    %v3397 = vlaneseq
    %v3398 = vshrl.u32 %v3397, 7
    %v3399 = vsub.s32 2, %v3398
    %v3400 = vrot.slane %v1406, %v3399
    %v3401 = vmul.f32 %v3312, %v3400
    %v3402 = vmul.f32 %v3314, %v3400
    %v3403 = vadd.f32 %v3261, %v3401
    %v3404 = vadd.f32 %v3262, %v3402
    %v3405 = vlaneseq
    %v3406 = vshrl.u32 %v3405, 7
    %v3407 = vsub.s32 2, %v3406
    %v3408 = vrot.slane %v1504, %v3407
    %v3409 = vmul.f32 %v3312, %v3408
    %v3410 = vmul.f32 %v3314, %v3408
    %v3411 = vadd.f32 %v3269, %v3409
    %v3412 = vadd.f32 %v3270, %v3410
    %v3413 = vlaneseq
    %v3414 = vshrl.u32 %v3413, 7
    %v3415 = vsub.s32 2, %v3414
    %v3416 = vrot.slane %v1602, %v3415
    %v3417 = vmul.f32 %v3312, %v3416
    %v3418 = vmul.f32 %v3314, %v3416
    %v3419 = vadd.f32 %v3277, %v3417
    %v3420 = vadd.f32 %v3278, %v3418
    %v3421 = vlaneseq
    %v3422 = vshrl.u32 %v3421, 7
    %v3423 = vsub.s32 2, %v3422
    %v3424 = vrot.slane %v1700, %v3423
    %v3425 = vmul.f32 %v3312, %v3424
    %v3426 = vmul.f32 %v3314, %v3424
    %v3427 = vadd.f32 %v3285, %v3425
    %v3428 = vadd.f32 %v3286, %v3426
    %v3429 = vlaneseq
    %v3430 = vshrl.u32 %v3429, 7
    %v3431 = vsub.s32 2, %v3430
    %v3432 = vrot.slane %v1798, %v3431
    %v3433 = vmul.f32 %v3312, %v3432
    %v3434 = vmul.f32 %v3314, %v3432
    %v3435 = vadd.f32 %v3293, %v3433
    %v3436 = vadd.f32 %v3294, %v3434
    %v3437 = vlaneseq
    %v3438 = vshrl.u32 %v3437, 7
    %v3439 = vsub.s32 2, %v3438
    %v3440 = vrot.slane %v1896, %v3439
    %v3441 = vmul.f32 %v3312, %v3440
    %v3442 = vmul.f32 %v3314, %v3440
    %v3443 = vadd.f32 %v3301, %v3441
    %v3444 = vadd.f32 %v3302, %v3442
    %v3445 = vlaneseq
    %v3446 = vshrl.u32 %v3445, 7
    %v3447 = vsub.s32 3, %v3446
    %v3448 = vrot.slane %v328, %v3447
    %v3449 = vmul.f32 %v321, %v3448
    %v3450 = vmul.f32 %v322, %v3448
    %v3451 = vsub.f32 %v3449, %v1915
    %v3452 = vsub.f32 %v3450, %v1916
    %v3453 = vmul.f32 %v3451, 1.442695
    %v3454 = vpow.pop %v3453
    %v3455 = vmul.f32 %v3452, 1.442695
    %v3456 = vpow.pop %v3455
    %v3457 = vadd.f32 %v3315, %v3454
    %v3458 = vadd.f32 %v3316, %v3456
    %v3459 = vlaneseq
    %v3460 = vshrl.u32 %v3459, 7
    %v3461 = vsub.s32 3, %v3460
    %v3462 = vrot.slane %v426, %v3461
    %v3463 = vmul.f32 %v3454, %v3462
    %v3464 = vmul.f32 %v3456, %v3462
    %v3465 = vadd.f32 %v3323, %v3463
    %v3466 = vadd.f32 %v3324, %v3464
    %v3467 = vlaneseq
    %v3468 = vshrl.u32 %v3467, 7
    %v3469 = vsub.s32 3, %v3468
    %v3470 = vrot.slane %v524, %v3469
    %v3471 = vmul.f32 %v3454, %v3470
    %v3472 = vmul.f32 %v3456, %v3470
    %v3473 = vadd.f32 %v3331, %v3471
    %v3474 = vadd.f32 %v3332, %v3472
    %v3475 = vlaneseq
    %v3476 = vshrl.u32 %v3475, 7
    %v3477 = vsub.s32 3, %v3476
    %v3478 = vrot.slane %v622, %v3477
    %v3479 = vmul.f32 %v3454, %v3478
    %v3480 = vmul.f32 %v3456, %v3478
    %v3481 = vadd.f32 %v3339, %v3479
    %v3482 = vadd.f32 %v3340, %v3480
    %v3483 = vlaneseq
    %v3484 = vshrl.u32 %v3483, 7
    %v3485 = vsub.s32 3, %v3484
    %v3486 = vrot.slane %v720, %v3485
    %v3487 = vmul.f32 %v3454, %v3486
    %v3488 = vmul.f32 %v3456, %v3486
    %v3489 = vadd.f32 %v3347, %v3487
    %v3490 = vadd.f32 %v3348, %v3488
    %v3491 = vlaneseq
    %v3492 = vshrl.u32 %v3491, 7
    %v3493 = vsub.s32 3, %v3492
    %v3494 = vrot.slane %v818, %v3493
    %v3495 = vmul.f32 %v3454, %v3494
    %v3496 = vmul.f32 %v3456, %v3494
    %v3497 = vadd.f32 %v3355, %v3495
    %v3498 = vadd.f32 %v3356, %v3496
    %v3499 = vlaneseq
    %v3500 = vshrl.u32 %v3499, 7
    %v3501 = vsub.s32 3, %v3500
    %v3502 = vrot.slane %v916, %v3501
    %v3503 = vmul.f32 %v3454, %v3502
    %v3504 = vmul.f32 %v3456, %v3502
    %v3505 = vadd.f32 %v3363, %v3503
    %v3506 = vadd.f32 %v3364, %v3504
    %v3507 = vlaneseq
    %v3508 = vshrl.u32 %v3507, 7
    %v3509 = vsub.s32 3, %v3508
    %v3510 = vrot.slane %v1014, %v3509
    %v3511 = vmul.f32 %v3454, %v3510
    %v3512 = vmul.f32 %v3456, %v3510
    %v3513 = vadd.f32 %v3371, %v3511
    %v3514 = vadd.f32 %v3372, %v3512
    %v3515 = vlaneseq
    %v3516 = vshrl.u32 %v3515, 7
    %v3517 = vsub.s32 3, %v3516
    %v3518 = vrot.slane %v1112, %v3517
    %v3519 = vmul.f32 %v3454, %v3518
    %v3520 = vmul.f32 %v3456, %v3518
    %v3521 = vadd.f32 %v3379, %v3519
    %v3522 = vadd.f32 %v3380, %v3520
    %v3523 = vlaneseq
    %v3524 = vshrl.u32 %v3523, 7
    %v3525 = vsub.s32 3, %v3524
    %v3526 = vrot.slane %v1210, %v3525
    %v3527 = vmul.f32 %v3454, %v3526
    %v3528 = vmul.f32 %v3456, %v3526
    %v3529 = vadd.f32 %v3387, %v3527
    %v3530 = vadd.f32 %v3388, %v3528
    %v3531 = vlaneseq
    %v3532 = vshrl.u32 %v3531, 7
    %v3533 = vsub.s32 3, %v3532
    %v3534 = vrot.slane %v1308, %v3533
    %v3535 = vmul.f32 %v3454, %v3534
    %v3536 = vmul.f32 %v3456, %v3534
    %v3537 = vadd.f32 %v3395, %v3535
    %v3538 = vadd.f32 %v3396, %v3536
    %v3539 = vlaneseq
    %v3540 = vshrl.u32 %v3539, 7
    %v3541 = vsub.s32 3, %v3540
    %v3542 = vrot.slane %v1406, %v3541
    %v3543 = vmul.f32 %v3454, %v3542
    %v3544 = vmul.f32 %v3456, %v3542
    %v3545 = vadd.f32 %v3403, %v3543
    %v3546 = vadd.f32 %v3404, %v3544
    %v3547 = vlaneseq
    %v3548 = vshrl.u32 %v3547, 7
    %v3549 = vsub.s32 3, %v3548
    %v3550 = vrot.slane %v1504, %v3549
    %v3551 = vmul.f32 %v3454, %v3550
    %v3552 = vmul.f32 %v3456, %v3550
    %v3553 = vadd.f32 %v3411, %v3551
    %v3554 = vadd.f32 %v3412, %v3552
    %v3555 = vlaneseq
    %v3556 = vshrl.u32 %v3555, 7
    %v3557 = vsub.s32 3, %v3556
    %v3558 = vrot.slane %v1602, %v3557
    %v3559 = vmul.f32 %v3454, %v3558
    %v3560 = vmul.f32 %v3456, %v3558
    %v3561 = vadd.f32 %v3419, %v3559
    %v3562 = vadd.f32 %v3420, %v3560
    %v3563 = vlaneseq
    %v3564 = vshrl.u32 %v3563, 7
    %v3565 = vsub.s32 3, %v3564
    %v3566 = vrot.slane %v1700, %v3565
    %v3567 = vmul.f32 %v3454, %v3566
    %v3568 = vmul.f32 %v3456, %v3566
    %v3569 = vadd.f32 %v3427, %v3567
    %v3570 = vadd.f32 %v3428, %v3568
    %v3571 = vlaneseq
    %v3572 = vshrl.u32 %v3571, 7
    %v3573 = vsub.s32 3, %v3572
    %v3574 = vrot.slane %v1798, %v3573
    %v3575 = vmul.f32 %v3454, %v3574
    %v3576 = vmul.f32 %v3456, %v3574
    %v3577 = vadd.f32 %v3435, %v3575
    %v3578 = vadd.f32 %v3436, %v3576
    %v3579 = vlaneseq
    %v3580 = vshrl.u32 %v3579, 7
    %v3581 = vsub.s32 3, %v3580
    %v3582 = vrot.slane %v1896, %v3581
    %v3583 = vmul.f32 %v3454, %v3582
    %v3584 = vmul.f32 %v3456, %v3582
    %v3585 = vadd.f32 %v3443, %v3583
    %v3586 = vadd.f32 %v3444, %v3584
    %v3587 = vlaneseq
    %v3588 = vshrl.u32 %v3587, 7
    %v3589 = vsub.s32 4, %v3588
    %v3590 = vrot.slane %v328, %v3589
    %v3591 = vmul.f32 %v321, %v3590
    %v3592 = vmul.f32 %v322, %v3590
    %v3593 = vsub.f32 %v3591, %v1915
    %v3594 = vsub.f32 %v3592, %v1916
    %v3595 = vmul.f32 %v3593, 1.442695
    %v3596 = vpow.pop %v3595
    %v3597 = vmul.f32 %v3594, 1.442695
    %v3598 = vpow.pop %v3597
    %v3599 = vadd.f32 %v3457, %v3596
    %v3600 = vadd.f32 %v3458, %v3598
    %v3601 = vlaneseq
    %v3602 = vshrl.u32 %v3601, 7
    %v3603 = vsub.s32 4, %v3602
    %v3604 = vrot.slane %v426, %v3603
    %v3605 = vmul.f32 %v3596, %v3604
    %v3606 = vmul.f32 %v3598, %v3604
    %v3607 = vadd.f32 %v3465, %v3605
    %v3608 = vadd.f32 %v3466, %v3606
    %v3609 = vlaneseq
    %v3610 = vshrl.u32 %v3609, 7
    %v3611 = vsub.s32 4, %v3610
    %v3612 = vrot.slane %v524, %v3611
    %v3613 = vmul.f32 %v3596, %v3612
    %v3614 = vmul.f32 %v3598, %v3612
    %v3615 = vadd.f32 %v3473, %v3613
    %v3616 = vadd.f32 %v3474, %v3614
    %v3617 = vlaneseq
    %v3618 = vshrl.u32 %v3617, 7
    %v3619 = vsub.s32 4, %v3618
    %v3620 = vrot.slane %v622, %v3619
    %v3621 = vmul.f32 %v3596, %v3620
    %v3622 = vmul.f32 %v3598, %v3620
    %v3623 = vadd.f32 %v3481, %v3621
    %v3624 = vadd.f32 %v3482, %v3622
    %v3625 = vlaneseq
    %v3626 = vshrl.u32 %v3625, 7
    %v3627 = vsub.s32 4, %v3626
    %v3628 = vrot.slane %v720, %v3627
    %v3629 = vmul.f32 %v3596, %v3628
    %v3630 = vmul.f32 %v3598, %v3628
    %v3631 = vadd.f32 %v3489, %v3629
    %v3632 = vadd.f32 %v3490, %v3630
    %v3633 = vlaneseq
    %v3634 = vshrl.u32 %v3633, 7
    %v3635 = vsub.s32 4, %v3634
    %v3636 = vrot.slane %v818, %v3635
    %v3637 = vmul.f32 %v3596, %v3636
    %v3638 = vmul.f32 %v3598, %v3636
    %v3639 = vadd.f32 %v3497, %v3637
    %v3640 = vadd.f32 %v3498, %v3638
    %v3641 = vlaneseq
    %v3642 = vshrl.u32 %v3641, 7
    %v3643 = vsub.s32 4, %v3642
    %v3644 = vrot.slane %v916, %v3643
    %v3645 = vmul.f32 %v3596, %v3644
    %v3646 = vmul.f32 %v3598, %v3644
    %v3647 = vadd.f32 %v3505, %v3645
    %v3648 = vadd.f32 %v3506, %v3646
    %v3649 = vlaneseq
    %v3650 = vshrl.u32 %v3649, 7
    %v3651 = vsub.s32 4, %v3650
    %v3652 = vrot.slane %v1014, %v3651
    %v3653 = vmul.f32 %v3596, %v3652
    %v3654 = vmul.f32 %v3598, %v3652
    %v3655 = vadd.f32 %v3513, %v3653
    %v3656 = vadd.f32 %v3514, %v3654
    %v3657 = vlaneseq
    %v3658 = vshrl.u32 %v3657, 7
    %v3659 = vsub.s32 4, %v3658
    %v3660 = vrot.slane %v1112, %v3659
    %v3661 = vmul.f32 %v3596, %v3660
    %v3662 = vmul.f32 %v3598, %v3660
    %v3663 = vadd.f32 %v3521, %v3661
    %v3664 = vadd.f32 %v3522, %v3662
    %v3665 = vlaneseq
    %v3666 = vshrl.u32 %v3665, 7
    %v3667 = vsub.s32 4, %v3666
    %v3668 = vrot.slane %v1210, %v3667
    %v3669 = vmul.f32 %v3596, %v3668
    %v3670 = vmul.f32 %v3598, %v3668
    %v3671 = vadd.f32 %v3529, %v3669
    %v3672 = vadd.f32 %v3530, %v3670
    %v3673 = vlaneseq
    %v3674 = vshrl.u32 %v3673, 7
    %v3675 = vsub.s32 4, %v3674
    %v3676 = vrot.slane %v1308, %v3675
    %v3677 = vmul.f32 %v3596, %v3676
    %v3678 = vmul.f32 %v3598, %v3676
    %v3679 = vadd.f32 %v3537, %v3677
    %v3680 = vadd.f32 %v3538, %v3678
    %v3681 = vlaneseq
    %v3682 = vshrl.u32 %v3681, 7
    %v3683 = vsub.s32 4, %v3682
    %v3684 = vrot.slane %v1406, %v3683
    %v3685 = vmul.f32 %v3596, %v3684
    %v3686 = vmul.f32 %v3598, %v3684
    %v3687 = vadd.f32 %v3545, %v3685
    %v3688 = vadd.f32 %v3546, %v3686
    %v3689 = vlaneseq
    %v3690 = vshrl.u32 %v3689, 7
    %v3691 = vsub.s32 4, %v3690
    %v3692 = vrot.slane %v1504, %v3691
    %v3693 = vmul.f32 %v3596, %v3692
    %v3694 = vmul.f32 %v3598, %v3692
    %v3695 = vadd.f32 %v3553, %v3693
    %v3696 = vadd.f32 %v3554, %v3694
    %v3697 = vlaneseq
    %v3698 = vshrl.u32 %v3697, 7
    %v3699 = vsub.s32 4, %v3698
    %v3700 = vrot.slane %v1602, %v3699
    %v3701 = vmul.f32 %v3596, %v3700
    %v3702 = vmul.f32 %v3598, %v3700
    %v3703 = vadd.f32 %v3561, %v3701
    %v3704 = vadd.f32 %v3562, %v3702
    %v3705 = vlaneseq
    %v3706 = vshrl.u32 %v3705, 7
    %v3707 = vsub.s32 4, %v3706
    %v3708 = vrot.slane %v1700, %v3707
    %v3709 = vmul.f32 %v3596, %v3708
    %v3710 = vmul.f32 %v3598, %v3708
    %v3711 = vadd.f32 %v3569, %v3709
    %v3712 = vadd.f32 %v3570, %v3710
    %v3713 = vlaneseq
    %v3714 = vshrl.u32 %v3713, 7
    %v3715 = vsub.s32 4, %v3714
    %v3716 = vrot.slane %v1798, %v3715
    %v3717 = vmul.f32 %v3596, %v3716
    %v3718 = vmul.f32 %v3598, %v3716
    %v3719 = vadd.f32 %v3577, %v3717
    %v3720 = vadd.f32 %v3578, %v3718
    %v3721 = vlaneseq
    %v3722 = vshrl.u32 %v3721, 7
    %v3723 = vsub.s32 4, %v3722
    %v3724 = vrot.slane %v1896, %v3723
    %v3725 = vmul.f32 %v3596, %v3724
    %v3726 = vmul.f32 %v3598, %v3724
    %v3727 = vadd.f32 %v3585, %v3725
    %v3728 = vadd.f32 %v3586, %v3726
    %v3729 = vlaneseq
    %v3730 = vshrl.u32 %v3729, 7
    %v3731 = vsub.s32 5, %v3730
    %v3732 = vrot.slane %v328, %v3731
    %v3733 = vmul.f32 %v321, %v3732
    %v3734 = vmul.f32 %v322, %v3732
    %v3735 = vsub.f32 %v3733, %v1915
    %v3736 = vsub.f32 %v3734, %v1916
    %v3737 = vmul.f32 %v3735, 1.442695
    %v3738 = vpow.pop %v3737
    %v3739 = vmul.f32 %v3736, 1.442695
    %v3740 = vpow.pop %v3739
    %v3741 = vadd.f32 %v3599, %v3738
    %v3742 = vadd.f32 %v3600, %v3740
    %v3743 = vlaneseq
    %v3744 = vshrl.u32 %v3743, 7
    %v3745 = vsub.s32 5, %v3744
    %v3746 = vrot.slane %v426, %v3745
    %v3747 = vmul.f32 %v3738, %v3746
    %v3748 = vmul.f32 %v3740, %v3746
    %v3749 = vadd.f32 %v3607, %v3747
    %v3750 = vadd.f32 %v3608, %v3748
    %v3751 = vlaneseq
    %v3752 = vshrl.u32 %v3751, 7
    %v3753 = vsub.s32 5, %v3752
    %v3754 = vrot.slane %v524, %v3753
    %v3755 = vmul.f32 %v3738, %v3754
    %v3756 = vmul.f32 %v3740, %v3754
    %v3757 = vadd.f32 %v3615, %v3755
    %v3758 = vadd.f32 %v3616, %v3756
    %v3759 = vlaneseq
    %v3760 = vshrl.u32 %v3759, 7
    %v3761 = vsub.s32 5, %v3760
    %v3762 = vrot.slane %v622, %v3761
    %v3763 = vmul.f32 %v3738, %v3762
    %v3764 = vmul.f32 %v3740, %v3762
    %v3765 = vadd.f32 %v3623, %v3763
    %v3766 = vadd.f32 %v3624, %v3764
    %v3767 = vlaneseq
    %v3768 = vshrl.u32 %v3767, 7
    %v3769 = vsub.s32 5, %v3768
    %v3770 = vrot.slane %v720, %v3769
    %v3771 = vmul.f32 %v3738, %v3770
    %v3772 = vmul.f32 %v3740, %v3770
    %v3773 = vadd.f32 %v3631, %v3771
    %v3774 = vadd.f32 %v3632, %v3772
    %v3775 = vlaneseq
    %v3776 = vshrl.u32 %v3775, 7
    %v3777 = vsub.s32 5, %v3776
    %v3778 = vrot.slane %v818, %v3777
    %v3779 = vmul.f32 %v3738, %v3778
    %v3780 = vmul.f32 %v3740, %v3778
    %v3781 = vadd.f32 %v3639, %v3779
    %v3782 = vadd.f32 %v3640, %v3780
    %v3783 = vlaneseq
    %v3784 = vshrl.u32 %v3783, 7
    %v3785 = vsub.s32 5, %v3784
    %v3786 = vrot.slane %v916, %v3785
    %v3787 = vmul.f32 %v3738, %v3786
    %v3788 = vmul.f32 %v3740, %v3786
    %v3789 = vadd.f32 %v3647, %v3787
    %v3790 = vadd.f32 %v3648, %v3788
    %v3791 = vlaneseq
    %v3792 = vshrl.u32 %v3791, 7
    %v3793 = vsub.s32 5, %v3792
    %v3794 = vrot.slane %v1014, %v3793
    %v3795 = vmul.f32 %v3738, %v3794
    %v3796 = vmul.f32 %v3740, %v3794
    %v3797 = vadd.f32 %v3655, %v3795
    %v3798 = vadd.f32 %v3656, %v3796
    %v3799 = vlaneseq
    %v3800 = vshrl.u32 %v3799, 7
    %v3801 = vsub.s32 5, %v3800
    %v3802 = vrot.slane %v1112, %v3801
    %v3803 = vmul.f32 %v3738, %v3802
    %v3804 = vmul.f32 %v3740, %v3802
    %v3805 = vadd.f32 %v3663, %v3803
    %v3806 = vadd.f32 %v3664, %v3804
    %v3807 = vlaneseq
    %v3808 = vshrl.u32 %v3807, 7
    %v3809 = vsub.s32 5, %v3808
    %v3810 = vrot.slane %v1210, %v3809
    %v3811 = vmul.f32 %v3738, %v3810
    %v3812 = vmul.f32 %v3740, %v3810
    %v3813 = vadd.f32 %v3671, %v3811
    %v3814 = vadd.f32 %v3672, %v3812
    %v3815 = vlaneseq
    %v3816 = vshrl.u32 %v3815, 7
    %v3817 = vsub.s32 5, %v3816
    %v3818 = vrot.slane %v1308, %v3817
    %v3819 = vmul.f32 %v3738, %v3818
    %v3820 = vmul.f32 %v3740, %v3818
    %v3821 = vadd.f32 %v3679, %v3819
    %v3822 = vadd.f32 %v3680, %v3820
    %v3823 = vlaneseq
    %v3824 = vshrl.u32 %v3823, 7
    %v3825 = vsub.s32 5, %v3824
    %v3826 = vrot.slane %v1406, %v3825
    %v3827 = vmul.f32 %v3738, %v3826
    %v3828 = vmul.f32 %v3740, %v3826
    %v3829 = vadd.f32 %v3687, %v3827
    %v3830 = vadd.f32 %v3688, %v3828
    %v3831 = vlaneseq
    %v3832 = vshrl.u32 %v3831, 7
    %v3833 = vsub.s32 5, %v3832
    %v3834 = vrot.slane %v1504, %v3833
    %v3835 = vmul.f32 %v3738, %v3834
    %v3836 = vmul.f32 %v3740, %v3834
    %v3837 = vadd.f32 %v3695, %v3835
    %v3838 = vadd.f32 %v3696, %v3836
    %v3839 = vlaneseq
    %v3840 = vshrl.u32 %v3839, 7
    %v3841 = vsub.s32 5, %v3840
    %v3842 = vrot.slane %v1602, %v3841
    %v3843 = vmul.f32 %v3738, %v3842
    %v3844 = vmul.f32 %v3740, %v3842
    %v3845 = vadd.f32 %v3703, %v3843
    %v3846 = vadd.f32 %v3704, %v3844
    %v3847 = vlaneseq
    %v3848 = vshrl.u32 %v3847, 7
    %v3849 = vsub.s32 5, %v3848
    %v3850 = vrot.slane %v1700, %v3849
    %v3851 = vmul.f32 %v3738, %v3850
    %v3852 = vmul.f32 %v3740, %v3850
    %v3853 = vadd.f32 %v3711, %v3851
    %v3854 = vadd.f32 %v3712, %v3852
    %v3855 = vlaneseq
    %v3856 = vshrl.u32 %v3855, 7
    %v3857 = vsub.s32 5, %v3856
    %v3858 = vrot.slane %v1798, %v3857
    %v3859 = vmul.f32 %v3738, %v3858
    %v3860 = vmul.f32 %v3740, %v3858
    %v3861 = vadd.f32 %v3719, %v3859
    %v3862 = vadd.f32 %v3720, %v3860
    %v3863 = vlaneseq
    %v3864 = vshrl.u32 %v3863, 7
    %v3865 = vsub.s32 5, %v3864
    %v3866 = vrot.slane %v1896, %v3865
    %v3867 = vmul.f32 %v3738, %v3866
    %v3868 = vmul.f32 %v3740, %v3866
    %v3869 = vadd.f32 %v3727, %v3867
    %v3870 = vadd.f32 %v3728, %v3868
    %v3871 = vlaneseq
    %v3872 = vshrl.u32 %v3871, 7
    %v3873 = vsub.s32 6, %v3872
    %v3874 = vrot.slane %v328, %v3873
    %v3875 = vmul.f32 %v321, %v3874
    %v3876 = vmul.f32 %v322, %v3874
    %v3877 = vsub.f32 %v3875, %v1915
    %v3878 = vsub.f32 %v3876, %v1916
    %v3879 = vmul.f32 %v3877, 1.442695
    %v3880 = vpow.pop %v3879
    %v3881 = vmul.f32 %v3878, 1.442695
    %v3882 = vpow.pop %v3881
    %v3883 = vadd.f32 %v3741, %v3880
    %v3884 = vadd.f32 %v3742, %v3882
    %v3885 = vlaneseq
    %v3886 = vshrl.u32 %v3885, 7
    %v3887 = vsub.s32 6, %v3886
    %v3888 = vrot.slane %v426, %v3887
    %v3889 = vmul.f32 %v3880, %v3888
    %v3890 = vmul.f32 %v3882, %v3888
    %v3891 = vadd.f32 %v3749, %v3889
    %v3892 = vadd.f32 %v3750, %v3890
    %v3893 = vlaneseq
    %v3894 = vshrl.u32 %v3893, 7
    %v3895 = vsub.s32 6, %v3894
    %v3896 = vrot.slane %v524, %v3895
    %v3897 = vmul.f32 %v3880, %v3896
    %v3898 = vmul.f32 %v3882, %v3896
    %v3899 = vadd.f32 %v3757, %v3897
    %v3900 = vadd.f32 %v3758, %v3898
    %v3901 = vlaneseq
    %v3902 = vshrl.u32 %v3901, 7
    %v3903 = vsub.s32 6, %v3902
    %v3904 = vrot.slane %v622, %v3903
    %v3905 = vmul.f32 %v3880, %v3904
    %v3906 = vmul.f32 %v3882, %v3904
    %v3907 = vadd.f32 %v3765, %v3905
    %v3908 = vadd.f32 %v3766, %v3906
    %v3909 = vlaneseq
    %v3910 = vshrl.u32 %v3909, 7
    %v3911 = vsub.s32 6, %v3910
    %v3912 = vrot.slane %v720, %v3911
    %v3913 = vmul.f32 %v3880, %v3912
    %v3914 = vmul.f32 %v3882, %v3912
    %v3915 = vadd.f32 %v3773, %v3913
    %v3916 = vadd.f32 %v3774, %v3914
    %v3917 = vlaneseq
    %v3918 = vshrl.u32 %v3917, 7
    %v3919 = vsub.s32 6, %v3918
    %v3920 = vrot.slane %v818, %v3919
    %v3921 = vmul.f32 %v3880, %v3920
    %v3922 = vmul.f32 %v3882, %v3920
    %v3923 = vadd.f32 %v3781, %v3921
    %v3924 = vadd.f32 %v3782, %v3922
    %v3925 = vlaneseq
    %v3926 = vshrl.u32 %v3925, 7
    %v3927 = vsub.s32 6, %v3926
    %v3928 = vrot.slane %v916, %v3927
    %v3929 = vmul.f32 %v3880, %v3928
    %v3930 = vmul.f32 %v3882, %v3928
    %v3931 = vadd.f32 %v3789, %v3929
    %v3932 = vadd.f32 %v3790, %v3930
    %v3933 = vlaneseq
    %v3934 = vshrl.u32 %v3933, 7
    %v3935 = vsub.s32 6, %v3934
    %v3936 = vrot.slane %v1014, %v3935
    %v3937 = vmul.f32 %v3880, %v3936
    %v3938 = vmul.f32 %v3882, %v3936
    %v3939 = vadd.f32 %v3797, %v3937
    %v3940 = vadd.f32 %v3798, %v3938
    %v3941 = vlaneseq
    %v3942 = vshrl.u32 %v3941, 7
    %v3943 = vsub.s32 6, %v3942
    %v3944 = vrot.slane %v1112, %v3943
    %v3945 = vmul.f32 %v3880, %v3944
    %v3946 = vmul.f32 %v3882, %v3944
    %v3947 = vadd.f32 %v3805, %v3945
    %v3948 = vadd.f32 %v3806, %v3946
    %v3949 = vlaneseq
    %v3950 = vshrl.u32 %v3949, 7
    %v3951 = vsub.s32 6, %v3950
    %v3952 = vrot.slane %v1210, %v3951
    %v3953 = vmul.f32 %v3880, %v3952
    %v3954 = vmul.f32 %v3882, %v3952
    %v3955 = vadd.f32 %v3813, %v3953
    %v3956 = vadd.f32 %v3814, %v3954
    %v3957 = vlaneseq
    %v3958 = vshrl.u32 %v3957, 7
    %v3959 = vsub.s32 6, %v3958
    %v3960 = vrot.slane %v1308, %v3959
    %v3961 = vmul.f32 %v3880, %v3960
    %v3962 = vmul.f32 %v3882, %v3960
    %v3963 = vadd.f32 %v3821, %v3961
    %v3964 = vadd.f32 %v3822, %v3962
    %v3965 = vlaneseq
    %v3966 = vshrl.u32 %v3965, 7
    %v3967 = vsub.s32 6, %v3966
    %v3968 = vrot.slane %v1406, %v3967
    %v3969 = vmul.f32 %v3880, %v3968
    %v3970 = vmul.f32 %v3882, %v3968
    %v3971 = vadd.f32 %v3829, %v3969
    %v3972 = vadd.f32 %v3830, %v3970
    %v3973 = vlaneseq
    %v3974 = vshrl.u32 %v3973, 7
    %v3975 = vsub.s32 6, %v3974
    %v3976 = vrot.slane %v1504, %v3975
    %v3977 = vmul.f32 %v3880, %v3976
    %v3978 = vmul.f32 %v3882, %v3976
    %v3979 = vadd.f32 %v3837, %v3977
    %v3980 = vadd.f32 %v3838, %v3978
    %v3981 = vlaneseq
    %v3982 = vshrl.u32 %v3981, 7
    %v3983 = vsub.s32 6, %v3982
    %v3984 = vrot.slane %v1602, %v3983
    %v3985 = vmul.f32 %v3880, %v3984
    %v3986 = vmul.f32 %v3882, %v3984
    %v3987 = vadd.f32 %v3845, %v3985
    %v3988 = vadd.f32 %v3846, %v3986
    %v3989 = vlaneseq
    %v3990 = vshrl.u32 %v3989, 7
    %v3991 = vsub.s32 6, %v3990
    %v3992 = vrot.slane %v1700, %v3991
    %v3993 = vmul.f32 %v3880, %v3992
    %v3994 = vmul.f32 %v3882, %v3992
    %v3995 = vadd.f32 %v3853, %v3993
    %v3996 = vadd.f32 %v3854, %v3994
    %v3997 = vlaneseq
    %v3998 = vshrl.u32 %v3997, 7
    %v3999 = vsub.s32 6, %v3998
    %v4000 = vrot.slane %v1798, %v3999
    %v4001 = vmul.f32 %v3880, %v4000
    %v4002 = vmul.f32 %v3882, %v4000
    %v4003 = vadd.f32 %v3861, %v4001
    %v4004 = vadd.f32 %v3862, %v4002
    %v4005 = vlaneseq
    %v4006 = vshrl.u32 %v4005, 7
    %v4007 = vsub.s32 6, %v4006
    %v4008 = vrot.slane %v1896, %v4007
    %v4009 = vmul.f32 %v3880, %v4008
    %v4010 = vmul.f32 %v3882, %v4008
    %v4011 = vadd.f32 %v3869, %v4009
    %v4012 = vadd.f32 %v3870, %v4010
    %v4013 = vlaneseq
    %v4014 = vshrl.u32 %v4013, 7
    %v4015 = vsub.s32 7, %v4014
    %v4016 = vrot.slane %v328, %v4015
    %v4017 = vmul.f32 %v321, %v4016
    %v4018 = vmul.f32 %v322, %v4016
    %v4019 = vsub.f32 %v4017, %v1915
    %v4020 = vsub.f32 %v4018, %v1916
    %v4021 = vmul.f32 %v4019, 1.442695
    %v4022 = vpow.pop %v4021
    %v4023 = vmul.f32 %v4020, 1.442695
    %v4024 = vpow.pop %v4023
    %v4025 = vadd.f32 %v3883, %v4022
    %v4026 = vadd.f32 %v3884, %v4024
    %v4027 = vlaneseq
    %v4028 = vshrl.u32 %v4027, 7
    %v4029 = vsub.s32 7, %v4028
    %v4030 = vrot.slane %v426, %v4029
    %v4031 = vmul.f32 %v4022, %v4030
    %v4032 = vmul.f32 %v4024, %v4030
    %v4033 = vadd.f32 %v3891, %v4031
    %v4034 = vadd.f32 %v3892, %v4032
    %v4035 = vlaneseq
    %v4036 = vshrl.u32 %v4035, 7
    %v4037 = vsub.s32 7, %v4036
    %v4038 = vrot.slane %v524, %v4037
    %v4039 = vmul.f32 %v4022, %v4038
    %v4040 = vmul.f32 %v4024, %v4038
    %v4041 = vadd.f32 %v3899, %v4039
    %v4042 = vadd.f32 %v3900, %v4040
    %v4043 = vlaneseq
    %v4044 = vshrl.u32 %v4043, 7
    %v4045 = vsub.s32 7, %v4044
    %v4046 = vrot.slane %v622, %v4045
    %v4047 = vmul.f32 %v4022, %v4046
    %v4048 = vmul.f32 %v4024, %v4046
    %v4049 = vadd.f32 %v3907, %v4047
    %v4050 = vadd.f32 %v3908, %v4048
    %v4051 = vlaneseq
    %v4052 = vshrl.u32 %v4051, 7
    %v4053 = vsub.s32 7, %v4052
    %v4054 = vrot.slane %v720, %v4053
    %v4055 = vmul.f32 %v4022, %v4054
    %v4056 = vmul.f32 %v4024, %v4054
    %v4057 = vadd.f32 %v3915, %v4055
    %v4058 = vadd.f32 %v3916, %v4056
    %v4059 = vlaneseq
    %v4060 = vshrl.u32 %v4059, 7
    %v4061 = vsub.s32 7, %v4060
    %v4062 = vrot.slane %v818, %v4061
    %v4063 = vmul.f32 %v4022, %v4062
    %v4064 = vmul.f32 %v4024, %v4062
    %v4065 = vadd.f32 %v3923, %v4063
    %v4066 = vadd.f32 %v3924, %v4064
    %v4067 = vlaneseq
    %v4068 = vshrl.u32 %v4067, 7
    %v4069 = vsub.s32 7, %v4068
    %v4070 = vrot.slane %v916, %v4069
    %v4071 = vmul.f32 %v4022, %v4070
    %v4072 = vmul.f32 %v4024, %v4070
    %v4073 = vadd.f32 %v3931, %v4071
    %v4074 = vadd.f32 %v3932, %v4072
    %v4075 = vlaneseq
    %v4076 = vshrl.u32 %v4075, 7
    %v4077 = vsub.s32 7, %v4076
    %v4078 = vrot.slane %v1014, %v4077
    %v4079 = vmul.f32 %v4022, %v4078
    %v4080 = vmul.f32 %v4024, %v4078
    %v4081 = vadd.f32 %v3939, %v4079
    %v4082 = vadd.f32 %v3940, %v4080
    %v4083 = vlaneseq
    %v4084 = vshrl.u32 %v4083, 7
    %v4085 = vsub.s32 7, %v4084
    %v4086 = vrot.slane %v1112, %v4085
    %v4087 = vmul.f32 %v4022, %v4086
    %v4088 = vmul.f32 %v4024, %v4086
    %v4089 = vadd.f32 %v3947, %v4087
    %v4090 = vadd.f32 %v3948, %v4088
    %v4091 = vlaneseq
    %v4092 = vshrl.u32 %v4091, 7
    %v4093 = vsub.s32 7, %v4092
    %v4094 = vrot.slane %v1210, %v4093
    %v4095 = vmul.f32 %v4022, %v4094
    %v4096 = vmul.f32 %v4024, %v4094
    %v4097 = vadd.f32 %v3955, %v4095
    %v4098 = vadd.f32 %v3956, %v4096
    %v4099 = vlaneseq
    %v4100 = vshrl.u32 %v4099, 7
    %v4101 = vsub.s32 7, %v4100
    %v4102 = vrot.slane %v1308, %v4101
    %v4103 = vmul.f32 %v4022, %v4102
    %v4104 = vmul.f32 %v4024, %v4102
    %v4105 = vadd.f32 %v3963, %v4103
    %v4106 = vadd.f32 %v3964, %v4104
    %v4107 = vlaneseq
    %v4108 = vshrl.u32 %v4107, 7
    %v4109 = vsub.s32 7, %v4108
    %v4110 = vrot.slane %v1406, %v4109
    %v4111 = vmul.f32 %v4022, %v4110
    %v4112 = vmul.f32 %v4024, %v4110
    %v4113 = vadd.f32 %v3971, %v4111
    %v4114 = vadd.f32 %v3972, %v4112
    %v4115 = vlaneseq
    %v4116 = vshrl.u32 %v4115, 7
    %v4117 = vsub.s32 7, %v4116
    %v4118 = vrot.slane %v1504, %v4117
    %v4119 = vmul.f32 %v4022, %v4118
    %v4120 = vmul.f32 %v4024, %v4118
    %v4121 = vadd.f32 %v3979, %v4119
    %v4122 = vadd.f32 %v3980, %v4120
    %v4123 = vlaneseq
    %v4124 = vshrl.u32 %v4123, 7
    %v4125 = vsub.s32 7, %v4124
    %v4126 = vrot.slane %v1602, %v4125
    %v4127 = vmul.f32 %v4022, %v4126
    %v4128 = vmul.f32 %v4024, %v4126
    %v4129 = vadd.f32 %v3987, %v4127
    %v4130 = vadd.f32 %v3988, %v4128
    %v4131 = vlaneseq
    %v4132 = vshrl.u32 %v4131, 7
    %v4133 = vsub.s32 7, %v4132
    %v4134 = vrot.slane %v1700, %v4133
    %v4135 = vmul.f32 %v4022, %v4134
    %v4136 = vmul.f32 %v4024, %v4134
    %v4137 = vadd.f32 %v3995, %v4135
    %v4138 = vadd.f32 %v3996, %v4136
    %v4139 = vlaneseq
    %v4140 = vshrl.u32 %v4139, 7
    %v4141 = vsub.s32 7, %v4140
    %v4142 = vrot.slane %v1798, %v4141
    %v4143 = vmul.f32 %v4022, %v4142
    %v4144 = vmul.f32 %v4024, %v4142
    %v4145 = vadd.f32 %v4003, %v4143
    %v4146 = vadd.f32 %v4004, %v4144
    %v4147 = vlaneseq
    %v4148 = vshrl.u32 %v4147, 7
    %v4149 = vsub.s32 7, %v4148
    %v4150 = vrot.slane %v1896, %v4149
    %v4151 = vmul.f32 %v4022, %v4150
    %v4152 = vmul.f32 %v4024, %v4150
    %v4153 = vadd.f32 %v4011, %v4151
    %v4154 = vadd.f32 %v4012, %v4152
    %v4155 = vrcp.pop %v4025
    %v4156 = vrcp.pop %v4026
    %v4157 = vmul.f32 %v4025, %v4155
    %v4158 = vmul.f32 %v4026, %v4156
    %v4159 = vsub.f32 2.0, %v4157
    %v4160 = vsub.f32 2.0, %v4158
    %v4161 = vmul.f32 %v4155, %v4159
    %v4162 = vmul.f32 %v4156, %v4160
    %v4163 = vmul.f32 %v4033, %v4161
    %v4164 = vmul.f32 %v4034, %v4162
    %4165 = vst [vmem:[%s6] sm:$0xff] %v4163
    %4166 = vst [vmem:[%s6 + $0x8] sm:$0xff] %v4164
    %v4167 = vmul.f32 %v4041, %v4161
    %v4168 = vmul.f32 %v4042, %v4162
    %s4169 = scalar_lea.vmem %s6, 16
    %4170 = vst [vmem:[%s4169] sm:$0xff] %v4167
    %4171 = vst [vmem:[%s4169 + $0x8] sm:$0xff] %v4168
    %v4172 = vmul.f32 %v4049, %v4161
    %v4173 = vmul.f32 %v4050, %v4162
    %s4174 = scalar_lea.vmem %s6, 32
    %4175 = vst [vmem:[%s4174] sm:$0xff] %v4172
    %4176 = vst [vmem:[%s4174 + $0x8] sm:$0xff] %v4173
    %v4177 = vmul.f32 %v4057, %v4161
    %v4178 = vmul.f32 %v4058, %v4162
    %s4179 = scalar_lea.vmem %s6, 48
    %4180 = vst [vmem:[%s4179] sm:$0xff] %v4177
    %4181 = vst [vmem:[%s4179 + $0x8] sm:$0xff] %v4178
    %v4182 = vmul.f32 %v4065, %v4161
    %v4183 = vmul.f32 %v4066, %v4162
    %s4184 = scalar_lea.vmem %s6, 64
    %4185 = vst [vmem:[%s4184] sm:$0xff] %v4182
    %4186 = vst [vmem:[%s4184 + $0x8] sm:$0xff] %v4183
    %v4187 = vmul.f32 %v4073, %v4161
    %v4188 = vmul.f32 %v4074, %v4162
    %s4189 = scalar_lea.vmem %s6, 80
    %4190 = vst [vmem:[%s4189] sm:$0xff] %v4187
    %4191 = vst [vmem:[%s4189 + $0x8] sm:$0xff] %v4188
    %v4192 = vmul.f32 %v4081, %v4161
    %v4193 = vmul.f32 %v4082, %v4162
    %s4194 = scalar_lea.vmem %s6, 96
    %4195 = vst [vmem:[%s4194] sm:$0xff] %v4192
    %4196 = vst [vmem:[%s4194 + $0x8] sm:$0xff] %v4193
    %v4197 = vmul.f32 %v4089, %v4161
    %v4198 = vmul.f32 %v4090, %v4162
    %s4199 = scalar_lea.vmem %s6, 112
    %4200 = vst [vmem:[%s4199] sm:$0xff] %v4197
    %4201 = vst [vmem:[%s4199 + $0x8] sm:$0xff] %v4198
    %v4202 = vmul.f32 %v4097, %v4161
    %v4203 = vmul.f32 %v4098, %v4162
    %s4204 = scalar_lea.vmem %s6, 128
    %4205 = vst [vmem:[%s4204] sm:$0xff] %v4202
    %4206 = vst [vmem:[%s4204 + $0x8] sm:$0xff] %v4203
    %v4207 = vmul.f32 %v4105, %v4161
    %v4208 = vmul.f32 %v4106, %v4162
    %s4209 = scalar_lea.vmem %s6, 144
    %4210 = vst [vmem:[%s4209] sm:$0xff] %v4207
    %4211 = vst [vmem:[%s4209 + $0x8] sm:$0xff] %v4208
    %v4212 = vmul.f32 %v4113, %v4161
    %v4213 = vmul.f32 %v4114, %v4162
    %s4214 = scalar_lea.vmem %s6, 160
    %4215 = vst [vmem:[%s4214] sm:$0xff] %v4212
    %4216 = vst [vmem:[%s4214 + $0x8] sm:$0xff] %v4213
    %v4217 = vmul.f32 %v4121, %v4161
    %v4218 = vmul.f32 %v4122, %v4162
    %s4219 = scalar_lea.vmem %s6, 176
    %4220 = vst [vmem:[%s4219] sm:$0xff] %v4217
    %4221 = vst [vmem:[%s4219 + $0x8] sm:$0xff] %v4218
    %v4222 = vmul.f32 %v4129, %v4161
    %v4223 = vmul.f32 %v4130, %v4162
    %s4224 = scalar_lea.vmem %s6, 192
    %4225 = vst [vmem:[%s4224] sm:$0xff] %v4222
    %4226 = vst [vmem:[%s4224 + $0x8] sm:$0xff] %v4223
    %v4227 = vmul.f32 %v4137, %v4161
    %v4228 = vmul.f32 %v4138, %v4162
    %s4229 = scalar_lea.vmem %s6, 208
    %4230 = vst [vmem:[%s4229] sm:$0xff] %v4227
    %4231 = vst [vmem:[%s4229 + $0x8] sm:$0xff] %v4228
    %v4232 = vmul.f32 %v4145, %v4161
    %v4233 = vmul.f32 %v4146, %v4162
    %s4234 = scalar_lea.vmem %s6, 224
    %4235 = vst [vmem:[%s4234] sm:$0xff] %v4232
    %4236 = vst [vmem:[%s4234 + $0x8] sm:$0xff] %v4233
    %v4237 = vmul.f32 %v4153, %v4161
    %v4238 = vmul.f32 %v4154, %v4162
    %s4239 = scalar_lea.vmem %s6, 240
    %4240 = vst [vmem:[%s4239] sm:$0xff] %v4237
    %4241 = vst [vmem:[%s4239 + $0x8] sm:$0xff] %v4238
    // Predicated region
    $region46: #{kdim_self_attention.1} parent=1 // pred_check
      _
    $region47: #{kdim_self_attention.1} parent=1 // pred_check_branch
      %4243 = sbr.rel (0) target = $region49
    $region48: #{kdim_self_attention.1} parent=1 // pred_region
      _
    $region49: #{kdim_self_attention.1} parent=1 // pred_fallthru
      _
    // Predicated region
    $region50: #{kdim_self_attention.1} parent=1 // pred_check
      _
    $region51: #{kdim_self_attention.1} parent=1 // pred_check_branch
      %4245 = sbr.rel (0) target = $region53
    $region52: #{kdim_self_attention.1} parent=1 // pred_region
      _
    $region53: #{kdim_self_attention.1} parent=1 // pred_fallthru
      _
    %4246 = vsyncpa [#allocation3], 1
    %4247 = vsyncpa [#allocation5], 1
    %4248 = vsyncpa [#allocation8], 1

</llo_original>
